<compile_context>
chip_gen: v7x
topology: tpu7x:2x2x1
jax: 0.10.0
libtpu: 0.0.40
codegen_flags: <defaults>
</compile_context>

<pallas_src>
import functools

import jax
import jax.numpy as jnp
from jax.experimental import pallas as pl
from jax.experimental.pallas import tpu as pltpu


# ---------------------------------------------------------------------------
# Pallas kernels
# ---------------------------------------------------------------------------

def up_matmul_kernel(x_ref, w_ref, o_ref):
    """ConvTranspose2d(k=2,s=2) channel mixing as one bf16 matmul.

    x_ref: (1, Ci, H*W) bf16, w_ref: (4*Co, Ci) bf16, o_ref: (1, 4*Co, H*W) bf16.
    Row e of the output is offset/channel e = (dy*2+dx)*Co + o.
    """
    acc = jnp.dot(w_ref[...], x_ref[0], preferred_element_type=jnp.float32)
    o_ref[0] = acc.astype(o_ref.dtype)


def resize_kernel(y_ref, rh_ref, rw_ref, b_ref, o_ref):
    """Bilinear (align_corners=True) resize with the 2x2 de-interleave folded
    into per-offset column subsets of the resize matrices.

    y_ref : (1, E, H, W) bf16   E = 4*Co, e = (dy*2+dx)*Co + o
    rh_ref: (E, Hc, H)   bf16   RH[:, dy::2] for the e's dy
    rw_ref: (E, W, Wc)   bf16   RW[:, dx::2].T for the e's dx
    b_ref : (Co, 1, 1)   f32    conv-transpose bias (resize-invariant)
    o_ref : (1, Co, Hc, Wc) bf16
    """
    y = y_ref[0]                                                   # (E, H, W)
    z1 = jnp.einsum('ekh,ehw->ekw', rh_ref[...], y,
                    preferred_element_type=jnp.float32)            # (E, Hc, W)
    z2 = jnp.einsum('ekw,ewc->ekc', z1.astype(jnp.bfloat16), rw_ref[...],
                    preferred_element_type=jnp.float32)            # (E, Hc, Wc)
    co = o_ref.shape[1]
    xr = z2[0:co] + z2[co:2 * co] + z2[2 * co:3 * co] + z2[3 * co:4 * co]
    xr = xr + b_ref[...]
    o_ref[0] = xr.astype(o_ref.dtype)


def fused_conv_kernel(xc_ref, xr_ref, w1c_ref, w1u_ref, w2_ref,
                      ss1_ref, ss2_ref, border_ref, o_ref, h1_scr,
                      *, tap_starts, window, margin):
    """concat + Conv3x3 + BN + ReLU + Conv3x3 + BN + ReLU, fully fused.

    Inputs are zero-padded flat "slabs": the (Hc+2)x(Wc+2) padded image is
    flattened and surrounded by a margin of zeros so every 3x3 tap is a plain
    static-offset load of length `window`.  The channel concat is implicit:
    conv1's weights are split into the x_copy block (w1c) and the upsampled
    block (w1u) and both matmuls accumulate into the same f32 accumulator.

    xc_ref : (1, Cc, Pbuf) bf16,  xr_ref: (1, Co, Pbuf) bf16
    w1c_ref: (9, Co, Cc) bf16,    w1u_ref/w2_ref: (9, Co, Co) bf16
    ss1/ss2: (2, Co, 1) f32       folded eval-mode BN [scale; shift]
    border : (1, Pp) f32          1 on real pixels, 0 on the 1-pixel pad ring
    o_ref  : (1, Co, Pp) f32      (wrapper strips the pad ring)
    h1_scr : VMEM (Co, Pbuf) bf16 scratch (stages h1 for conv2's taps)
    """
    pp = window
    m = margin

    # ---- conv1 (+ implicit channel concat) ---------------------------------
    acc = jnp.zeros(o_ref.shape[1:], jnp.float32)                  # (Co, Pp)
    for t, st in enumerate(tap_starts):
        xc_s = xc_ref[0, :, st:st + pp]                            # (Cc, Pp) bf16
        xr_s = xr_ref[0, :, st:st + pp]                            # (Co, Pp) bf16
        acc = acc + jnp.dot(w1c_ref[t], xc_s, preferred_element_type=jnp.float32)
        acc = acc + jnp.dot(w1u_ref[t], xr_s, preferred_element_type=jnp.float32)
    h1 = jnp.maximum(acc * ss1_ref[0] + ss1_ref[1], 0.0)           # BN + ReLU (f32)
    h1 = h1 * border_ref[...]                                      # restore zero pad ring

    # Stage h1 (bf16) into a zero-margined VMEM slab for conv2's taps.
    h1_scr[...] = jnp.zeros(h1_scr.shape, h1_scr.dtype)
    h1_scr[:, m:m + pp] = h1.astype(h1_scr.dtype)

    # ---- conv2 --------------------------------------------------------------
    acc2 = jnp.zeros(o_ref.shape[1:], jnp.float32)
    for t, st in enumerate(tap_starts):
        h1_s = h1_scr[:, st:st + pp]                               # (Co, Pp) bf16
        acc2 = acc2 + jnp.dot(w2_ref[t], h1_s, preferred_element_type=jnp.float32)
    out = jnp.maximum(acc2 * ss2_ref[0] + ss2_ref[1], 0.0)
    o_ref[0] = out


# ---------------------------------------------------------------------------
# Glue helpers (plain JAX, tiny constants / contiguous reshapes only)
# ---------------------------------------------------------------------------

def bilinear_matrix(out_size, in_size):
    """Row-stochastic matrix M s.t. y = M @ x is 1-D bilinear resize,
    matching PyTorch align_corners=True."""
    if out_size == 1:
        return jnp.zeros((1, in_size), jnp.float32).at[0, 0].set(1.0)
    src = jnp.arange(out_size, dtype=jnp.float32) * (in_size - 1) / (out_size - 1)
    i0 = jnp.clip(jnp.floor(src).astype(jnp.int32), 0, in_size - 1)
    i1 = jnp.clip(i0 + 1, 0, in_size - 1)
    frac = src - i0.astype(jnp.float32)
    m = jnp.zeros((out_size, in_size), jnp.float32)
    rows = jnp.arange(out_size)
    m = m.at[rows, i0].add(1.0 - frac)
    m = m.at[rows, i1].add(frac)
    return m


def fold_bn(conv_bias, gamma, beta, mean, var, eps=1e-5):
    """Fold conv bias + eval-mode BatchNorm into per-channel scale/shift."""
    scale = gamma / jnp.sqrt(var + eps)
    shift = scale * (conv_bias - mean) + beta
    return jnp.stack([scale, shift], axis=0).reshape(2, -1, 1).astype(jnp.float32)


# ---------------------------------------------------------------------------
# decoder: parameter init + forward
# ---------------------------------------------------------------------------

def init_decoder_params(key, in_channels, out_channels):
    ks = jax.random.split(key, 10)
    p = {}
    # ConvTranspose2d(in, out, k=2, s=2): weight (in, out, 2, 2), bias (out,)
    p["up_w"] = 0.1 * jax.random.normal(ks[0], (in_channels, out_channels, 2, 2), jnp.float32)
    p["up_b"] = 0.1 * jax.random.normal(ks[1], (out_channels,), jnp.float32)
    # Conv2d(in, out, 3, pad=1)
    p["c1_w"] = 0.1 * jax.random.normal(ks[2], (out_channels, in_channels, 3, 3), jnp.float32)
    p["c1_b"] = 0.1 * jax.random.normal(ks[3], (out_channels,), jnp.float32)
    p["bn1_gamma"] = 1.0 + 0.1 * jax.random.normal(ks[4], (out_channels,), jnp.float32)
    p["bn1_beta"] = 0.1 * jax.random.normal(ks[5], (out_channels,), jnp.float32)
    p["bn1_mean"] = 0.1 * jax.random.normal(ks[6], (out_channels,), jnp.float32)
    p["bn1_var"] = 0.5 + jax.random.uniform(ks[7], (out_channels,), jnp.float32)
    # Conv2d(out, out, 3, pad=1)
    p["c2_w"] = 0.1 * jax.random.normal(ks[8], (out_channels, out_channels, 3, 3), jnp.float32)
    p["c2_b"] = 0.1 * jax.random.normal(ks[9], (out_channels,), jnp.float32)
    p["bn2_gamma"] = jnp.ones((out_channels,), jnp.float32)
    p["bn2_beta"] = jnp.zeros((out_channels,), jnp.float32)
    p["bn2_mean"] = jnp.zeros((out_channels,), jnp.float32)
    p["bn2_var"] = jnp.ones((out_channels,), jnp.float32)
    return p


def decoder_forward(params, x_copy, x):
    """Matches `decoder.forward(x_copy, x, interpolate=True)` (NCHW in/out)."""
    f32, bf16 = jnp.float32, jnp.bfloat16
    N, Ci, H, W = x.shape
    _, Cc, Hc, Wc = x_copy.shape
    Co = params["up_b"].shape[0]
    E = 4 * Co
    par = pltpu.CompilerParams(dimension_semantics=("parallel",))

    # ---- 1) ConvTranspose2d(k=2,s=2) channel mixing (bias added post-resize) ----
    # out[n, (dy,dx,o), h, w] = sum_ci up_w[ci, o, dy, dx] * x[n, ci, h, w]
    wup = jnp.transpose(params["up_w"], (2, 3, 1, 0)).reshape(E, Ci).astype(bf16)
    x_flat = x.astype(bf16).reshape(N, Ci, H * W)
    y = pl.pallas_call(
        up_matmul_kernel,
        out_shape=jax.ShapeDtypeStruct((N, E, H * W), bf16),
        grid=(N,),
        in_specs=[
            pl.BlockSpec((1, Ci, H * W), lambda n: (n, 0, 0)),
            pl.BlockSpec((E, Ci), lambda n: (0, 0)),
        ],
        out_specs=pl.BlockSpec((1, E, H * W), lambda n: (n, 0, 0)),
        compiler_params=par,
    )(x_flat, wup)
    y4 = y.reshape(N, E, H, W)   # contiguous (lane split done HBM-side, ~free)

    # ---- 2) bilinear resize to x_copy size, de-interleave folded into the matrices ----
    RH = bilinear_matrix(Hc, 2 * H)                                 # (Hc, 2H)
    RW = bilinear_matrix(Wc, 2 * W)                                 # (Wc, 2W)
    rh_pair = jnp.stack([RH[:, 0::2], RH[:, 1::2]], axis=0)         # (2, Hc, H)  by dy
    rw_pair = jnp.stack([RW[:, 0::2].T, RW[:, 1::2].T], axis=0)     # (2, W, Wc)  by dx
    rhb = jnp.repeat(rh_pair[jnp.array([0, 0, 1, 1])], Co, axis=0).astype(bf16)  # (E, Hc, H)
    rwb = jnp.repeat(rw_pair[jnp.array([0, 1, 0, 1])], Co, axis=0).astype(bf16)  # (E, W, Wc)
    b_up = params["up_b"].reshape(Co, 1, 1).astype(f32)

    x_rs = pl.pallas_call(
        resize_kernel,
        out_shape=jax.ShapeDtypeStruct((N, Co, Hc, Wc), bf16),
        grid=(N,),
        in_specs=[
            pl.BlockSpec((1, E, H, W), lambda n: (n, 0, 0, 0)),
            pl.BlockSpec((E, Hc, H), lambda n: (0, 0, 0)),
            pl.BlockSpec((E, W, Wc), lambda n: (0, 0, 0)),
            pl.BlockSpec((Co, 1, 1), lambda n: (0, 0, 0)),
        ],
        out_specs=pl.BlockSpec((1, Co, Hc, Wc), lambda n: (n, 0, 0, 0)),
        compiler_params=par,
    )(y4, rhb, rwb, b_up)

    # ---- 3) fused concat + (Conv3x3 + BN + ReLU) x 2 --------------------------
    Hp, Wp = Hc + 2, Wc + 2
    Pp = Hp * Wp                       # padded flat image length
    M = Wp + 1                         # slab margin so every tap is in-bounds
    Pbuf = Pp + 2 * M
    tap_starts = tuple(M + (ky - 1) * Wp + (kx - 1)
                       for ky in range(3) for kx in range(3))

    def to_slab(img):
        # (N, C, Hc, Wc) -> zero-padded flat slab (N, C, Pbuf), bf16
        p = jnp.pad(img, ((0, 0), (0, 0), (1, 1), (1, 1)))
        p = p.reshape(img.shape[0], img.shape[1], Pp)
        p = jnp.pad(p, ((0, 0), (0, 0), (M, M)))
        return p.astype(bf16)

    xc_buf = to_slab(x_copy)           # skip connection (first Cc cat channels)
    xr_buf = to_slab(x_rs)             # upsampled features (last Co cat channels)

    w1c = jnp.transpose(params["c1_w"][:, :Cc], (2, 3, 0, 1)).reshape(9, Co, Cc).astype(bf16)
    w1u = jnp.transpose(params["c1_w"][:, Cc:], (2, 3, 0, 1)).reshape(9, Co, Co).astype(bf16)
    w2 = jnp.transpose(params["c2_w"], (2, 3, 0, 1)).reshape(9, Co, Co).astype(bf16)
    ss1 = fold_bn(params["c1_b"], params["bn1_gamma"], params["bn1_beta"],
                  params["bn1_mean"], params["bn1_var"])
    ss2 = fold_bn(params["c2_b"], params["bn2_gamma"], params["bn2_beta"],
                  params["bn2_mean"], params["bn2_var"])
    border = jnp.zeros((Hp, Wp), f32).at[1:Hc + 1, 1:Wc + 1].set(1.0).reshape(1, Pp)

    kern = functools.partial(fused_conv_kernel, tap_starts=tap_starts,
                             window=Pp, margin=M)
    out = pl.pallas_call(
        kern,
        out_shape=jax.ShapeDtypeStruct((N, Co, Pp), f32),
        grid=(N,),
        in_specs=[
            pl.BlockSpec((1, Cc, Pbuf), lambda n: (n, 0, 0)),
            pl.BlockSpec((1, Co, Pbuf), lambda n: (n, 0, 0)),
            pl.BlockSpec((9, Co, Cc), lambda n: (0, 0, 0)),
            pl.BlockSpec((9, Co, Co), lambda n: (0, 0, 0)),
            pl.BlockSpec((9, Co, Co), lambda n: (0, 0, 0)),
            pl.BlockSpec((2, Co, 1), lambda n: (0, 0, 0)),
            pl.BlockSpec((2, Co, 1), lambda n: (0, 0, 0)),
            pl.BlockSpec((1, Pp), lambda n: (0, 0)),
        ],
        out_specs=pl.BlockSpec((1, Co, Pp), lambda n: (n, 0, 0)),
        scratch_shapes=[pltpu.VMEM((Co, Pbuf), bf16)],
        compiler_params=par,
    )(xc_buf, xr_buf, w1c, w1u, w2, ss1, ss2, border)

    # strip the pad ring; output stays NCHW
    out = out.reshape(N, Co, Hp, Wp)[:, :, 1:Hc + 1, 1:Wc + 1]
    return out


# ---------------------------------------------------------------------------
# Main
# ---------------------------------------------------------------------------

if __name__ == "__main__":
    in_channels, out_channels = 8, 4
    N = 2
    key = jax.random.PRNGKey(0)
    k_params, k_xc, k_x = jax.random.split(key, 3)

    params = init_decoder_params(k_params, in_channels, out_channels)

    # x_copy: skip connection with (in_channels - out_channels) channels,
    # larger spatial size; x: coarse feature map with in_channels channels.
    x_copy = jax.random.normal(k_xc, (N, in_channels - out_channels, 16, 16), jnp.float32)
    x = jax.random.normal(k_x, (N, in_channels, 7, 7), jnp.float32)

    out = jax.jit(decoder_forward)(params, x_copy, x)
    out = jax.block_until_ready(out)

    assert out.shape == (N, out_channels, 16, 16), out.shape
    assert bool(jnp.all(jnp.isfinite(out))), "non-finite values in output"
    print("KERNEL_OK")
</pallas_src>

<mosaic_0001>
module attributes {stable_mosaic.version = 11 : i64} {
  func.func private @main(%arg0: i32) attributes {dimension_semantics = [#tpu.dimension_semantics<core_parallel>], iteration_bounds = array<i64: 2>, tpu.core_type = #tpu.core_type<sc_scalar_subcore>, window_params = []} {
    return
  }
}

module attributes {stable_mosaic.version = 11 : i64} {
  func.func private @main(%arg0: i32) attributes {dimension_semantics = [#tpu.dimension_semantics<core_parallel>], iteration_bounds = array<i64: 2>, tpu.core_type = #tpu.core_type<sc_scalar_subcore>, window_params = []} {
    return
  }
}

module attributes {stable_mosaic.version = 11 : i64} {
  func.func @up_matmul_kernel(%arg0: i32, %arg1: memref<1x8x49xbf16, #tpu.memory_space<vmem>>, %arg2: memref<16x8xbf16, #tpu.memory_space<vmem>>, %arg3: memref<1x16x49xbf16, #tpu.memory_space<vmem>>) attributes {dimension_semantics = [#tpu.dimension_semantics<parallel>], iteration_bounds = array<i64: 2>, scalar_prefetch = 0 : i64, scratch_operands = 0 : i64, tpu.core_type = #tpu.core_type<tc>, window_params = [{transform_indices = @transform_0, window_bounds = array<i64: 1, 8, 49>}, {pipeline_mode = #tpu.pipeline_mode<synchronous>, transform_indices = @transform_1, window_bounds = array<i64: 16, 8>}, {transform_indices = @transform_2, window_bounds = array<i64: 1, 16, 49>}]} {
    %c0 = arith.constant 0 : index
    %c0_0 = arith.constant 0 : index
    %0 = vector.load %arg2[%c0, %c0_0] : memref<16x8xbf16, #tpu.memory_space<vmem>>, vector<16x8xbf16>
    %c0_1 = arith.constant 0 : index
    %c0_2 = arith.constant 0 : index
    %c0_3 = arith.constant 0 : index
    %1 = vector.load %arg1[%c0_1, %c0_2, %c0_3] : memref<1x8x49xbf16, #tpu.memory_space<vmem>>, vector<1x8x49xbf16>
    %2 = vector.shape_cast %1 : vector<1x8x49xbf16> to vector<8x49xbf16>
    %cst = arith.constant dense<0.000000e+00> : vector<16x49xf32>
    %3 = tpu.matmul %0, %2, %cst {dimension_numbers = #tpu.dot_dimension_numbers<[1], [0], [0], [1], [0, 0, 1, 1], [], []>} : vector<16x8xbf16>, vector<8x49xbf16>, vector<16x49xf32> -> vector<16x49xf32>
    %4 = arith.truncf %3 : vector<16x49xf32> to vector<16x49xbf16>
    %c0_4 = arith.constant 0 : index
    %c0_5 = arith.constant 0 : index
    %c0_6 = arith.constant 0 : index
    %5 = vector.load %arg3[%c0_4, %c0_5, %c0_6] : memref<1x16x49xbf16, #tpu.memory_space<vmem>>, vector<1x16x49xbf16>
    %6 = vector.shape_cast %5 : vector<1x16x49xbf16> to vector<16x49xbf16>
    %7 = vector.shape_cast %4 : vector<16x49xbf16> to vector<1x16x49xbf16>
    tpu.vector_store %arg3[%c0_4, %c0_5, %c0_6], %7 {strides = array<i32>} : memref<1x16x49xbf16, #tpu.memory_space<vmem>>, vector<1x16x49xbf16>,
    return
  }
  func.func @transform_0(%arg0: i32) -> (i32, i32, i32) {
    %c0_i32 = arith.constant 0 : i32
    %c0_i32_0 = arith.constant 0 : i32
    %c0_i32_1 = arith.constant 0 : i32
    return %arg0, %c0_i32, %c0_i32_0 : i32, i32, i32
  }
  func.func @transform_1(%arg0: i32) -> (i32, i32) {
    %c0_i32 = arith.constant 0 : i32
    %c0_i32_0 = arith.constant 0 : i32
    %c0_i32_1 = arith.constant 0 : i32
    return %c0_i32, %c0_i32_0 : i32, i32
  }
  func.func @transform_2(%arg0: i32) -> (i32, i32, i32) {
    %c0_i32 = arith.constant 0 : i32
    %c0_i32_0 = arith.constant 0 : i32
    %c0_i32_1 = arith.constant 0 : i32
    return %arg0, %c0_i32, %c0_i32_0 : i32, i32, i32
  }
}

module attributes {stable_mosaic.version = 11 : i64} {
  func.func @resize_kernel(%arg0: i32, %arg1: memref<1x16x7x7xbf16, #tpu.memory_space<vmem>>, %arg2: memref<16x16x7xbf16, #tpu.memory_space<vmem>>, %arg3: memref<16x7x16xbf16, #tpu.memory_space<vmem>>, %arg4: memref<4x1x1xf32, #tpu.memory_space<vmem>>, %arg5: memref<1x4x16x16xbf16, #tpu.memory_space<vmem>>) attributes {dimension_semantics = [#tpu.dimension_semantics<parallel>], iteration_bounds = array<i64: 2>, scalar_prefetch = 0 : i64, scratch_operands = 0 : i64, tpu.core_type = #tpu.core_type<tc>, window_params = [{transform_indices = @transform_0, window_bounds = array<i64: 1, 16, 7, 7>}, {pipeline_mode = #tpu.pipeline_mode<synchronous>, transform_indices = @transform_1, window_bounds = array<i64: 16, 16, 7>}, {pipeline_mode = #tpu.pipeline_mode<synchronous>, transform_indices = @transform_2, window_bounds = array<i64: 16, 7, 16>}, {pipeline_mode = #tpu.pipeline_mode<synchronous>, transform_indices = @transform_3, window_bounds = array<i64: 4, 1, 1>}, {transform_indices = @transform_4, window_bounds = array<i64: 1, 4, 16, 16>}]} {
    %c0 = arith.constant 0 : index
    %c0_0 = arith.constant 0 : index
    %c0_1 = arith.constant 0 : index
    %c0_2 = arith.constant 0 : index
    %0 = vector.load %arg1[%c0, %c0_0, %c0_1, %c0_2] : memref<1x16x7x7xbf16, #tpu.memory_space<vmem>>, vector<1x16x7x7xbf16>
    %1 = vector.shape_cast %0 : vector<1x16x7x7xbf16> to vector<16x7x7xbf16>
    %c0_3 = arith.constant 0 : index
    %c0_4 = arith.constant 0 : index
    %c0_5 = arith.constant 0 : index
    %2 = vector.load %arg2[%c0_3, %c0_4, %c0_5] : memref<16x16x7xbf16, #tpu.memory_space<vmem>>, vector<16x16x7xbf16>
    "tpu.trace_start"() <{level = 10 : i32, message = "ekh,ehw->ekw"}> : () -> ()
    %cst = arith.constant dense<0.000000e+00> : vector<16x16x7xf32>
    %3 = tpu.matmul %2, %1, %cst {dimension_numbers = #tpu.dot_dimension_numbers<[2], [1], [1], [2], [0, 0, 0, 1, 1, 2], [0], [0]>} : vector<16x16x7xbf16>, vector<16x7x7xbf16>, vector<16x16x7xf32> -> vector<16x16x7xf32>
    "tpu.trace_stop"() : () -> ()
    %4 = arith.truncf %3 : vector<16x16x7xf32> to vector<16x16x7xbf16>
    %c0_6 = arith.constant 0 : index
    %c0_7 = arith.constant 0 : index
    %c0_8 = arith.constant 0 : index
    %5 = vector.load %arg3[%c0_6, %c0_7, %c0_8] : memref<16x7x16xbf16, #tpu.memory_space<vmem>>, vector<16x7x16xbf16>
    "tpu.trace_start"() <{level = 10 : i32, message = "ekw,ewc->ekc"}> : () -> ()
    %cst_9 = arith.constant dense<0.000000e+00> : vector<16x16x16xf32>
    %6 = tpu.matmul %4, %5, %cst_9 {dimension_numbers = #tpu.dot_dimension_numbers<[2], [1], [1], [2], [0, 0, 0, 1, 1, 2], [0], [0]>} : vector<16x16x7xbf16>, vector<16x7x16xbf16>, vector<16x16x16xf32> -> vector<16x16x16xf32>
    "tpu.trace_stop"() : () -> ()
    %7 = vector.extract_strided_slice %6 {offsets = [0, 0, 0], sizes = [4, 16, 16], strides = [1, 1, 1]} : vector<16x16x16xf32> to vector<4x16x16xf32>
    %8 = vector.extract_strided_slice %6 {offsets = [4, 0, 0], sizes = [4, 16, 16], strides = [1, 1, 1]} : vector<16x16x16xf32> to vector<4x16x16xf32>
    %9 = arith.addf %7, %8 : vector<4x16x16xf32>
    %10 = vector.extract_strided_slice %6 {offsets = [8, 0, 0], sizes = [4, 16, 16], strides = [1, 1, 1]} : vector<16x16x16xf32> to vector<4x16x16xf32>
    %11 = arith.addf %9, %10 : vector<4x16x16xf32>
    %12 = vector.extract_strided_slice %6 {offsets = [12, 0, 0], sizes = [4, 16, 16], strides = [1, 1, 1]} : vector<16x16x16xf32> to vector<4x16x16xf32>
    %13 = arith.addf %11, %12 : vector<4x16x16xf32>
    %c0_10 = arith.constant 0 : index
    %c0_11 = arith.constant 0 : index
    %c0_12 = arith.constant 0 : index
    %14 = vector.load %arg4[%c0_10, %c0_11, %c0_12] : memref<4x1x1xf32, #tpu.memory_space<vmem>>, vector<4x1x1xf32>
    %15 = vector.broadcast %14 : vector<4x1x1xf32> to vector<4x16x16xf32>
    %16 = arith.addf %13, %15 : vector<4x16x16xf32>
    %17 = arith.truncf %16 : vector<4x16x16xf32> to vector<4x16x16xbf16>
    %c0_13 = arith.constant 0 : index
    %c0_14 = arith.constant 0 : index
    %c0_15 = arith.constant 0 : index
    %c0_16 = arith.constant 0 : index
    %18 = vector.load %arg5[%c0_13, %c0_14, %c0_15, %c0_16] : memref<1x4x16x16xbf16, #tpu.memory_space<vmem>>, vector<1x4x16x16xbf16>
    %19 = vector.shape_cast %18 : vector<1x4x16x16xbf16> to vector<4x16x16xbf16>
    %20 = vector.shape_cast %17 : vector<4x16x16xbf16> to vector<1x4x16x16xbf16>
    tpu.vector_store %arg5[%c0_13, %c0_14, %c0_15, %c0_16], %20 {strides = array<i32>} : memref<1x4x16x16xbf16, #tpu.memory_space<vmem>>, vector<1x4x16x16xbf16>,
    return
  }
  func.func @transform_0(%arg0: i32) -> (i32, i32, i32, i32) {
    %c0_i32 = arith.constant 0 : i32
    %c0_i32_0 = arith.constant 0 : i32
    %c0_i32_1 = arith.constant 0 : i32
    %c0_i32_2 = arith.constant 0 : i32
    return %arg0, %c0_i32, %c0_i32_0, %c0_i32_1 : i32, i32, i32, i32
  }
  func.func @transform_1(%arg0: i32) -> (i32, i32, i32) {
    %c0_i32 = arith.constant 0 : i32
    %c0_i32_0 = arith.constant 0 : i32
    %c0_i32_1 = arith.constant 0 : i32
    %c0_i32_2 = arith.constant 0 : i32
    return %c0_i32, %c0_i32_0, %c0_i32_1 : i32, i32, i32
  }
  func.func @transform_2(%arg0: i32) -> (i32, i32, i32) {
    %c0_i32 = arith.constant 0 : i32
    %c0_i32_0 = arith.constant 0 : i32
    %c0_i32_1 = arith.constant 0 : i32
    %c0_i32_2 = arith.constant 0 : i32
    return %c0_i32, %c0_i32_0, %c0_i32_1 : i32, i32, i32
  }
  func.func @transform_3(%arg0: i32) -> (i32, i32, i32) {
    %c0_i32 = arith.constant 0 : i32
    %c0_i32_0 = arith.constant 0 : i32
    %c0_i32_1 = arith.constant 0 : i32
    %c0_i32_2 = arith.constant 0 : i32
    return %c0_i32, %c0_i32_0, %c0_i32_1 : i32, i32, i32
  }
  func.func @transform_4(%arg0: i32) -> (i32, i32, i32, i32) {
    %c0_i32 = arith.constant 0 : i32
    %c0_i32_0 = arith.constant 0 : i32
    %c0_i32_1 = arith.constant 0 : i32
    %c0_i32_2 = arith.constant 0 : i32
    return %arg0, %c0_i32, %c0_i32_0, %c0_i32_1 : i32, i32, i32, i32
  }
}

module attributes {stable_mosaic.version = 11 : i64} {
  func.func @fused_conv_kernel(%arg0: i32, %arg1: memref<1x4x362xbf16, #tpu.memory_space<vmem>>, %arg2: memref<1x4x362xbf16, #tpu.memory_space<vmem>>, %arg3: memref<9x4x4xbf16, #tpu.memory_space<vmem>>, %arg4: memref<9x4x4xbf16, #tpu.memory_space<vmem>>, %arg5: memref<9x4x4xbf16, #tpu.memory_space<vmem>>, %arg6: memref<2x4x1xf32, #tpu.memory_space<vmem>>, %arg7: memref<2x4x1xf32, #tpu.memory_space<vmem>>, %arg8: memref<1x324xf32, #tpu.memory_space<vmem>>, %arg9: memref<1x4x324xf32, #tpu.memory_space<vmem>>, %arg10: memref<4x362xbf16, #tpu.memory_space<vmem>>) attributes {dimension_semantics = [#tpu.dimension_semantics<parallel>], iteration_bounds = array<i64: 2>, scalar_prefetch = 0 : i64, scratch_operands = 1 : i64, tpu.core_type = #tpu.core_type<tc>, window_params = [{transform_indices = @transform_0, window_bounds = array<i64: 1, 4, 362>}, {transform_indices = @transform_1, window_bounds = array<i64: 1, 4, 362>}, {pipeline_mode = #tpu.pipeline_mode<synchronous>, transform_indices = @transform_2, window_bounds = array<i64: 9, 4, 4>}, {pipeline_mode = #tpu.pipeline_mode<synchronous>, transform_indices = @transform_3, window_bounds = array<i64: 9, 4, 4>}, {pipeline_mode = #tpu.pipeline_mode<synchronous>, transform_indices = @transform_4, window_bounds = array<i64: 9, 4, 4>}, {pipeline_mode = #tpu.pipeline_mode<synchronous>, transform_indices = @transform_5, window_bounds = array<i64: 2, 4, 1>}, {pipeline_mode = #tpu.pipeline_mode<synchronous>, transform_indices = @transform_6, window_bounds = array<i64: 2, 4, 1>}, {pipeline_mode = #tpu.pipeline_mode<synchronous>, transform_indices = @transform_7, window_bounds = array<i64: 1, 324>}, {transform_indices = @transform_8, window_bounds = array<i64: 1, 4, 324>}]} {
    %cst = arith.constant 0.000000e+00 : f32
    %0 = vector.broadcast %cst : f32 to vector<4x324xf32>
    %c0 = arith.constant 0 : index
    %c0_0 = arith.constant 0 : index
    %c0_1 = arith.constant 0 : index
    %1 = vector.load %arg1[%c0, %c0_0, %c0_1] : memref<1x4x362xbf16, #tpu.memory_space<vmem>>, vector<1x4x324xbf16>
    %2 = vector.shape_cast %1 : vector<1x4x324xbf16> to vector<4x324xbf16>
    %c0_2 = arith.constant 0 : index
    %c0_3 = arith.constant 0 : index
    %c0_4 = arith.constant 0 : index
    %3 = vector.load %arg2[%c0_2, %c0_3, %c0_4] : memref<1x4x362xbf16, #tpu.memory_space<vmem>>, vector<1x4x324xbf16>
    %4 = vector.shape_cast %3 : vector<1x4x324xbf16> to vector<4x324xbf16>
    %c0_5 = arith.constant 0 : index
    %c0_6 = arith.constant 0 : index
    %c0_7 = arith.constant 0 : index
    %5 = vector.load %arg3[%c0_5, %c0_6, %c0_7] : memref<9x4x4xbf16, #tpu.memory_space<vmem>>, vector<1x4x4xbf16>
    %6 = vector.shape_cast %5 : vector<1x4x4xbf16> to vector<4x4xbf16>
    %cst_8 = arith.constant dense<0.000000e+00> : vector<4x324xf32>
    %7 = tpu.matmul %6, %2, %cst_8 {dimension_numbers = #tpu.dot_dimension_numbers<[1], [0], [0], [1], [0, 0, 1, 1], [], []>} : vector<4x4xbf16>, vector<4x324xbf16>, vector<4x324xf32> -> vector<4x324xf32>
    %8 = arith.addf %0, %7 : vector<4x324xf32>
    %c0_9 = arith.constant 0 : index
    %c0_10 = arith.constant 0 : index
    %c0_11 = arith.constant 0 : index
    %9 = vector.load %arg4[%c0_9, %c0_10, %c0_11] : memref<9x4x4xbf16, #tpu.memory_space<vmem>>, vector<1x4x4xbf16>
    %10 = vector.shape_cast %9 : vector<1x4x4xbf16> to vector<4x4xbf16>
    %cst_12 = arith.constant dense<0.000000e+00> : vector<4x324xf32>
    %11 = tpu.matmul %10, %4, %cst_12 {dimension_numbers = #tpu.dot_dimension_numbers<[1], [0], [0], [1], [0, 0, 1, 1], [], []>} : vector<4x4xbf16>, vector<4x324xbf16>, vector<4x324xf32> -> vector<4x324xf32>
    %12 = arith.addf %8, %11 : vector<4x324xf32>
    %c0_13 = arith.constant 0 : index
    %c0_14 = arith.constant 0 : index
    %c1 = arith.constant 1 : index
    %13 = vector.load %arg1[%c0_13, %c0_14, %c1] : memref<1x4x362xbf16, #tpu.memory_space<vmem>>, vector<1x4x324xbf16>
    %14 = vector.shape_cast %13 : vector<1x4x324xbf16> to vector<4x324xbf16>
    %c0_15 = arith.constant 0 : index
    %c0_16 = arith.constant 0 : index
    %c1_17 = arith.constant 1 : index
    %15 = vector.load %arg2[%c0_15, %c0_16, %c1_17] : memref<1x4x362xbf16, #tpu.memory_space<vmem>>, vector<1x4x324xbf16>
    %16 = vector.shape_cast %15 : vector<1x4x324xbf16> to vector<4x324xbf16>
    %c1_18 = arith.constant 1 : index
    %c0_19 = arith.constant 0 : index
    %c0_20 = arith.constant 0 : index
    %17 = vector.load %arg3[%c1_18, %c0_19, %c0_20] : memref<9x4x4xbf16, #tpu.memory_space<vmem>>, vector<1x4x4xbf16>
    %18 = vector.shape_cast %17 : vector<1x4x4xbf16> to vector<4x4xbf16>
    %cst_21 = arith.constant dense<0.000000e+00> : vector<4x324xf32>
    %19 = tpu.matmul %18, %14, %cst_21 {dimension_numbers = #tpu.dot_dimension_numbers<[1], [0], [0], [1], [0, 0, 1, 1], [], []>} : vector<4x4xbf16>, vector<4x324xbf16>, vector<4x324xf32> -> vector<4x324xf32>
    %20 = arith.addf %12, %19 : vector<4x324xf32>
    %c1_22 = arith.constant 1 : index
    %c0_23 = arith.constant 0 : index
    %c0_24 = arith.constant 0 : index
    %21 = vector.load %arg4[%c1_22, %c0_23, %c0_24] : memref<9x4x4xbf16, #tpu.memory_space<vmem>>, vector<1x4x4xbf16>
    %22 = vector.shape_cast %21 : vector<1x4x4xbf16> to vector<4x4xbf16>
    %cst_25 = arith.constant dense<0.000000e+00> : vector<4x324xf32>
    %23 = tpu.matmul %22, %16, %cst_25 {dimension_numbers = #tpu.dot_dimension_numbers<[1], [0], [0], [1], [0, 0, 1, 1], [], []>} : vector<4x4xbf16>, vector<4x324xbf16>, vector<4x324xf32> -> vector<4x324xf32>
    %24 = arith.addf %20, %23 : vector<4x324xf32>
    %c0_26 = arith.constant 0 : index
    %c0_27 = arith.constant 0 : index
    %c2 = arith.constant 2 : index
    %25 = vector.load %arg1[%c0_26, %c0_27, %c2] : memref<1x4x362xbf16, #tpu.memory_space<vmem>>, vector<1x4x324xbf16>
    %26 = vector.shape_cast %25 : vector<1x4x324xbf16> to vector<4x324xbf16>
    %c0_28 = arith.constant 0 : index
    %c0_29 = arith.constant 0 : index
    %c2_30 = arith.constant 2 : index
    %27 = vector.load %arg2[%c0_28, %c0_29, %c2_30] : memref<1x4x362xbf16, #tpu.memory_space<vmem>>, vector<1x4x324xbf16>
    %28 = vector.shape_cast %27 : vector<1x4x324xbf16> to vector<4x324xbf16>
    %c2_31 = arith.constant 2 : index
    %c0_32 = arith.constant 0 : index
    %c0_33 = arith.constant 0 : index
    %29 = vector.load %arg3[%c2_31, %c0_32, %c0_33] : memref<9x4x4xbf16, #tpu.memory_space<vmem>>, vector<1x4x4xbf16>
    %30 = vector.shape_cast %29 : vector<1x4x4xbf16> to vector<4x4xbf16>
    %cst_34 = arith.constant dense<0.000000e+00> : vector<4x324xf32>
    %31 = tpu.matmul %30, %26, %cst_34 {dimension_numbers = #tpu.dot_dimension_numbers<[1], [0], [0], [1], [0, 0, 1, 1], [], []>} : vector<4x4xbf16>, vector<4x324xbf16>, vector<4x324xf32> -> vector<4x324xf32>
    %32 = arith.addf %24, %31 : vector<4x324xf32>
    %c2_35 = arith.constant 2 : index
    %c0_36 = arith.constant 0 : index
    %c0_37 = arith.constant 0 : index
    %33 = vector.load %arg4[%c2_35, %c0_36, %c0_37] : memref<9x4x4xbf16, #tpu.memory_space<vmem>>, vector<1x4x4xbf16>
    %34 = vector.shape_cast %33 : vector<1x4x4xbf16> to vector<4x4xbf16>
    %cst_38 = arith.constant dense<0.000000e+00> : vector<4x324xf32>
    %35 = tpu.matmul %34, %28, %cst_38 {dimension_numbers = #tpu.dot_dimension_numbers<[1], [0], [0], [1], [0, 0, 1, 1], [], []>} : vector<4x4xbf16>, vector<4x324xbf16>, vector<4x324xf32> -> vector<4x324xf32>
    %36 = arith.addf %32, %35 : vector<4x324xf32>
    %c0_39 = arith.constant 0 : index
    %c0_40 = arith.constant 0 : index
    %c18 = arith.constant 18 : index
    %37 = vector.load %arg1[%c0_39, %c0_40, %c18] : memref<1x4x362xbf16, #tpu.memory_space<vmem>>, vector<1x4x324xbf16>
    %38 = vector.shape_cast %37 : vector<1x4x324xbf16> to vector<4x324xbf16>
    %c0_41 = arith.constant 0 : index
    %c0_42 = arith.constant 0 : index
    %c18_43 = arith.constant 18 : index
    %39 = vector.load %arg2[%c0_41, %c0_42, %c18_43] : memref<1x4x362xbf16, #tpu.memory_space<vmem>>, vector<1x4x324xbf16>
    %40 = vector.shape_cast %39 : vector<1x4x324xbf16> to vector<4x324xbf16>
    %c3 = arith.constant 3 : index
    %c0_44 = arith.constant 0 : index
    %c0_45 = arith.constant 0 : index
    %41 = vector.load %arg3[%c3, %c0_44, %c0_45] : memref<9x4x4xbf16, #tpu.memory_space<vmem>>, vector<1x4x4xbf16>
    %42 = vector.shape_cast %41 : vector<1x4x4xbf16> to vector<4x4xbf16>
    %cst_46 = arith.constant dense<0.000000e+00> : vector<4x324xf32>
    %43 = tpu.matmul %42, %38, %cst_46 {dimension_numbers = #tpu.dot_dimension_numbers<[1], [0], [0], [1], [0, 0, 1, 1], [], []>} : vector<4x4xbf16>, vector<4x324xbf16>, vector<4x324xf32> -> vector<4x324xf32>
    %44 = arith.addf %36, %43 : vector<4x324xf32>
    %c3_47 = arith.constant 3 : index
    %c0_48 = arith.constant 0 : index
    %c0_49 = arith.constant 0 : index
    %45 = vector.load %arg4[%c3_47, %c0_48, %c0_49] : memref<9x4x4xbf16, #tpu.memory_space<vmem>>, vector<1x4x4xbf16>
    %46 = vector.shape_cast %45 : vector<1x4x4xbf16> to vector<4x4xbf16>
    %cst_50 = arith.constant dense<0.000000e+00> : vector<4x324xf32>
    %47 = tpu.matmul %46, %40, %cst_50 {dimension_numbers = #tpu.dot_dimension_numbers<[1], [0], [0], [1], [0, 0, 1, 1], [], []>} : vector<4x4xbf16>, vector<4x324xbf16>, vector<4x324xf32> -> vector<4x324xf32>
    %48 = arith.addf %44, %47 : vector<4x324xf32>
    %c0_51 = arith.constant 0 : index
    %c0_52 = arith.constant 0 : index
    %c19 = arith.constant 19 : index
    %49 = vector.load %arg1[%c0_51, %c0_52, %c19] : memref<1x4x362xbf16, #tpu.memory_space<vmem>>, vector<1x4x324xbf16>
    %50 = vector.shape_cast %49 : vector<1x4x324xbf16> to vector<4x324xbf16>
    %c0_53 = arith.constant 0 : index
    %c0_54 = arith.constant 0 : index
    %c19_55 = arith.constant 19 : index
    %51 = vector.load %arg2[%c0_53, %c0_54, %c19_55] : memref<1x4x362xbf16, #tpu.memory_space<vmem>>, vector<1x4x324xbf16>
    %52 = vector.shape_cast %51 : vector<1x4x324xbf16> to vector<4x324xbf16>
    %c4 = arith.constant 4 : index
    %c0_56 = arith.constant 0 : index
    %c0_57 = arith.constant 0 : index
    %53 = vector.load %arg3[%c4, %c0_56, %c0_57] : memref<9x4x4xbf16, #tpu.memory_space<vmem>>, vector<1x4x4xbf16>
    %54 = vector.shape_cast %53 : vector<1x4x4xbf16> to vector<4x4xbf16>
    %cst_58 = arith.constant dense<0.000000e+00> : vector<4x324xf32>
    %55 = tpu.matmul %54, %50, %cst_58 {dimension_numbers = #tpu.dot_dimension_numbers<[1], [0], [0], [1], [0, 0, 1, 1], [], []>} : vector<4x4xbf16>, vector<4x324xbf16>, vector<4x324xf32> -> vector<4x324xf32>
    %56 = arith.addf %48, %55 : vector<4x324xf32>
    %c4_59 = arith.constant 4 : index
    %c0_60 = arith.constant 0 : index
    %c0_61 = arith.constant 0 : index
    %57 = vector.load %arg4[%c4_59, %c0_60, %c0_61] : memref<9x4x4xbf16, #tpu.memory_space<vmem>>, vector<1x4x4xbf16>
    %58 = vector.shape_cast %57 : vector<1x4x4xbf16> to vector<4x4xbf16>
    %cst_62 = arith.constant dense<0.000000e+00> : vector<4x324xf32>
    %59 = tpu.matmul %58, %52, %cst_62 {dimension_numbers = #tpu.dot_dimension_numbers<[1], [0], [0], [1], [0, 0, 1, 1], [], []>} : vector<4x4xbf16>, vector<4x324xbf16>, vector<4x324xf32> -> vector<4x324xf32>
    %60 = arith.addf %56, %59 : vector<4x324xf32>
    %c0_63 = arith.constant 0 : index
    %c0_64 = arith.constant 0 : index
    %c20 = arith.constant 20 : index
    %61 = vector.load %arg1[%c0_63, %c0_64, %c20] : memref<1x4x362xbf16, #tpu.memory_space<vmem>>, vector<1x4x324xbf16>
    %62 = vector.shape_cast %61 : vector<1x4x324xbf16> to vector<4x324xbf16>
    %c0_65 = arith.constant 0 : index
    %c0_66 = arith.constant 0 : index
    %c20_67 = arith.constant 20 : index
    %63 = vector.load %arg2[%c0_65, %c0_66, %c20_67] : memref<1x4x362xbf16, #tpu.memory_space<vmem>>, vector<1x4x324xbf16>
    %64 = vector.shape_cast %63 : vector<1x4x324xbf16> to vector<4x324xbf16>
    %c5 = arith.constant 5 : index
    %c0_68 = arith.constant 0 : index
    %c0_69 = arith.constant 0 : index
    %65 = vector.load %arg3[%c5, %c0_68, %c0_69] : memref<9x4x4xbf16, #tpu.memory_space<vmem>>, vector<1x4x4xbf16>
    %66 = vector.shape_cast %65 : vector<1x4x4xbf16> to vector<4x4xbf16>
    %cst_70 = arith.constant dense<0.000000e+00> : vector<4x324xf32>
    %67 = tpu.matmul %66, %62, %cst_70 {dimension_numbers = #tpu.dot_dimension_numbers<[1], [0], [0], [1], [0, 0, 1, 1], [], []>} : vector<4x4xbf16>, vector<4x324xbf16>, vector<4x324xf32> -> vector<4x324xf32>
    %68 = arith.addf %60, %67 : vector<4x324xf32>
    %c5_71 = arith.constant 5 : index
    %c0_72 = arith.constant 0 : index
    %c0_73 = arith.constant 0 : index
    %69 = vector.load %arg4[%c5_71, %c0_72, %c0_73] : memref<9x4x4xbf16, #tpu.memory_space<vmem>>, vector<1x4x4xbf16>
    %70 = vector.shape_cast %69 : vector<1x4x4xbf16> to vector<4x4xbf16>
    %cst_74 = arith.constant dense<0.000000e+00> : vector<4x324xf32>
    %71 = tpu.matmul %70, %64, %cst_74 {dimension_numbers = #tpu.dot_dimension_numbers<[1], [0], [0], [1], [0, 0, 1, 1], [], []>} : vector<4x4xbf16>, vector<4x324xbf16>, vector<4x324xf32> -> vector<4x324xf32>
    %72 = arith.addf %68, %71 : vector<4x324xf32>
    %c0_75 = arith.constant 0 : index
    %c0_76 = arith.constant 0 : index
    %c36 = arith.constant 36 : index
    %73 = vector.load %arg1[%c0_75, %c0_76, %c36] : memref<1x4x362xbf16, #tpu.memory_space<vmem>>, vector<1x4x324xbf16>
    %74 = vector.shape_cast %73 : vector<1x4x324xbf16> to vector<4x324xbf16>
    %c0_77 = arith.constant 0 : index
    %c0_78 = arith.constant 0 : index
    %c36_79 = arith.constant 36 : index
    %75 = vector.load %arg2[%c0_77, %c0_78, %c36_79] : memref<1x4x362xbf16, #tpu.memory_space<vmem>>, vector<1x4x324xbf16>
    %76 = vector.shape_cast %75 : vector<1x4x324xbf16> to vector<4x324xbf16>
    %c6 = arith.constant 6 : index
    %c0_80 = arith.constant 0 : index
    %c0_81 = arith.constant 0 : index
    %77 = vector.load %arg3[%c6, %c0_80, %c0_81] : memref<9x4x4xbf16, #tpu.memory_space<vmem>>, vector<1x4x4xbf16>
    %78 = vector.shape_cast %77 : vector<1x4x4xbf16> to vector<4x4xbf16>
    %cst_82 = arith.constant dense<0.000000e+00> : vector<4x324xf32>
    %79 = tpu.matmul %78, %74, %cst_82 {dimension_numbers = #tpu.dot_dimension_numbers<[1], [0], [0], [1], [0, 0, 1, 1], [], []>} : vector<4x4xbf16>, vector<4x324xbf16>, vector<4x324xf32> -> vector<4x324xf32>
    %80 = arith.addf %72, %79 : vector<4x324xf32>
    %c6_83 = arith.constant 6 : index
    %c0_84 = arith.constant 0 : index
    %c0_85 = arith.constant 0 : index
    %81 = vector.load %arg4[%c6_83, %c0_84, %c0_85] : memref<9x4x4xbf16, #tpu.memory_space<vmem>>, vector<1x4x4xbf16>
    %82 = vector.shape_cast %81 : vector<1x4x4xbf16> to vector<4x4xbf16>
    %cst_86 = arith.constant dense<0.000000e+00> : vector<4x324xf32>
    %83 = tpu.matmul %82, %76, %cst_86 {dimension_numbers = #tpu.dot_dimension_numbers<[1], [0], [0], [1], [0, 0, 1, 1], [], []>} : vector<4x4xbf16>, vector<4x324xbf16>, vector<4x324xf32> -> vector<4x324xf32>
    %84 = arith.addf %80, %83 : vector<4x324xf32>
    %c0_87 = arith.constant 0 : index
    %c0_88 = arith.constant 0 : index
    %c37 = arith.constant 37 : index
    %85 = vector.load %arg1[%c0_87, %c0_88, %c37] : memref<1x4x362xbf16, #tpu.memory_space<vmem>>, vector<1x4x324xbf16>
    %86 = vector.shape_cast %85 : vector<1x4x324xbf16> to vector<4x324xbf16>
    %c0_89 = arith.constant 0 : index
    %c0_90 = arith.constant 0 : index
    %c37_91 = arith.constant 37 : index
    %87 = vector.load %arg2[%c0_89, %c0_90, %c37_91] : memref<1x4x362xbf16, #tpu.memory_space<vmem>>, vector<1x4x324xbf16>
    %88 = vector.shape_cast %87 : vector<1x4x324xbf16> to vector<4x324xbf16>
    %c7 = arith.constant 7 : index
    %c0_92 = arith.constant 0 : index
    %c0_93 = arith.constant 0 : index
    %89 = vector.load %arg3[%c7, %c0_92, %c0_93] : memref<9x4x4xbf16, #tpu.memory_space<vmem>>, vector<1x4x4xbf16>
    %90 = vector.shape_cast %89 : vector<1x4x4xbf16> to vector<4x4xbf16>
    %cst_94 = arith.constant dense<0.000000e+00> : vector<4x324xf32>
    %91 = tpu.matmul %90, %86, %cst_94 {dimension_numbers = #tpu.dot_dimension_numbers<[1], [0], [0], [1], [0, 0, 1, 1], [], []>} : vector<4x4xbf16>, vector<4x324xbf16>, vector<4x324xf32> -> vector<4x324xf32>
    %92 = arith.addf %84, %91 : vector<4x324xf32>
    %c7_95 = arith.constant 7 : index
    %c0_96 = arith.constant 0 : index
    %c0_97 = arith.constant 0 : index
    %93 = vector.load %arg4[%c7_95, %c0_96, %c0_97] : memref<9x4x4xbf16, #tpu.memory_space<vmem>>, vector<1x4x4xbf16>
    %94 = vector.shape_cast %93 : vector<1x4x4xbf16> to vector<4x4xbf16>
    %cst_98 = arith.constant dense<0.000000e+00> : vector<4x324xf32>
    %95 = tpu.matmul %94, %88, %cst_98 {dimension_numbers = #tpu.dot_dimension_numbers<[1], [0], [0], [1], [0, 0, 1, 1], [], []>} : vector<4x4xbf16>, vector<4x324xbf16>, vector<4x324xf32> -> vector<4x324xf32>
    %96 = arith.addf %92, %95 : vector<4x324xf32>
    %c0_99 = arith.constant 0 : index
    %c0_100 = arith.constant 0 : index
    %c38 = arith.constant 38 : index
    %97 = vector.load %arg1[%c0_99, %c0_100, %c38] : memref<1x4x362xbf16, #tpu.memory_space<vmem>>, vector<1x4x324xbf16>
    %98 = vector.shape_cast %97 : vector<1x4x324xbf16> to vector<4x324xbf16>
    %c0_101 = arith.constant 0 : index
    %c0_102 = arith.constant 0 : index
    %c38_103 = arith.constant 38 : index
    %99 = vector.load %arg2[%c0_101, %c0_102, %c38_103] : memref<1x4x362xbf16, #tpu.memory_space<vmem>>, vector<1x4x324xbf16>
    %100 = vector.shape_cast %99 : vector<1x4x324xbf16> to vector<4x324xbf16>
    %c8 = arith.constant 8 : index
    %c0_104 = arith.constant 0 : index
    %c0_105 = arith.constant 0 : index
    %101 = vector.load %arg3[%c8, %c0_104, %c0_105] : memref<9x4x4xbf16, #tpu.memory_space<vmem>>, vector<1x4x4xbf16>
    %102 = vector.shape_cast %101 : vector<1x4x4xbf16> to vector<4x4xbf16>
    %cst_106 = arith.constant dense<0.000000e+00> : vector<4x324xf32>
    %103 = tpu.matmul %102, %98, %cst_106 {dimension_numbers = #tpu.dot_dimension_numbers<[1], [0], [0], [1], [0, 0, 1, 1], [], []>} : vector<4x4xbf16>, vector<4x324xbf16>, vector<4x324xf32> -> vector<4x324xf32>
    %104 = arith.addf %96, %103 : vector<4x324xf32>
    %c8_107 = arith.constant 8 : index
    %c0_108 = arith.constant 0 : index
    %c0_109 = arith.constant 0 : index
    %105 = vector.load %arg4[%c8_107, %c0_108, %c0_109] : memref<9x4x4xbf16, #tpu.memory_space<vmem>>, vector<1x4x4xbf16>
    %106 = vector.shape_cast %105 : vector<1x4x4xbf16> to vector<4x4xbf16>
    %cst_110 = arith.constant dense<0.000000e+00> : vector<4x324xf32>
    %107 = tpu.matmul %106, %100, %cst_110 {dimension_numbers = #tpu.dot_dimension_numbers<[1], [0], [0], [1], [0, 0, 1, 1], [], []>} : vector<4x4xbf16>, vector<4x324xbf16>, vector<4x324xf32> -> vector<4x324xf32>
    %108 = arith.addf %104, %107 : vector<4x324xf32>
    %c0_111 = arith.constant 0 : index
    %c0_112 = arith.constant 0 : index
    %c0_113 = arith.constant 0 : index
    %109 = vector.load %arg6[%c0_111, %c0_112, %c0_113] : memref<2x4x1xf32, #tpu.memory_space<vmem>>, vector<1x4x1xf32>
    %110 = vector.shape_cast %109 : vector<1x4x1xf32> to vector<4x1xf32>
    %111 = vector.broadcast %110 : vector<4x1xf32> to vector<4x324xf32>
    %112 = arith.mulf %108, %111 : vector<4x324xf32>
    %c1_114 = arith.constant 1 : index
    %c0_115 = arith.constant 0 : index
    %c0_116 = arith.constant 0 : index
    %113 = vector.load %arg6[%c1_114, %c0_115, %c0_116] : memref<2x4x1xf32, #tpu.memory_space<vmem>>, vector<1x4x1xf32>
    %114 = vector.shape_cast %113 : vector<1x4x1xf32> to vector<4x1xf32>
    %115 = vector.broadcast %114 : vector<4x1xf32> to vector<4x324xf32>
    %116 = arith.addf %112, %115 : vector<4x324xf32>
    %cst_117 = arith.constant 0.000000e+00 : f32
    %117 = vector.broadcast %cst_117 : f32 to vector<4x324xf32>
    %118 = arith.maximumf %116, %117 : vector<4x324xf32>
    %c0_118 = arith.constant 0 : index
    %c0_119 = arith.constant 0 : index
    %119 = vector.load %arg8[%c0_118, %c0_119] : memref<1x324xf32, #tpu.memory_space<vmem>>, vector<1x324xf32>
    %120 = vector.broadcast %119 : vector<1x324xf32> to vector<4x324xf32>
    %121 = arith.mulf %118, %120 : vector<4x324xf32>
    %cst_120 = arith.constant 0.000000e+00 : bf16
    %122 = vector.broadcast %cst_120 : bf16 to vector<4x362xbf16>
    %c0_121 = arith.constant 0 : index
    %c0_122 = arith.constant 0 : index
    %123 = vector.load %arg10[%c0_121, %c0_122] : memref<4x362xbf16, #tpu.memory_space<vmem>>, vector<4x362xbf16>
    tpu.vector_store %arg10[%c0_121, %c0_122], %122 {strides = array<i32>} : memref<4x362xbf16, #tpu.memory_space<vmem>>, vector<4x362xbf16>,
    %124 = arith.truncf %121 : vector<4x324xf32> to vector<4x324xbf16>
    %c0_123 = arith.constant 0 : index
    %c19_124 = arith.constant 19 : index
    %125 = vector.load %arg10[%c0_123, %c19_124] : memref<4x362xbf16, #tpu.memory_space<vmem>>, vector<4x324xbf16>
    tpu.vector_store %arg10[%c0_123, %c19_124], %124 {strides = array<i32>} : memref<4x362xbf16, #tpu.memory_space<vmem>>, vector<4x324xbf16>,
    %cst_125 = arith.constant 0.000000e+00 : f32
    %126 = vector.broadcast %cst_125 : f32 to vector<4x324xf32>
    %c0_126 = arith.constant 0 : index
    %c0_127 = arith.constant 0 : index
    %127 = vector.load %arg10[%c0_126, %c0_127] : memref<4x362xbf16, #tpu.memory_space<vmem>>, vector<4x324xbf16>
    %c0_128 = arith.constant 0 : index
    %c0_129 = arith.constant 0 : index
    %c0_130 = arith.constant 0 : index
    %128 = vector.load %arg5[%c0_128, %c0_129, %c0_130] : memref<9x4x4xbf16, #tpu.memory_space<vmem>>, vector<1x4x4xbf16>
    %129 = vector.shape_cast %128 : vector<1x4x4xbf16> to vector<4x4xbf16>
    %cst_131 = arith.constant dense<0.000000e+00> : vector<4x324xf32>
    %130 = tpu.matmul %129, %127, %cst_131 {dimension_numbers = #tpu.dot_dimension_numbers<[1], [0], [0], [1], [0, 0, 1, 1], [], []>} : vector<4x4xbf16>, vector<4x324xbf16>, vector<4x324xf32> -> vector<4x324xf32>
    %131 = arith.addf %126, %130 : vector<4x324xf32>
    %c0_132 = arith.constant 0 : index
    %c1_133 = arith.constant 1 : index
    %132 = vector.load %arg10[%c0_132, %c1_133] : memref<4x362xbf16, #tpu.memory_space<vmem>>, vector<4x324xbf16>
    %c1_134 = arith.constant 1 : index
    %c0_135 = arith.constant 0 : index
    %c0_136 = arith.constant 0 : index
    %133 = vector.load %arg5[%c1_134, %c0_135, %c0_136] : memref<9x4x4xbf16, #tpu.memory_space<vmem>>, vector<1x4x4xbf16>
    %134 = vector.shape_cast %133 : vector<1x4x4xbf16> to vector<4x4xbf16>
    %cst_137 = arith.constant dense<0.000000e+00> : vector<4x324xf32>
    %135 = tpu.matmul %134, %132, %cst_137 {dimension_numbers = #tpu.dot_dimension_numbers<[1], [0], [0], [1], [0, 0, 1, 1], [], []>} : vector<4x4xbf16>, vector<4x324xbf16>, vector<4x324xf32> -> vector<4x324xf32>
    %136 = arith.addf %131, %135 : vector<4x324xf32>
    %c0_138 = arith.constant 0 : index
    %c2_139 = arith.constant 2 : index
    %137 = vector.load %arg10[%c0_138, %c2_139] : memref<4x362xbf16, #tpu.memory_space<vmem>>, vector<4x324xbf16>
    %c2_140 = arith.constant 2 : index
    %c0_141 = arith.constant 0 : index
    %c0_142 = arith.constant 0 : index
    %138 = vector.load %arg5[%c2_140, %c0_141, %c0_142] : memref<9x4x4xbf16, #tpu.memory_space<vmem>>, vector<1x4x4xbf16>
    %139 = vector.shape_cast %138 : vector<1x4x4xbf16> to vector<4x4xbf16>
    %cst_143 = arith.constant dense<0.000000e+00> : vector<4x324xf32>
    %140 = tpu.matmul %139, %137, %cst_143 {dimension_numbers = #tpu.dot_dimension_numbers<[1], [0], [0], [1], [0, 0, 1, 1], [], []>} : vector<4x4xbf16>, vector<4x324xbf16>, vector<4x324xf32> -> vector<4x324xf32>
    %141 = arith.addf %136, %140 : vector<4x324xf32>
    %c0_144 = arith.constant 0 : index
    %c18_145 = arith.constant 18 : index
    %142 = vector.load %arg10[%c0_144, %c18_145] : memref<4x362xbf16, #tpu.memory_space<vmem>>, vector<4x324xbf16>
    %c3_146 = arith.constant 3 : index
    %c0_147 = arith.constant 0 : index
    %c0_148 = arith.constant 0 : index
    %143 = vector.load %arg5[%c3_146, %c0_147, %c0_148] : memref<9x4x4xbf16, #tpu.memory_space<vmem>>, vector<1x4x4xbf16>
    %144 = vector.shape_cast %143 : vector<1x4x4xbf16> to vector<4x4xbf16>
    %cst_149 = arith.constant dense<0.000000e+00> : vector<4x324xf32>
    %145 = tpu.matmul %144, %142, %cst_149 {dimension_numbers = #tpu.dot_dimension_numbers<[1], [0], [0], [1], [0, 0, 1, 1], [], []>} : vector<4x4xbf16>, vector<4x324xbf16>, vector<4x324xf32> -> vector<4x324xf32>
    %146 = arith.addf %141, %145 : vector<4x324xf32>
    %c0_150 = arith.constant 0 : index
    %c19_151 = arith.constant 19 : index
    %147 = vector.load %arg10[%c0_150, %c19_151] : memref<4x362xbf16, #tpu.memory_space<vmem>>, vector<4x324xbf16>
    %c4_152 = arith.constant 4 : index
    %c0_153 = arith.constant 0 : index
    %c0_154 = arith.constant 0 : index
    %148 = vector.load %arg5[%c4_152, %c0_153, %c0_154] : memref<9x4x4xbf16, #tpu.memory_space<vmem>>, vector<1x4x4xbf16>
    %149 = vector.shape_cast %148 : vector<1x4x4xbf16> to vector<4x4xbf16>
    %cst_155 = arith.constant dense<0.000000e+00> : vector<4x324xf32>
    %150 = tpu.matmul %149, %147, %cst_155 {dimension_numbers = #tpu.dot_dimension_numbers<[1], [0], [0], [1], [0, 0, 1, 1], [], []>} : vector<4x4xbf16>, vector<4x324xbf16>, vector<4x324xf32> -> vector<4x324xf32>
    %151 = arith.addf %146, %150 : vector<4x324xf32>
    %c0_156 = arith.constant 0 : index
    %c20_157 = arith.constant 20 : index
    %152 = vector.load %arg10[%c0_156, %c20_157] : memref<4x362xbf16, #tpu.memory_space<vmem>>, vector<4x324xbf16>
    %c5_158 = arith.constant 5 : index
    %c0_159 = arith.constant 0 : index
    %c0_160 = arith.constant 0 : index
    %153 = vector.load %arg5[%c5_158, %c0_159, %c0_160] : memref<9x4x4xbf16, #tpu.memory_space<vmem>>, vector<1x4x4xbf16>
    %154 = vector.shape_cast %153 : vector<1x4x4xbf16> to vector<4x4xbf16>
    %cst_161 = arith.constant dense<0.000000e+00> : vector<4x324xf32>
    %155 = tpu.matmul %154, %152, %cst_161 {dimension_numbers = #tpu.dot_dimension_numbers<[1], [0], [0], [1], [0, 0, 1, 1], [], []>} : vector<4x4xbf16>, vector<4x324xbf16>, vector<4x324xf32> -> vector<4x324xf32>
    %156 = arith.addf %151, %155 : vector<4x324xf32>
    %c0_162 = arith.constant 0 : index
    %c36_163 = arith.constant 36 : index
    %157 = vector.load %arg10[%c0_162, %c36_163] : memref<4x362xbf16, #tpu.memory_space<vmem>>, vector<4x324xbf16>
    %c6_164 = arith.constant 6 : index
    %c0_165 = arith.constant 0 : index
    %c0_166 = arith.constant 0 : index
    %158 = vector.load %arg5[%c6_164, %c0_165, %c0_166] : memref<9x4x4xbf16, #tpu.memory_space<vmem>>, vector<1x4x4xbf16>
    %159 = vector.shape_cast %158 : vector<1x4x4xbf16> to vector<4x4xbf16>
    %cst_167 = arith.constant dense<0.000000e+00> : vector<4x324xf32>
    %160 = tpu.matmul %159, %157, %cst_167 {dimension_numbers = #tpu.dot_dimension_numbers<[1], [0], [0], [1], [0, 0, 1, 1], [], []>} : vector<4x4xbf16>, vector<4x324xbf16>, vector<4x324xf32> -> vector<4x324xf32>
    %161 = arith.addf %156, %160 : vector<4x324xf32>
    %c0_168 = arith.constant 0 : index
    %c37_169 = arith.constant 37 : index
    %162 = vector.load %arg10[%c0_168, %c37_169] : memref<4x362xbf16, #tpu.memory_space<vmem>>, vector<4x324xbf16>
    %c7_170 = arith.constant 7 : index
    %c0_171 = arith.constant 0 : index
    %c0_172 = arith.constant 0 : index
    %163 = vector.load %arg5[%c7_170, %c0_171, %c0_172] : memref<9x4x4xbf16, #tpu.memory_space<vmem>>, vector<1x4x4xbf16>
    %164 = vector.shape_cast %163 : vector<1x4x4xbf16> to vector<4x4xbf16>
    %cst_173 = arith.constant dense<0.000000e+00> : vector<4x324xf32>
    %165 = tpu.matmul %164, %162, %cst_173 {dimension_numbers = #tpu.dot_dimension_numbers<[1], [0], [0], [1], [0, 0, 1, 1], [], []>} : vector<4x4xbf16>, vector<4x324xbf16>, vector<4x324xf32> -> vector<4x324xf32>
    %166 = arith.addf %161, %165 : vector<4x324xf32>
    %c0_174 = arith.constant 0 : index
    %c38_175 = arith.constant 38 : index
    %167 = vector.load %arg10[%c0_174, %c38_175] : memref<4x362xbf16, #tpu.memory_space<vmem>>, vector<4x324xbf16>
    %c8_176 = arith.constant 8 : index
    %c0_177 = arith.constant 0 : index
    %c0_178 = arith.constant 0 : index
    %168 = vector.load %arg5[%c8_176, %c0_177, %c0_178] : memref<9x4x4xbf16, #tpu.memory_space<vmem>>, vector<1x4x4xbf16>
    %169 = vector.shape_cast %168 : vector<1x4x4xbf16> to vector<4x4xbf16>
    %cst_179 = arith.constant dense<0.000000e+00> : vector<4x324xf32>
    %170 = tpu.matmul %169, %167, %cst_179 {dimension_numbers = #tpu.dot_dimension_numbers<[1], [0], [0], [1], [0, 0, 1, 1], [], []>} : vector<4x4xbf16>, vector<4x324xbf16>, vector<4x324xf32> -> vector<4x324xf32>
    %171 = arith.addf %166, %170 : vector<4x324xf32>
    %c0_180 = arith.constant 0 : index
    %c0_181 = arith.constant 0 : index
    %c0_182 = arith.constant 0 : index
    %172 = vector.load %arg7[%c0_180, %c0_181, %c0_182] : memref<2x4x1xf32, #tpu.memory_space<vmem>>, vector<1x4x1xf32>
    %173 = vector.shape_cast %172 : vector<1x4x1xf32> to vector<4x1xf32>
    %174 = vector.broadcast %173 : vector<4x1xf32> to vector<4x324xf32>
    %175 = arith.mulf %171, %174 : vector<4x324xf32>
    %c1_183 = arith.constant 1 : index
    %c0_184 = arith.constant 0 : index
    %c0_185 = arith.constant 0 : index
    %176 = vector.load %arg7[%c1_183, %c0_184, %c0_185] : memref<2x4x1xf32, #tpu.memory_space<vmem>>, vector<1x4x1xf32>
    %177 = vector.shape_cast %176 : vector<1x4x1xf32> to vector<4x1xf32>
    %178 = vector.broadcast %177 : vector<4x1xf32> to vector<4x324xf32>
    %179 = arith.addf %175, %178 : vector<4x324xf32>
    %cst_186 = arith.constant 0.000000e+00 : f32
    %180 = vector.broadcast %cst_186 : f32 to vector<4x324xf32>
    %181 = arith.maximumf %179, %180 : vector<4x324xf32>
    %c0_187 = arith.constant 0 : index
    %c0_188 = arith.constant 0 : index
    %c0_189 = arith.constant 0 : index
    %182 = vector.load %arg9[%c0_187, %c0_188, %c0_189] : memref<1x4x324xf32, #tpu.memory_space<vmem>>, vector<1x4x324xf32>
    %183 = vector.shape_cast %182 : vector<1x4x324xf32> to vector<4x324xf32>
    %184 = vector.shape_cast %181 : vector<4x324xf32> to vector<1x4x324xf32>
    tpu.vector_store %arg9[%c0_187, %c0_188, %c0_189], %184 {strides = array<i32>} : memref<1x4x324xf32, #tpu.memory_space<vmem>>, vector<1x4x324xf32>,
    return
  }
  func.func @transform_0(%arg0: i32) -> (i32, i32, i32) {
    %c0_i32 = arith.constant 0 : i32
    %c0_i32_0 = arith.constant 0 : i32
    %c0_i32_1 = arith.constant 0 : i32
    return %arg0, %c0_i32, %c0_i32_0 : i32, i32, i32
  }
  func.func @transform_1(%arg0: i32) -> (i32, i32, i32) {
    %c0_i32 = arith.constant 0 : i32
    %c0_i32_0 = arith.constant 0 : i32
    %c0_i32_1 = arith.constant 0 : i32
    return %arg0, %c0_i32, %c0_i32_0 : i32, i32, i32
  }
  func.func @transform_2(%arg0: i32) -> (i32, i32, i32) {
    %c0_i32 = arith.constant 0 : i32
    %c0_i32_0 = arith.constant 0 : i32
    %c0_i32_1 = arith.constant 0 : i32
    %c0_i32_2 = arith.constant 0 : i32
    return %c0_i32, %c0_i32_0, %c0_i32_1 : i32, i32, i32
  }
  func.func @transform_3(%arg0: i32) -> (i32, i32, i32) {
    %c0_i32 = arith.constant 0 : i32
    %c0_i32_0 = arith.constant 0 : i32
    %c0_i32_1 = arith.constant 0 : i32
    %c0_i32_2 = arith.constant 0 : i32
    return %c0_i32, %c0_i32_0, %c0_i32_1 : i32, i32, i32
  }
  func.func @transform_4(%arg0: i32) -> (i32, i32, i32) {
    %c0_i32 = arith.constant 0 : i32
    %c0_i32_0 = arith.constant 0 : i32
    %c0_i32_1 = arith.constant 0 : i32
    %c0_i32_2 = arith.constant 0 : i32
    return %c0_i32, %c0_i32_0, %c0_i32_1 : i32, i32, i32
  }
  func.func @transform_5(%arg0: i32) -> (i32, i32, i32) {
    %c0_i32 = arith.constant 0 : i32
    %c0_i32_0 = arith.constant 0 : i32
    %c0_i32_1 = arith.constant 0 : i32
    %c0_i32_2 = arith.constant 0 : i32
    return %c0_i32, %c0_i32_0, %c0_i32_1 : i32, i32, i32
  }
  func.func @transform_6(%arg0: i32) -> (i32, i32, i32) {
    %c0_i32 = arith.constant 0 : i32
    %c0_i32_0 = arith.constant 0 : i32
    %c0_i32_1 = arith.constant 0 : i32
    %c0_i32_2 = arith.constant 0 : i32
    return %c0_i32, %c0_i32_0, %c0_i32_1 : i32, i32, i32
  }
  func.func @transform_7(%arg0: i32) -> (i32, i32) {
    %c0_i32 = arith.constant 0 : i32
    %c0_i32_0 = arith.constant 0 : i32
    %c0_i32_1 = arith.constant 0 : i32
    return %c0_i32, %c0_i32_0 : i32, i32
  }
  func.func @transform_8(%arg0: i32) -> (i32, i32, i32) {
    %c0_i32 = arith.constant 0 : i32
    %c0_i32_0 = arith.constant 0 : i32
    %c0_i32_1 = arith.constant 0 : i32
    return %arg0, %c0_i32, %c0_i32_0 : i32, i32, i32
  }
}

</mosaic_0001>

<llo_original>
// kernel: decoder_forward.3
$region0: #{decoder_forward.3}
  #allocation0 [shape = 'u32[]', space=smem, size = 0x4, offset = 0x4, fixed_abs, tag = 'smem constant byte address 0x4 - core index']
  #allocation1 [shape = 'u32[144,128]{1,0:T(1,128)}', space=vmem, size = 0x12000, scoped, tag = 'internal scratch']
  %s0 = inlined_call_operand.vmem [shape: bf16[2,8,49], index: 0, kind: input, shape index: {}]
  %s1 = inlined_call_operand.vmem [shape: bf16[16,8], index: 1, kind: input, shape index: {}]
  %s2 = inlined_call_operand.vmem [shape: bf16[2,16,49], index: 2, kind: output, shape index: {}]
  %s3 = sld [smem:[#allocation0]]
  $region41: #{decoder_forward.3} parent=0
    _
  %s5 = ssub.s32 1, %s3
  %s6 = scalar_select 0, %s5, %s3
  loop: start=0, step=1, limit=4
  $region2: #{decoder_forward.3} parent=0 // loop_pre_header
    _
  $region3: #{decoder_forward.3} parent=0 // loop_header
    %s8 = sphi 0, %s12
    %p9 = scmp.ge.s32.totalorder %s8, 4
    %s18 = sphi 0, %s20
    %s21 = sphi 0, %s18
    %s22 = sphi 0, %s21
    %s38 = sphi 0, %s22
    %s42 = sphi 0, %s42
    %s44 = sphi 0, %s42
    %s45 = sphi 0, %s44
    %s59 = sphi 0, %s45
    %s65 = sphi 0, %s67
    %s68 = sphi 0, %s65
    %s69 = sphi 0, %s68
    %s85 = sphi 0, %s69
  $region4: #{decoder_forward.3} parent=0 // loop_header_branch
    %11 = sbr.rel (%p9) target = $region8
  $region5: #{decoder_forward.3} parent=0 // loop_body
    %s13 = ssub.s32 %s8, 1
    %s14 = ssub.s32 %s8, 2
    %s15 = sadd.s32 %s8, 1
    %s16 = ssub.s32 %s8, %s15
    %p17 = scmp.eq.s32.totalorder %s16, 0
    %s19 = sadd.s32 %s18, 1
    %s20 = scalar_select %p17, %s18, %s19
    %p23 = pneg %p17
    %p24 = scmp.eq.s32.totalorder %s8, 1
    %p25 = por %p23, %p24
    %p26 = scmp.ne.s32.totalorder %s18, %s21
    %p27 = scmp.eq.s32.totalorder %s8, 0
    %p28 = por %p26, %p27
    %p29 = scmp.ne.s32.totalorder %s18, %s21
    %p30 = scmp.eq.s32.totalorder %s13, 1
    %p31 = por %p29, %p30
    %p32 = scmp.ne.s32.totalorder %s21, %s22
    %p33 = scmp.eq.s32.totalorder %s13, 0
    %p34 = por %p32, %p33
    %p35 = scmp.ne.s32.totalorder %s21, %s22
    %p36 = scmp.eq.s32.totalorder %s14, 1
    %p37 = por %p35, %p36
    %p39 = scmp.ne.s32.totalorder %s22, %s38
    %p40 = scmp.eq.s32.totalorder %s14, 0
    %p41 = por %p39, %p40
    %s43 = sadd.s32 %s42, 1
    %p46 = scmp.eq.s32.totalorder %s8, 1
    %p47 = scmp.ne.s32.totalorder %s42, %s44
    %p48 = scmp.eq.s32.totalorder %s8, 0
    %p49 = por %p47, %p48
    %p50 = scmp.ne.s32.totalorder %s42, %s44
    %p51 = scmp.eq.s32.totalorder %s13, 1
    %p52 = por %p50, %p51
    %p53 = scmp.ne.s32.totalorder %s44, %s45
    %p54 = scmp.eq.s32.totalorder %s13, 0
    %p55 = por %p53, %p54
    %p56 = scmp.ne.s32.totalorder %s44, %s45
    %p57 = scmp.eq.s32.totalorder %s14, 1
    %p58 = por %p56, %p57
    %p60 = scmp.ne.s32.totalorder %s45, %s59
    %p61 = scmp.eq.s32.totalorder %s14, 0
    %p62 = por %p60, %p61
    %s63 = ssub.s32 %s8, %s15
    %p64 = scmp.eq.s32.totalorder %s63, 0
    %s66 = sadd.s32 %s65, 1
    %s67 = scalar_select %p64, %s65, %s66
    %p70 = pneg %p64
    %p71 = scmp.eq.s32.totalorder %s8, 1
    %p72 = por %p70, %p71
    %p73 = scmp.ne.s32.totalorder %s65, %s68
    %p74 = scmp.eq.s32.totalorder %s8, 0
    %p75 = por %p73, %p74
    %p76 = scmp.ne.s32.totalorder %s65, %s68
    %p77 = scmp.eq.s32.totalorder %s13, 1
    %p78 = por %p76, %p77
    %p79 = scmp.ne.s32.totalorder %s68, %s69
    %p80 = scmp.eq.s32.totalorder %s13, 0
    %p81 = por %p79, %p80
    %p82 = scmp.ne.s32.totalorder %s68, %s69
    %p83 = scmp.eq.s32.totalorder %s14, 1
    %p84 = por %p82, %p83
    %p86 = scmp.ne.s32.totalorder %s69, %s85
    %p87 = scmp.eq.s32.totalorder %s14, 0
    %p88 = por %p86, %p87
    %p89 = scmp.le.s32.totalorder 1, %s8
    %p90 = scmp.lt.s32.totalorder %s8, 3
    %p91 = pnand %p89, %p90
    %p92 = pneg %p91
    // Predicated region
    $region9: #{decoder_forward.3} parent=5 // pred_check
      _
    $region10: #{decoder_forward.3} parent=5 // pred_check_branch
      %94 = sbr.rel (%p91) target = $region12
    $region11: #{decoder_forward.3} parent=5 // pred_region
      %s95 = ssub.s32 %s8, 1
      // Predicated region
      $region13: #{decoder_forward.3} parent=11 // pred_check
        %p96 = pneg %p55
      $region14: #{decoder_forward.3} parent=11 // pred_check_branch
        %98 = sbr.rel (%p96) target = $region16
      $region15: #{decoder_forward.3} parent=11 // pred_region
        _
      $region16: #{decoder_forward.3} parent=11 // pred_fallthru
        _
    $region12: #{decoder_forward.3} parent=5 // pred_fallthru
      _
    %p99 = scmp.lt.s32.totalorder %s8, 2
    // Predicated region
    $region17: #{decoder_forward.3} parent=5 // pred_check
      %p100 = pneg %p99
    $region18: #{decoder_forward.3} parent=5 // pred_check_branch
      %102 = sbr.rel (%p100) target = $region20
    $region19: #{decoder_forward.3} parent=5 // pred_region
      // Predicated region
      $region21: #{decoder_forward.3} parent=19 // pred_check
        %p103 = pneg %p28
      $region22: #{decoder_forward.3} parent=19 // pred_check_branch
        %105 = sbr.rel (%p103) target = $region24
      $region23: #{decoder_forward.3} parent=19 // pred_region
        %p106 = scmp.lt.s32.totalorder %s8, 1
        %s107 = scalar_select %p106, %s8, 1
        %s108 = smul.addr %s107, 4
        %s109 = scalar_lea.vmem %s0, %s108
      $region24: #{decoder_forward.3} parent=19 // pred_fallthru
        _
    $region20: #{decoder_forward.3} parent=5 // pred_fallthru
      _
    %p110 = scmp.le.s32.totalorder 1, %s8
    %p111 = scmp.lt.s32.totalorder %s8, 3
    %p112 = pnand %p110, %p111
    %p113 = pneg %p112
    // Predicated region
    $region25: #{decoder_forward.3} parent=5 // pred_check
      _
    $region26: #{decoder_forward.3} parent=5 // pred_check_branch
      %115 = sbr.rel (%p112) target = $region28
    $region27: #{decoder_forward.3} parent=5 // pred_region
      %s116 = ssub.s32 %s8, 1
      %p117 = scmp.lt.s32.totalorder %s13, 1
      %s118 = scalar_select %p117, %s13, 1
      %s119 = smul.addr %s118, 4
      %s120 = scalar_lea.vmem %s0, %s119
      %p121 = pneg %p34
      %p122 = pneg %p31
      %p123 = pneg %p55
      %p124 = pneg %p52
      %p125 = pneg %p81
      %p126 = pneg %p78
      %p127 = scmp.lt.s32.totalorder %s13, 1
      %s128 = scalar_select %p127, %s13, 1
      %s129 = smul.addr %s128, 2
      %s130 = smul.addr %s129, 4
      %s131 = scalar_lea.vmem %s2, %s130
      %p132 = scmp.lt.s32.totalorder %s13, 1
      %s133 = scalar_select %p132, %s13, 1
      %s134 = smul.addr %s133, 4
      %s135 = scalar_lea.vmem %s0, %s134
      %p136 = scmp.lt.s32.totalorder %s13, 1
      %s137 = scalar_select %p136, %s13, 1
      %s138 = smul.addr %s137, 2
      %s139 = smul.addr %s138, 4
      %s140 = scalar_lea.vmem %s2, %s139
      %v142 = vld [vmem:[%s1] sm:$0xf]
      %v143 = vld [vmem:[%s1 + $0x4] sm:$0xf]
      %v144 = vld [vmem:[%s135] sm:$0xf]
      %v147 = vunpack.c.l.b16 %v142
      %v148 = vunpack.c.l.b16 %v143
      %v149 = vpack.c.b16 %v148, %v147
      %vm150 = vcmask 64512
      %v152 = vsel %vm150, %v149, 0
      %vm154 = vcmask 1043456
      %v156 = vsel %vm154, %v144, 0
      %158 = vmatprep.subr.bf16.mxu0 0
      %159 = vmatpush1.bf16.msra.mxu0 %v156
      %160 = vmatprep.subr.bf16.mxu0 0
      %161 = vmatpush1.bf16.msra.mxu0 0
      %162 = vmatprep.subr.bf16.mxu0 0
      %163 = vmatpush1.bf16.msra.mxu0 0
      %164 = vmatprep.subr.bf16.mxu0 0
      %165 = vmatpush1.bf16.msra.mxu0 0
      %166 = vmatprep.subr.bf16.mxu0 0
      %167 = vmatpush1.bf16.msra.mxu0 0
      %168 = vmatprep.subr.bf16.mxu0 0
      %169 = vmatpush1.bf16.msra.mxu0 0
      %170 = vmatprep.subr.bf16.mxu0 0
      %171 = vmatpush1.bf16.msra.mxu0 0
      %172 = vmatprep.subr.bf16.mxu0 0
      %173 = vmatpush1.bf16.msra.mxu0 0
      %174 = vmatprep.subr.bf16.mxu0 0
      %175 = vmatpush1.bf16.msra.mxu0 0
      %176 = vmatprep.subr.bf16.mxu0 0
      %177 = vmatpush1.bf16.msra.mxu0 0
      %178 = vmatprep.subr.bf16.mxu0 0
      %179 = vmatpush1.bf16.msra.mxu0 0
      %180 = vmatprep.subr.bf16.mxu0 0
      %181 = vmatpush1.bf16.msra.mxu0 0
      %182 = vmatprep.subr.bf16.mxu0 0
      %183 = vmatpush1.bf16.msra.mxu0 0
      %184 = vmatprep.subr.bf16.mxu0 0
      %185 = vmatpush1.bf16.msra.mxu0 0
      %186 = vmatprep.subr.bf16.mxu0 0
      %187 = vmatpush1.bf16.msra.mxu0 0
      %188 = vmatprep.subr.bf16.mxu0 0
      %189 = vmatpush1.bf16.msra.mxu0 0
      %190 = vmatprep.mubr.bf16.mxu0 0
      %191 = vmatmul.mubr.bf16.gmra.mrb[0].mxu0 %v152
      %v192 = vpop.f32.mrb[0].mxu0
      %v193 = vadd.f32 0.0, %v192
      %v194 = vpop.f32.mrb[0].mxu0
      %v195 = vpop.f32.mrb[0].mxu0
      %v196 = vadd.f32 0.0, %v195
      %v197 = vpop.f32.mrb[0].mxu0
      %198 = vdwg.mxu0
      %v199 = vpack.c.bf16 %v196, %v193
      %v201 = vunpack.c.l.b16 %v199
      %v202 = vunpack.c.h.b16 %v199
      %v203 = vpack.c.b16 %v201, %v201
      %v204 = vpack.c.b16 %v202, %v202
      %vm207 = vcmask 396288
      %208 = vst.msk [vmem:[%s140] sm:$0xf] %vm207, %v203
      %209 = vst.msk [vmem:[%s140 + $0x4] sm:$0xf] %vm207, %v204
      %p210 = scmp.lt.s32.totalorder %s13, 1
      %s211 = scalar_select %p210, %s13, 1
      %s212 = smul.addr %s211, 2
      %s213 = smul.addr %s212, 4
      %s214 = scalar_lea.vmem %s2, %s213
      // Predicated region
      $region29: #{decoder_forward.3} parent=27 // pred_check
        %p215 = pneg %p78
      $region30: #{decoder_forward.3} parent=27 // pred_check_branch
        %217 = sbr.rel (%p215) target = $region32
      $region31: #{decoder_forward.3} parent=27 // pred_region
        _
      $region32: #{decoder_forward.3} parent=27 // pred_fallthru
        _
    $region28: #{decoder_forward.3} parent=5 // pred_fallthru
      _
    %p218 = scmp.le.s32.totalorder 2, %s8
    // Predicated region
    $region33: #{decoder_forward.3} parent=5 // pred_check
      %p219 = pneg %p218
    $region34: #{decoder_forward.3} parent=5 // pred_check_branch
      %221 = sbr.rel (%p219) target = $region36
    $region35: #{decoder_forward.3} parent=5 // pred_region
      %s222 = ssub.s32 %s8, 2
      // Predicated region
      $region37: #{decoder_forward.3} parent=35 // pred_check
        %p223 = pneg %p84
      $region38: #{decoder_forward.3} parent=35 // pred_check_branch
        %225 = sbr.rel (%p223) target = $region40
      $region39: #{decoder_forward.3} parent=35 // pred_region
        %p226 = scmp.lt.s32.totalorder %s14, 1
        %s227 = scalar_select %p226, %s14, 1
        %s228 = smul.addr %s227, 2
        %s229 = smul.addr %s228, 4
        %s230 = scalar_lea.vmem %s2, %s229
      $region40: #{decoder_forward.3} parent=35 // pred_fallthru
        _
    $region36: #{decoder_forward.3} parent=5 // pred_fallthru
      _
  $region6: #{decoder_forward.3} parent=0 // loop_footer
    %s12 = sadd.s32 1, %s8
  $region7: #{decoder_forward.3} parent=0 // loop_footer_branch
    %7 = sbr.rel target = $region3
  $region8: #{decoder_forward.3} parent=0 // loop_exit
    _

// kernel: decoder_forward.4
$region0: #{decoder_forward.4}
  #allocation0 [shape = 'u32[]', space=smem, size = 0x4, offset = 0x4, fixed_abs, tag = 'smem constant byte address 0x4 - core index']
  #allocation1 [shape = 'u32[144,128]{1,0:T(1,128)}', space=vmem, size = 0x12000, scoped, tag = 'internal scratch']
  %s0 = inlined_call_operand.vmem [shape: bf16[2,16,7,7], index: 0, kind: input, shape index: {}]
  %s1 = inlined_call_operand.vmem [shape: bf16[16,16,7], index: 1, kind: input, shape index: {}]
  %s2 = inlined_call_operand.vmem [shape: bf16[16,7,16], index: 2, kind: input, shape index: {}]
  %s3 = inlined_call_operand.vmem [shape: f32[4,1,1], index: 3, kind: input, shape index: {}]
  %s4 = inlined_call_operand.vmem [shape: bf16[2,4,16,16], index: 4, kind: output, shape index: {}]
  %s5 = sld [smem:[#allocation0]]
  $region49: #{decoder_forward.4} parent=0
    _
  %s7 = ssub.s32 1, %s5
  %s8 = scalar_select 0, %s7, %s5
  loop: start=0, step=1, limit=4
  $region2: #{decoder_forward.4} parent=0 // loop_pre_header
    _
  $region3: #{decoder_forward.4} parent=0 // loop_header
    %s10 = sphi 0, %s14
    %p11 = scmp.ge.s32.totalorder %s10, 4
    %s20 = sphi 0, %s22
    %s23 = sphi 0, %s20
    %s24 = sphi 0, %s23
    %s40 = sphi 0, %s24
    %s44 = sphi 0, %s44
    %s46 = sphi 0, %s44
    %s47 = sphi 0, %s46
    %s61 = sphi 0, %s47
    %s65 = sphi 0, %s65
    %s67 = sphi 0, %s65
    %s68 = sphi 0, %s67
    %s82 = sphi 0, %s68
    %s86 = sphi 0, %s86
    %s88 = sphi 0, %s86
    %s89 = sphi 0, %s88
    %s103 = sphi 0, %s89
    %s109 = sphi 0, %s111
    %s112 = sphi 0, %s109
    %s113 = sphi 0, %s112
    %s129 = sphi 0, %s113
  $region4: #{decoder_forward.4} parent=0 // loop_header_branch
    %13 = sbr.rel (%p11) target = $region8
  $region5: #{decoder_forward.4} parent=0 // loop_body
    %s15 = ssub.s32 %s10, 1
    %s16 = ssub.s32 %s10, 2
    %s17 = sadd.s32 %s10, 1
    %s18 = ssub.s32 %s10, %s17
    %p19 = scmp.eq.s32.totalorder %s18, 0
    %s21 = sadd.s32 %s20, 1
    %s22 = scalar_select %p19, %s20, %s21
    %p25 = pneg %p19
    %p26 = scmp.eq.s32.totalorder %s10, 1
    %p27 = por %p25, %p26
    %p28 = scmp.ne.s32.totalorder %s20, %s23
    %p29 = scmp.eq.s32.totalorder %s10, 0
    %p30 = por %p28, %p29
    %p31 = scmp.ne.s32.totalorder %s20, %s23
    %p32 = scmp.eq.s32.totalorder %s15, 1
    %p33 = por %p31, %p32
    %p34 = scmp.ne.s32.totalorder %s23, %s24
    %p35 = scmp.eq.s32.totalorder %s15, 0
    %p36 = por %p34, %p35
    %p37 = scmp.ne.s32.totalorder %s23, %s24
    %p38 = scmp.eq.s32.totalorder %s16, 1
    %p39 = por %p37, %p38
    %p41 = scmp.ne.s32.totalorder %s24, %s40
    %p42 = scmp.eq.s32.totalorder %s16, 0
    %p43 = por %p41, %p42
    %s45 = sadd.s32 %s44, 1
    %p48 = scmp.eq.s32.totalorder %s10, 1
    %p49 = scmp.ne.s32.totalorder %s44, %s46
    %p50 = scmp.eq.s32.totalorder %s10, 0
    %p51 = por %p49, %p50
    %p52 = scmp.ne.s32.totalorder %s44, %s46
    %p53 = scmp.eq.s32.totalorder %s15, 1
    %p54 = por %p52, %p53
    %p55 = scmp.ne.s32.totalorder %s46, %s47
    %p56 = scmp.eq.s32.totalorder %s15, 0
    %p57 = por %p55, %p56
    %p58 = scmp.ne.s32.totalorder %s46, %s47
    %p59 = scmp.eq.s32.totalorder %s16, 1
    %p60 = por %p58, %p59
    %p62 = scmp.ne.s32.totalorder %s47, %s61
    %p63 = scmp.eq.s32.totalorder %s16, 0
    %p64 = por %p62, %p63
    %s66 = sadd.s32 %s65, 1
    %p69 = scmp.eq.s32.totalorder %s10, 1
    %p70 = scmp.ne.s32.totalorder %s65, %s67
    %p71 = scmp.eq.s32.totalorder %s10, 0
    %p72 = por %p70, %p71
    %p73 = scmp.ne.s32.totalorder %s65, %s67
    %p74 = scmp.eq.s32.totalorder %s15, 1
    %p75 = por %p73, %p74
    %p76 = scmp.ne.s32.totalorder %s67, %s68
    %p77 = scmp.eq.s32.totalorder %s15, 0
    %p78 = por %p76, %p77
    %p79 = scmp.ne.s32.totalorder %s67, %s68
    %p80 = scmp.eq.s32.totalorder %s16, 1
    %p81 = por %p79, %p80
    %p83 = scmp.ne.s32.totalorder %s68, %s82
    %p84 = scmp.eq.s32.totalorder %s16, 0
    %p85 = por %p83, %p84
    %s87 = sadd.s32 %s86, 1
    %p90 = scmp.eq.s32.totalorder %s10, 1
    %p91 = scmp.ne.s32.totalorder %s86, %s88
    %p92 = scmp.eq.s32.totalorder %s10, 0
    %p93 = por %p91, %p92
    %p94 = scmp.ne.s32.totalorder %s86, %s88
    %p95 = scmp.eq.s32.totalorder %s15, 1
    %p96 = por %p94, %p95
    %p97 = scmp.ne.s32.totalorder %s88, %s89
    %p98 = scmp.eq.s32.totalorder %s15, 0
    %p99 = por %p97, %p98
    %p100 = scmp.ne.s32.totalorder %s88, %s89
    %p101 = scmp.eq.s32.totalorder %s16, 1
    %p102 = por %p100, %p101
    %p104 = scmp.ne.s32.totalorder %s89, %s103
    %p105 = scmp.eq.s32.totalorder %s16, 0
    %p106 = por %p104, %p105
    %s107 = ssub.s32 %s10, %s17
    %p108 = scmp.eq.s32.totalorder %s107, 0
    %s110 = sadd.s32 %s109, 1
    %s111 = scalar_select %p108, %s109, %s110
    %p114 = pneg %p108
    %p115 = scmp.eq.s32.totalorder %s10, 1
    %p116 = por %p114, %p115
    %p117 = scmp.ne.s32.totalorder %s109, %s112
    %p118 = scmp.eq.s32.totalorder %s10, 0
    %p119 = por %p117, %p118
    %p120 = scmp.ne.s32.totalorder %s109, %s112
    %p121 = scmp.eq.s32.totalorder %s15, 1
    %p122 = por %p120, %p121
    %p123 = scmp.ne.s32.totalorder %s112, %s113
    %p124 = scmp.eq.s32.totalorder %s15, 0
    %p125 = por %p123, %p124
    %p126 = scmp.ne.s32.totalorder %s112, %s113
    %p127 = scmp.eq.s32.totalorder %s16, 1
    %p128 = por %p126, %p127
    %p130 = scmp.ne.s32.totalorder %s113, %s129
    %p131 = scmp.eq.s32.totalorder %s16, 0
    %p132 = por %p130, %p131
    %p133 = scmp.le.s32.totalorder 1, %s10
    %p134 = scmp.lt.s32.totalorder %s10, 3
    %p135 = pnand %p133, %p134
    %p136 = pneg %p135
    // Predicated region
    $region9: #{decoder_forward.4} parent=5 // pred_check
      _
    $region10: #{decoder_forward.4} parent=5 // pred_check_branch
      %138 = sbr.rel (%p135) target = $region12
    $region11: #{decoder_forward.4} parent=5 // pred_region
      %s139 = ssub.s32 %s10, 1
      // Predicated region
      $region13: #{decoder_forward.4} parent=11 // pred_check
        %p140 = pneg %p57
      $region14: #{decoder_forward.4} parent=11 // pred_check_branch
        %142 = sbr.rel (%p140) target = $region16
      $region15: #{decoder_forward.4} parent=11 // pred_region
        _
      $region16: #{decoder_forward.4} parent=11 // pred_fallthru
        _
      // Predicated region
      $region17: #{decoder_forward.4} parent=11 // pred_check
        %p143 = pneg %p78
      $region18: #{decoder_forward.4} parent=11 // pred_check_branch
        %145 = sbr.rel (%p143) target = $region20
      $region19: #{decoder_forward.4} parent=11 // pred_region
        _
      $region20: #{decoder_forward.4} parent=11 // pred_fallthru
        _
      // Predicated region
      $region21: #{decoder_forward.4} parent=11 // pred_check
        %p146 = pneg %p99
      $region22: #{decoder_forward.4} parent=11 // pred_check_branch
        %148 = sbr.rel (%p146) target = $region24
      $region23: #{decoder_forward.4} parent=11 // pred_region
        _
      $region24: #{decoder_forward.4} parent=11 // pred_fallthru
        _
    $region12: #{decoder_forward.4} parent=5 // pred_fallthru
      _
    %p149 = scmp.lt.s32.totalorder %s10, 2
    // Predicated region
    $region25: #{decoder_forward.4} parent=5 // pred_check
      %p150 = pneg %p149
    $region26: #{decoder_forward.4} parent=5 // pred_check_branch
      %152 = sbr.rel (%p150) target = $region28
    $region27: #{decoder_forward.4} parent=5 // pred_region
      // Predicated region
      $region29: #{decoder_forward.4} parent=27 // pred_check
        %p153 = pneg %p30
      $region30: #{decoder_forward.4} parent=27 // pred_check_branch
        %155 = sbr.rel (%p153) target = $region32
      $region31: #{decoder_forward.4} parent=27 // pred_region
        %p156 = scmp.lt.s32.totalorder %s10, 1
        %s157 = scalar_select %p156, %s10, 1
        %s158 = smul.addr %s157, 16
        %s159 = smul.addr %s158, 4
        %s160 = scalar_lea.vmem %s0, %s159
      $region32: #{decoder_forward.4} parent=27 // pred_fallthru
        _
    $region28: #{decoder_forward.4} parent=5 // pred_fallthru
      _
    %p161 = scmp.le.s32.totalorder 1, %s10
    %p162 = scmp.lt.s32.totalorder %s10, 3
    %p163 = pnand %p161, %p162
    %p164 = pneg %p163
    // Predicated region
    $region33: #{decoder_forward.4} parent=5 // pred_check
      _
    $region34: #{decoder_forward.4} parent=5 // pred_check_branch
      %166 = sbr.rel (%p163) target = $region36
    $region35: #{decoder_forward.4} parent=5 // pred_region
      %s167 = ssub.s32 %s10, 1
      %p168 = scmp.lt.s32.totalorder %s15, 1
      %s169 = scalar_select %p168, %s15, 1
      %s170 = smul.addr %s169, 16
      %s171 = smul.addr %s170, 4
      %s172 = scalar_lea.vmem %s0, %s171
      %p173 = pneg %p36
      %p174 = pneg %p33
      %p175 = pneg %p57
      %p176 = pneg %p54
      %p177 = pneg %p78
      %p178 = pneg %p75
      %p179 = pneg %p99
      %p180 = pneg %p96
      %p181 = pneg %p125
      %p182 = pneg %p122
      %p183 = scmp.lt.s32.totalorder %s15, 1
      %s184 = scalar_select %p183, %s15, 1
      %s185 = smul.addr %s184, 8
      %s186 = smul.addr %s185, 4
      %s187 = scalar_lea.vmem %s4, %s186
      %p188 = scmp.lt.s32.totalorder %s15, 1
      %s189 = scalar_select %p188, %s15, 1
      %s190 = smul.addr %s189, 16
      %s191 = smul.addr %s190, 4
      %s192 = scalar_lea.vmem %s0, %s191
      %p193 = scmp.lt.s32.totalorder %s15, 1
      %s194 = scalar_select %p193, %s15, 1
      %s195 = smul.addr %s194, 8
      %s196 = smul.addr %s195, 4
      %s197 = scalar_lea.vmem %s4, %s196
      %v199 = vld [vmem:[%s192] sm:$0xf]
      %v200 = vld [vmem:[%s192 + $0x4] sm:$0xf]
      %v201 = vld [vmem:[%s192 + $0x8] sm:$0xf]
      %v202 = vld [vmem:[%s192 + $0xc] sm:$0xf]
      %v203 = vld [vmem:[%s192 + $0x10] sm:$0xf]
      %v204 = vld [vmem:[%s192 + $0x14] sm:$0xf]
      %v205 = vld [vmem:[%s192 + $0x18] sm:$0xf]
      %v206 = vld [vmem:[%s192 + $0x1c] sm:$0xf]
      %v207 = vld [vmem:[%s192 + $0x20] sm:$0xf]
      %v208 = vld [vmem:[%s192 + $0x24] sm:$0xf]
      %v209 = vld [vmem:[%s192 + $0x28] sm:$0xf]
      %v210 = vld [vmem:[%s192 + $0x2c] sm:$0xf]
      %v211 = vld [vmem:[%s192 + $0x30] sm:$0xf]
      %v212 = vld [vmem:[%s192 + $0x34] sm:$0xf]
      %v213 = vld [vmem:[%s192 + $0x38] sm:$0xf]
      %v214 = vld [vmem:[%s192 + $0x3c] sm:$0xf]
      %v215 = vld [vmem:[%s1] sm:$0xf]
      %v216 = vld [vmem:[%s1 + $0x4] sm:$0xf]
      %v217 = vld [vmem:[%s1 + $0x8] sm:$0xf]
      %v218 = vld [vmem:[%s1 + $0xc] sm:$0xf]
      %v219 = vld [vmem:[%s1 + $0x10] sm:$0xf]
      %v220 = vld [vmem:[%s1 + $0x14] sm:$0xf]
      %v221 = vld [vmem:[%s1 + $0x18] sm:$0xf]
      %v222 = vld [vmem:[%s1 + $0x1c] sm:$0xf]
      %v223 = vld [vmem:[%s1 + $0x20] sm:$0xf]
      %v224 = vld [vmem:[%s1 + $0x24] sm:$0xf]
      %v225 = vld [vmem:[%s1 + $0x28] sm:$0xf]
      %v226 = vld [vmem:[%s1 + $0x2c] sm:$0xf]
      %v227 = vld [vmem:[%s1 + $0x30] sm:$0xf]
      %v228 = vld [vmem:[%s1 + $0x34] sm:$0xf]
      %v229 = vld [vmem:[%s1 + $0x38] sm:$0xf]
      %v230 = vld [vmem:[%s1 + $0x3c] sm:$0xf]
      %v231 = vld [vmem:[%s1 + $0x40] sm:$0xf]
      %v232 = vld [vmem:[%s1 + $0x44] sm:$0xf]
      %v233 = vld [vmem:[%s1 + $0x48] sm:$0xf]
      %v234 = vld [vmem:[%s1 + $0x4c] sm:$0xf]
      %v235 = vld [vmem:[%s1 + $0x50] sm:$0xf]
      %v236 = vld [vmem:[%s1 + $0x54] sm:$0xf]
      %v237 = vld [vmem:[%s1 + $0x58] sm:$0xf]
      %v238 = vld [vmem:[%s1 + $0x5c] sm:$0xf]
      %v239 = vld [vmem:[%s1 + $0x60] sm:$0xf]
      %v240 = vld [vmem:[%s1 + $0x64] sm:$0xf]
      %v241 = vld [vmem:[%s1 + $0x68] sm:$0xf]
      %v242 = vld [vmem:[%s1 + $0x6c] sm:$0xf]
      %v243 = vld [vmem:[%s1 + $0x70] sm:$0xf]
      %v244 = vld [vmem:[%s1 + $0x74] sm:$0xf]
      %v245 = vld [vmem:[%s1 + $0x78] sm:$0xf]
      %v246 = vld [vmem:[%s1 + $0x7c] sm:$0xf]
      %v249 = vunpack.c.l.b16 %v215
      %v250 = vunpack.c.l.b16 %v216
      %v251 = vpack.c.b16 %v250, %v249
      %vm252 = vcmask 56320
      %v254 = vsel %vm252, %v251, 0
      %vm256 = vcmask 1042432
      %vm257 = vcmask 1043456
      %v258 = vsel %vm256, 4294967295, 65535
      %v259 = vsel %vm257, %v258, 0
      %v261 = vand.u32 %v199, %v259
      %263 = vmatprep.subr.bf16.mxu0 0
      %264 = vmatpush1.bf16.msra.mxu0 %v261
      %265 = vmatprep.subr.bf16.mxu0 0
      %266 = vmatpush1.bf16.msra.mxu0 0
      %267 = vmatprep.subr.bf16.mxu0 0
      %268 = vmatpush1.bf16.msra.mxu0 0
      %269 = vmatprep.subr.bf16.mxu0 0
      %270 = vmatpush1.bf16.msra.mxu0 0
      %271 = vmatprep.subr.bf16.mxu0 0
      %272 = vmatpush1.bf16.msra.mxu0 0
      %273 = vmatprep.subr.bf16.mxu0 0
      %274 = vmatpush1.bf16.msra.mxu0 0
      %275 = vmatprep.subr.bf16.mxu0 0
      %276 = vmatpush1.bf16.msra.mxu0 0
      %277 = vmatprep.subr.bf16.mxu0 0
      %278 = vmatpush1.bf16.msra.mxu0 0
      %279 = vmatprep.subr.bf16.mxu0 0
      %280 = vmatpush1.bf16.msra.mxu0 0
      %281 = vmatprep.subr.bf16.mxu0 0
      %282 = vmatpush1.bf16.msra.mxu0 0
      %283 = vmatprep.subr.bf16.mxu0 0
      %284 = vmatpush1.bf16.msra.mxu0 0
      %285 = vmatprep.subr.bf16.mxu0 0
      %286 = vmatpush1.bf16.msra.mxu0 0
      %287 = vmatprep.subr.bf16.mxu0 0
      %288 = vmatpush1.bf16.msra.mxu0 0
      %289 = vmatprep.subr.bf16.mxu0 0
      %290 = vmatpush1.bf16.msra.mxu0 0
      %291 = vmatprep.subr.bf16.mxu0 0
      %292 = vmatpush1.bf16.msra.mxu0 0
      %293 = vmatprep.subr.bf16.mxu0 0
      %294 = vmatpush1.bf16.msra.mxu0 0
      %295 = vmatprep.mubr.bf16.mxu0 0
      %296 = vmatmul.mubr.bf16.gmra.mrb[0].mxu0 %v254
      %v297 = vpop.f32.mrb[0].mxu0
      %v298 = vadd.f32 0.0, %v297
      %v299 = vpop.f32.mrb[0].mxu0
      %v300 = vpop.f32.mrb[0].mxu0
      %v301 = vadd.f32 0.0, %v300
      %v302 = vpop.f32.mrb[0].mxu0
      %303 = vdwg.mxu0
      %v306 = vunpack.c.l.b16 %v217
      %v307 = vunpack.c.l.b16 %v218
      %v308 = vpack.c.b16 %v307, %v306
      %v310 = vsel %vm252, %v308, 0
      %v313 = vand.u32 %v200, %v259
      %315 = vmatprep.subr.bf16.mxu0 0
      %316 = vmatpush1.bf16.msra.mxu0 %v313
      %317 = vmatprep.subr.bf16.mxu0 0
      %318 = vmatpush1.bf16.msra.mxu0 0
      %319 = vmatprep.subr.bf16.mxu0 0
      %320 = vmatpush1.bf16.msra.mxu0 0
      %321 = vmatprep.subr.bf16.mxu0 0
      %322 = vmatpush1.bf16.msra.mxu0 0
      %323 = vmatprep.subr.bf16.mxu0 0
      %324 = vmatpush1.bf16.msra.mxu0 0
      %325 = vmatprep.subr.bf16.mxu0 0
      %326 = vmatpush1.bf16.msra.mxu0 0
      %327 = vmatprep.subr.bf16.mxu0 0
      %328 = vmatpush1.bf16.msra.mxu0 0
      %329 = vmatprep.subr.bf16.mxu0 0
      %330 = vmatpush1.bf16.msra.mxu0 0
      %331 = vmatprep.subr.bf16.mxu0 0
      %332 = vmatpush1.bf16.msra.mxu0 0
      %333 = vmatprep.subr.bf16.mxu0 0
      %334 = vmatpush1.bf16.msra.mxu0 0
      %335 = vmatprep.subr.bf16.mxu0 0
      %336 = vmatpush1.bf16.msra.mxu0 0
      %337 = vmatprep.subr.bf16.mxu0 0
      %338 = vmatpush1.bf16.msra.mxu0 0
      %339 = vmatprep.subr.bf16.mxu0 0
      %340 = vmatpush1.bf16.msra.mxu0 0
      %341 = vmatprep.subr.bf16.mxu0 0
      %342 = vmatpush1.bf16.msra.mxu0 0
      %343 = vmatprep.subr.bf16.mxu0 0
      %344 = vmatpush1.bf16.msra.mxu0 0
      %345 = vmatprep.subr.bf16.mxu0 0
      %346 = vmatpush1.bf16.msra.mxu0 0
      %347 = vmatprep.mubr.bf16.mxu0 0
      %348 = vmatmul.mubr.bf16.gmra.mrb[0].mxu0 %v310
      %v349 = vpop.f32.mrb[0].mxu0
      %v350 = vadd.f32 0.0, %v349
      %v351 = vpop.f32.mrb[0].mxu0
      %v352 = vpop.f32.mrb[0].mxu0
      %v353 = vadd.f32 0.0, %v352
      %v354 = vpop.f32.mrb[0].mxu0
      %355 = vdwg.mxu0
      %v358 = vunpack.c.l.b16 %v219
      %v359 = vunpack.c.l.b16 %v220
      %v360 = vpack.c.b16 %v359, %v358
      %v362 = vsel %vm252, %v360, 0
      %v365 = vand.u32 %v201, %v259
      %367 = vmatprep.subr.bf16.mxu0 0
      %368 = vmatpush1.bf16.msra.mxu0 %v365
      %369 = vmatprep.subr.bf16.mxu0 0
      %370 = vmatpush1.bf16.msra.mxu0 0
      %371 = vmatprep.subr.bf16.mxu0 0
      %372 = vmatpush1.bf16.msra.mxu0 0
      %373 = vmatprep.subr.bf16.mxu0 0
      %374 = vmatpush1.bf16.msra.mxu0 0
      %375 = vmatprep.subr.bf16.mxu0 0
      %376 = vmatpush1.bf16.msra.mxu0 0
      %377 = vmatprep.subr.bf16.mxu0 0
      %378 = vmatpush1.bf16.msra.mxu0 0
      %379 = vmatprep.subr.bf16.mxu0 0
      %380 = vmatpush1.bf16.msra.mxu0 0
      %381 = vmatprep.subr.bf16.mxu0 0
      %382 = vmatpush1.bf16.msra.mxu0 0
      %383 = vmatprep.subr.bf16.mxu0 0
      %384 = vmatpush1.bf16.msra.mxu0 0
      %385 = vmatprep.subr.bf16.mxu0 0
      %386 = vmatpush1.bf16.msra.mxu0 0
      %387 = vmatprep.subr.bf16.mxu0 0
      %388 = vmatpush1.bf16.msra.mxu0 0
      %389 = vmatprep.subr.bf16.mxu0 0
      %390 = vmatpush1.bf16.msra.mxu0 0
      %391 = vmatprep.subr.bf16.mxu0 0
      %392 = vmatpush1.bf16.msra.mxu0 0
      %393 = vmatprep.subr.bf16.mxu0 0
      %394 = vmatpush1.bf16.msra.mxu0 0
      %395 = vmatprep.subr.bf16.mxu0 0
      %396 = vmatpush1.bf16.msra.mxu0 0
      %397 = vmatprep.subr.bf16.mxu0 0
      %398 = vmatpush1.bf16.msra.mxu0 0
      %399 = vmatprep.mubr.bf16.mxu0 0
      %400 = vmatmul.mubr.bf16.gmra.mrb[0].mxu0 %v362
      %v401 = vpop.f32.mrb[0].mxu0
      %v402 = vadd.f32 0.0, %v401
      %v403 = vpop.f32.mrb[0].mxu0
      %v404 = vpop.f32.mrb[0].mxu0
      %v405 = vadd.f32 0.0, %v404
      %v406 = vpop.f32.mrb[0].mxu0
      %407 = vdwg.mxu0
      %v410 = vunpack.c.l.b16 %v221
      %v411 = vunpack.c.l.b16 %v222
      %v412 = vpack.c.b16 %v411, %v410
      %v414 = vsel %vm252, %v412, 0
      %v417 = vand.u32 %v202, %v259
      %419 = vmatprep.subr.bf16.mxu0 0
      %420 = vmatpush1.bf16.msra.mxu0 %v417
      %421 = vmatprep.subr.bf16.mxu0 0
      %422 = vmatpush1.bf16.msra.mxu0 0
      %423 = vmatprep.subr.bf16.mxu0 0
      %424 = vmatpush1.bf16.msra.mxu0 0
      %425 = vmatprep.subr.bf16.mxu0 0
      %426 = vmatpush1.bf16.msra.mxu0 0
      %427 = vmatprep.subr.bf16.mxu0 0
      %428 = vmatpush1.bf16.msra.mxu0 0
      %429 = vmatprep.subr.bf16.mxu0 0
      %430 = vmatpush1.bf16.msra.mxu0 0
      %431 = vmatprep.subr.bf16.mxu0 0
      %432 = vmatpush1.bf16.msra.mxu0 0
      %433 = vmatprep.subr.bf16.mxu0 0
      %434 = vmatpush1.bf16.msra.mxu0 0
      %435 = vmatprep.subr.bf16.mxu0 0
      %436 = vmatpush1.bf16.msra.mxu0 0
      %437 = vmatprep.subr.bf16.mxu0 0
      %438 = vmatpush1.bf16.msra.mxu0 0
      %439 = vmatprep.subr.bf16.mxu0 0
      %440 = vmatpush1.bf16.msra.mxu0 0
      %441 = vmatprep.subr.bf16.mxu0 0
      %442 = vmatpush1.bf16.msra.mxu0 0
      %443 = vmatprep.subr.bf16.mxu0 0
      %444 = vmatpush1.bf16.msra.mxu0 0
      %445 = vmatprep.subr.bf16.mxu0 0
      %446 = vmatpush1.bf16.msra.mxu0 0
      %447 = vmatprep.subr.bf16.mxu0 0
      %448 = vmatpush1.bf16.msra.mxu0 0
      %449 = vmatprep.subr.bf16.mxu0 0
      %450 = vmatpush1.bf16.msra.mxu0 0
      %451 = vmatprep.mubr.bf16.mxu0 0
      %452 = vmatmul.mubr.bf16.gmra.mrb[0].mxu0 %v414
      %v453 = vpop.f32.mrb[0].mxu0
      %v454 = vadd.f32 0.0, %v453
      %v455 = vpop.f32.mrb[0].mxu0
      %v456 = vpop.f32.mrb[0].mxu0
      %v457 = vadd.f32 0.0, %v456
      %v458 = vpop.f32.mrb[0].mxu0
      %459 = vdwg.mxu0
      %v462 = vunpack.c.l.b16 %v223
      %v463 = vunpack.c.l.b16 %v224
      %v464 = vpack.c.b16 %v463, %v462
      %v466 = vsel %vm252, %v464, 0
      %v469 = vand.u32 %v203, %v259
      %471 = vmatprep.subr.bf16.mxu0 0
      %472 = vmatpush1.bf16.msra.mxu0 %v469
      %473 = vmatprep.subr.bf16.mxu0 0
      %474 = vmatpush1.bf16.msra.mxu0 0
      %475 = vmatprep.subr.bf16.mxu0 0
      %476 = vmatpush1.bf16.msra.mxu0 0
      %477 = vmatprep.subr.bf16.mxu0 0
      %478 = vmatpush1.bf16.msra.mxu0 0
      %479 = vmatprep.subr.bf16.mxu0 0
      %480 = vmatpush1.bf16.msra.mxu0 0
      %481 = vmatprep.subr.bf16.mxu0 0
      %482 = vmatpush1.bf16.msra.mxu0 0
      %483 = vmatprep.subr.bf16.mxu0 0
      %484 = vmatpush1.bf16.msra.mxu0 0
      %485 = vmatprep.subr.bf16.mxu0 0
      %486 = vmatpush1.bf16.msra.mxu0 0
      %487 = vmatprep.subr.bf16.mxu0 0
      %488 = vmatpush1.bf16.msra.mxu0 0
      %489 = vmatprep.subr.bf16.mxu0 0
      %490 = vmatpush1.bf16.msra.mxu0 0
      %491 = vmatprep.subr.bf16.mxu0 0
      %492 = vmatpush1.bf16.msra.mxu0 0
      %493 = vmatprep.subr.bf16.mxu0 0
      %494 = vmatpush1.bf16.msra.mxu0 0
      %495 = vmatprep.subr.bf16.mxu0 0
      %496 = vmatpush1.bf16.msra.mxu0 0
      %497 = vmatprep.subr.bf16.mxu0 0
      %498 = vmatpush1.bf16.msra.mxu0 0
      %499 = vmatprep.subr.bf16.mxu0 0
      %500 = vmatpush1.bf16.msra.mxu0 0
      %501 = vmatprep.subr.bf16.mxu0 0
      %502 = vmatpush1.bf16.msra.mxu0 0
      %503 = vmatprep.mubr.bf16.mxu0 0
      %504 = vmatmul.mubr.bf16.gmra.mrb[0].mxu0 %v466
      %v505 = vpop.f32.mrb[0].mxu0
      %v506 = vadd.f32 0.0, %v505
      %v507 = vpop.f32.mrb[0].mxu0
      %v508 = vpop.f32.mrb[0].mxu0
      %v509 = vadd.f32 0.0, %v508
      %v510 = vpop.f32.mrb[0].mxu0
      %511 = vdwg.mxu0
      %v514 = vunpack.c.l.b16 %v225
      %v515 = vunpack.c.l.b16 %v226
      %v516 = vpack.c.b16 %v515, %v514
      %v518 = vsel %vm252, %v516, 0
      %v521 = vand.u32 %v204, %v259
      %523 = vmatprep.subr.bf16.mxu0 0
      %524 = vmatpush1.bf16.msra.mxu0 %v521
      %525 = vmatprep.subr.bf16.mxu0 0
      %526 = vmatpush1.bf16.msra.mxu0 0
      %527 = vmatprep.subr.bf16.mxu0 0
      %528 = vmatpush1.bf16.msra.mxu0 0
      %529 = vmatprep.subr.bf16.mxu0 0
      %530 = vmatpush1.bf16.msra.mxu0 0
      %531 = vmatprep.subr.bf16.mxu0 0
      %532 = vmatpush1.bf16.msra.mxu0 0
      %533 = vmatprep.subr.bf16.mxu0 0
      %534 = vmatpush1.bf16.msra.mxu0 0
      %535 = vmatprep.subr.bf16.mxu0 0
      %536 = vmatpush1.bf16.msra.mxu0 0
      %537 = vmatprep.subr.bf16.mxu0 0
      %538 = vmatpush1.bf16.msra.mxu0 0
      %539 = vmatprep.subr.bf16.mxu0 0
      %540 = vmatpush1.bf16.msra.mxu0 0
      %541 = vmatprep.subr.bf16.mxu0 0
      %542 = vmatpush1.bf16.msra.mxu0 0
      %543 = vmatprep.subr.bf16.mxu0 0
      %544 = vmatpush1.bf16.msra.mxu0 0
      %545 = vmatprep.subr.bf16.mxu0 0
      %546 = vmatpush1.bf16.msra.mxu0 0
      %547 = vmatprep.subr.bf16.mxu0 0
      %548 = vmatpush1.bf16.msra.mxu0 0
      %549 = vmatprep.subr.bf16.mxu0 0
      %550 = vmatpush1.bf16.msra.mxu0 0
      %551 = vmatprep.subr.bf16.mxu0 0
      %552 = vmatpush1.bf16.msra.mxu0 0
      %553 = vmatprep.subr.bf16.mxu0 0
      %554 = vmatpush1.bf16.msra.mxu0 0
      %555 = vmatprep.mubr.bf16.mxu0 0
      %556 = vmatmul.mubr.bf16.gmra.mrb[0].mxu0 %v518
      %v557 = vpop.f32.mrb[0].mxu0
      %v558 = vadd.f32 0.0, %v557
      %v559 = vpop.f32.mrb[0].mxu0
      %v560 = vpop.f32.mrb[0].mxu0
      %v561 = vadd.f32 0.0, %v560
      %v562 = vpop.f32.mrb[0].mxu0
      %563 = vdwg.mxu0
      %v566 = vunpack.c.l.b16 %v227
      %v567 = vunpack.c.l.b16 %v228
      %v568 = vpack.c.b16 %v567, %v566
      %v570 = vsel %vm252, %v568, 0
      %v573 = vand.u32 %v205, %v259
      %575 = vmatprep.subr.bf16.mxu0 0
      %576 = vmatpush1.bf16.msra.mxu0 %v573
      %577 = vmatprep.subr.bf16.mxu0 0
      %578 = vmatpush1.bf16.msra.mxu0 0
      %579 = vmatprep.subr.bf16.mxu0 0
      %580 = vmatpush1.bf16.msra.mxu0 0
      %581 = vmatprep.subr.bf16.mxu0 0
      %582 = vmatpush1.bf16.msra.mxu0 0
      %583 = vmatprep.subr.bf16.mxu0 0
      %584 = vmatpush1.bf16.msra.mxu0 0
      %585 = vmatprep.subr.bf16.mxu0 0
      %586 = vmatpush1.bf16.msra.mxu0 0
      %587 = vmatprep.subr.bf16.mxu0 0
      %588 = vmatpush1.bf16.msra.mxu0 0
      %589 = vmatprep.subr.bf16.mxu0 0
      %590 = vmatpush1.bf16.msra.mxu0 0
      %591 = vmatprep.subr.bf16.mxu0 0
      %592 = vmatpush1.bf16.msra.mxu0 0
      %593 = vmatprep.subr.bf16.mxu0 0
      %594 = vmatpush1.bf16.msra.mxu0 0
      %595 = vmatprep.subr.bf16.mxu0 0
      %596 = vmatpush1.bf16.msra.mxu0 0
      %597 = vmatprep.subr.bf16.mxu0 0
      %598 = vmatpush1.bf16.msra.mxu0 0
      %599 = vmatprep.subr.bf16.mxu0 0
      %600 = vmatpush1.bf16.msra.mxu0 0
      %601 = vmatprep.subr.bf16.mxu0 0
      %602 = vmatpush1.bf16.msra.mxu0 0
      %603 = vmatprep.subr.bf16.mxu0 0
      %604 = vmatpush1.bf16.msra.mxu0 0
      %605 = vmatprep.subr.bf16.mxu0 0
      %606 = vmatpush1.bf16.msra.mxu0 0
      %607 = vmatprep.mubr.bf16.mxu0 0
      %608 = vmatmul.mubr.bf16.gmra.mrb[0].mxu0 %v570
      %v609 = vpop.f32.mrb[0].mxu0
      %v610 = vadd.f32 0.0, %v609
      %v611 = vpop.f32.mrb[0].mxu0
      %v612 = vpop.f32.mrb[0].mxu0
      %v613 = vadd.f32 0.0, %v612
      %v614 = vpop.f32.mrb[0].mxu0
      %615 = vdwg.mxu0
      %v618 = vunpack.c.l.b16 %v229
      %v619 = vunpack.c.l.b16 %v230
      %v620 = vpack.c.b16 %v619, %v618
      %v622 = vsel %vm252, %v620, 0
      %v625 = vand.u32 %v206, %v259
      %627 = vmatprep.subr.bf16.mxu0 0
      %628 = vmatpush1.bf16.msra.mxu0 %v625
      %629 = vmatprep.subr.bf16.mxu0 0
      %630 = vmatpush1.bf16.msra.mxu0 0
      %631 = vmatprep.subr.bf16.mxu0 0
      %632 = vmatpush1.bf16.msra.mxu0 0
      %633 = vmatprep.subr.bf16.mxu0 0
      %634 = vmatpush1.bf16.msra.mxu0 0
      %635 = vmatprep.subr.bf16.mxu0 0
      %636 = vmatpush1.bf16.msra.mxu0 0
      %637 = vmatprep.subr.bf16.mxu0 0
      %638 = vmatpush1.bf16.msra.mxu0 0
      %639 = vmatprep.subr.bf16.mxu0 0
      %640 = vmatpush1.bf16.msra.mxu0 0
      %641 = vmatprep.subr.bf16.mxu0 0
      %642 = vmatpush1.bf16.msra.mxu0 0
      %643 = vmatprep.subr.bf16.mxu0 0
      %644 = vmatpush1.bf16.msra.mxu0 0
      %645 = vmatprep.subr.bf16.mxu0 0
      %646 = vmatpush1.bf16.msra.mxu0 0
      %647 = vmatprep.subr.bf16.mxu0 0
      %648 = vmatpush1.bf16.msra.mxu0 0
      %649 = vmatprep.subr.bf16.mxu0 0
      %650 = vmatpush1.bf16.msra.mxu0 0
      %651 = vmatprep.subr.bf16.mxu0 0
      %652 = vmatpush1.bf16.msra.mxu0 0
      %653 = vmatprep.subr.bf16.mxu0 0
      %654 = vmatpush1.bf16.msra.mxu0 0
      %655 = vmatprep.subr.bf16.mxu0 0
      %656 = vmatpush1.bf16.msra.mxu0 0
      %657 = vmatprep.subr.bf16.mxu0 0
      %658 = vmatpush1.bf16.msra.mxu0 0
      %659 = vmatprep.mubr.bf16.mxu0 0
      %660 = vmatmul.mubr.bf16.gmra.mrb[0].mxu0 %v622
      %v661 = vpop.f32.mrb[0].mxu0
      %v662 = vadd.f32 0.0, %v661
      %v663 = vpop.f32.mrb[0].mxu0
      %v664 = vpop.f32.mrb[0].mxu0
      %v665 = vadd.f32 0.0, %v664
      %v666 = vpop.f32.mrb[0].mxu0
      %667 = vdwg.mxu0
      %v670 = vunpack.c.l.b16 %v231
      %v671 = vunpack.c.l.b16 %v232
      %v672 = vpack.c.b16 %v671, %v670
      %v674 = vsel %vm252, %v672, 0
      %v677 = vand.u32 %v207, %v259
      %679 = vmatprep.subr.bf16.mxu0 0
      %680 = vmatpush1.bf16.msra.mxu0 %v677
      %681 = vmatprep.subr.bf16.mxu0 0
      %682 = vmatpush1.bf16.msra.mxu0 0
      %683 = vmatprep.subr.bf16.mxu0 0
      %684 = vmatpush1.bf16.msra.mxu0 0
      %685 = vmatprep.subr.bf16.mxu0 0
      %686 = vmatpush1.bf16.msra.mxu0 0
      %687 = vmatprep.subr.bf16.mxu0 0
      %688 = vmatpush1.bf16.msra.mxu0 0
      %689 = vmatprep.subr.bf16.mxu0 0
      %690 = vmatpush1.bf16.msra.mxu0 0
      %691 = vmatprep.subr.bf16.mxu0 0
      %692 = vmatpush1.bf16.msra.mxu0 0
      %693 = vmatprep.subr.bf16.mxu0 0
      %694 = vmatpush1.bf16.msra.mxu0 0
      %695 = vmatprep.subr.bf16.mxu0 0
      %696 = vmatpush1.bf16.msra.mxu0 0
      %697 = vmatprep.subr.bf16.mxu0 0
      %698 = vmatpush1.bf16.msra.mxu0 0
      %699 = vmatprep.subr.bf16.mxu0 0
      %700 = vmatpush1.bf16.msra.mxu0 0
      %701 = vmatprep.subr.bf16.mxu0 0
      %702 = vmatpush1.bf16.msra.mxu0 0
      %703 = vmatprep.subr.bf16.mxu0 0
      %704 = vmatpush1.bf16.msra.mxu0 0
      %705 = vmatprep.subr.bf16.mxu0 0
      %706 = vmatpush1.bf16.msra.mxu0 0
      %707 = vmatprep.subr.bf16.mxu0 0
      %708 = vmatpush1.bf16.msra.mxu0 0
      %709 = vmatprep.subr.bf16.mxu0 0
      %710 = vmatpush1.bf16.msra.mxu0 0
      %711 = vmatprep.mubr.bf16.mxu0 0
      %712 = vmatmul.mubr.bf16.gmra.mrb[0].mxu0 %v674
      %v713 = vpop.f32.mrb[0].mxu0
      %v714 = vadd.f32 0.0, %v713
      %v715 = vpop.f32.mrb[0].mxu0
      %v716 = vpop.f32.mrb[0].mxu0
      %v717 = vadd.f32 0.0, %v716
      %v718 = vpop.f32.mrb[0].mxu0
      %719 = vdwg.mxu0
      %v722 = vunpack.c.l.b16 %v233
      %v723 = vunpack.c.l.b16 %v234
      %v724 = vpack.c.b16 %v723, %v722
      %v726 = vsel %vm252, %v724, 0
      %v729 = vand.u32 %v208, %v259
      %731 = vmatprep.subr.bf16.mxu0 0
      %732 = vmatpush1.bf16.msra.mxu0 %v729
      %733 = vmatprep.subr.bf16.mxu0 0
      %734 = vmatpush1.bf16.msra.mxu0 0
      %735 = vmatprep.subr.bf16.mxu0 0
      %736 = vmatpush1.bf16.msra.mxu0 0
      %737 = vmatprep.subr.bf16.mxu0 0
      %738 = vmatpush1.bf16.msra.mxu0 0
      %739 = vmatprep.subr.bf16.mxu0 0
      %740 = vmatpush1.bf16.msra.mxu0 0
      %741 = vmatprep.subr.bf16.mxu0 0
      %742 = vmatpush1.bf16.msra.mxu0 0
      %743 = vmatprep.subr.bf16.mxu0 0
      %744 = vmatpush1.bf16.msra.mxu0 0
      %745 = vmatprep.subr.bf16.mxu0 0
      %746 = vmatpush1.bf16.msra.mxu0 0
      %747 = vmatprep.subr.bf16.mxu0 0
      %748 = vmatpush1.bf16.msra.mxu0 0
      %749 = vmatprep.subr.bf16.mxu0 0
      %750 = vmatpush1.bf16.msra.mxu0 0
      %751 = vmatprep.subr.bf16.mxu0 0
      %752 = vmatpush1.bf16.msra.mxu0 0
      %753 = vmatprep.subr.bf16.mxu0 0
      %754 = vmatpush1.bf16.msra.mxu0 0
      %755 = vmatprep.subr.bf16.mxu0 0
      %756 = vmatpush1.bf16.msra.mxu0 0
      %757 = vmatprep.subr.bf16.mxu0 0
      %758 = vmatpush1.bf16.msra.mxu0 0
      %759 = vmatprep.subr.bf16.mxu0 0
      %760 = vmatpush1.bf16.msra.mxu0 0
      %761 = vmatprep.subr.bf16.mxu0 0
      %762 = vmatpush1.bf16.msra.mxu0 0
      %763 = vmatprep.mubr.bf16.mxu0 0
      %764 = vmatmul.mubr.bf16.gmra.mrb[0].mxu0 %v726
      %v765 = vpop.f32.mrb[0].mxu0
      %v766 = vadd.f32 0.0, %v765
      %v767 = vpop.f32.mrb[0].mxu0
      %v768 = vpop.f32.mrb[0].mxu0
      %v769 = vadd.f32 0.0, %v768
      %v770 = vpop.f32.mrb[0].mxu0
      %771 = vdwg.mxu0
      %v774 = vunpack.c.l.b16 %v235
      %v775 = vunpack.c.l.b16 %v236
      %v776 = vpack.c.b16 %v775, %v774
      %v778 = vsel %vm252, %v776, 0
      %v781 = vand.u32 %v209, %v259
      %783 = vmatprep.subr.bf16.mxu0 0
      %784 = vmatpush1.bf16.msra.mxu0 %v781
      %785 = vmatprep.subr.bf16.mxu0 0
      %786 = vmatpush1.bf16.msra.mxu0 0
      %787 = vmatprep.subr.bf16.mxu0 0
      %788 = vmatpush1.bf16.msra.mxu0 0
      %789 = vmatprep.subr.bf16.mxu0 0
      %790 = vmatpush1.bf16.msra.mxu0 0
      %791 = vmatprep.subr.bf16.mxu0 0
      %792 = vmatpush1.bf16.msra.mxu0 0
      %793 = vmatprep.subr.bf16.mxu0 0
      %794 = vmatpush1.bf16.msra.mxu0 0
      %795 = vmatprep.subr.bf16.mxu0 0
      %796 = vmatpush1.bf16.msra.mxu0 0
      %797 = vmatprep.subr.bf16.mxu0 0
      %798 = vmatpush1.bf16.msra.mxu0 0
      %799 = vmatprep.subr.bf16.mxu0 0
      %800 = vmatpush1.bf16.msra.mxu0 0
      %801 = vmatprep.subr.bf16.mxu0 0
      %802 = vmatpush1.bf16.msra.mxu0 0
      %803 = vmatprep.subr.bf16.mxu0 0
      %804 = vmatpush1.bf16.msra.mxu0 0
      %805 = vmatprep.subr.bf16.mxu0 0
      %806 = vmatpush1.bf16.msra.mxu0 0
      %807 = vmatprep.subr.bf16.mxu0 0
      %808 = vmatpush1.bf16.msra.mxu0 0
      %809 = vmatprep.subr.bf16.mxu0 0
      %810 = vmatpush1.bf16.msra.mxu0 0
      %811 = vmatprep.subr.bf16.mxu0 0
      %812 = vmatpush1.bf16.msra.mxu0 0
      %813 = vmatprep.subr.bf16.mxu0 0
      %814 = vmatpush1.bf16.msra.mxu0 0
      %815 = vmatprep.mubr.bf16.mxu0 0
      %816 = vmatmul.mubr.bf16.gmra.mrb[0].mxu0 %v778
      %v817 = vpop.f32.mrb[0].mxu0
      %v818 = vadd.f32 0.0, %v817
      %v819 = vpop.f32.mrb[0].mxu0
      %v820 = vpop.f32.mrb[0].mxu0
      %v821 = vadd.f32 0.0, %v820
      %v822 = vpop.f32.mrb[0].mxu0
      %823 = vdwg.mxu0
      %v826 = vunpack.c.l.b16 %v237
      %v827 = vunpack.c.l.b16 %v238
      %v828 = vpack.c.b16 %v827, %v826
      %v830 = vsel %vm252, %v828, 0
      %v833 = vand.u32 %v210, %v259
      %835 = vmatprep.subr.bf16.mxu0 0
      %836 = vmatpush1.bf16.msra.mxu0 %v833
      %837 = vmatprep.subr.bf16.mxu0 0
      %838 = vmatpush1.bf16.msra.mxu0 0
      %839 = vmatprep.subr.bf16.mxu0 0
      %840 = vmatpush1.bf16.msra.mxu0 0
      %841 = vmatprep.subr.bf16.mxu0 0
      %842 = vmatpush1.bf16.msra.mxu0 0
      %843 = vmatprep.subr.bf16.mxu0 0
      %844 = vmatpush1.bf16.msra.mxu0 0
      %845 = vmatprep.subr.bf16.mxu0 0
      %846 = vmatpush1.bf16.msra.mxu0 0
      %847 = vmatprep.subr.bf16.mxu0 0
      %848 = vmatpush1.bf16.msra.mxu0 0
      %849 = vmatprep.subr.bf16.mxu0 0
      %850 = vmatpush1.bf16.msra.mxu0 0
      %851 = vmatprep.subr.bf16.mxu0 0
      %852 = vmatpush1.bf16.msra.mxu0 0
      %853 = vmatprep.subr.bf16.mxu0 0
      %854 = vmatpush1.bf16.msra.mxu0 0
      %855 = vmatprep.subr.bf16.mxu0 0
      %856 = vmatpush1.bf16.msra.mxu0 0
      %857 = vmatprep.subr.bf16.mxu0 0
      %858 = vmatpush1.bf16.msra.mxu0 0
      %859 = vmatprep.subr.bf16.mxu0 0
      %860 = vmatpush1.bf16.msra.mxu0 0
      %861 = vmatprep.subr.bf16.mxu0 0
      %862 = vmatpush1.bf16.msra.mxu0 0
      %863 = vmatprep.subr.bf16.mxu0 0
      %864 = vmatpush1.bf16.msra.mxu0 0
      %865 = vmatprep.subr.bf16.mxu0 0
      %866 = vmatpush1.bf16.msra.mxu0 0
      %867 = vmatprep.mubr.bf16.mxu0 0
      %868 = vmatmul.mubr.bf16.gmra.mrb[0].mxu0 %v830
      %v869 = vpop.f32.mrb[0].mxu0
      %v870 = vadd.f32 0.0, %v869
      %v871 = vpop.f32.mrb[0].mxu0
      %v872 = vpop.f32.mrb[0].mxu0
      %v873 = vadd.f32 0.0, %v872
      %v874 = vpop.f32.mrb[0].mxu0
      %875 = vdwg.mxu0
      %v878 = vunpack.c.l.b16 %v239
      %v879 = vunpack.c.l.b16 %v240
      %v880 = vpack.c.b16 %v879, %v878
      %v882 = vsel %vm252, %v880, 0
      %v885 = vand.u32 %v211, %v259
      %887 = vmatprep.subr.bf16.mxu0 0
      %888 = vmatpush1.bf16.msra.mxu0 %v885
      %889 = vmatprep.subr.bf16.mxu0 0
      %890 = vmatpush1.bf16.msra.mxu0 0
      %891 = vmatprep.subr.bf16.mxu0 0
      %892 = vmatpush1.bf16.msra.mxu0 0
      %893 = vmatprep.subr.bf16.mxu0 0
      %894 = vmatpush1.bf16.msra.mxu0 0
      %895 = vmatprep.subr.bf16.mxu0 0
      %896 = vmatpush1.bf16.msra.mxu0 0
      %897 = vmatprep.subr.bf16.mxu0 0
      %898 = vmatpush1.bf16.msra.mxu0 0
      %899 = vmatprep.subr.bf16.mxu0 0
      %900 = vmatpush1.bf16.msra.mxu0 0
      %901 = vmatprep.subr.bf16.mxu0 0
      %902 = vmatpush1.bf16.msra.mxu0 0
      %903 = vmatprep.subr.bf16.mxu0 0
      %904 = vmatpush1.bf16.msra.mxu0 0
      %905 = vmatprep.subr.bf16.mxu0 0
      %906 = vmatpush1.bf16.msra.mxu0 0
      %907 = vmatprep.subr.bf16.mxu0 0
      %908 = vmatpush1.bf16.msra.mxu0 0
      %909 = vmatprep.subr.bf16.mxu0 0
      %910 = vmatpush1.bf16.msra.mxu0 0
      %911 = vmatprep.subr.bf16.mxu0 0
      %912 = vmatpush1.bf16.msra.mxu0 0
      %913 = vmatprep.subr.bf16.mxu0 0
      %914 = vmatpush1.bf16.msra.mxu0 0
      %915 = vmatprep.subr.bf16.mxu0 0
      %916 = vmatpush1.bf16.msra.mxu0 0
      %917 = vmatprep.subr.bf16.mxu0 0
      %918 = vmatpush1.bf16.msra.mxu0 0
      %919 = vmatprep.mubr.bf16.mxu0 0
      %920 = vmatmul.mubr.bf16.gmra.mrb[0].mxu0 %v882
      %v921 = vpop.f32.mrb[0].mxu0
      %v922 = vadd.f32 0.0, %v921
      %v923 = vpop.f32.mrb[0].mxu0
      %v924 = vpop.f32.mrb[0].mxu0
      %v925 = vadd.f32 0.0, %v924
      %v926 = vpop.f32.mrb[0].mxu0
      %927 = vdwg.mxu0
      %v930 = vunpack.c.l.b16 %v241
      %v931 = vunpack.c.l.b16 %v242
      %v932 = vpack.c.b16 %v931, %v930
      %v934 = vsel %vm252, %v932, 0
      %v937 = vand.u32 %v212, %v259
      %939 = vmatprep.subr.bf16.mxu0 0
      %940 = vmatpush1.bf16.msra.mxu0 %v937
      %941 = vmatprep.subr.bf16.mxu0 0
      %942 = vmatpush1.bf16.msra.mxu0 0
      %943 = vmatprep.subr.bf16.mxu0 0
      %944 = vmatpush1.bf16.msra.mxu0 0
      %945 = vmatprep.subr.bf16.mxu0 0
      %946 = vmatpush1.bf16.msra.mxu0 0
      %947 = vmatprep.subr.bf16.mxu0 0
      %948 = vmatpush1.bf16.msra.mxu0 0
      %949 = vmatprep.subr.bf16.mxu0 0
      %950 = vmatpush1.bf16.msra.mxu0 0
      %951 = vmatprep.subr.bf16.mxu0 0
      %952 = vmatpush1.bf16.msra.mxu0 0
      %953 = vmatprep.subr.bf16.mxu0 0
      %954 = vmatpush1.bf16.msra.mxu0 0
      %955 = vmatprep.subr.bf16.mxu0 0
      %956 = vmatpush1.bf16.msra.mxu0 0
      %957 = vmatprep.subr.bf16.mxu0 0
      %958 = vmatpush1.bf16.msra.mxu0 0
      %959 = vmatprep.subr.bf16.mxu0 0
      %960 = vmatpush1.bf16.msra.mxu0 0
      %961 = vmatprep.subr.bf16.mxu0 0
      %962 = vmatpush1.bf16.msra.mxu0 0
      %963 = vmatprep.subr.bf16.mxu0 0
      %964 = vmatpush1.bf16.msra.mxu0 0
      %965 = vmatprep.subr.bf16.mxu0 0
      %966 = vmatpush1.bf16.msra.mxu0 0
      %967 = vmatprep.subr.bf16.mxu0 0
      %968 = vmatpush1.bf16.msra.mxu0 0
      %969 = vmatprep.subr.bf16.mxu0 0
      %970 = vmatpush1.bf16.msra.mxu0 0
      %971 = vmatprep.mubr.bf16.mxu0 0
      %972 = vmatmul.mubr.bf16.gmra.mrb[0].mxu0 %v934
      %v973 = vpop.f32.mrb[0].mxu0
      %v974 = vadd.f32 0.0, %v973
      %v975 = vpop.f32.mrb[0].mxu0
      %v976 = vpop.f32.mrb[0].mxu0
      %v977 = vadd.f32 0.0, %v976
      %v978 = vpop.f32.mrb[0].mxu0
      %979 = vdwg.mxu0
      %v982 = vunpack.c.l.b16 %v243
      %v983 = vunpack.c.l.b16 %v244
      %v984 = vpack.c.b16 %v983, %v982
      %v986 = vsel %vm252, %v984, 0
      %v989 = vand.u32 %v213, %v259
      %991 = vmatprep.subr.bf16.mxu0 0
      %992 = vmatpush1.bf16.msra.mxu0 %v989
      %993 = vmatprep.subr.bf16.mxu0 0
      %994 = vmatpush1.bf16.msra.mxu0 0
      %995 = vmatprep.subr.bf16.mxu0 0
      %996 = vmatpush1.bf16.msra.mxu0 0
      %997 = vmatprep.subr.bf16.mxu0 0
      %998 = vmatpush1.bf16.msra.mxu0 0
      %999 = vmatprep.subr.bf16.mxu0 0
      %1000 = vmatpush1.bf16.msra.mxu0 0
      %1001 = vmatprep.subr.bf16.mxu0 0
      %1002 = vmatpush1.bf16.msra.mxu0 0
      %1003 = vmatprep.subr.bf16.mxu0 0
      %1004 = vmatpush1.bf16.msra.mxu0 0
      %1005 = vmatprep.subr.bf16.mxu0 0
      %1006 = vmatpush1.bf16.msra.mxu0 0
      %1007 = vmatprep.subr.bf16.mxu0 0
      %1008 = vmatpush1.bf16.msra.mxu0 0
      %1009 = vmatprep.subr.bf16.mxu0 0
      %1010 = vmatpush1.bf16.msra.mxu0 0
      %1011 = vmatprep.subr.bf16.mxu0 0
      %1012 = vmatpush1.bf16.msra.mxu0 0
      %1013 = vmatprep.subr.bf16.mxu0 0
      %1014 = vmatpush1.bf16.msra.mxu0 0
      %1015 = vmatprep.subr.bf16.mxu0 0
      %1016 = vmatpush1.bf16.msra.mxu0 0
      %1017 = vmatprep.subr.bf16.mxu0 0
      %1018 = vmatpush1.bf16.msra.mxu0 0
      %1019 = vmatprep.subr.bf16.mxu0 0
      %1020 = vmatpush1.bf16.msra.mxu0 0
      %1021 = vmatprep.subr.bf16.mxu0 0
      %1022 = vmatpush1.bf16.msra.mxu0 0
      %1023 = vmatprep.mubr.bf16.mxu0 0
      %1024 = vmatmul.mubr.bf16.gmra.mrb[0].mxu0 %v986
      %v1025 = vpop.f32.mrb[0].mxu0
      %v1026 = vadd.f32 0.0, %v1025
      %v1027 = vpop.f32.mrb[0].mxu0
      %v1028 = vpop.f32.mrb[0].mxu0
      %v1029 = vadd.f32 0.0, %v1028
      %v1030 = vpop.f32.mrb[0].mxu0
      %1031 = vdwg.mxu0
      %v1034 = vunpack.c.l.b16 %v245
      %v1035 = vunpack.c.l.b16 %v246
      %v1036 = vpack.c.b16 %v1035, %v1034
      %v1038 = vsel %vm252, %v1036, 0
      %v1041 = vand.u32 %v214, %v259
      %1043 = vmatprep.subr.bf16.mxu0 0
      %1044 = vmatpush1.bf16.msra.mxu0 %v1041
      %1045 = vmatprep.subr.bf16.mxu0 0
      %1046 = vmatpush1.bf16.msra.mxu0 0
      %1047 = vmatprep.subr.bf16.mxu0 0
      %1048 = vmatpush1.bf16.msra.mxu0 0
      %1049 = vmatprep.subr.bf16.mxu0 0
      %1050 = vmatpush1.bf16.msra.mxu0 0
      %1051 = vmatprep.subr.bf16.mxu0 0
      %1052 = vmatpush1.bf16.msra.mxu0 0
      %1053 = vmatprep.subr.bf16.mxu0 0
      %1054 = vmatpush1.bf16.msra.mxu0 0
      %1055 = vmatprep.subr.bf16.mxu0 0
      %1056 = vmatpush1.bf16.msra.mxu0 0
      %1057 = vmatprep.subr.bf16.mxu0 0
      %1058 = vmatpush1.bf16.msra.mxu0 0
      %1059 = vmatprep.subr.bf16.mxu0 0
      %1060 = vmatpush1.bf16.msra.mxu0 0
      %1061 = vmatprep.subr.bf16.mxu0 0
      %1062 = vmatpush1.bf16.msra.mxu0 0
      %1063 = vmatprep.subr.bf16.mxu0 0
      %1064 = vmatpush1.bf16.msra.mxu0 0
      %1065 = vmatprep.subr.bf16.mxu0 0
      %1066 = vmatpush1.bf16.msra.mxu0 0
      %1067 = vmatprep.subr.bf16.mxu0 0
      %1068 = vmatpush1.bf16.msra.mxu0 0
      %1069 = vmatprep.subr.bf16.mxu0 0
      %1070 = vmatpush1.bf16.msra.mxu0 0
      %1071 = vmatprep.subr.bf16.mxu0 0
      %1072 = vmatpush1.bf16.msra.mxu0 0
      %1073 = vmatprep.subr.bf16.mxu0 0
      %1074 = vmatpush1.bf16.msra.mxu0 0
      %1075 = vmatprep.mubr.bf16.mxu0 0
      %1076 = vmatmul.mubr.bf16.gmra.mrb[0].mxu0 %v1038
      %v1077 = vpop.f32.mrb[0].mxu0
      %v1078 = vadd.f32 0.0, %v1077
      %v1079 = vpop.f32.mrb[0].mxu0
      %v1080 = vpop.f32.mrb[0].mxu0
      %v1081 = vadd.f32 0.0, %v1080
      %v1082 = vpop.f32.mrb[0].mxu0
      %1083 = vdwg.mxu0
      %v1084 = vpack.c.bf16 %v301, %v298
      %v1085 = vpack.c.bf16 %v353, %v350
      %v1086 = vpack.c.bf16 %v405, %v402
      %v1087 = vpack.c.bf16 %v457, %v454
      %v1088 = vpack.c.bf16 %v509, %v506
      %v1089 = vpack.c.bf16 %v561, %v558
      %v1090 = vpack.c.bf16 %v613, %v610
      %v1091 = vpack.c.bf16 %v665, %v662
      %v1092 = vpack.c.bf16 %v717, %v714
      %v1093 = vpack.c.bf16 %v769, %v766
      %v1094 = vpack.c.bf16 %v821, %v818
      %v1095 = vpack.c.bf16 %v873, %v870
      %v1096 = vpack.c.bf16 %v925, %v922
      %v1097 = vpack.c.bf16 %v977, %v974
      %v1098 = vpack.c.bf16 %v1029, %v1026
      %v1099 = vpack.c.bf16 %v1081, %v1078
      %v1100 = vld [vmem:[%s2] sm:$0xf]
      %v1101 = vld [vmem:[%s2 + $0x4] sm:$0xf]
      %v1102 = vld [vmem:[%s2 + $0x8] sm:$0xf]
      %v1103 = vld [vmem:[%s2 + $0xc] sm:$0xf]
      %v1104 = vld [vmem:[%s2 + $0x10] sm:$0xf]
      %v1105 = vld [vmem:[%s2 + $0x14] sm:$0xf]
      %v1106 = vld [vmem:[%s2 + $0x18] sm:$0xf]
      %v1107 = vld [vmem:[%s2 + $0x1c] sm:$0xf]
      %v1108 = vld [vmem:[%s2 + $0x20] sm:$0xf]
      %v1109 = vld [vmem:[%s2 + $0x24] sm:$0xf]
      %v1110 = vld [vmem:[%s2 + $0x28] sm:$0xf]
      %v1111 = vld [vmem:[%s2 + $0x2c] sm:$0xf]
      %v1112 = vld [vmem:[%s2 + $0x30] sm:$0xf]
      %v1113 = vld [vmem:[%s2 + $0x34] sm:$0xf]
      %v1114 = vld [vmem:[%s2 + $0x38] sm:$0xf]
      %v1115 = vld [vmem:[%s2 + $0x3c] sm:$0xf]
      %v1117 = vsel %vm252, %v1084, 0
      %v1120 = vand.u32 %v1100, %v259
      %1122 = vmatprep.subr.bf16.mxu0 0
      %1123 = vmatpush1.bf16.msra.mxu0 %v1120
      %1124 = vmatprep.subr.bf16.mxu0 0
      %1125 = vmatpush1.bf16.msra.mxu0 0
      %1126 = vmatprep.subr.bf16.mxu0 0
      %1127 = vmatpush1.bf16.msra.mxu0 0
      %1128 = vmatprep.subr.bf16.mxu0 0
      %1129 = vmatpush1.bf16.msra.mxu0 0
      %1130 = vmatprep.subr.bf16.mxu0 0
      %1131 = vmatpush1.bf16.msra.mxu0 0
      %1132 = vmatprep.subr.bf16.mxu0 0
      %1133 = vmatpush1.bf16.msra.mxu0 0
      %1134 = vmatprep.subr.bf16.mxu0 0
      %1135 = vmatpush1.bf16.msra.mxu0 0
      %1136 = vmatprep.subr.bf16.mxu0 0
      %1137 = vmatpush1.bf16.msra.mxu0 0
      %1138 = vmatprep.subr.bf16.mxu0 0
      %1139 = vmatpush1.bf16.msra.mxu0 0
      %1140 = vmatprep.subr.bf16.mxu0 0
      %1141 = vmatpush1.bf16.msra.mxu0 0
      %1142 = vmatprep.subr.bf16.mxu0 0
      %1143 = vmatpush1.bf16.msra.mxu0 0
      %1144 = vmatprep.subr.bf16.mxu0 0
      %1145 = vmatpush1.bf16.msra.mxu0 0
      %1146 = vmatprep.subr.bf16.mxu0 0
      %1147 = vmatpush1.bf16.msra.mxu0 0
      %1148 = vmatprep.subr.bf16.mxu0 0
      %1149 = vmatpush1.bf16.msra.mxu0 0
      %1150 = vmatprep.subr.bf16.mxu0 0
      %1151 = vmatpush1.bf16.msra.mxu0 0
      %1152 = vmatprep.subr.bf16.mxu0 0
      %1153 = vmatpush1.bf16.msra.mxu0 0
      %1154 = vmatprep.mubr.bf16.mxu0 0
      %1155 = vmatmul.mubr.bf16.gmra.mrb[0].mxu0 %v1117
      %v1156 = vpop.f32.mrb[0].mxu0
      %v1157 = vadd.f32 0.0, %v1156
      %v1158 = vpop.f32.mrb[0].mxu0
      %v1159 = vpop.f32.mrb[0].mxu0
      %v1160 = vadd.f32 0.0, %v1159
      %v1161 = vpop.f32.mrb[0].mxu0
      %1162 = vdwg.mxu0
      %v1164 = vsel %vm252, %v1085, 0
      %v1167 = vand.u32 %v1101, %v259
      %1169 = vmatprep.subr.bf16.mxu0 0
      %1170 = vmatpush1.bf16.msra.mxu0 %v1167
      %1171 = vmatprep.subr.bf16.mxu0 0
      %1172 = vmatpush1.bf16.msra.mxu0 0
      %1173 = vmatprep.subr.bf16.mxu0 0
      %1174 = vmatpush1.bf16.msra.mxu0 0
      %1175 = vmatprep.subr.bf16.mxu0 0
      %1176 = vmatpush1.bf16.msra.mxu0 0
      %1177 = vmatprep.subr.bf16.mxu0 0
      %1178 = vmatpush1.bf16.msra.mxu0 0
      %1179 = vmatprep.subr.bf16.mxu0 0
      %1180 = vmatpush1.bf16.msra.mxu0 0
      %1181 = vmatprep.subr.bf16.mxu0 0
      %1182 = vmatpush1.bf16.msra.mxu0 0
      %1183 = vmatprep.subr.bf16.mxu0 0
      %1184 = vmatpush1.bf16.msra.mxu0 0
      %1185 = vmatprep.subr.bf16.mxu0 0
      %1186 = vmatpush1.bf16.msra.mxu0 0
      %1187 = vmatprep.subr.bf16.mxu0 0
      %1188 = vmatpush1.bf16.msra.mxu0 0
      %1189 = vmatprep.subr.bf16.mxu0 0
      %1190 = vmatpush1.bf16.msra.mxu0 0
      %1191 = vmatprep.subr.bf16.mxu0 0
      %1192 = vmatpush1.bf16.msra.mxu0 0
      %1193 = vmatprep.subr.bf16.mxu0 0
      %1194 = vmatpush1.bf16.msra.mxu0 0
      %1195 = vmatprep.subr.bf16.mxu0 0
      %1196 = vmatpush1.bf16.msra.mxu0 0
      %1197 = vmatprep.subr.bf16.mxu0 0
      %1198 = vmatpush1.bf16.msra.mxu0 0
      %1199 = vmatprep.subr.bf16.mxu0 0
      %1200 = vmatpush1.bf16.msra.mxu0 0
      %1201 = vmatprep.mubr.bf16.mxu0 0
      %1202 = vmatmul.mubr.bf16.gmra.mrb[0].mxu0 %v1164
      %v1203 = vpop.f32.mrb[0].mxu0
      %v1204 = vadd.f32 0.0, %v1203
      %v1205 = vpop.f32.mrb[0].mxu0
      %v1206 = vpop.f32.mrb[0].mxu0
      %v1207 = vadd.f32 0.0, %v1206
      %v1208 = vpop.f32.mrb[0].mxu0
      %1209 = vdwg.mxu0
      %v1211 = vsel %vm252, %v1086, 0
      %v1214 = vand.u32 %v1102, %v259
      %1216 = vmatprep.subr.bf16.mxu0 0
      %1217 = vmatpush1.bf16.msra.mxu0 %v1214
      %1218 = vmatprep.subr.bf16.mxu0 0
      %1219 = vmatpush1.bf16.msra.mxu0 0
      %1220 = vmatprep.subr.bf16.mxu0 0
      %1221 = vmatpush1.bf16.msra.mxu0 0
      %1222 = vmatprep.subr.bf16.mxu0 0
      %1223 = vmatpush1.bf16.msra.mxu0 0
      %1224 = vmatprep.subr.bf16.mxu0 0
      %1225 = vmatpush1.bf16.msra.mxu0 0
      %1226 = vmatprep.subr.bf16.mxu0 0
      %1227 = vmatpush1.bf16.msra.mxu0 0
      %1228 = vmatprep.subr.bf16.mxu0 0
      %1229 = vmatpush1.bf16.msra.mxu0 0
      %1230 = vmatprep.subr.bf16.mxu0 0
      %1231 = vmatpush1.bf16.msra.mxu0 0
      %1232 = vmatprep.subr.bf16.mxu0 0
      %1233 = vmatpush1.bf16.msra.mxu0 0
      %1234 = vmatprep.subr.bf16.mxu0 0
      %1235 = vmatpush1.bf16.msra.mxu0 0
      %1236 = vmatprep.subr.bf16.mxu0 0
      %1237 = vmatpush1.bf16.msra.mxu0 0
      %1238 = vmatprep.subr.bf16.mxu0 0
      %1239 = vmatpush1.bf16.msra.mxu0 0
      %1240 = vmatprep.subr.bf16.mxu0 0
      %1241 = vmatpush1.bf16.msra.mxu0 0
      %1242 = vmatprep.subr.bf16.mxu0 0
      %1243 = vmatpush1.bf16.msra.mxu0 0
      %1244 = vmatprep.subr.bf16.mxu0 0
      %1245 = vmatpush1.bf16.msra.mxu0 0
      %1246 = vmatprep.subr.bf16.mxu0 0
      %1247 = vmatpush1.bf16.msra.mxu0 0
      %1248 = vmatprep.mubr.bf16.mxu0 0
      %1249 = vmatmul.mubr.bf16.gmra.mrb[0].mxu0 %v1211
      %v1250 = vpop.f32.mrb[0].mxu0
      %v1251 = vadd.f32 0.0, %v1250
      %v1252 = vpop.f32.mrb[0].mxu0
      %v1253 = vpop.f32.mrb[0].mxu0
      %v1254 = vadd.f32 0.0, %v1253
      %v1255 = vpop.f32.mrb[0].mxu0
      %1256 = vdwg.mxu0
      %v1258 = vsel %vm252, %v1087, 0
      %v1261 = vand.u32 %v1103, %v259
      %1263 = vmatprep.subr.bf16.mxu0 0
      %1264 = vmatpush1.bf16.msra.mxu0 %v1261
      %1265 = vmatprep.subr.bf16.mxu0 0
      %1266 = vmatpush1.bf16.msra.mxu0 0
      %1267 = vmatprep.subr.bf16.mxu0 0
      %1268 = vmatpush1.bf16.msra.mxu0 0
      %1269 = vmatprep.subr.bf16.mxu0 0
      %1270 = vmatpush1.bf16.msra.mxu0 0
      %1271 = vmatprep.subr.bf16.mxu0 0
      %1272 = vmatpush1.bf16.msra.mxu0 0
      %1273 = vmatprep.subr.bf16.mxu0 0
      %1274 = vmatpush1.bf16.msra.mxu0 0
      %1275 = vmatprep.subr.bf16.mxu0 0
      %1276 = vmatpush1.bf16.msra.mxu0 0
      %1277 = vmatprep.subr.bf16.mxu0 0
      %1278 = vmatpush1.bf16.msra.mxu0 0
      %1279 = vmatprep.subr.bf16.mxu0 0
      %1280 = vmatpush1.bf16.msra.mxu0 0
      %1281 = vmatprep.subr.bf16.mxu0 0
      %1282 = vmatpush1.bf16.msra.mxu0 0
      %1283 = vmatprep.subr.bf16.mxu0 0
      %1284 = vmatpush1.bf16.msra.mxu0 0
      %1285 = vmatprep.subr.bf16.mxu0 0
      %1286 = vmatpush1.bf16.msra.mxu0 0
      %1287 = vmatprep.subr.bf16.mxu0 0
      %1288 = vmatpush1.bf16.msra.mxu0 0
      %1289 = vmatprep.subr.bf16.mxu0 0
      %1290 = vmatpush1.bf16.msra.mxu0 0
      %1291 = vmatprep.subr.bf16.mxu0 0
      %1292 = vmatpush1.bf16.msra.mxu0 0
      %1293 = vmatprep.subr.bf16.mxu0 0
      %1294 = vmatpush1.bf16.msra.mxu0 0
      %1295 = vmatprep.mubr.bf16.mxu0 0
      %1296 = vmatmul.mubr.bf16.gmra.mrb[0].mxu0 %v1258
      %v1297 = vpop.f32.mrb[0].mxu0
      %v1298 = vadd.f32 0.0, %v1297
      %v1299 = vpop.f32.mrb[0].mxu0
      %v1300 = vpop.f32.mrb[0].mxu0
      %v1301 = vadd.f32 0.0, %v1300
      %v1302 = vpop.f32.mrb[0].mxu0
      %1303 = vdwg.mxu0
      %v1305 = vsel %vm252, %v1088, 0
      %v1308 = vand.u32 %v1104, %v259
      %1310 = vmatprep.subr.bf16.mxu0 0
      %1311 = vmatpush1.bf16.msra.mxu0 %v1308
      %1312 = vmatprep.subr.bf16.mxu0 0
      %1313 = vmatpush1.bf16.msra.mxu0 0
      %1314 = vmatprep.subr.bf16.mxu0 0
      %1315 = vmatpush1.bf16.msra.mxu0 0
      %1316 = vmatprep.subr.bf16.mxu0 0
      %1317 = vmatpush1.bf16.msra.mxu0 0
      %1318 = vmatprep.subr.bf16.mxu0 0
      %1319 = vmatpush1.bf16.msra.mxu0 0
      %1320 = vmatprep.subr.bf16.mxu0 0
      %1321 = vmatpush1.bf16.msra.mxu0 0
      %1322 = vmatprep.subr.bf16.mxu0 0
      %1323 = vmatpush1.bf16.msra.mxu0 0
      %1324 = vmatprep.subr.bf16.mxu0 0
      %1325 = vmatpush1.bf16.msra.mxu0 0
      %1326 = vmatprep.subr.bf16.mxu0 0
      %1327 = vmatpush1.bf16.msra.mxu0 0
      %1328 = vmatprep.subr.bf16.mxu0 0
      %1329 = vmatpush1.bf16.msra.mxu0 0
      %1330 = vmatprep.subr.bf16.mxu0 0
      %1331 = vmatpush1.bf16.msra.mxu0 0
      %1332 = vmatprep.subr.bf16.mxu0 0
      %1333 = vmatpush1.bf16.msra.mxu0 0
      %1334 = vmatprep.subr.bf16.mxu0 0
      %1335 = vmatpush1.bf16.msra.mxu0 0
      %1336 = vmatprep.subr.bf16.mxu0 0
      %1337 = vmatpush1.bf16.msra.mxu0 0
      %1338 = vmatprep.subr.bf16.mxu0 0
      %1339 = vmatpush1.bf16.msra.mxu0 0
      %1340 = vmatprep.subr.bf16.mxu0 0
      %1341 = vmatpush1.bf16.msra.mxu0 0
      %1342 = vmatprep.mubr.bf16.mxu0 0
      %1343 = vmatmul.mubr.bf16.gmra.mrb[0].mxu0 %v1305
      %v1344 = vpop.f32.mrb[0].mxu0
      %v1345 = vadd.f32 0.0, %v1344
      %v1346 = vpop.f32.mrb[0].mxu0
      %v1347 = vpop.f32.mrb[0].mxu0
      %v1348 = vadd.f32 0.0, %v1347
      %v1349 = vpop.f32.mrb[0].mxu0
      %1350 = vdwg.mxu0
      %v1352 = vsel %vm252, %v1089, 0
      %v1355 = vand.u32 %v1105, %v259
      %1357 = vmatprep.subr.bf16.mxu0 0
      %1358 = vmatpush1.bf16.msra.mxu0 %v1355
      %1359 = vmatprep.subr.bf16.mxu0 0
      %1360 = vmatpush1.bf16.msra.mxu0 0
      %1361 = vmatprep.subr.bf16.mxu0 0
      %1362 = vmatpush1.bf16.msra.mxu0 0
      %1363 = vmatprep.subr.bf16.mxu0 0
      %1364 = vmatpush1.bf16.msra.mxu0 0
      %1365 = vmatprep.subr.bf16.mxu0 0
      %1366 = vmatpush1.bf16.msra.mxu0 0
      %1367 = vmatprep.subr.bf16.mxu0 0
      %1368 = vmatpush1.bf16.msra.mxu0 0
      %1369 = vmatprep.subr.bf16.mxu0 0
      %1370 = vmatpush1.bf16.msra.mxu0 0
      %1371 = vmatprep.subr.bf16.mxu0 0
      %1372 = vmatpush1.bf16.msra.mxu0 0
      %1373 = vmatprep.subr.bf16.mxu0 0
      %1374 = vmatpush1.bf16.msra.mxu0 0
      %1375 = vmatprep.subr.bf16.mxu0 0
      %1376 = vmatpush1.bf16.msra.mxu0 0
      %1377 = vmatprep.subr.bf16.mxu0 0
      %1378 = vmatpush1.bf16.msra.mxu0 0
      %1379 = vmatprep.subr.bf16.mxu0 0
      %1380 = vmatpush1.bf16.msra.mxu0 0
      %1381 = vmatprep.subr.bf16.mxu0 0
      %1382 = vmatpush1.bf16.msra.mxu0 0
      %1383 = vmatprep.subr.bf16.mxu0 0
      %1384 = vmatpush1.bf16.msra.mxu0 0
      %1385 = vmatprep.subr.bf16.mxu0 0
      %1386 = vmatpush1.bf16.msra.mxu0 0
      %1387 = vmatprep.subr.bf16.mxu0 0
      %1388 = vmatpush1.bf16.msra.mxu0 0
      %1389 = vmatprep.mubr.bf16.mxu0 0
      %1390 = vmatmul.mubr.bf16.gmra.mrb[0].mxu0 %v1352
      %v1391 = vpop.f32.mrb[0].mxu0
      %v1392 = vadd.f32 0.0, %v1391
      %v1393 = vpop.f32.mrb[0].mxu0
      %v1394 = vpop.f32.mrb[0].mxu0
      %v1395 = vadd.f32 0.0, %v1394
      %v1396 = vpop.f32.mrb[0].mxu0
      %1397 = vdwg.mxu0
      %v1399 = vsel %vm252, %v1090, 0
      %v1402 = vand.u32 %v1106, %v259
      %1404 = vmatprep.subr.bf16.mxu0 0
      %1405 = vmatpush1.bf16.msra.mxu0 %v1402
      %1406 = vmatprep.subr.bf16.mxu0 0
      %1407 = vmatpush1.bf16.msra.mxu0 0
      %1408 = vmatprep.subr.bf16.mxu0 0
      %1409 = vmatpush1.bf16.msra.mxu0 0
      %1410 = vmatprep.subr.bf16.mxu0 0
      %1411 = vmatpush1.bf16.msra.mxu0 0
      %1412 = vmatprep.subr.bf16.mxu0 0
      %1413 = vmatpush1.bf16.msra.mxu0 0
      %1414 = vmatprep.subr.bf16.mxu0 0
      %1415 = vmatpush1.bf16.msra.mxu0 0
      %1416 = vmatprep.subr.bf16.mxu0 0
      %1417 = vmatpush1.bf16.msra.mxu0 0
      %1418 = vmatprep.subr.bf16.mxu0 0
      %1419 = vmatpush1.bf16.msra.mxu0 0
      %1420 = vmatprep.subr.bf16.mxu0 0
      %1421 = vmatpush1.bf16.msra.mxu0 0
      %1422 = vmatprep.subr.bf16.mxu0 0
      %1423 = vmatpush1.bf16.msra.mxu0 0
      %1424 = vmatprep.subr.bf16.mxu0 0
      %1425 = vmatpush1.bf16.msra.mxu0 0
      %1426 = vmatprep.subr.bf16.mxu0 0
      %1427 = vmatpush1.bf16.msra.mxu0 0
      %1428 = vmatprep.subr.bf16.mxu0 0
      %1429 = vmatpush1.bf16.msra.mxu0 0
      %1430 = vmatprep.subr.bf16.mxu0 0
      %1431 = vmatpush1.bf16.msra.mxu0 0
      %1432 = vmatprep.subr.bf16.mxu0 0
      %1433 = vmatpush1.bf16.msra.mxu0 0
      %1434 = vmatprep.subr.bf16.mxu0 0
      %1435 = vmatpush1.bf16.msra.mxu0 0
      %1436 = vmatprep.mubr.bf16.mxu0 0
      %1437 = vmatmul.mubr.bf16.gmra.mrb[0].mxu0 %v1399
      %v1438 = vpop.f32.mrb[0].mxu0
      %v1439 = vadd.f32 0.0, %v1438
      %v1440 = vpop.f32.mrb[0].mxu0
      %v1441 = vpop.f32.mrb[0].mxu0
      %v1442 = vadd.f32 0.0, %v1441
      %v1443 = vpop.f32.mrb[0].mxu0
      %1444 = vdwg.mxu0
      %v1446 = vsel %vm252, %v1091, 0
      %v1449 = vand.u32 %v1107, %v259
      %1451 = vmatprep.subr.bf16.mxu0 0
      %1452 = vmatpush1.bf16.msra.mxu0 %v1449
      %1453 = vmatprep.subr.bf16.mxu0 0
      %1454 = vmatpush1.bf16.msra.mxu0 0
      %1455 = vmatprep.subr.bf16.mxu0 0
      %1456 = vmatpush1.bf16.msra.mxu0 0
      %1457 = vmatprep.subr.bf16.mxu0 0
      %1458 = vmatpush1.bf16.msra.mxu0 0
      %1459 = vmatprep.subr.bf16.mxu0 0
      %1460 = vmatpush1.bf16.msra.mxu0 0
      %1461 = vmatprep.subr.bf16.mxu0 0
      %1462 = vmatpush1.bf16.msra.mxu0 0
      %1463 = vmatprep.subr.bf16.mxu0 0
      %1464 = vmatpush1.bf16.msra.mxu0 0
      %1465 = vmatprep.subr.bf16.mxu0 0
      %1466 = vmatpush1.bf16.msra.mxu0 0
      %1467 = vmatprep.subr.bf16.mxu0 0
      %1468 = vmatpush1.bf16.msra.mxu0 0
      %1469 = vmatprep.subr.bf16.mxu0 0
      %1470 = vmatpush1.bf16.msra.mxu0 0
      %1471 = vmatprep.subr.bf16.mxu0 0
      %1472 = vmatpush1.bf16.msra.mxu0 0
      %1473 = vmatprep.subr.bf16.mxu0 0
      %1474 = vmatpush1.bf16.msra.mxu0 0
      %1475 = vmatprep.subr.bf16.mxu0 0
      %1476 = vmatpush1.bf16.msra.mxu0 0
      %1477 = vmatprep.subr.bf16.mxu0 0
      %1478 = vmatpush1.bf16.msra.mxu0 0
      %1479 = vmatprep.subr.bf16.mxu0 0
      %1480 = vmatpush1.bf16.msra.mxu0 0
      %1481 = vmatprep.subr.bf16.mxu0 0
      %1482 = vmatpush1.bf16.msra.mxu0 0
      %1483 = vmatprep.mubr.bf16.mxu0 0
      %1484 = vmatmul.mubr.bf16.gmra.mrb[0].mxu0 %v1446
      %v1485 = vpop.f32.mrb[0].mxu0
      %v1486 = vadd.f32 0.0, %v1485
      %v1487 = vpop.f32.mrb[0].mxu0
      %v1488 = vpop.f32.mrb[0].mxu0
      %v1489 = vadd.f32 0.0, %v1488
      %v1490 = vpop.f32.mrb[0].mxu0
      %1491 = vdwg.mxu0
      %v1493 = vsel %vm252, %v1092, 0
      %v1496 = vand.u32 %v1108, %v259
      %1498 = vmatprep.subr.bf16.mxu0 0
      %1499 = vmatpush1.bf16.msra.mxu0 %v1496
      %1500 = vmatprep.subr.bf16.mxu0 0
      %1501 = vmatpush1.bf16.msra.mxu0 0
      %1502 = vmatprep.subr.bf16.mxu0 0
      %1503 = vmatpush1.bf16.msra.mxu0 0
      %1504 = vmatprep.subr.bf16.mxu0 0
      %1505 = vmatpush1.bf16.msra.mxu0 0
      %1506 = vmatprep.subr.bf16.mxu0 0
      %1507 = vmatpush1.bf16.msra.mxu0 0
      %1508 = vmatprep.subr.bf16.mxu0 0
      %1509 = vmatpush1.bf16.msra.mxu0 0
      %1510 = vmatprep.subr.bf16.mxu0 0
      %1511 = vmatpush1.bf16.msra.mxu0 0
      %1512 = vmatprep.subr.bf16.mxu0 0
      %1513 = vmatpush1.bf16.msra.mxu0 0
      %1514 = vmatprep.subr.bf16.mxu0 0
      %1515 = vmatpush1.bf16.msra.mxu0 0
      %1516 = vmatprep.subr.bf16.mxu0 0
      %1517 = vmatpush1.bf16.msra.mxu0 0
      %1518 = vmatprep.subr.bf16.mxu0 0
      %1519 = vmatpush1.bf16.msra.mxu0 0
      %1520 = vmatprep.subr.bf16.mxu0 0
      %1521 = vmatpush1.bf16.msra.mxu0 0
      %1522 = vmatprep.subr.bf16.mxu0 0
      %1523 = vmatpush1.bf16.msra.mxu0 0
      %1524 = vmatprep.subr.bf16.mxu0 0
      %1525 = vmatpush1.bf16.msra.mxu0 0
      %1526 = vmatprep.subr.bf16.mxu0 0
      %1527 = vmatpush1.bf16.msra.mxu0 0
      %1528 = vmatprep.subr.bf16.mxu0 0
      %1529 = vmatpush1.bf16.msra.mxu0 0
      %1530 = vmatprep.mubr.bf16.mxu0 0
      %1531 = vmatmul.mubr.bf16.gmra.mrb[0].mxu0 %v1493
      %v1532 = vpop.f32.mrb[0].mxu0
      %v1533 = vadd.f32 0.0, %v1532
      %v1534 = vpop.f32.mrb[0].mxu0
      %v1535 = vpop.f32.mrb[0].mxu0
      %v1536 = vadd.f32 0.0, %v1535
      %v1537 = vpop.f32.mrb[0].mxu0
      %1538 = vdwg.mxu0
      %v1540 = vsel %vm252, %v1093, 0
      %v1543 = vand.u32 %v1109, %v259
      %1545 = vmatprep.subr.bf16.mxu0 0
      %1546 = vmatpush1.bf16.msra.mxu0 %v1543
      %1547 = vmatprep.subr.bf16.mxu0 0
      %1548 = vmatpush1.bf16.msra.mxu0 0
      %1549 = vmatprep.subr.bf16.mxu0 0
      %1550 = vmatpush1.bf16.msra.mxu0 0
      %1551 = vmatprep.subr.bf16.mxu0 0
      %1552 = vmatpush1.bf16.msra.mxu0 0
      %1553 = vmatprep.subr.bf16.mxu0 0
      %1554 = vmatpush1.bf16.msra.mxu0 0
      %1555 = vmatprep.subr.bf16.mxu0 0
      %1556 = vmatpush1.bf16.msra.mxu0 0
      %1557 = vmatprep.subr.bf16.mxu0 0
      %1558 = vmatpush1.bf16.msra.mxu0 0
      %1559 = vmatprep.subr.bf16.mxu0 0
      %1560 = vmatpush1.bf16.msra.mxu0 0
      %1561 = vmatprep.subr.bf16.mxu0 0
      %1562 = vmatpush1.bf16.msra.mxu0 0
      %1563 = vmatprep.subr.bf16.mxu0 0
      %1564 = vmatpush1.bf16.msra.mxu0 0
      %1565 = vmatprep.subr.bf16.mxu0 0
      %1566 = vmatpush1.bf16.msra.mxu0 0
      %1567 = vmatprep.subr.bf16.mxu0 0
      %1568 = vmatpush1.bf16.msra.mxu0 0
      %1569 = vmatprep.subr.bf16.mxu0 0
      %1570 = vmatpush1.bf16.msra.mxu0 0
      %1571 = vmatprep.subr.bf16.mxu0 0
      %1572 = vmatpush1.bf16.msra.mxu0 0
      %1573 = vmatprep.subr.bf16.mxu0 0
      %1574 = vmatpush1.bf16.msra.mxu0 0
      %1575 = vmatprep.subr.bf16.mxu0 0
      %1576 = vmatpush1.bf16.msra.mxu0 0
      %1577 = vmatprep.mubr.bf16.mxu0 0
      %1578 = vmatmul.mubr.bf16.gmra.mrb[0].mxu0 %v1540
      %v1579 = vpop.f32.mrb[0].mxu0
      %v1580 = vadd.f32 0.0, %v1579
      %v1581 = vpop.f32.mrb[0].mxu0
      %v1582 = vpop.f32.mrb[0].mxu0
      %v1583 = vadd.f32 0.0, %v1582
      %v1584 = vpop.f32.mrb[0].mxu0
      %1585 = vdwg.mxu0
      %v1587 = vsel %vm252, %v1094, 0
      %v1590 = vand.u32 %v1110, %v259
      %1592 = vmatprep.subr.bf16.mxu0 0
      %1593 = vmatpush1.bf16.msra.mxu0 %v1590
      %1594 = vmatprep.subr.bf16.mxu0 0
      %1595 = vmatpush1.bf16.msra.mxu0 0
      %1596 = vmatprep.subr.bf16.mxu0 0
      %1597 = vmatpush1.bf16.msra.mxu0 0
      %1598 = vmatprep.subr.bf16.mxu0 0
      %1599 = vmatpush1.bf16.msra.mxu0 0
      %1600 = vmatprep.subr.bf16.mxu0 0
      %1601 = vmatpush1.bf16.msra.mxu0 0
      %1602 = vmatprep.subr.bf16.mxu0 0
      %1603 = vmatpush1.bf16.msra.mxu0 0
      %1604 = vmatprep.subr.bf16.mxu0 0
      %1605 = vmatpush1.bf16.msra.mxu0 0
      %1606 = vmatprep.subr.bf16.mxu0 0
      %1607 = vmatpush1.bf16.msra.mxu0 0
      %1608 = vmatprep.subr.bf16.mxu0 0
      %1609 = vmatpush1.bf16.msra.mxu0 0
      %1610 = vmatprep.subr.bf16.mxu0 0
      %1611 = vmatpush1.bf16.msra.mxu0 0
      %1612 = vmatprep.subr.bf16.mxu0 0
      %1613 = vmatpush1.bf16.msra.mxu0 0
      %1614 = vmatprep.subr.bf16.mxu0 0
      %1615 = vmatpush1.bf16.msra.mxu0 0
      %1616 = vmatprep.subr.bf16.mxu0 0
      %1617 = vmatpush1.bf16.msra.mxu0 0
      %1618 = vmatprep.subr.bf16.mxu0 0
      %1619 = vmatpush1.bf16.msra.mxu0 0
      %1620 = vmatprep.subr.bf16.mxu0 0
      %1621 = vmatpush1.bf16.msra.mxu0 0
      %1622 = vmatprep.subr.bf16.mxu0 0
      %1623 = vmatpush1.bf16.msra.mxu0 0
      %1624 = vmatprep.mubr.bf16.mxu0 0
      %1625 = vmatmul.mubr.bf16.gmra.mrb[0].mxu0 %v1587
      %v1626 = vpop.f32.mrb[0].mxu0
      %v1627 = vadd.f32 0.0, %v1626
      %v1628 = vpop.f32.mrb[0].mxu0
      %v1629 = vpop.f32.mrb[0].mxu0
      %v1630 = vadd.f32 0.0, %v1629
      %v1631 = vpop.f32.mrb[0].mxu0
      %1632 = vdwg.mxu0
      %v1634 = vsel %vm252, %v1095, 0
      %v1637 = vand.u32 %v1111, %v259
      %1639 = vmatprep.subr.bf16.mxu0 0
      %1640 = vmatpush1.bf16.msra.mxu0 %v1637
      %1641 = vmatprep.subr.bf16.mxu0 0
      %1642 = vmatpush1.bf16.msra.mxu0 0
      %1643 = vmatprep.subr.bf16.mxu0 0
      %1644 = vmatpush1.bf16.msra.mxu0 0
      %1645 = vmatprep.subr.bf16.mxu0 0
      %1646 = vmatpush1.bf16.msra.mxu0 0
      %1647 = vmatprep.subr.bf16.mxu0 0
      %1648 = vmatpush1.bf16.msra.mxu0 0
      %1649 = vmatprep.subr.bf16.mxu0 0
      %1650 = vmatpush1.bf16.msra.mxu0 0
      %1651 = vmatprep.subr.bf16.mxu0 0
      %1652 = vmatpush1.bf16.msra.mxu0 0
      %1653 = vmatprep.subr.bf16.mxu0 0
      %1654 = vmatpush1.bf16.msra.mxu0 0
      %1655 = vmatprep.subr.bf16.mxu0 0
      %1656 = vmatpush1.bf16.msra.mxu0 0
      %1657 = vmatprep.subr.bf16.mxu0 0
      %1658 = vmatpush1.bf16.msra.mxu0 0
      %1659 = vmatprep.subr.bf16.mxu0 0
      %1660 = vmatpush1.bf16.msra.mxu0 0
      %1661 = vmatprep.subr.bf16.mxu0 0
      %1662 = vmatpush1.bf16.msra.mxu0 0
      %1663 = vmatprep.subr.bf16.mxu0 0
      %1664 = vmatpush1.bf16.msra.mxu0 0
      %1665 = vmatprep.subr.bf16.mxu0 0
      %1666 = vmatpush1.bf16.msra.mxu0 0
      %1667 = vmatprep.subr.bf16.mxu0 0
      %1668 = vmatpush1.bf16.msra.mxu0 0
      %1669 = vmatprep.subr.bf16.mxu0 0
      %1670 = vmatpush1.bf16.msra.mxu0 0
      %1671 = vmatprep.mubr.bf16.mxu0 0
      %1672 = vmatmul.mubr.bf16.gmra.mrb[0].mxu0 %v1634
      %v1673 = vpop.f32.mrb[0].mxu0
      %v1674 = vadd.f32 0.0, %v1673
      %v1675 = vpop.f32.mrb[0].mxu0
      %v1676 = vpop.f32.mrb[0].mxu0
      %v1677 = vadd.f32 0.0, %v1676
      %v1678 = vpop.f32.mrb[0].mxu0
      %1679 = vdwg.mxu0
      %v1681 = vsel %vm252, %v1096, 0
      %v1684 = vand.u32 %v1112, %v259
      %1686 = vmatprep.subr.bf16.mxu0 0
      %1687 = vmatpush1.bf16.msra.mxu0 %v1684
      %1688 = vmatprep.subr.bf16.mxu0 0
      %1689 = vmatpush1.bf16.msra.mxu0 0
      %1690 = vmatprep.subr.bf16.mxu0 0
      %1691 = vmatpush1.bf16.msra.mxu0 0
      %1692 = vmatprep.subr.bf16.mxu0 0
      %1693 = vmatpush1.bf16.msra.mxu0 0
      %1694 = vmatprep.subr.bf16.mxu0 0
      %1695 = vmatpush1.bf16.msra.mxu0 0
      %1696 = vmatprep.subr.bf16.mxu0 0
      %1697 = vmatpush1.bf16.msra.mxu0 0
      %1698 = vmatprep.subr.bf16.mxu0 0
      %1699 = vmatpush1.bf16.msra.mxu0 0
      %1700 = vmatprep.subr.bf16.mxu0 0
      %1701 = vmatpush1.bf16.msra.mxu0 0
      %1702 = vmatprep.subr.bf16.mxu0 0
      %1703 = vmatpush1.bf16.msra.mxu0 0
      %1704 = vmatprep.subr.bf16.mxu0 0
      %1705 = vmatpush1.bf16.msra.mxu0 0
      %1706 = vmatprep.subr.bf16.mxu0 0
      %1707 = vmatpush1.bf16.msra.mxu0 0
      %1708 = vmatprep.subr.bf16.mxu0 0
      %1709 = vmatpush1.bf16.msra.mxu0 0
      %1710 = vmatprep.subr.bf16.mxu0 0
      %1711 = vmatpush1.bf16.msra.mxu0 0
      %1712 = vmatprep.subr.bf16.mxu0 0
      %1713 = vmatpush1.bf16.msra.mxu0 0
      %1714 = vmatprep.subr.bf16.mxu0 0
      %1715 = vmatpush1.bf16.msra.mxu0 0
      %1716 = vmatprep.subr.bf16.mxu0 0
      %1717 = vmatpush1.bf16.msra.mxu0 0
      %1718 = vmatprep.mubr.bf16.mxu0 0
      %1719 = vmatmul.mubr.bf16.gmra.mrb[0].mxu0 %v1681
      %v1720 = vpop.f32.mrb[0].mxu0
      %v1721 = vadd.f32 0.0, %v1720
      %v1722 = vpop.f32.mrb[0].mxu0
      %v1723 = vpop.f32.mrb[0].mxu0
      %v1724 = vadd.f32 0.0, %v1723
      %v1725 = vpop.f32.mrb[0].mxu0
      %1726 = vdwg.mxu0
      %v1728 = vsel %vm252, %v1097, 0
      %v1731 = vand.u32 %v1113, %v259
      %1733 = vmatprep.subr.bf16.mxu0 0
      %1734 = vmatpush1.bf16.msra.mxu0 %v1731
      %1735 = vmatprep.subr.bf16.mxu0 0
      %1736 = vmatpush1.bf16.msra.mxu0 0
      %1737 = vmatprep.subr.bf16.mxu0 0
      %1738 = vmatpush1.bf16.msra.mxu0 0
      %1739 = vmatprep.subr.bf16.mxu0 0
      %1740 = vmatpush1.bf16.msra.mxu0 0
      %1741 = vmatprep.subr.bf16.mxu0 0
      %1742 = vmatpush1.bf16.msra.mxu0 0
      %1743 = vmatprep.subr.bf16.mxu0 0
      %1744 = vmatpush1.bf16.msra.mxu0 0
      %1745 = vmatprep.subr.bf16.mxu0 0
      %1746 = vmatpush1.bf16.msra.mxu0 0
      %1747 = vmatprep.subr.bf16.mxu0 0
      %1748 = vmatpush1.bf16.msra.mxu0 0
      %1749 = vmatprep.subr.bf16.mxu0 0
      %1750 = vmatpush1.bf16.msra.mxu0 0
      %1751 = vmatprep.subr.bf16.mxu0 0
      %1752 = vmatpush1.bf16.msra.mxu0 0
      %1753 = vmatprep.subr.bf16.mxu0 0
      %1754 = vmatpush1.bf16.msra.mxu0 0
      %1755 = vmatprep.subr.bf16.mxu0 0
      %1756 = vmatpush1.bf16.msra.mxu0 0
      %1757 = vmatprep.subr.bf16.mxu0 0
      %1758 = vmatpush1.bf16.msra.mxu0 0
      %1759 = vmatprep.subr.bf16.mxu0 0
      %1760 = vmatpush1.bf16.msra.mxu0 0
      %1761 = vmatprep.subr.bf16.mxu0 0
      %1762 = vmatpush1.bf16.msra.mxu0 0
      %1763 = vmatprep.subr.bf16.mxu0 0
      %1764 = vmatpush1.bf16.msra.mxu0 0
      %1765 = vmatprep.mubr.bf16.mxu0 0
      %1766 = vmatmul.mubr.bf16.gmra.mrb[0].mxu0 %v1728
      %v1767 = vpop.f32.mrb[0].mxu0
      %v1768 = vadd.f32 0.0, %v1767
      %v1769 = vpop.f32.mrb[0].mxu0
      %v1770 = vpop.f32.mrb[0].mxu0
      %v1771 = vadd.f32 0.0, %v1770
      %v1772 = vpop.f32.mrb[0].mxu0
      %1773 = vdwg.mxu0
      %v1775 = vsel %vm252, %v1098, 0
      %v1778 = vand.u32 %v1114, %v259
      %1780 = vmatprep.subr.bf16.mxu0 0
      %1781 = vmatpush1.bf16.msra.mxu0 %v1778
      %1782 = vmatprep.subr.bf16.mxu0 0
      %1783 = vmatpush1.bf16.msra.mxu0 0
      %1784 = vmatprep.subr.bf16.mxu0 0
      %1785 = vmatpush1.bf16.msra.mxu0 0
      %1786 = vmatprep.subr.bf16.mxu0 0
      %1787 = vmatpush1.bf16.msra.mxu0 0
      %1788 = vmatprep.subr.bf16.mxu0 0
      %1789 = vmatpush1.bf16.msra.mxu0 0
      %1790 = vmatprep.subr.bf16.mxu0 0
      %1791 = vmatpush1.bf16.msra.mxu0 0
      %1792 = vmatprep.subr.bf16.mxu0 0
      %1793 = vmatpush1.bf16.msra.mxu0 0
      %1794 = vmatprep.subr.bf16.mxu0 0
      %1795 = vmatpush1.bf16.msra.mxu0 0
      %1796 = vmatprep.subr.bf16.mxu0 0
      %1797 = vmatpush1.bf16.msra.mxu0 0
      %1798 = vmatprep.subr.bf16.mxu0 0
      %1799 = vmatpush1.bf16.msra.mxu0 0
      %1800 = vmatprep.subr.bf16.mxu0 0
      %1801 = vmatpush1.bf16.msra.mxu0 0
      %1802 = vmatprep.subr.bf16.mxu0 0
      %1803 = vmatpush1.bf16.msra.mxu0 0
      %1804 = vmatprep.subr.bf16.mxu0 0
      %1805 = vmatpush1.bf16.msra.mxu0 0
      %1806 = vmatprep.subr.bf16.mxu0 0
      %1807 = vmatpush1.bf16.msra.mxu0 0
      %1808 = vmatprep.subr.bf16.mxu0 0
      %1809 = vmatpush1.bf16.msra.mxu0 0
      %1810 = vmatprep.subr.bf16.mxu0 0
      %1811 = vmatpush1.bf16.msra.mxu0 0
      %1812 = vmatprep.mubr.bf16.mxu0 0
      %1813 = vmatmul.mubr.bf16.gmra.mrb[0].mxu0 %v1775
      %v1814 = vpop.f32.mrb[0].mxu0
      %v1815 = vadd.f32 0.0, %v1814
      %v1816 = vpop.f32.mrb[0].mxu0
      %v1817 = vpop.f32.mrb[0].mxu0
      %v1818 = vadd.f32 0.0, %v1817
      %v1819 = vpop.f32.mrb[0].mxu0
      %1820 = vdwg.mxu0
      %v1822 = vsel %vm252, %v1099, 0
      %v1825 = vand.u32 %v1115, %v259
      %1827 = vmatprep.subr.bf16.mxu0 0
      %1828 = vmatpush1.bf16.msra.mxu0 %v1825
      %1829 = vmatprep.subr.bf16.mxu0 0
      %1830 = vmatpush1.bf16.msra.mxu0 0
      %1831 = vmatprep.subr.bf16.mxu0 0
      %1832 = vmatpush1.bf16.msra.mxu0 0
      %1833 = vmatprep.subr.bf16.mxu0 0
      %1834 = vmatpush1.bf16.msra.mxu0 0
      %1835 = vmatprep.subr.bf16.mxu0 0
      %1836 = vmatpush1.bf16.msra.mxu0 0
      %1837 = vmatprep.subr.bf16.mxu0 0
      %1838 = vmatpush1.bf16.msra.mxu0 0
      %1839 = vmatprep.subr.bf16.mxu0 0
      %1840 = vmatpush1.bf16.msra.mxu0 0
      %1841 = vmatprep.subr.bf16.mxu0 0
      %1842 = vmatpush1.bf16.msra.mxu0 0
      %1843 = vmatprep.subr.bf16.mxu0 0
      %1844 = vmatpush1.bf16.msra.mxu0 0
      %1845 = vmatprep.subr.bf16.mxu0 0
      %1846 = vmatpush1.bf16.msra.mxu0 0
      %1847 = vmatprep.subr.bf16.mxu0 0
      %1848 = vmatpush1.bf16.msra.mxu0 0
      %1849 = vmatprep.subr.bf16.mxu0 0
      %1850 = vmatpush1.bf16.msra.mxu0 0
      %1851 = vmatprep.subr.bf16.mxu0 0
      %1852 = vmatpush1.bf16.msra.mxu0 0
      %1853 = vmatprep.subr.bf16.mxu0 0
      %1854 = vmatpush1.bf16.msra.mxu0 0
      %1855 = vmatprep.subr.bf16.mxu0 0
      %1856 = vmatpush1.bf16.msra.mxu0 0
      %1857 = vmatprep.subr.bf16.mxu0 0
      %1858 = vmatpush1.bf16.msra.mxu0 0
      %1859 = vmatprep.mubr.bf16.mxu0 0
      %1860 = vmatmul.mubr.bf16.gmra.mrb[0].mxu0 %v1822
      %v1861 = vpop.f32.mrb[0].mxu0
      %v1862 = vadd.f32 0.0, %v1861
      %v1863 = vpop.f32.mrb[0].mxu0
      %v1864 = vpop.f32.mrb[0].mxu0
      %v1865 = vadd.f32 0.0, %v1864
      %v1866 = vpop.f32.mrb[0].mxu0
      %1867 = vdwg.mxu0
      %v1868 = vadd.f32 %v1157, %v1345
      %v1869 = vadd.f32 %v1160, %v1348
      %v1870 = vadd.f32 %v1204, %v1392
      %v1871 = vadd.f32 %v1207, %v1395
      %v1872 = vadd.f32 %v1251, %v1439
      %v1873 = vadd.f32 %v1254, %v1442
      %v1874 = vadd.f32 %v1298, %v1486
      %v1875 = vadd.f32 %v1301, %v1489
      %v1876 = vadd.f32 %v1868, %v1533
      %v1877 = vadd.f32 %v1869, %v1536
      %v1878 = vadd.f32 %v1870, %v1580
      %v1879 = vadd.f32 %v1871, %v1583
      %v1880 = vadd.f32 %v1872, %v1627
      %v1881 = vadd.f32 %v1873, %v1630
      %v1882 = vadd.f32 %v1874, %v1674
      %v1883 = vadd.f32 %v1875, %v1677
      %v1884 = vadd.f32 %v1876, %v1721
      %v1885 = vadd.f32 %v1877, %v1724
      %v1886 = vadd.f32 %v1878, %v1768
      %v1887 = vadd.f32 %v1879, %v1771
      %v1888 = vadd.f32 %v1880, %v1815
      %v1889 = vadd.f32 %v1881, %v1818
      %v1890 = vadd.f32 %v1882, %v1862
      %v1891 = vadd.f32 %v1883, %v1865
      %v1892 = vld [vmem:[%s3] sm:$0x1]
      %v1893 = vld [vmem:[%s3 + $0x1] sm:$0x1]
      %v1894 = vld [vmem:[%s3 + $0x2] sm:$0x1]
      %v1895 = vld [vmem:[%s3 + $0x3] sm:$0x1]
      %v1900 = vlaneseq
      %v1901 = vshrl.u32 %v1900, 7
      %v1902 = vsub.s32 0, %v1901
      %v1903 = vrot.slane %v1892, %v1902
      %v1904 = vlaneseq
      %v1905 = vshrl.u32 %v1904, 7
      %v1906 = vsub.s32 0, %v1905
      %v1907 = vrot.slane %v1893, %v1906
      %v1908 = vlaneseq
      %v1909 = vshrl.u32 %v1908, 7
      %v1910 = vsub.s32 0, %v1909
      %v1911 = vrot.slane %v1894, %v1910
      %v1912 = vlaneseq
      %v1913 = vshrl.u32 %v1912, 7
      %v1914 = vsub.s32 0, %v1913
      %v1915 = vrot.slane %v1895, %v1914
      %1916 = vset.pattern.permute.xlu0 0
      %1917 = vperm.xlu0 %1916, %v1903
      %v1918 = vpop.permute.xlu0 %1917
      %1920 = vset.pattern.permute.xlu0 0
      %1921 = vperm.xlu0 %1920, %v1907
      %v1922 = vpop.permute.xlu0 %1921
      %1924 = vset.pattern.permute.xlu0 0
      %1925 = vperm.xlu0 %1924, %v1911
      %v1926 = vpop.permute.xlu0 %1925
      %1928 = vset.pattern.permute.xlu0 0
      %1929 = vperm.xlu0 %1928, %v1915
      %v1930 = vpop.permute.xlu0 %1929
      %v1932 = vadd.f32 %v1884, %v1918
      %v1933 = vadd.f32 %v1885, %v1918
      %v1934 = vadd.f32 %v1886, %v1922
      %v1935 = vadd.f32 %v1887, %v1922
      %v1936 = vadd.f32 %v1888, %v1926
      %v1937 = vadd.f32 %v1889, %v1926
      %v1938 = vadd.f32 %v1890, %v1930
      %v1939 = vadd.f32 %v1891, %v1930
      %v1940 = vpack.c.bf16 %v1933, %v1932
      %v1941 = vpack.c.bf16 %v1935, %v1934
      %v1942 = vpack.c.bf16 %v1937, %v1936
      %v1943 = vpack.c.bf16 %v1939, %v1938
      %v1948 = vunpack.c.l.b16 %v1940
      %v1949 = vunpack.c.h.b16 %v1940
      %v1950 = vunpack.c.l.b16 %v1941
      %v1951 = vunpack.c.h.b16 %v1941
      %v1952 = vunpack.c.l.b16 %v1942
      %v1953 = vunpack.c.h.b16 %v1942
      %v1954 = vunpack.c.l.b16 %v1943
      %v1955 = vunpack.c.h.b16 %v1943
      %v1956 = vpack.c.b16 %v1948, %v1948
      %v1957 = vpack.c.b16 %v1949, %v1949
      %v1958 = vpack.c.b16 %v1950, %v1950
      %v1959 = vpack.c.b16 %v1951, %v1951
      %v1960 = vpack.c.b16 %v1952, %v1952
      %v1961 = vpack.c.b16 %v1953, %v1953
      %v1962 = vpack.c.b16 %v1954, %v1954
      %v1963 = vpack.c.b16 %v1955, %v1955
      %vm1972 = vcmask 125952
      %1973 = vst.msk [vmem:[%s197] sm:$0xf] %vm1972, %v1956
      %1974 = vst.msk [vmem:[%s197 + $0x4] sm:$0xf] %vm1972, %v1957
      %1975 = vst.msk [vmem:[%s197 + $0x8] sm:$0xf] %vm1972, %v1958
      %1976 = vst.msk [vmem:[%s197 + $0xc] sm:$0xf] %vm1972, %v1959
      %1977 = vst.msk [vmem:[%s197 + $0x10] sm:$0xf] %vm1972, %v1960
      %1978 = vst.msk [vmem:[%s197 + $0x14] sm:$0xf] %vm1972, %v1961
      %1979 = vst.msk [vmem:[%s197 + $0x18] sm:$0xf] %vm1972, %v1962
      %1980 = vst.msk [vmem:[%s197 + $0x1c] sm:$0xf] %vm1972, %v1963
      %p1981 = scmp.lt.s32.totalorder %s15, 1
      %s1982 = scalar_select %p1981, %s15, 1
      %s1983 = smul.addr %s1982, 8
      %s1984 = smul.addr %s1983, 4
      %s1985 = scalar_lea.vmem %s4, %s1984
      // Predicated region
      $region37: #{decoder_forward.4} parent=35 // pred_check
        %p1986 = pneg %p122
      $region38: #{decoder_forward.4} parent=35 // pred_check_branch
        %1988 = sbr.rel (%p1986) target = $region40
      $region39: #{decoder_forward.4} parent=35 // pred_region
        _
      $region40: #{decoder_forward.4} parent=35 // pred_fallthru
        _
    $region36: #{decoder_forward.4} parent=5 // pred_fallthru
      _
    %p1989 = scmp.le.s32.totalorder 2, %s10
    // Predicated region
    $region41: #{decoder_forward.4} parent=5 // pred_check
      %p1990 = pneg %p1989
    $region42: #{decoder_forward.4} parent=5 // pred_check_branch
      %1992 = sbr.rel (%p1990) target = $region44
    $region43: #{decoder_forward.4} parent=5 // pred_region
      %s1993 = ssub.s32 %s10, 2
      // Predicated region
      $region45: #{decoder_forward.4} parent=43 // pred_check
        %p1994 = pneg %p128
      $region46: #{decoder_forward.4} parent=43 // pred_check_branch
        %1996 = sbr.rel (%p1994) target = $region48
      $region47: #{decoder_forward.4} parent=43 // pred_region
        %p1997 = scmp.lt.s32.totalorder %s16, 1
        %s1998 = scalar_select %p1997, %s16, 1
        %s1999 = smul.addr %s1998, 8
        %s2000 = smul.addr %s1999, 4
        %s2001 = scalar_lea.vmem %s4, %s2000
      $region48: #{decoder_forward.4} parent=43 // pred_fallthru
        _
    $region44: #{decoder_forward.4} parent=5 // pred_fallthru
      _
  $region6: #{decoder_forward.4} parent=0 // loop_footer
    %s14 = sadd.s32 1, %s10
  $region7: #{decoder_forward.4} parent=0 // loop_footer_branch
    %9 = sbr.rel target = $region3
  $region8: #{decoder_forward.4} parent=0 // loop_exit
    _

// kernel: decoder_forward.5
$region0: #{decoder_forward.5}
  #allocation0 [shape = 'u32[]', space=smem, size = 0x4, offset = 0x4, fixed_abs, tag = 'smem constant byte address 0x4 - core index']
  #allocation1 [shape = 'u32[144,128]{1,0:T(1,128)}', space=vmem, size = 0x12000, scoped, tag = 'internal scratch']
  #allocation2 [shape = 'bf16[4,362]{1,0:T(4,128)(2,1)}', space=vmem, size = 0xc00, scoped, tag = 'scratch operand']
  %s0 = inlined_call_operand.vmem [shape: bf16[2,4,362], index: 0, kind: input, shape index: {}]
  %s1 = inlined_call_operand.vmem [shape: bf16[2,4,362], index: 1, kind: input, shape index: {}]
  %s2 = inlined_call_operand.vmem [shape: bf16[9,4,4], index: 2, kind: input, shape index: {}]
  %s3 = inlined_call_operand.vmem [shape: bf16[9,4,4], index: 3, kind: input, shape index: {}]
  %s4 = inlined_call_operand.vmem [shape: bf16[9,4,4], index: 4, kind: input, shape index: {}]
  %s5 = inlined_call_operand.vmem [shape: f32[2,4,1], index: 5, kind: input, shape index: {}]
  %s6 = inlined_call_operand.vmem [shape: f32[2,4,1], index: 6, kind: input, shape index: {}]
  %s7 = inlined_call_operand.vmem [shape: f32[1,324], index: 7, kind: input, shape index: {}]
  %s8 = inlined_call_operand.vmem [shape: f32[2,4,324], index: 8, kind: output, shape index: {}]
  %s9 = sld [smem:[#allocation0]]
  $region65: #{decoder_forward.5} parent=0
    _
  %s11 = ssub.s32 1, %s9
  %s12 = scalar_select 0, %s11, %s9
  loop: start=0, step=1, limit=4
  $region2: #{decoder_forward.5} parent=0 // loop_pre_header
    _
  $region3: #{decoder_forward.5} parent=0 // loop_header
    %s14 = sphi 0, %s18
    %p15 = scmp.ge.s32.totalorder %s14, 4
    %s24 = sphi 0, %s26
    %s27 = sphi 0, %s24
    %s28 = sphi 0, %s27
    %s44 = sphi 0, %s28
    %s50 = sphi 0, %s52
    %s53 = sphi 0, %s50
    %s54 = sphi 0, %s53
    %s70 = sphi 0, %s54
    %s74 = sphi 0, %s74
    %s76 = sphi 0, %s74
    %s77 = sphi 0, %s76
    %s91 = sphi 0, %s77
    %s95 = sphi 0, %s95
    %s97 = sphi 0, %s95
    %s98 = sphi 0, %s97
    %s112 = sphi 0, %s98
    %s116 = sphi 0, %s116
    %s118 = sphi 0, %s116
    %s119 = sphi 0, %s118
    %s133 = sphi 0, %s119
    %s137 = sphi 0, %s137
    %s139 = sphi 0, %s137
    %s140 = sphi 0, %s139
    %s154 = sphi 0, %s140
    %s158 = sphi 0, %s158
    %s160 = sphi 0, %s158
    %s161 = sphi 0, %s160
    %s175 = sphi 0, %s161
    %s179 = sphi 0, %s179
    %s181 = sphi 0, %s179
    %s182 = sphi 0, %s181
    %s196 = sphi 0, %s182
    %s202 = sphi 0, %s204
    %s205 = sphi 0, %s202
    %s206 = sphi 0, %s205
    %s222 = sphi 0, %s206
  $region4: #{decoder_forward.5} parent=0 // loop_header_branch
    %17 = sbr.rel (%p15) target = $region8
  $region5: #{decoder_forward.5} parent=0 // loop_body
    %s19 = ssub.s32 %s14, 1
    %s20 = ssub.s32 %s14, 2
    %s21 = sadd.s32 %s14, 1
    %s22 = ssub.s32 %s14, %s21
    %p23 = scmp.eq.s32.totalorder %s22, 0
    %s25 = sadd.s32 %s24, 1
    %s26 = scalar_select %p23, %s24, %s25
    %p29 = pneg %p23
    %p30 = scmp.eq.s32.totalorder %s14, 1
    %p31 = por %p29, %p30
    %p32 = scmp.ne.s32.totalorder %s24, %s27
    %p33 = scmp.eq.s32.totalorder %s14, 0
    %p34 = por %p32, %p33
    %p35 = scmp.ne.s32.totalorder %s24, %s27
    %p36 = scmp.eq.s32.totalorder %s19, 1
    %p37 = por %p35, %p36
    %p38 = scmp.ne.s32.totalorder %s27, %s28
    %p39 = scmp.eq.s32.totalorder %s19, 0
    %p40 = por %p38, %p39
    %p41 = scmp.ne.s32.totalorder %s27, %s28
    %p42 = scmp.eq.s32.totalorder %s20, 1
    %p43 = por %p41, %p42
    %p45 = scmp.ne.s32.totalorder %s28, %s44
    %p46 = scmp.eq.s32.totalorder %s20, 0
    %p47 = por %p45, %p46
    %s48 = ssub.s32 %s14, %s21
    %p49 = scmp.eq.s32.totalorder %s48, 0
    %s51 = sadd.s32 %s50, 1
    %s52 = scalar_select %p49, %s50, %s51
    %p55 = pneg %p49
    %p56 = scmp.eq.s32.totalorder %s14, 1
    %p57 = por %p55, %p56
    %p58 = scmp.ne.s32.totalorder %s50, %s53
    %p59 = scmp.eq.s32.totalorder %s14, 0
    %p60 = por %p58, %p59
    %p61 = scmp.ne.s32.totalorder %s50, %s53
    %p62 = scmp.eq.s32.totalorder %s19, 1
    %p63 = por %p61, %p62
    %p64 = scmp.ne.s32.totalorder %s53, %s54
    %p65 = scmp.eq.s32.totalorder %s19, 0
    %p66 = por %p64, %p65
    %p67 = scmp.ne.s32.totalorder %s53, %s54
    %p68 = scmp.eq.s32.totalorder %s20, 1
    %p69 = por %p67, %p68
    %p71 = scmp.ne.s32.totalorder %s54, %s70
    %p72 = scmp.eq.s32.totalorder %s20, 0
    %p73 = por %p71, %p72
    %s75 = sadd.s32 %s74, 1
    %p78 = scmp.eq.s32.totalorder %s14, 1
    %p79 = scmp.ne.s32.totalorder %s74, %s76
    %p80 = scmp.eq.s32.totalorder %s14, 0
    %p81 = por %p79, %p80
    %p82 = scmp.ne.s32.totalorder %s74, %s76
    %p83 = scmp.eq.s32.totalorder %s19, 1
    %p84 = por %p82, %p83
    %p85 = scmp.ne.s32.totalorder %s76, %s77
    %p86 = scmp.eq.s32.totalorder %s19, 0
    %p87 = por %p85, %p86
    %p88 = scmp.ne.s32.totalorder %s76, %s77
    %p89 = scmp.eq.s32.totalorder %s20, 1
    %p90 = por %p88, %p89
    %p92 = scmp.ne.s32.totalorder %s77, %s91
    %p93 = scmp.eq.s32.totalorder %s20, 0
    %p94 = por %p92, %p93
    %s96 = sadd.s32 %s95, 1
    %p99 = scmp.eq.s32.totalorder %s14, 1
    %p100 = scmp.ne.s32.totalorder %s95, %s97
    %p101 = scmp.eq.s32.totalorder %s14, 0
    %p102 = por %p100, %p101
    %p103 = scmp.ne.s32.totalorder %s95, %s97
    %p104 = scmp.eq.s32.totalorder %s19, 1
    %p105 = por %p103, %p104
    %p106 = scmp.ne.s32.totalorder %s97, %s98
    %p107 = scmp.eq.s32.totalorder %s19, 0
    %p108 = por %p106, %p107
    %p109 = scmp.ne.s32.totalorder %s97, %s98
    %p110 = scmp.eq.s32.totalorder %s20, 1
    %p111 = por %p109, %p110
    %p113 = scmp.ne.s32.totalorder %s98, %s112
    %p114 = scmp.eq.s32.totalorder %s20, 0
    %p115 = por %p113, %p114
    %s117 = sadd.s32 %s116, 1
    %p120 = scmp.eq.s32.totalorder %s14, 1
    %p121 = scmp.ne.s32.totalorder %s116, %s118
    %p122 = scmp.eq.s32.totalorder %s14, 0
    %p123 = por %p121, %p122
    %p124 = scmp.ne.s32.totalorder %s116, %s118
    %p125 = scmp.eq.s32.totalorder %s19, 1
    %p126 = por %p124, %p125
    %p127 = scmp.ne.s32.totalorder %s118, %s119
    %p128 = scmp.eq.s32.totalorder %s19, 0
    %p129 = por %p127, %p128
    %p130 = scmp.ne.s32.totalorder %s118, %s119
    %p131 = scmp.eq.s32.totalorder %s20, 1
    %p132 = por %p130, %p131
    %p134 = scmp.ne.s32.totalorder %s119, %s133
    %p135 = scmp.eq.s32.totalorder %s20, 0
    %p136 = por %p134, %p135
    %s138 = sadd.s32 %s137, 1
    %p141 = scmp.eq.s32.totalorder %s14, 1
    %p142 = scmp.ne.s32.totalorder %s137, %s139
    %p143 = scmp.eq.s32.totalorder %s14, 0
    %p144 = por %p142, %p143
    %p145 = scmp.ne.s32.totalorder %s137, %s139
    %p146 = scmp.eq.s32.totalorder %s19, 1
    %p147 = por %p145, %p146
    %p148 = scmp.ne.s32.totalorder %s139, %s140
    %p149 = scmp.eq.s32.totalorder %s19, 0
    %p150 = por %p148, %p149
    %p151 = scmp.ne.s32.totalorder %s139, %s140
    %p152 = scmp.eq.s32.totalorder %s20, 1
    %p153 = por %p151, %p152
    %p155 = scmp.ne.s32.totalorder %s140, %s154
    %p156 = scmp.eq.s32.totalorder %s20, 0
    %p157 = por %p155, %p156
    %s159 = sadd.s32 %s158, 1
    %p162 = scmp.eq.s32.totalorder %s14, 1
    %p163 = scmp.ne.s32.totalorder %s158, %s160
    %p164 = scmp.eq.s32.totalorder %s14, 0
    %p165 = por %p163, %p164
    %p166 = scmp.ne.s32.totalorder %s158, %s160
    %p167 = scmp.eq.s32.totalorder %s19, 1
    %p168 = por %p166, %p167
    %p169 = scmp.ne.s32.totalorder %s160, %s161
    %p170 = scmp.eq.s32.totalorder %s19, 0
    %p171 = por %p169, %p170
    %p172 = scmp.ne.s32.totalorder %s160, %s161
    %p173 = scmp.eq.s32.totalorder %s20, 1
    %p174 = por %p172, %p173
    %p176 = scmp.ne.s32.totalorder %s161, %s175
    %p177 = scmp.eq.s32.totalorder %s20, 0
    %p178 = por %p176, %p177
    %s180 = sadd.s32 %s179, 1
    %p183 = scmp.eq.s32.totalorder %s14, 1
    %p184 = scmp.ne.s32.totalorder %s179, %s181
    %p185 = scmp.eq.s32.totalorder %s14, 0
    %p186 = por %p184, %p185
    %p187 = scmp.ne.s32.totalorder %s179, %s181
    %p188 = scmp.eq.s32.totalorder %s19, 1
    %p189 = por %p187, %p188
    %p190 = scmp.ne.s32.totalorder %s181, %s182
    %p191 = scmp.eq.s32.totalorder %s19, 0
    %p192 = por %p190, %p191
    %p193 = scmp.ne.s32.totalorder %s181, %s182
    %p194 = scmp.eq.s32.totalorder %s20, 1
    %p195 = por %p193, %p194
    %p197 = scmp.ne.s32.totalorder %s182, %s196
    %p198 = scmp.eq.s32.totalorder %s20, 0
    %p199 = por %p197, %p198
    %s200 = ssub.s32 %s14, %s21
    %p201 = scmp.eq.s32.totalorder %s200, 0
    %s203 = sadd.s32 %s202, 1
    %s204 = scalar_select %p201, %s202, %s203
    %p207 = pneg %p201
    %p208 = scmp.eq.s32.totalorder %s14, 1
    %p209 = por %p207, %p208
    %p210 = scmp.ne.s32.totalorder %s202, %s205
    %p211 = scmp.eq.s32.totalorder %s14, 0
    %p212 = por %p210, %p211
    %p213 = scmp.ne.s32.totalorder %s202, %s205
    %p214 = scmp.eq.s32.totalorder %s19, 1
    %p215 = por %p213, %p214
    %p216 = scmp.ne.s32.totalorder %s205, %s206
    %p217 = scmp.eq.s32.totalorder %s19, 0
    %p218 = por %p216, %p217
    %p219 = scmp.ne.s32.totalorder %s205, %s206
    %p220 = scmp.eq.s32.totalorder %s20, 1
    %p221 = por %p219, %p220
    %p223 = scmp.ne.s32.totalorder %s206, %s222
    %p224 = scmp.eq.s32.totalorder %s20, 0
    %p225 = por %p223, %p224
    %p226 = scmp.le.s32.totalorder 1, %s14
    %p227 = scmp.lt.s32.totalorder %s14, 3
    %p228 = pnand %p226, %p227
    %p229 = pneg %p228
    // Predicated region
    $region9: #{decoder_forward.5} parent=5 // pred_check
      _
    $region10: #{decoder_forward.5} parent=5 // pred_check_branch
      %231 = sbr.rel (%p228) target = $region12
    $region11: #{decoder_forward.5} parent=5 // pred_region
      %s232 = ssub.s32 %s14, 1
      // Predicated region
      $region13: #{decoder_forward.5} parent=11 // pred_check
        %p233 = pneg %p87
      $region14: #{decoder_forward.5} parent=11 // pred_check_branch
        %235 = sbr.rel (%p233) target = $region16
      $region15: #{decoder_forward.5} parent=11 // pred_region
        _
      $region16: #{decoder_forward.5} parent=11 // pred_fallthru
        _
      // Predicated region
      $region17: #{decoder_forward.5} parent=11 // pred_check
        %p236 = pneg %p108
      $region18: #{decoder_forward.5} parent=11 // pred_check_branch
        %238 = sbr.rel (%p236) target = $region20
      $region19: #{decoder_forward.5} parent=11 // pred_region
        _
      $region20: #{decoder_forward.5} parent=11 // pred_fallthru
        _
      // Predicated region
      $region21: #{decoder_forward.5} parent=11 // pred_check
        %p239 = pneg %p129
      $region22: #{decoder_forward.5} parent=11 // pred_check_branch
        %241 = sbr.rel (%p239) target = $region24
      $region23: #{decoder_forward.5} parent=11 // pred_region
        _
      $region24: #{decoder_forward.5} parent=11 // pred_fallthru
        _
      // Predicated region
      $region25: #{decoder_forward.5} parent=11 // pred_check
        %p242 = pneg %p150
      $region26: #{decoder_forward.5} parent=11 // pred_check_branch
        %244 = sbr.rel (%p242) target = $region28
      $region27: #{decoder_forward.5} parent=11 // pred_region
        _
      $region28: #{decoder_forward.5} parent=11 // pred_fallthru
        _
      // Predicated region
      $region29: #{decoder_forward.5} parent=11 // pred_check
        %p245 = pneg %p171
      $region30: #{decoder_forward.5} parent=11 // pred_check_branch
        %247 = sbr.rel (%p245) target = $region32
      $region31: #{decoder_forward.5} parent=11 // pred_region
        _
      $region32: #{decoder_forward.5} parent=11 // pred_fallthru
        _
      // Predicated region
      $region33: #{decoder_forward.5} parent=11 // pred_check
        %p248 = pneg %p192
      $region34: #{decoder_forward.5} parent=11 // pred_check_branch
        %250 = sbr.rel (%p248) target = $region36
      $region35: #{decoder_forward.5} parent=11 // pred_region
        _
      $region36: #{decoder_forward.5} parent=11 // pred_fallthru
        _
    $region12: #{decoder_forward.5} parent=5 // pred_fallthru
      _
    %p251 = scmp.lt.s32.totalorder %s14, 2
    // Predicated region
    $region37: #{decoder_forward.5} parent=5 // pred_check
      %p252 = pneg %p251
    $region38: #{decoder_forward.5} parent=5 // pred_check_branch
      %254 = sbr.rel (%p252) target = $region40
    $region39: #{decoder_forward.5} parent=5 // pred_region
      // Predicated region
      $region41: #{decoder_forward.5} parent=39 // pred_check
        %p255 = pneg %p34
      $region42: #{decoder_forward.5} parent=39 // pred_check_branch
        %257 = sbr.rel (%p255) target = $region44
      $region43: #{decoder_forward.5} parent=39 // pred_region
        %p258 = scmp.lt.s32.totalorder %s14, 1
        %s259 = scalar_select %p258, %s14, 1
        %s260 = smul.addr %s259, 3
        %s261 = smul.addr %s260, 2
        %s262 = scalar_lea.vmem %s0, %s261
      $region44: #{decoder_forward.5} parent=39 // pred_fallthru
        _
      // Predicated region
      $region45: #{decoder_forward.5} parent=39 // pred_check
        %p263 = pneg %p60
      $region46: #{decoder_forward.5} parent=39 // pred_check_branch
        %265 = sbr.rel (%p263) target = $region48
      $region47: #{decoder_forward.5} parent=39 // pred_region
        %p266 = scmp.lt.s32.totalorder %s14, 1
        %s267 = scalar_select %p266, %s14, 1
        %s268 = smul.addr %s267, 3
        %s269 = smul.addr %s268, 2
        %s270 = scalar_lea.vmem %s1, %s269
      $region48: #{decoder_forward.5} parent=39 // pred_fallthru
        _
    $region40: #{decoder_forward.5} parent=5 // pred_fallthru
      _
    %p271 = scmp.le.s32.totalorder 1, %s14
    %p272 = scmp.lt.s32.totalorder %s14, 3
    %p273 = pnand %p271, %p272
    %p274 = pneg %p273
    // Predicated region
    $region49: #{decoder_forward.5} parent=5 // pred_check
      _
    $region50: #{decoder_forward.5} parent=5 // pred_check_branch
      %276 = sbr.rel (%p273) target = $region52
    $region51: #{decoder_forward.5} parent=5 // pred_region
      %s277 = ssub.s32 %s14, 1
      %p278 = scmp.lt.s32.totalorder %s19, 1
      %s279 = scalar_select %p278, %s19, 1
      %s280 = smul.addr %s279, 3
      %s281 = smul.addr %s280, 2
      %s282 = scalar_lea.vmem %s0, %s281
      %p283 = pneg %p40
      %p284 = pneg %p37
      %p285 = scmp.lt.s32.totalorder %s19, 1
      %s286 = scalar_select %p285, %s19, 1
      %s287 = smul.addr %s286, 3
      %s288 = smul.addr %s287, 2
      %s289 = scalar_lea.vmem %s1, %s288
      %p290 = pneg %p66
      %p291 = pneg %p63
      %p292 = pneg %p87
      %p293 = pneg %p84
      %p294 = pneg %p108
      %p295 = pneg %p105
      %p296 = pneg %p129
      %p297 = pneg %p126
      %p298 = pneg %p150
      %p299 = pneg %p147
      %p300 = pneg %p171
      %p301 = pneg %p168
      %p302 = pneg %p192
      %p303 = pneg %p189
      %p304 = pneg %p218
      %p305 = pneg %p215
      %p306 = scmp.lt.s32.totalorder %s19, 1
      %s307 = scalar_select %p306, %s19, 1
      %s308 = smul.addr %s307, 3
      %s309 = smul.addr %s308, 4
      %s310 = scalar_lea.vmem %s8, %s309
      %p311 = scmp.lt.s32.totalorder %s19, 1
      %s312 = scalar_select %p311, %s19, 1
      %s313 = smul.addr %s312, 3
      %s314 = smul.addr %s313, 2
      %s315 = scalar_lea.vmem %s0, %s314
      %p316 = scmp.lt.s32.totalorder %s19, 1
      %s317 = scalar_select %p316, %s19, 1
      %s318 = smul.addr %s317, 3
      %s319 = smul.addr %s318, 2
      %s320 = scalar_lea.vmem %s1, %s319
      %p321 = scmp.lt.s32.totalorder %s19, 1
      %s322 = scalar_select %p321, %s19, 1
      %s323 = smul.addr %s322, 3
      %s324 = smul.addr %s323, 4
      %s325 = scalar_lea.vmem %s8, %s324
      %v327 = vld [vmem:[%s315] sm:$0x3f]
      %v328 = vld [vmem:[%s320] sm:$0x3f]
      %v329 = vld [vmem:[%s2] sm:$0x3]
      %v330 = vld [vmem:[%s3] sm:$0x3]
      %v332 = vcombine.high %v328, %v328
      %v334 = vunpack.c.l.s4 1983009808
      %v335 = vunpack.c.0.s8 %v334
      %v336 = vlaneseq
      %v337 = vshrl.u32 %v336, 7
      %v338 = vsub.s32 %v335, %v337
      %v339 = vrot.slane %v328, %v338
      %v341 = vunpack.c.l.s4 1983009808
      %v342 = vunpack.c.0.s8 %v341
      %v343 = vlaneseq
      %v344 = vshrl.u32 %v343, 7
      %v345 = vsub.s32 %v342, %v344
      %v346 = vrot.slane %v332, %v345
      %v347 = vcombine.high %v339, %v339
      %vm348 = vcmask 31744
      %v350 = vsel %vm348, %v330, 0
      %vm352 = vcmask 1041408
      %v354 = vsel %vm352, %v339, 0
      %v357 = vsel %vm352, %v347, 0
      %v360 = vsel %vm352, %v346, 0
      %362 = vmatprep.subr.bf16.mxu0 %v357
      %363 = vmatpush1.bf16.msra.mxu0 %v354
      %364 = vmatprep.subr.bf16.mxu0 0
      %365 = vmatpush1.bf16.msra.mxu0 0
      %366 = vmatprep.subr.bf16.mxu0 0
      %367 = vmatpush1.bf16.msra.mxu0 0
      %368 = vmatprep.subr.bf16.mxu0 0
      %369 = vmatpush1.bf16.msra.mxu0 0
      %370 = vmatprep.subr.bf16.mxu0 0
      %371 = vmatpush1.bf16.msra.mxu0 0
      %372 = vmatprep.subr.bf16.mxu0 0
      %373 = vmatpush1.bf16.msra.mxu0 0
      %374 = vmatprep.subr.bf16.mxu0 0
      %375 = vmatpush1.bf16.msra.mxu0 0
      %376 = vmatprep.subr.bf16.mxu0 0
      %377 = vmatpush1.bf16.msra.mxu0 0
      %378 = vmatprep.subr.bf16.mxu0 0
      %379 = vmatpush1.bf16.msra.mxu0 0
      %380 = vmatprep.subr.bf16.mxu0 0
      %381 = vmatpush1.bf16.msra.mxu0 0
      %382 = vmatprep.subr.bf16.mxu0 0
      %383 = vmatpush1.bf16.msra.mxu0 0
      %384 = vmatprep.subr.bf16.mxu0 0
      %385 = vmatpush1.bf16.msra.mxu0 0
      %386 = vmatprep.subr.bf16.mxu0 0
      %387 = vmatpush1.bf16.msra.mxu0 0
      %388 = vmatprep.subr.bf16.mxu0 0
      %389 = vmatpush1.bf16.msra.mxu0 0
      %390 = vmatprep.subr.bf16.mxu0 0
      %391 = vmatpush1.bf16.msra.mxu0 0
      %392 = vmatprep.subr.bf16.mxu0 0
      %393 = vmatpush1.bf16.msra.mxu0 0
      %394 = vmatprep.mubr.bf16.mxu0 0
      %395 = vmatmul.mubr.bf16.gmra.mrb[0].mxu0 %v350
      %v396 = vpop.f32.mrb[0].mxu0
      %v397 = vadd.f32 0.0, %v396
      %v398 = vpop.f32.mrb[0].mxu0
      %v399 = vadd.f32 0.0, %v398
      %v400 = vpop.f32.mrb[0].mxu0
      %v401 = vpop.f32.mrb[0].mxu0
      %402 = vdwg.mxu0
      %403 = vmatprep.subr.bf16.mxu0 0
      %404 = vmatpush1.bf16.msra.mxu0 %v360
      %405 = vmatprep.subr.bf16.mxu0 0
      %406 = vmatpush1.bf16.msra.mxu0 0
      %407 = vmatprep.subr.bf16.mxu0 0
      %408 = vmatpush1.bf16.msra.mxu0 0
      %409 = vmatprep.subr.bf16.mxu0 0
      %410 = vmatpush1.bf16.msra.mxu0 0
      %411 = vmatprep.subr.bf16.mxu0 0
      %412 = vmatpush1.bf16.msra.mxu0 0
      %413 = vmatprep.subr.bf16.mxu0 0
      %414 = vmatpush1.bf16.msra.mxu0 0
      %415 = vmatprep.subr.bf16.mxu0 0
      %416 = vmatpush1.bf16.msra.mxu0 0
      %417 = vmatprep.subr.bf16.mxu0 0
      %418 = vmatpush1.bf16.msra.mxu0 0
      %419 = vmatprep.subr.bf16.mxu0 0
      %420 = vmatpush1.bf16.msra.mxu0 0
      %421 = vmatprep.subr.bf16.mxu0 0
      %422 = vmatpush1.bf16.msra.mxu0 0
      %423 = vmatprep.subr.bf16.mxu0 0
      %424 = vmatpush1.bf16.msra.mxu0 0
      %425 = vmatprep.subr.bf16.mxu0 0
      %426 = vmatpush1.bf16.msra.mxu0 0
      %427 = vmatprep.subr.bf16.mxu0 0
      %428 = vmatpush1.bf16.msra.mxu0 0
      %429 = vmatprep.subr.bf16.mxu0 0
      %430 = vmatpush1.bf16.msra.mxu0 0
      %431 = vmatprep.subr.bf16.mxu0 0
      %432 = vmatpush1.bf16.msra.mxu0 0
      %433 = vmatprep.subr.bf16.mxu0 0
      %434 = vmatpush1.bf16.msra.mxu0 0
      %435 = vmatprep.mubr.bf16.mxu0 0
      %436 = vmatmul.mubr.bf16.gmra.mrb[0].mxu0 %v350
      %v437 = vpop.f32.mrb[0].mxu0
      %v438 = vadd.f32 0.0, %v437
      %v439 = vpop.f32.mrb[0].mxu0
      %v440 = vpop.f32.mrb[0].mxu0
      %v441 = vpop.f32.mrb[0].mxu0
      %442 = vdwg.mxu0
      %v444 = vcombine.high %v327, %v327
      %v446 = vunpack.c.l.s4 1983009808
      %v447 = vunpack.c.0.s8 %v446
      %v448 = vlaneseq
      %v449 = vshrl.u32 %v448, 7
      %v450 = vsub.s32 %v447, %v449
      %v451 = vrot.slane %v327, %v450
      %v453 = vunpack.c.l.s4 1983009808
      %v454 = vunpack.c.0.s8 %v453
      %v455 = vlaneseq
      %v456 = vshrl.u32 %v455, 7
      %v457 = vsub.s32 %v454, %v456
      %v458 = vrot.slane %v444, %v457
      %v459 = vcombine.high %v451, %v451
      %v461 = vsel %vm348, %v329, 0
      %v464 = vsel %vm352, %v451, 0
      %v467 = vsel %vm352, %v459, 0
      %v470 = vsel %vm352, %v458, 0
      %472 = vmatprep.subr.bf16.mxu0 %v467
      %473 = vmatpush1.bf16.msra.mxu0 %v464
      %474 = vmatprep.subr.bf16.mxu0 0
      %475 = vmatpush1.bf16.msra.mxu0 0
      %476 = vmatprep.subr.bf16.mxu0 0
      %477 = vmatpush1.bf16.msra.mxu0 0
      %478 = vmatprep.subr.bf16.mxu0 0
      %479 = vmatpush1.bf16.msra.mxu0 0
      %480 = vmatprep.subr.bf16.mxu0 0
      %481 = vmatpush1.bf16.msra.mxu0 0
      %482 = vmatprep.subr.bf16.mxu0 0
      %483 = vmatpush1.bf16.msra.mxu0 0
      %484 = vmatprep.subr.bf16.mxu0 0
      %485 = vmatpush1.bf16.msra.mxu0 0
      %486 = vmatprep.subr.bf16.mxu0 0
      %487 = vmatpush1.bf16.msra.mxu0 0
      %488 = vmatprep.subr.bf16.mxu0 0
      %489 = vmatpush1.bf16.msra.mxu0 0
      %490 = vmatprep.subr.bf16.mxu0 0
      %491 = vmatpush1.bf16.msra.mxu0 0
      %492 = vmatprep.subr.bf16.mxu0 0
      %493 = vmatpush1.bf16.msra.mxu0 0
      %494 = vmatprep.subr.bf16.mxu0 0
      %495 = vmatpush1.bf16.msra.mxu0 0
      %496 = vmatprep.subr.bf16.mxu0 0
      %497 = vmatpush1.bf16.msra.mxu0 0
      %498 = vmatprep.subr.bf16.mxu0 0
      %499 = vmatpush1.bf16.msra.mxu0 0
      %500 = vmatprep.subr.bf16.mxu0 0
      %501 = vmatpush1.bf16.msra.mxu0 0
      %502 = vmatprep.subr.bf16.mxu0 0
      %503 = vmatpush1.bf16.msra.mxu0 0
      %504 = vmatprep.mubr.bf16.mxu0 0
      %505 = vmatmul.mubr.bf16.gmra.mrb[0].mxu0 %v461
      %v506 = vpop.f32.mrb[0].mxu0
      %v507 = vadd.f32 %v397, %v506
      %v508 = vpop.f32.mrb[0].mxu0
      %v509 = vadd.f32 %v399, %v508
      %v510 = vpop.f32.mrb[0].mxu0
      %v511 = vpop.f32.mrb[0].mxu0
      %512 = vdwg.mxu0
      %513 = vmatprep.subr.bf16.mxu0 0
      %514 = vmatpush1.bf16.msra.mxu0 %v470
      %515 = vmatprep.subr.bf16.mxu0 0
      %516 = vmatpush1.bf16.msra.mxu0 0
      %517 = vmatprep.subr.bf16.mxu0 0
      %518 = vmatpush1.bf16.msra.mxu0 0
      %519 = vmatprep.subr.bf16.mxu0 0
      %520 = vmatpush1.bf16.msra.mxu0 0
      %521 = vmatprep.subr.bf16.mxu0 0
      %522 = vmatpush1.bf16.msra.mxu0 0
      %523 = vmatprep.subr.bf16.mxu0 0
      %524 = vmatpush1.bf16.msra.mxu0 0
      %525 = vmatprep.subr.bf16.mxu0 0
      %526 = vmatpush1.bf16.msra.mxu0 0
      %527 = vmatprep.subr.bf16.mxu0 0
      %528 = vmatpush1.bf16.msra.mxu0 0
      %529 = vmatprep.subr.bf16.mxu0 0
      %530 = vmatpush1.bf16.msra.mxu0 0
      %531 = vmatprep.subr.bf16.mxu0 0
      %532 = vmatpush1.bf16.msra.mxu0 0
      %533 = vmatprep.subr.bf16.mxu0 0
      %534 = vmatpush1.bf16.msra.mxu0 0
      %535 = vmatprep.subr.bf16.mxu0 0
      %536 = vmatpush1.bf16.msra.mxu0 0
      %537 = vmatprep.subr.bf16.mxu0 0
      %538 = vmatpush1.bf16.msra.mxu0 0
      %539 = vmatprep.subr.bf16.mxu0 0
      %540 = vmatpush1.bf16.msra.mxu0 0
      %541 = vmatprep.subr.bf16.mxu0 0
      %542 = vmatpush1.bf16.msra.mxu0 0
      %543 = vmatprep.subr.bf16.mxu0 0
      %544 = vmatpush1.bf16.msra.mxu0 0
      %545 = vmatprep.mubr.bf16.mxu0 0
      %546 = vmatmul.mubr.bf16.gmra.mrb[0].mxu0 %v461
      %v547 = vpop.f32.mrb[0].mxu0
      %v548 = vadd.f32 %v438, %v547
      %v549 = vpop.f32.mrb[0].mxu0
      %v550 = vpop.f32.mrb[0].mxu0
      %v551 = vpop.f32.mrb[0].mxu0
      %552 = vdwg.mxu0
      %v553 = vld [vmem:[%s315] sm:$0x3f]
      %v554 = vld [vmem:[%s320] sm:$0x3f]
      %s555 = scalar_lea.vmem %s2, 2
      %v556 = vld [vmem:[%s555] sm:$0x3]
      %v558 = vcombine.high %v553, %v553
      %v560 = vunpack.c.l.s4 1983009808
      %v561 = vunpack.c.0.s8 %v560
      %v562 = vlaneseq
      %v563 = vshrl.u32 %v562, 7
      %v564 = vsub.s32 %v561, %v563
      %v565 = vrot.slane %v553, %v564
      %v567 = vunpack.c.l.s4 1983009808
      %v568 = vunpack.c.0.s8 %v567
      %v569 = vlaneseq
      %v570 = vshrl.u32 %v569, 7
      %v571 = vsub.s32 %v568, %v570
      %v572 = vrot.slane %v558, %v571
      %v573 = vcombine.high %v565, %v565
      %574 = vrot.lane.b32.xlu0 %v565, 127
      %v575 = vpop.permute.xlu0 %574
      %576 = vrot.lane.b32.xlu0 %v573, 127
      %v577 = vpop.permute.xlu0 %576
      %578 = vrot.lane.b32.xlu0 %v572, 127
      %v579 = vpop.permute.xlu0 %578
      %vm580 = vcmask 1039360
      %v581 = vsel %vm580, %v575, %v577
      %v582 = vsel %vm580, %v577, %v579
      %v584 = vsel %vm348, %v556, 0
      %v587 = vsel %vm352, %v581, 0
      %v590 = vsel %vm352, %v582, 0
      %v593 = vsel %vm352, %v579, 0
      %595 = vmatprep.subr.bf16.mxu0 %v590
      %596 = vmatpush1.bf16.msra.mxu0 %v587
      %597 = vmatprep.subr.bf16.mxu0 0
      %598 = vmatpush1.bf16.msra.mxu0 0
      %599 = vmatprep.subr.bf16.mxu0 0
      %600 = vmatpush1.bf16.msra.mxu0 0
      %601 = vmatprep.subr.bf16.mxu0 0
      %602 = vmatpush1.bf16.msra.mxu0 0
      %603 = vmatprep.subr.bf16.mxu0 0
      %604 = vmatpush1.bf16.msra.mxu0 0
      %605 = vmatprep.subr.bf16.mxu0 0
      %606 = vmatpush1.bf16.msra.mxu0 0
      %607 = vmatprep.subr.bf16.mxu0 0
      %608 = vmatpush1.bf16.msra.mxu0 0
      %609 = vmatprep.subr.bf16.mxu0 0
      %610 = vmatpush1.bf16.msra.mxu0 0
      %611 = vmatprep.subr.bf16.mxu0 0
      %612 = vmatpush1.bf16.msra.mxu0 0
      %613 = vmatprep.subr.bf16.mxu0 0
      %614 = vmatpush1.bf16.msra.mxu0 0
      %615 = vmatprep.subr.bf16.mxu0 0
      %616 = vmatpush1.bf16.msra.mxu0 0
      %617 = vmatprep.subr.bf16.mxu0 0
      %618 = vmatpush1.bf16.msra.mxu0 0
      %619 = vmatprep.subr.bf16.mxu0 0
      %620 = vmatpush1.bf16.msra.mxu0 0
      %621 = vmatprep.subr.bf16.mxu0 0
      %622 = vmatpush1.bf16.msra.mxu0 0
      %623 = vmatprep.subr.bf16.mxu0 0
      %624 = vmatpush1.bf16.msra.mxu0 0
      %625 = vmatprep.subr.bf16.mxu0 0
      %626 = vmatpush1.bf16.msra.mxu0 0
      %627 = vmatprep.mubr.bf16.mxu0 0
      %628 = vmatmul.mubr.bf16.gmra.mrb[0].mxu0 %v584
      %v629 = vpop.f32.mrb[0].mxu0
      %v630 = vadd.f32 0.0, %v629
      %v631 = vpop.f32.mrb[0].mxu0
      %v632 = vadd.f32 0.0, %v631
      %v633 = vpop.f32.mrb[0].mxu0
      %v634 = vpop.f32.mrb[0].mxu0
      %635 = vdwg.mxu0
      %636 = vmatprep.subr.bf16.mxu0 0
      %637 = vmatpush1.bf16.msra.mxu0 %v593
      %638 = vmatprep.subr.bf16.mxu0 0
      %639 = vmatpush1.bf16.msra.mxu0 0
      %640 = vmatprep.subr.bf16.mxu0 0
      %641 = vmatpush1.bf16.msra.mxu0 0
      %642 = vmatprep.subr.bf16.mxu0 0
      %643 = vmatpush1.bf16.msra.mxu0 0
      %644 = vmatprep.subr.bf16.mxu0 0
      %645 = vmatpush1.bf16.msra.mxu0 0
      %646 = vmatprep.subr.bf16.mxu0 0
      %647 = vmatpush1.bf16.msra.mxu0 0
      %648 = vmatprep.subr.bf16.mxu0 0
      %649 = vmatpush1.bf16.msra.mxu0 0
      %650 = vmatprep.subr.bf16.mxu0 0
      %651 = vmatpush1.bf16.msra.mxu0 0
      %652 = vmatprep.subr.bf16.mxu0 0
      %653 = vmatpush1.bf16.msra.mxu0 0
      %654 = vmatprep.subr.bf16.mxu0 0
      %655 = vmatpush1.bf16.msra.mxu0 0
      %656 = vmatprep.subr.bf16.mxu0 0
      %657 = vmatpush1.bf16.msra.mxu0 0
      %658 = vmatprep.subr.bf16.mxu0 0
      %659 = vmatpush1.bf16.msra.mxu0 0
      %660 = vmatprep.subr.bf16.mxu0 0
      %661 = vmatpush1.bf16.msra.mxu0 0
      %662 = vmatprep.subr.bf16.mxu0 0
      %663 = vmatpush1.bf16.msra.mxu0 0
      %664 = vmatprep.subr.bf16.mxu0 0
      %665 = vmatpush1.bf16.msra.mxu0 0
      %666 = vmatprep.subr.bf16.mxu0 0
      %667 = vmatpush1.bf16.msra.mxu0 0
      %668 = vmatprep.mubr.bf16.mxu0 0
      %669 = vmatmul.mubr.bf16.gmra.mrb[0].mxu0 %v584
      %v670 = vpop.f32.mrb[0].mxu0
      %v671 = vadd.f32 0.0, %v670
      %v672 = vpop.f32.mrb[0].mxu0
      %v673 = vpop.f32.mrb[0].mxu0
      %v674 = vpop.f32.mrb[0].mxu0
      %675 = vdwg.mxu0
      %v676 = vadd.f32 %v507, %v630
      %v677 = vadd.f32 %v509, %v632
      %v678 = vadd.f32 %v548, %v671
      %s679 = scalar_lea.vmem %s3, 2
      %v680 = vld [vmem:[%s679] sm:$0x3]
      %v682 = vcombine.high %v554, %v554
      %v684 = vunpack.c.l.s4 1983009808
      %v685 = vunpack.c.0.s8 %v684
      %v686 = vlaneseq
      %v687 = vshrl.u32 %v686, 7
      %v688 = vsub.s32 %v685, %v687
      %v689 = vrot.slane %v554, %v688
      %v691 = vunpack.c.l.s4 1983009808
      %v692 = vunpack.c.0.s8 %v691
      %v693 = vlaneseq
      %v694 = vshrl.u32 %v693, 7
      %v695 = vsub.s32 %v692, %v694
      %v696 = vrot.slane %v682, %v695
      %v697 = vcombine.high %v689, %v689
      %698 = vrot.lane.b32.xlu0 %v689, 127
      %v699 = vpop.permute.xlu0 %698
      %700 = vrot.lane.b32.xlu0 %v697, 127
      %v701 = vpop.permute.xlu0 %700
      %702 = vrot.lane.b32.xlu0 %v696, 127
      %v703 = vpop.permute.xlu0 %702
      %v704 = vsel %vm580, %v699, %v701
      %v705 = vsel %vm580, %v701, %v703
      %v707 = vsel %vm348, %v680, 0
      %v710 = vsel %vm352, %v704, 0
      %v713 = vsel %vm352, %v705, 0
      %v716 = vsel %vm352, %v703, 0
      %718 = vmatprep.subr.bf16.mxu0 %v713
      %719 = vmatpush1.bf16.msra.mxu0 %v710
      %720 = vmatprep.subr.bf16.mxu0 0
      %721 = vmatpush1.bf16.msra.mxu0 0
      %722 = vmatprep.subr.bf16.mxu0 0
      %723 = vmatpush1.bf16.msra.mxu0 0
      %724 = vmatprep.subr.bf16.mxu0 0
      %725 = vmatpush1.bf16.msra.mxu0 0
      %726 = vmatprep.subr.bf16.mxu0 0
      %727 = vmatpush1.bf16.msra.mxu0 0
      %728 = vmatprep.subr.bf16.mxu0 0
      %729 = vmatpush1.bf16.msra.mxu0 0
      %730 = vmatprep.subr.bf16.mxu0 0
      %731 = vmatpush1.bf16.msra.mxu0 0
      %732 = vmatprep.subr.bf16.mxu0 0
      %733 = vmatpush1.bf16.msra.mxu0 0
      %734 = vmatprep.subr.bf16.mxu0 0
      %735 = vmatpush1.bf16.msra.mxu0 0
      %736 = vmatprep.subr.bf16.mxu0 0
      %737 = vmatpush1.bf16.msra.mxu0 0
      %738 = vmatprep.subr.bf16.mxu0 0
      %739 = vmatpush1.bf16.msra.mxu0 0
      %740 = vmatprep.subr.bf16.mxu0 0
      %741 = vmatpush1.bf16.msra.mxu0 0
      %742 = vmatprep.subr.bf16.mxu0 0
      %743 = vmatpush1.bf16.msra.mxu0 0
      %744 = vmatprep.subr.bf16.mxu0 0
      %745 = vmatpush1.bf16.msra.mxu0 0
      %746 = vmatprep.subr.bf16.mxu0 0
      %747 = vmatpush1.bf16.msra.mxu0 0
      %748 = vmatprep.subr.bf16.mxu0 0
      %749 = vmatpush1.bf16.msra.mxu0 0
      %750 = vmatprep.mubr.bf16.mxu0 0
      %751 = vmatmul.mubr.bf16.gmra.mrb[0].mxu0 %v707
      %v752 = vpop.f32.mrb[0].mxu0
      %v753 = vadd.f32 0.0, %v752
      %v754 = vpop.f32.mrb[0].mxu0
      %v755 = vadd.f32 0.0, %v754
      %v756 = vpop.f32.mrb[0].mxu0
      %v757 = vpop.f32.mrb[0].mxu0
      %758 = vdwg.mxu0
      %759 = vmatprep.subr.bf16.mxu0 0
      %760 = vmatpush1.bf16.msra.mxu0 %v716
      %761 = vmatprep.subr.bf16.mxu0 0
      %762 = vmatpush1.bf16.msra.mxu0 0
      %763 = vmatprep.subr.bf16.mxu0 0
      %764 = vmatpush1.bf16.msra.mxu0 0
      %765 = vmatprep.subr.bf16.mxu0 0
      %766 = vmatpush1.bf16.msra.mxu0 0
      %767 = vmatprep.subr.bf16.mxu0 0
      %768 = vmatpush1.bf16.msra.mxu0 0
      %769 = vmatprep.subr.bf16.mxu0 0
      %770 = vmatpush1.bf16.msra.mxu0 0
      %771 = vmatprep.subr.bf16.mxu0 0
      %772 = vmatpush1.bf16.msra.mxu0 0
      %773 = vmatprep.subr.bf16.mxu0 0
      %774 = vmatpush1.bf16.msra.mxu0 0
      %775 = vmatprep.subr.bf16.mxu0 0
      %776 = vmatpush1.bf16.msra.mxu0 0
      %777 = vmatprep.subr.bf16.mxu0 0
      %778 = vmatpush1.bf16.msra.mxu0 0
      %779 = vmatprep.subr.bf16.mxu0 0
      %780 = vmatpush1.bf16.msra.mxu0 0
      %781 = vmatprep.subr.bf16.mxu0 0
      %782 = vmatpush1.bf16.msra.mxu0 0
      %783 = vmatprep.subr.bf16.mxu0 0
      %784 = vmatpush1.bf16.msra.mxu0 0
      %785 = vmatprep.subr.bf16.mxu0 0
      %786 = vmatpush1.bf16.msra.mxu0 0
      %787 = vmatprep.subr.bf16.mxu0 0
      %788 = vmatpush1.bf16.msra.mxu0 0
      %789 = vmatprep.subr.bf16.mxu0 0
      %790 = vmatpush1.bf16.msra.mxu0 0
      %791 = vmatprep.mubr.bf16.mxu0 0
      %792 = vmatmul.mubr.bf16.gmra.mrb[0].mxu0 %v707
      %v793 = vpop.f32.mrb[0].mxu0
      %v794 = vadd.f32 0.0, %v793
      %v795 = vpop.f32.mrb[0].mxu0
      %v796 = vpop.f32.mrb[0].mxu0
      %v797 = vpop.f32.mrb[0].mxu0
      %798 = vdwg.mxu0
      %v799 = vadd.f32 %v676, %v753
      %v800 = vadd.f32 %v677, %v755
      %v801 = vadd.f32 %v678, %v794
      %v802 = vld [vmem:[%s315] sm:$0x3f]
      %v803 = vld [vmem:[%s320] sm:$0x3f]
      %s804 = scalar_lea.vmem %s2, 4
      %v805 = vld [vmem:[%s804] sm:$0x3]
      %v807 = vcombine.high %v802, %v802
      %v809 = vunpack.c.l.s4 1983009808
      %v810 = vunpack.c.0.s8 %v809
      %v811 = vlaneseq
      %v812 = vshrl.u32 %v811, 7
      %v813 = vsub.s32 %v810, %v812
      %v814 = vrot.slane %v802, %v813
      %v816 = vunpack.c.l.s4 1983009808
      %v817 = vunpack.c.0.s8 %v816
      %v818 = vlaneseq
      %v819 = vshrl.u32 %v818, 7
      %v820 = vsub.s32 %v817, %v819
      %v821 = vrot.slane %v807, %v820
      %v822 = vcombine.high %v814, %v814
      %823 = vrot.lane.b32.xlu0 %v814, 126
      %v824 = vpop.permute.xlu0 %823
      %825 = vrot.lane.b32.xlu0 %v822, 126
      %v826 = vpop.permute.xlu0 %825
      %827 = vrot.lane.b32.xlu0 %v821, 126
      %v828 = vpop.permute.xlu0 %827
      %vm829 = vcmask 1031168
      %v830 = vsel %vm829, %v824, %v826
      %v831 = vsel %vm829, %v826, %v828
      %v833 = vsel %vm348, %v805, 0
      %v836 = vsel %vm352, %v830, 0
      %v839 = vsel %vm352, %v831, 0
      %v842 = vsel %vm352, %v828, 0
      %844 = vmatprep.subr.bf16.mxu0 %v839
      %845 = vmatpush1.bf16.msra.mxu0 %v836
      %846 = vmatprep.subr.bf16.mxu0 0
      %847 = vmatpush1.bf16.msra.mxu0 0
      %848 = vmatprep.subr.bf16.mxu0 0
      %849 = vmatpush1.bf16.msra.mxu0 0
      %850 = vmatprep.subr.bf16.mxu0 0
      %851 = vmatpush1.bf16.msra.mxu0 0
      %852 = vmatprep.subr.bf16.mxu0 0
      %853 = vmatpush1.bf16.msra.mxu0 0
      %854 = vmatprep.subr.bf16.mxu0 0
      %855 = vmatpush1.bf16.msra.mxu0 0
      %856 = vmatprep.subr.bf16.mxu0 0
      %857 = vmatpush1.bf16.msra.mxu0 0
      %858 = vmatprep.subr.bf16.mxu0 0
      %859 = vmatpush1.bf16.msra.mxu0 0
      %860 = vmatprep.subr.bf16.mxu0 0
      %861 = vmatpush1.bf16.msra.mxu0 0
      %862 = vmatprep.subr.bf16.mxu0 0
      %863 = vmatpush1.bf16.msra.mxu0 0
      %864 = vmatprep.subr.bf16.mxu0 0
      %865 = vmatpush1.bf16.msra.mxu0 0
      %866 = vmatprep.subr.bf16.mxu0 0
      %867 = vmatpush1.bf16.msra.mxu0 0
      %868 = vmatprep.subr.bf16.mxu0 0
      %869 = vmatpush1.bf16.msra.mxu0 0
      %870 = vmatprep.subr.bf16.mxu0 0
      %871 = vmatpush1.bf16.msra.mxu0 0
      %872 = vmatprep.subr.bf16.mxu0 0
      %873 = vmatpush1.bf16.msra.mxu0 0
      %874 = vmatprep.subr.bf16.mxu0 0
      %875 = vmatpush1.bf16.msra.mxu0 0
      %876 = vmatprep.mubr.bf16.mxu0 0
      %877 = vmatmul.mubr.bf16.gmra.mrb[0].mxu0 %v833
      %v878 = vpop.f32.mrb[0].mxu0
      %v879 = vadd.f32 0.0, %v878
      %v880 = vpop.f32.mrb[0].mxu0
      %v881 = vadd.f32 0.0, %v880
      %v882 = vpop.f32.mrb[0].mxu0
      %v883 = vpop.f32.mrb[0].mxu0
      %884 = vdwg.mxu0
      %885 = vmatprep.subr.bf16.mxu0 0
      %886 = vmatpush1.bf16.msra.mxu0 %v842
      %887 = vmatprep.subr.bf16.mxu0 0
      %888 = vmatpush1.bf16.msra.mxu0 0
      %889 = vmatprep.subr.bf16.mxu0 0
      %890 = vmatpush1.bf16.msra.mxu0 0
      %891 = vmatprep.subr.bf16.mxu0 0
      %892 = vmatpush1.bf16.msra.mxu0 0
      %893 = vmatprep.subr.bf16.mxu0 0
      %894 = vmatpush1.bf16.msra.mxu0 0
      %895 = vmatprep.subr.bf16.mxu0 0
      %896 = vmatpush1.bf16.msra.mxu0 0
      %897 = vmatprep.subr.bf16.mxu0 0
      %898 = vmatpush1.bf16.msra.mxu0 0
      %899 = vmatprep.subr.bf16.mxu0 0
      %900 = vmatpush1.bf16.msra.mxu0 0
      %901 = vmatprep.subr.bf16.mxu0 0
      %902 = vmatpush1.bf16.msra.mxu0 0
      %903 = vmatprep.subr.bf16.mxu0 0
      %904 = vmatpush1.bf16.msra.mxu0 0
      %905 = vmatprep.subr.bf16.mxu0 0
      %906 = vmatpush1.bf16.msra.mxu0 0
      %907 = vmatprep.subr.bf16.mxu0 0
      %908 = vmatpush1.bf16.msra.mxu0 0
      %909 = vmatprep.subr.bf16.mxu0 0
      %910 = vmatpush1.bf16.msra.mxu0 0
      %911 = vmatprep.subr.bf16.mxu0 0
      %912 = vmatpush1.bf16.msra.mxu0 0
      %913 = vmatprep.subr.bf16.mxu0 0
      %914 = vmatpush1.bf16.msra.mxu0 0
      %915 = vmatprep.subr.bf16.mxu0 0
      %916 = vmatpush1.bf16.msra.mxu0 0
      %917 = vmatprep.mubr.bf16.mxu0 0
      %918 = vmatmul.mubr.bf16.gmra.mrb[0].mxu0 %v833
      %v919 = vpop.f32.mrb[0].mxu0
      %v920 = vadd.f32 0.0, %v919
      %v921 = vpop.f32.mrb[0].mxu0
      %v922 = vpop.f32.mrb[0].mxu0
      %v923 = vpop.f32.mrb[0].mxu0
      %924 = vdwg.mxu0
      %v925 = vadd.f32 %v799, %v879
      %v926 = vadd.f32 %v800, %v881
      %v927 = vadd.f32 %v801, %v920
      %s928 = scalar_lea.vmem %s3, 4
      %v929 = vld [vmem:[%s928] sm:$0x3]
      %v931 = vcombine.high %v803, %v803
      %v933 = vunpack.c.l.s4 1983009808
      %v934 = vunpack.c.0.s8 %v933
      %v935 = vlaneseq
      %v936 = vshrl.u32 %v935, 7
      %v937 = vsub.s32 %v934, %v936
      %v938 = vrot.slane %v803, %v937
      %v940 = vunpack.c.l.s4 1983009808
      %v941 = vunpack.c.0.s8 %v940
      %v942 = vlaneseq
      %v943 = vshrl.u32 %v942, 7
      %v944 = vsub.s32 %v941, %v943
      %v945 = vrot.slane %v931, %v944
      %v946 = vcombine.high %v938, %v938
      %947 = vrot.lane.b32.xlu0 %v938, 126
      %v948 = vpop.permute.xlu0 %947
      %949 = vrot.lane.b32.xlu0 %v946, 126
      %v950 = vpop.permute.xlu0 %949
      %951 = vrot.lane.b32.xlu0 %v945, 126
      %v952 = vpop.permute.xlu0 %951
      %v953 = vsel %vm829, %v948, %v950
      %v954 = vsel %vm829, %v950, %v952
      %v956 = vsel %vm348, %v929, 0
      %v959 = vsel %vm352, %v953, 0
      %v962 = vsel %vm352, %v954, 0
      %v965 = vsel %vm352, %v952, 0
      %967 = vmatprep.subr.bf16.mxu0 %v962
      %968 = vmatpush1.bf16.msra.mxu0 %v959
      %969 = vmatprep.subr.bf16.mxu0 0
      %970 = vmatpush1.bf16.msra.mxu0 0
      %971 = vmatprep.subr.bf16.mxu0 0
      %972 = vmatpush1.bf16.msra.mxu0 0
      %973 = vmatprep.subr.bf16.mxu0 0
      %974 = vmatpush1.bf16.msra.mxu0 0
      %975 = vmatprep.subr.bf16.mxu0 0
      %976 = vmatpush1.bf16.msra.mxu0 0
      %977 = vmatprep.subr.bf16.mxu0 0
      %978 = vmatpush1.bf16.msra.mxu0 0
      %979 = vmatprep.subr.bf16.mxu0 0
      %980 = vmatpush1.bf16.msra.mxu0 0
      %981 = vmatprep.subr.bf16.mxu0 0
      %982 = vmatpush1.bf16.msra.mxu0 0
      %983 = vmatprep.subr.bf16.mxu0 0
      %984 = vmatpush1.bf16.msra.mxu0 0
      %985 = vmatprep.subr.bf16.mxu0 0
      %986 = vmatpush1.bf16.msra.mxu0 0
      %987 = vmatprep.subr.bf16.mxu0 0
      %988 = vmatpush1.bf16.msra.mxu0 0
      %989 = vmatprep.subr.bf16.mxu0 0
      %990 = vmatpush1.bf16.msra.mxu0 0
      %991 = vmatprep.subr.bf16.mxu0 0
      %992 = vmatpush1.bf16.msra.mxu0 0
      %993 = vmatprep.subr.bf16.mxu0 0
      %994 = vmatpush1.bf16.msra.mxu0 0
      %995 = vmatprep.subr.bf16.mxu0 0
      %996 = vmatpush1.bf16.msra.mxu0 0
      %997 = vmatprep.subr.bf16.mxu0 0
      %998 = vmatpush1.bf16.msra.mxu0 0
      %999 = vmatprep.mubr.bf16.mxu0 0
      %1000 = vmatmul.mubr.bf16.gmra.mrb[0].mxu0 %v956
      %v1001 = vpop.f32.mrb[0].mxu0
      %v1002 = vadd.f32 0.0, %v1001
      %v1003 = vpop.f32.mrb[0].mxu0
      %v1004 = vadd.f32 0.0, %v1003
      %v1005 = vpop.f32.mrb[0].mxu0
      %v1006 = vpop.f32.mrb[0].mxu0
      %1007 = vdwg.mxu0
      %1008 = vmatprep.subr.bf16.mxu0 0
      %1009 = vmatpush1.bf16.msra.mxu0 %v965
      %1010 = vmatprep.subr.bf16.mxu0 0
      %1011 = vmatpush1.bf16.msra.mxu0 0
      %1012 = vmatprep.subr.bf16.mxu0 0
      %1013 = vmatpush1.bf16.msra.mxu0 0
      %1014 = vmatprep.subr.bf16.mxu0 0
      %1015 = vmatpush1.bf16.msra.mxu0 0
      %1016 = vmatprep.subr.bf16.mxu0 0
      %1017 = vmatpush1.bf16.msra.mxu0 0
      %1018 = vmatprep.subr.bf16.mxu0 0
      %1019 = vmatpush1.bf16.msra.mxu0 0
      %1020 = vmatprep.subr.bf16.mxu0 0
      %1021 = vmatpush1.bf16.msra.mxu0 0
      %1022 = vmatprep.subr.bf16.mxu0 0
      %1023 = vmatpush1.bf16.msra.mxu0 0
      %1024 = vmatprep.subr.bf16.mxu0 0
      %1025 = vmatpush1.bf16.msra.mxu0 0
      %1026 = vmatprep.subr.bf16.mxu0 0
      %1027 = vmatpush1.bf16.msra.mxu0 0
      %1028 = vmatprep.subr.bf16.mxu0 0
      %1029 = vmatpush1.bf16.msra.mxu0 0
      %1030 = vmatprep.subr.bf16.mxu0 0
      %1031 = vmatpush1.bf16.msra.mxu0 0
      %1032 = vmatprep.subr.bf16.mxu0 0
      %1033 = vmatpush1.bf16.msra.mxu0 0
      %1034 = vmatprep.subr.bf16.mxu0 0
      %1035 = vmatpush1.bf16.msra.mxu0 0
      %1036 = vmatprep.subr.bf16.mxu0 0
      %1037 = vmatpush1.bf16.msra.mxu0 0
      %1038 = vmatprep.subr.bf16.mxu0 0
      %1039 = vmatpush1.bf16.msra.mxu0 0
      %1040 = vmatprep.mubr.bf16.mxu0 0
      %1041 = vmatmul.mubr.bf16.gmra.mrb[0].mxu0 %v956
      %v1042 = vpop.f32.mrb[0].mxu0
      %v1043 = vadd.f32 0.0, %v1042
      %v1044 = vpop.f32.mrb[0].mxu0
      %v1045 = vpop.f32.mrb[0].mxu0
      %v1046 = vpop.f32.mrb[0].mxu0
      %1047 = vdwg.mxu0
      %v1048 = vadd.f32 %v925, %v1002
      %v1049 = vadd.f32 %v926, %v1004
      %v1050 = vadd.f32 %v927, %v1043
      %v1051 = vld [vmem:[%s315] sm:$0x3f]
      %v1052 = vld [vmem:[%s320] sm:$0x3f]
      %s1053 = scalar_lea.vmem %s2, 6
      %v1054 = vld [vmem:[%s1053] sm:$0x3]
      %v1056 = vcombine.high %v1051, %v1051
      %v1058 = vunpack.c.l.s4 1983009808
      %v1059 = vunpack.c.0.s8 %v1058
      %v1060 = vlaneseq
      %v1061 = vshrl.u32 %v1060, 7
      %v1062 = vsub.s32 %v1059, %v1061
      %v1063 = vrot.slane %v1051, %v1062
      %v1065 = vunpack.c.l.s4 1983009808
      %v1066 = vunpack.c.0.s8 %v1065
      %v1067 = vlaneseq
      %v1068 = vshrl.u32 %v1067, 7
      %v1069 = vsub.s32 %v1066, %v1068
      %v1070 = vrot.slane %v1056, %v1069
      %v1071 = vcombine.high %v1063, %v1063
      %1072 = vrot.lane.b32.xlu0 %v1063, 110
      %v1073 = vpop.permute.xlu0 %1072
      %1074 = vrot.lane.b32.xlu0 %v1071, 110
      %v1075 = vpop.permute.xlu0 %1074
      %1076 = vrot.lane.b32.xlu0 %v1070, 110
      %v1077 = vpop.permute.xlu0 %1076
      %vm1078 = vcmask 900096
      %v1079 = vsel %vm1078, %v1073, %v1075
      %v1080 = vsel %vm1078, %v1075, %v1077
      %v1082 = vsel %vm348, %v1054, 0
      %v1085 = vsel %vm352, %v1079, 0
      %v1088 = vsel %vm352, %v1080, 0
      %v1091 = vsel %vm352, %v1077, 0
      %1093 = vmatprep.subr.bf16.mxu0 %v1088
      %1094 = vmatpush1.bf16.msra.mxu0 %v1085
      %1095 = vmatprep.subr.bf16.mxu0 0
      %1096 = vmatpush1.bf16.msra.mxu0 0
      %1097 = vmatprep.subr.bf16.mxu0 0
      %1098 = vmatpush1.bf16.msra.mxu0 0
      %1099 = vmatprep.subr.bf16.mxu0 0
      %1100 = vmatpush1.bf16.msra.mxu0 0
      %1101 = vmatprep.subr.bf16.mxu0 0
      %1102 = vmatpush1.bf16.msra.mxu0 0
      %1103 = vmatprep.subr.bf16.mxu0 0
      %1104 = vmatpush1.bf16.msra.mxu0 0
      %1105 = vmatprep.subr.bf16.mxu0 0
      %1106 = vmatpush1.bf16.msra.mxu0 0
      %1107 = vmatprep.subr.bf16.mxu0 0
      %1108 = vmatpush1.bf16.msra.mxu0 0
      %1109 = vmatprep.subr.bf16.mxu0 0
      %1110 = vmatpush1.bf16.msra.mxu0 0
      %1111 = vmatprep.subr.bf16.mxu0 0
      %1112 = vmatpush1.bf16.msra.mxu0 0
      %1113 = vmatprep.subr.bf16.mxu0 0
      %1114 = vmatpush1.bf16.msra.mxu0 0
      %1115 = vmatprep.subr.bf16.mxu0 0
      %1116 = vmatpush1.bf16.msra.mxu0 0
      %1117 = vmatprep.subr.bf16.mxu0 0
      %1118 = vmatpush1.bf16.msra.mxu0 0
      %1119 = vmatprep.subr.bf16.mxu0 0
      %1120 = vmatpush1.bf16.msra.mxu0 0
      %1121 = vmatprep.subr.bf16.mxu0 0
      %1122 = vmatpush1.bf16.msra.mxu0 0
      %1123 = vmatprep.subr.bf16.mxu0 0
      %1124 = vmatpush1.bf16.msra.mxu0 0
      %1125 = vmatprep.mubr.bf16.mxu0 0
      %1126 = vmatmul.mubr.bf16.gmra.mrb[0].mxu0 %v1082
      %v1127 = vpop.f32.mrb[0].mxu0
      %v1128 = vadd.f32 0.0, %v1127
      %v1129 = vpop.f32.mrb[0].mxu0
      %v1130 = vadd.f32 0.0, %v1129
      %v1131 = vpop.f32.mrb[0].mxu0
      %v1132 = vpop.f32.mrb[0].mxu0
      %1133 = vdwg.mxu0
      %1134 = vmatprep.subr.bf16.mxu0 0
      %1135 = vmatpush1.bf16.msra.mxu0 %v1091
      %1136 = vmatprep.subr.bf16.mxu0 0
      %1137 = vmatpush1.bf16.msra.mxu0 0
      %1138 = vmatprep.subr.bf16.mxu0 0
      %1139 = vmatpush1.bf16.msra.mxu0 0
      %1140 = vmatprep.subr.bf16.mxu0 0
      %1141 = vmatpush1.bf16.msra.mxu0 0
      %1142 = vmatprep.subr.bf16.mxu0 0
      %1143 = vmatpush1.bf16.msra.mxu0 0
      %1144 = vmatprep.subr.bf16.mxu0 0
      %1145 = vmatpush1.bf16.msra.mxu0 0
      %1146 = vmatprep.subr.bf16.mxu0 0
      %1147 = vmatpush1.bf16.msra.mxu0 0
      %1148 = vmatprep.subr.bf16.mxu0 0
      %1149 = vmatpush1.bf16.msra.mxu0 0
      %1150 = vmatprep.subr.bf16.mxu0 0
      %1151 = vmatpush1.bf16.msra.mxu0 0
      %1152 = vmatprep.subr.bf16.mxu0 0
      %1153 = vmatpush1.bf16.msra.mxu0 0
      %1154 = vmatprep.subr.bf16.mxu0 0
      %1155 = vmatpush1.bf16.msra.mxu0 0
      %1156 = vmatprep.subr.bf16.mxu0 0
      %1157 = vmatpush1.bf16.msra.mxu0 0
      %1158 = vmatprep.subr.bf16.mxu0 0
      %1159 = vmatpush1.bf16.msra.mxu0 0
      %1160 = vmatprep.subr.bf16.mxu0 0
      %1161 = vmatpush1.bf16.msra.mxu0 0
      %1162 = vmatprep.subr.bf16.mxu0 0
      %1163 = vmatpush1.bf16.msra.mxu0 0
      %1164 = vmatprep.subr.bf16.mxu0 0
      %1165 = vmatpush1.bf16.msra.mxu0 0
      %1166 = vmatprep.mubr.bf16.mxu0 0
      %1167 = vmatmul.mubr.bf16.gmra.mrb[0].mxu0 %v1082
      %v1168 = vpop.f32.mrb[0].mxu0
      %v1169 = vadd.f32 0.0, %v1168
      %v1170 = vpop.f32.mrb[0].mxu0
      %v1171 = vpop.f32.mrb[0].mxu0
      %v1172 = vpop.f32.mrb[0].mxu0
      %1173 = vdwg.mxu0
      %v1174 = vadd.f32 %v1048, %v1128
      %v1175 = vadd.f32 %v1049, %v1130
      %v1176 = vadd.f32 %v1050, %v1169
      %s1177 = scalar_lea.vmem %s3, 6
      %v1178 = vld [vmem:[%s1177] sm:$0x3]
      %v1180 = vcombine.high %v1052, %v1052
      %v1182 = vunpack.c.l.s4 1983009808
      %v1183 = vunpack.c.0.s8 %v1182
      %v1184 = vlaneseq
      %v1185 = vshrl.u32 %v1184, 7
      %v1186 = vsub.s32 %v1183, %v1185
      %v1187 = vrot.slane %v1052, %v1186
      %v1189 = vunpack.c.l.s4 1983009808
      %v1190 = vunpack.c.0.s8 %v1189
      %v1191 = vlaneseq
      %v1192 = vshrl.u32 %v1191, 7
      %v1193 = vsub.s32 %v1190, %v1192
      %v1194 = vrot.slane %v1180, %v1193
      %v1195 = vcombine.high %v1187, %v1187
      %1196 = vrot.lane.b32.xlu0 %v1187, 110
      %v1197 = vpop.permute.xlu0 %1196
      %1198 = vrot.lane.b32.xlu0 %v1195, 110
      %v1199 = vpop.permute.xlu0 %1198
      %1200 = vrot.lane.b32.xlu0 %v1194, 110
      %v1201 = vpop.permute.xlu0 %1200
      %v1202 = vsel %vm1078, %v1197, %v1199
      %v1203 = vsel %vm1078, %v1199, %v1201
      %v1205 = vsel %vm348, %v1178, 0
      %v1208 = vsel %vm352, %v1202, 0
      %v1211 = vsel %vm352, %v1203, 0
      %v1214 = vsel %vm352, %v1201, 0
      %1216 = vmatprep.subr.bf16.mxu0 %v1211
      %1217 = vmatpush1.bf16.msra.mxu0 %v1208
      %1218 = vmatprep.subr.bf16.mxu0 0
      %1219 = vmatpush1.bf16.msra.mxu0 0
      %1220 = vmatprep.subr.bf16.mxu0 0
      %1221 = vmatpush1.bf16.msra.mxu0 0
      %1222 = vmatprep.subr.bf16.mxu0 0
      %1223 = vmatpush1.bf16.msra.mxu0 0
      %1224 = vmatprep.subr.bf16.mxu0 0
      %1225 = vmatpush1.bf16.msra.mxu0 0
      %1226 = vmatprep.subr.bf16.mxu0 0
      %1227 = vmatpush1.bf16.msra.mxu0 0
      %1228 = vmatprep.subr.bf16.mxu0 0
      %1229 = vmatpush1.bf16.msra.mxu0 0
      %1230 = vmatprep.subr.bf16.mxu0 0
      %1231 = vmatpush1.bf16.msra.mxu0 0
      %1232 = vmatprep.subr.bf16.mxu0 0
      %1233 = vmatpush1.bf16.msra.mxu0 0
      %1234 = vmatprep.subr.bf16.mxu0 0
      %1235 = vmatpush1.bf16.msra.mxu0 0
      %1236 = vmatprep.subr.bf16.mxu0 0
      %1237 = vmatpush1.bf16.msra.mxu0 0
      %1238 = vmatprep.subr.bf16.mxu0 0
      %1239 = vmatpush1.bf16.msra.mxu0 0
      %1240 = vmatprep.subr.bf16.mxu0 0
      %1241 = vmatpush1.bf16.msra.mxu0 0
      %1242 = vmatprep.subr.bf16.mxu0 0
      %1243 = vmatpush1.bf16.msra.mxu0 0
      %1244 = vmatprep.subr.bf16.mxu0 0
      %1245 = vmatpush1.bf16.msra.mxu0 0
      %1246 = vmatprep.subr.bf16.mxu0 0
      %1247 = vmatpush1.bf16.msra.mxu0 0
      %1248 = vmatprep.mubr.bf16.mxu0 0
      %1249 = vmatmul.mubr.bf16.gmra.mrb[0].mxu0 %v1205
      %v1250 = vpop.f32.mrb[0].mxu0
      %v1251 = vadd.f32 0.0, %v1250
      %v1252 = vpop.f32.mrb[0].mxu0
      %v1253 = vadd.f32 0.0, %v1252
      %v1254 = vpop.f32.mrb[0].mxu0
      %v1255 = vpop.f32.mrb[0].mxu0
      %1256 = vdwg.mxu0
      %1257 = vmatprep.subr.bf16.mxu0 0
      %1258 = vmatpush1.bf16.msra.mxu0 %v1214
      %1259 = vmatprep.subr.bf16.mxu0 0
      %1260 = vmatpush1.bf16.msra.mxu0 0
      %1261 = vmatprep.subr.bf16.mxu0 0
      %1262 = vmatpush1.bf16.msra.mxu0 0
      %1263 = vmatprep.subr.bf16.mxu0 0
      %1264 = vmatpush1.bf16.msra.mxu0 0
      %1265 = vmatprep.subr.bf16.mxu0 0
      %1266 = vmatpush1.bf16.msra.mxu0 0
      %1267 = vmatprep.subr.bf16.mxu0 0
      %1268 = vmatpush1.bf16.msra.mxu0 0
      %1269 = vmatprep.subr.bf16.mxu0 0
      %1270 = vmatpush1.bf16.msra.mxu0 0
      %1271 = vmatprep.subr.bf16.mxu0 0
      %1272 = vmatpush1.bf16.msra.mxu0 0
      %1273 = vmatprep.subr.bf16.mxu0 0
      %1274 = vmatpush1.bf16.msra.mxu0 0
      %1275 = vmatprep.subr.bf16.mxu0 0
      %1276 = vmatpush1.bf16.msra.mxu0 0
      %1277 = vmatprep.subr.bf16.mxu0 0
      %1278 = vmatpush1.bf16.msra.mxu0 0
      %1279 = vmatprep.subr.bf16.mxu0 0
      %1280 = vmatpush1.bf16.msra.mxu0 0
      %1281 = vmatprep.subr.bf16.mxu0 0
      %1282 = vmatpush1.bf16.msra.mxu0 0
      %1283 = vmatprep.subr.bf16.mxu0 0
      %1284 = vmatpush1.bf16.msra.mxu0 0
      %1285 = vmatprep.subr.bf16.mxu0 0
      %1286 = vmatpush1.bf16.msra.mxu0 0
      %1287 = vmatprep.subr.bf16.mxu0 0
      %1288 = vmatpush1.bf16.msra.mxu0 0
      %1289 = vmatprep.mubr.bf16.mxu0 0
      %1290 = vmatmul.mubr.bf16.gmra.mrb[0].mxu0 %v1205
      %v1291 = vpop.f32.mrb[0].mxu0
      %v1292 = vadd.f32 0.0, %v1291
      %v1293 = vpop.f32.mrb[0].mxu0
      %v1294 = vpop.f32.mrb[0].mxu0
      %v1295 = vpop.f32.mrb[0].mxu0
      %1296 = vdwg.mxu0
      %v1297 = vadd.f32 %v1174, %v1251
      %v1298 = vadd.f32 %v1175, %v1253
      %v1299 = vadd.f32 %v1176, %v1292
      %v1300 = vld [vmem:[%s315] sm:$0x3f]
      %v1301 = vld [vmem:[%s320] sm:$0x3f]
      %s1302 = scalar_lea.vmem %s2, 8
      %v1303 = vld [vmem:[%s1302] sm:$0x3]
      %v1305 = vcombine.high %v1300, %v1300
      %v1307 = vunpack.c.l.s4 1983009808
      %v1308 = vunpack.c.0.s8 %v1307
      %v1309 = vlaneseq
      %v1310 = vshrl.u32 %v1309, 7
      %v1311 = vsub.s32 %v1308, %v1310
      %v1312 = vrot.slane %v1300, %v1311
      %v1314 = vunpack.c.l.s4 1983009808
      %v1315 = vunpack.c.0.s8 %v1314
      %v1316 = vlaneseq
      %v1317 = vshrl.u32 %v1316, 7
      %v1318 = vsub.s32 %v1315, %v1317
      %v1319 = vrot.slane %v1305, %v1318
      %v1320 = vcombine.high %v1312, %v1312
      %1321 = vrot.lane.b32.xlu0 %v1312, 109
      %v1322 = vpop.permute.xlu0 %1321
      %1323 = vrot.lane.b32.xlu0 %v1320, 109
      %v1324 = vpop.permute.xlu0 %1323
      %1325 = vrot.lane.b32.xlu0 %v1319, 109
      %v1326 = vpop.permute.xlu0 %1325
      %vm1327 = vcmask 891904
      %v1328 = vsel %vm1327, %v1322, %v1324
      %v1329 = vsel %vm1327, %v1324, %v1326
      %v1331 = vsel %vm348, %v1303, 0
      %v1334 = vsel %vm352, %v1328, 0
      %v1337 = vsel %vm352, %v1329, 0
      %v1340 = vsel %vm352, %v1326, 0
      %1342 = vmatprep.subr.bf16.mxu0 %v1337
      %1343 = vmatpush1.bf16.msra.mxu0 %v1334
      %1344 = vmatprep.subr.bf16.mxu0 0
      %1345 = vmatpush1.bf16.msra.mxu0 0
      %1346 = vmatprep.subr.bf16.mxu0 0
      %1347 = vmatpush1.bf16.msra.mxu0 0
      %1348 = vmatprep.subr.bf16.mxu0 0
      %1349 = vmatpush1.bf16.msra.mxu0 0
      %1350 = vmatprep.subr.bf16.mxu0 0
      %1351 = vmatpush1.bf16.msra.mxu0 0
      %1352 = vmatprep.subr.bf16.mxu0 0
      %1353 = vmatpush1.bf16.msra.mxu0 0
      %1354 = vmatprep.subr.bf16.mxu0 0
      %1355 = vmatpush1.bf16.msra.mxu0 0
      %1356 = vmatprep.subr.bf16.mxu0 0
      %1357 = vmatpush1.bf16.msra.mxu0 0
      %1358 = vmatprep.subr.bf16.mxu0 0
      %1359 = vmatpush1.bf16.msra.mxu0 0
      %1360 = vmatprep.subr.bf16.mxu0 0
      %1361 = vmatpush1.bf16.msra.mxu0 0
      %1362 = vmatprep.subr.bf16.mxu0 0
      %1363 = vmatpush1.bf16.msra.mxu0 0
      %1364 = vmatprep.subr.bf16.mxu0 0
      %1365 = vmatpush1.bf16.msra.mxu0 0
      %1366 = vmatprep.subr.bf16.mxu0 0
      %1367 = vmatpush1.bf16.msra.mxu0 0
      %1368 = vmatprep.subr.bf16.mxu0 0
      %1369 = vmatpush1.bf16.msra.mxu0 0
      %1370 = vmatprep.subr.bf16.mxu0 0
      %1371 = vmatpush1.bf16.msra.mxu0 0
      %1372 = vmatprep.subr.bf16.mxu0 0
      %1373 = vmatpush1.bf16.msra.mxu0 0
      %1374 = vmatprep.mubr.bf16.mxu0 0
      %1375 = vmatmul.mubr.bf16.gmra.mrb[0].mxu0 %v1331
      %v1376 = vpop.f32.mrb[0].mxu0
      %v1377 = vadd.f32 0.0, %v1376
      %v1378 = vpop.f32.mrb[0].mxu0
      %v1379 = vadd.f32 0.0, %v1378
      %v1380 = vpop.f32.mrb[0].mxu0
      %v1381 = vpop.f32.mrb[0].mxu0
      %1382 = vdwg.mxu0
      %1383 = vmatprep.subr.bf16.mxu0 0
      %1384 = vmatpush1.bf16.msra.mxu0 %v1340
      %1385 = vmatprep.subr.bf16.mxu0 0
      %1386 = vmatpush1.bf16.msra.mxu0 0
      %1387 = vmatprep.subr.bf16.mxu0 0
      %1388 = vmatpush1.bf16.msra.mxu0 0
      %1389 = vmatprep.subr.bf16.mxu0 0
      %1390 = vmatpush1.bf16.msra.mxu0 0
      %1391 = vmatprep.subr.bf16.mxu0 0
      %1392 = vmatpush1.bf16.msra.mxu0 0
      %1393 = vmatprep.subr.bf16.mxu0 0
      %1394 = vmatpush1.bf16.msra.mxu0 0
      %1395 = vmatprep.subr.bf16.mxu0 0
      %1396 = vmatpush1.bf16.msra.mxu0 0
      %1397 = vmatprep.subr.bf16.mxu0 0
      %1398 = vmatpush1.bf16.msra.mxu0 0
      %1399 = vmatprep.subr.bf16.mxu0 0
      %1400 = vmatpush1.bf16.msra.mxu0 0
      %1401 = vmatprep.subr.bf16.mxu0 0
      %1402 = vmatpush1.bf16.msra.mxu0 0
      %1403 = vmatprep.subr.bf16.mxu0 0
      %1404 = vmatpush1.bf16.msra.mxu0 0
      %1405 = vmatprep.subr.bf16.mxu0 0
      %1406 = vmatpush1.bf16.msra.mxu0 0
      %1407 = vmatprep.subr.bf16.mxu0 0
      %1408 = vmatpush1.bf16.msra.mxu0 0
      %1409 = vmatprep.subr.bf16.mxu0 0
      %1410 = vmatpush1.bf16.msra.mxu0 0
      %1411 = vmatprep.subr.bf16.mxu0 0
      %1412 = vmatpush1.bf16.msra.mxu0 0
      %1413 = vmatprep.subr.bf16.mxu0 0
      %1414 = vmatpush1.bf16.msra.mxu0 0
      %1415 = vmatprep.mubr.bf16.mxu0 0
      %1416 = vmatmul.mubr.bf16.gmra.mrb[0].mxu0 %v1331
      %v1417 = vpop.f32.mrb[0].mxu0
      %v1418 = vadd.f32 0.0, %v1417
      %v1419 = vpop.f32.mrb[0].mxu0
      %v1420 = vpop.f32.mrb[0].mxu0
      %v1421 = vpop.f32.mrb[0].mxu0
      %1422 = vdwg.mxu0
      %v1423 = vadd.f32 %v1297, %v1377
      %v1424 = vadd.f32 %v1298, %v1379
      %v1425 = vadd.f32 %v1299, %v1418
      %s1426 = scalar_lea.vmem %s3, 8
      %v1427 = vld [vmem:[%s1426] sm:$0x3]
      %v1429 = vcombine.high %v1301, %v1301
      %v1431 = vunpack.c.l.s4 1983009808
      %v1432 = vunpack.c.0.s8 %v1431
      %v1433 = vlaneseq
      %v1434 = vshrl.u32 %v1433, 7
      %v1435 = vsub.s32 %v1432, %v1434
      %v1436 = vrot.slane %v1301, %v1435
      %v1438 = vunpack.c.l.s4 1983009808
      %v1439 = vunpack.c.0.s8 %v1438
      %v1440 = vlaneseq
      %v1441 = vshrl.u32 %v1440, 7
      %v1442 = vsub.s32 %v1439, %v1441
      %v1443 = vrot.slane %v1429, %v1442
      %v1444 = vcombine.high %v1436, %v1436
      %1445 = vrot.lane.b32.xlu0 %v1436, 109
      %v1446 = vpop.permute.xlu0 %1445
      %1447 = vrot.lane.b32.xlu0 %v1444, 109
      %v1448 = vpop.permute.xlu0 %1447
      %1449 = vrot.lane.b32.xlu0 %v1443, 109
      %v1450 = vpop.permute.xlu0 %1449
      %v1451 = vsel %vm1327, %v1446, %v1448
      %v1452 = vsel %vm1327, %v1448, %v1450
      %v1454 = vsel %vm348, %v1427, 0
      %v1457 = vsel %vm352, %v1451, 0
      %v1460 = vsel %vm352, %v1452, 0
      %v1463 = vsel %vm352, %v1450, 0
      %1465 = vmatprep.subr.bf16.mxu0 %v1460
      %1466 = vmatpush1.bf16.msra.mxu0 %v1457
      %1467 = vmatprep.subr.bf16.mxu0 0
      %1468 = vmatpush1.bf16.msra.mxu0 0
      %1469 = vmatprep.subr.bf16.mxu0 0
      %1470 = vmatpush1.bf16.msra.mxu0 0
      %1471 = vmatprep.subr.bf16.mxu0 0
      %1472 = vmatpush1.bf16.msra.mxu0 0
      %1473 = vmatprep.subr.bf16.mxu0 0
      %1474 = vmatpush1.bf16.msra.mxu0 0
      %1475 = vmatprep.subr.bf16.mxu0 0
      %1476 = vmatpush1.bf16.msra.mxu0 0
      %1477 = vmatprep.subr.bf16.mxu0 0
      %1478 = vmatpush1.bf16.msra.mxu0 0
      %1479 = vmatprep.subr.bf16.mxu0 0
      %1480 = vmatpush1.bf16.msra.mxu0 0
      %1481 = vmatprep.subr.bf16.mxu0 0
      %1482 = vmatpush1.bf16.msra.mxu0 0
      %1483 = vmatprep.subr.bf16.mxu0 0
      %1484 = vmatpush1.bf16.msra.mxu0 0
      %1485 = vmatprep.subr.bf16.mxu0 0
      %1486 = vmatpush1.bf16.msra.mxu0 0
      %1487 = vmatprep.subr.bf16.mxu0 0
      %1488 = vmatpush1.bf16.msra.mxu0 0
      %1489 = vmatprep.subr.bf16.mxu0 0
      %1490 = vmatpush1.bf16.msra.mxu0 0
      %1491 = vmatprep.subr.bf16.mxu0 0
      %1492 = vmatpush1.bf16.msra.mxu0 0
      %1493 = vmatprep.subr.bf16.mxu0 0
      %1494 = vmatpush1.bf16.msra.mxu0 0
      %1495 = vmatprep.subr.bf16.mxu0 0
      %1496 = vmatpush1.bf16.msra.mxu0 0
      %1497 = vmatprep.mubr.bf16.mxu0 0
      %1498 = vmatmul.mubr.bf16.gmra.mrb[0].mxu0 %v1454
      %v1499 = vpop.f32.mrb[0].mxu0
      %v1500 = vadd.f32 0.0, %v1499
      %v1501 = vpop.f32.mrb[0].mxu0
      %v1502 = vadd.f32 0.0, %v1501
      %v1503 = vpop.f32.mrb[0].mxu0
      %v1504 = vpop.f32.mrb[0].mxu0
      %1505 = vdwg.mxu0
      %1506 = vmatprep.subr.bf16.mxu0 0
      %1507 = vmatpush1.bf16.msra.mxu0 %v1463
      %1508 = vmatprep.subr.bf16.mxu0 0
      %1509 = vmatpush1.bf16.msra.mxu0 0
      %1510 = vmatprep.subr.bf16.mxu0 0
      %1511 = vmatpush1.bf16.msra.mxu0 0
      %1512 = vmatprep.subr.bf16.mxu0 0
      %1513 = vmatpush1.bf16.msra.mxu0 0
      %1514 = vmatprep.subr.bf16.mxu0 0
      %1515 = vmatpush1.bf16.msra.mxu0 0
      %1516 = vmatprep.subr.bf16.mxu0 0
      %1517 = vmatpush1.bf16.msra.mxu0 0
      %1518 = vmatprep.subr.bf16.mxu0 0
      %1519 = vmatpush1.bf16.msra.mxu0 0
      %1520 = vmatprep.subr.bf16.mxu0 0
      %1521 = vmatpush1.bf16.msra.mxu0 0
      %1522 = vmatprep.subr.bf16.mxu0 0
      %1523 = vmatpush1.bf16.msra.mxu0 0
      %1524 = vmatprep.subr.bf16.mxu0 0
      %1525 = vmatpush1.bf16.msra.mxu0 0
      %1526 = vmatprep.subr.bf16.mxu0 0
      %1527 = vmatpush1.bf16.msra.mxu0 0
      %1528 = vmatprep.subr.bf16.mxu0 0
      %1529 = vmatpush1.bf16.msra.mxu0 0
      %1530 = vmatprep.subr.bf16.mxu0 0
      %1531 = vmatpush1.bf16.msra.mxu0 0
      %1532 = vmatprep.subr.bf16.mxu0 0
      %1533 = vmatpush1.bf16.msra.mxu0 0
      %1534 = vmatprep.subr.bf16.mxu0 0
      %1535 = vmatpush1.bf16.msra.mxu0 0
      %1536 = vmatprep.subr.bf16.mxu0 0
      %1537 = vmatpush1.bf16.msra.mxu0 0
      %1538 = vmatprep.mubr.bf16.mxu0 0
      %1539 = vmatmul.mubr.bf16.gmra.mrb[0].mxu0 %v1454
      %v1540 = vpop.f32.mrb[0].mxu0
      %v1541 = vadd.f32 0.0, %v1540
      %v1542 = vpop.f32.mrb[0].mxu0
      %v1543 = vpop.f32.mrb[0].mxu0
      %v1544 = vpop.f32.mrb[0].mxu0
      %1545 = vdwg.mxu0
      %v1546 = vadd.f32 %v1423, %v1500
      %v1547 = vadd.f32 %v1424, %v1502
      %v1548 = vadd.f32 %v1425, %v1541
      %v1549 = vld [vmem:[%s315] sm:$0x3f]
      %v1550 = vld [vmem:[%s320] sm:$0x3f]
      %s1551 = scalar_lea.vmem %s2, 10
      %v1552 = vld [vmem:[%s1551] sm:$0x3]
      %v1554 = vcombine.high %v1549, %v1549
      %v1556 = vunpack.c.l.s4 1983009808
      %v1557 = vunpack.c.0.s8 %v1556
      %v1558 = vlaneseq
      %v1559 = vshrl.u32 %v1558, 7
      %v1560 = vsub.s32 %v1557, %v1559
      %v1561 = vrot.slane %v1549, %v1560
      %v1563 = vunpack.c.l.s4 1983009808
      %v1564 = vunpack.c.0.s8 %v1563
      %v1565 = vlaneseq
      %v1566 = vshrl.u32 %v1565, 7
      %v1567 = vsub.s32 %v1564, %v1566
      %v1568 = vrot.slane %v1554, %v1567
      %v1569 = vcombine.high %v1561, %v1561
      %1570 = vrot.lane.b32.xlu0 %v1561, 108
      %v1571 = vpop.permute.xlu0 %1570
      %1572 = vrot.lane.b32.xlu0 %v1569, 108
      %v1573 = vpop.permute.xlu0 %1572
      %1574 = vrot.lane.b32.xlu0 %v1568, 108
      %v1575 = vpop.permute.xlu0 %1574
      %vm1576 = vcmask 883712
      %v1577 = vsel %vm1576, %v1571, %v1573
      %v1578 = vsel %vm1576, %v1573, %v1575
      %v1580 = vsel %vm348, %v1552, 0
      %v1583 = vsel %vm352, %v1577, 0
      %v1586 = vsel %vm352, %v1578, 0
      %v1589 = vsel %vm352, %v1575, 0
      %1591 = vmatprep.subr.bf16.mxu0 %v1586
      %1592 = vmatpush1.bf16.msra.mxu0 %v1583
      %1593 = vmatprep.subr.bf16.mxu0 0
      %1594 = vmatpush1.bf16.msra.mxu0 0
      %1595 = vmatprep.subr.bf16.mxu0 0
      %1596 = vmatpush1.bf16.msra.mxu0 0
      %1597 = vmatprep.subr.bf16.mxu0 0
      %1598 = vmatpush1.bf16.msra.mxu0 0
      %1599 = vmatprep.subr.bf16.mxu0 0
      %1600 = vmatpush1.bf16.msra.mxu0 0
      %1601 = vmatprep.subr.bf16.mxu0 0
      %1602 = vmatpush1.bf16.msra.mxu0 0
      %1603 = vmatprep.subr.bf16.mxu0 0
      %1604 = vmatpush1.bf16.msra.mxu0 0
      %1605 = vmatprep.subr.bf16.mxu0 0
      %1606 = vmatpush1.bf16.msra.mxu0 0
      %1607 = vmatprep.subr.bf16.mxu0 0
      %1608 = vmatpush1.bf16.msra.mxu0 0
      %1609 = vmatprep.subr.bf16.mxu0 0
      %1610 = vmatpush1.bf16.msra.mxu0 0
      %1611 = vmatprep.subr.bf16.mxu0 0
      %1612 = vmatpush1.bf16.msra.mxu0 0
      %1613 = vmatprep.subr.bf16.mxu0 0
      %1614 = vmatpush1.bf16.msra.mxu0 0
      %1615 = vmatprep.subr.bf16.mxu0 0
      %1616 = vmatpush1.bf16.msra.mxu0 0
      %1617 = vmatprep.subr.bf16.mxu0 0
      %1618 = vmatpush1.bf16.msra.mxu0 0
      %1619 = vmatprep.subr.bf16.mxu0 0
      %1620 = vmatpush1.bf16.msra.mxu0 0
      %1621 = vmatprep.subr.bf16.mxu0 0
      %1622 = vmatpush1.bf16.msra.mxu0 0
      %1623 = vmatprep.mubr.bf16.mxu0 0
      %1624 = vmatmul.mubr.bf16.gmra.mrb[0].mxu0 %v1580
      %v1625 = vpop.f32.mrb[0].mxu0
      %v1626 = vadd.f32 0.0, %v1625
      %v1627 = vpop.f32.mrb[0].mxu0
      %v1628 = vadd.f32 0.0, %v1627
      %v1629 = vpop.f32.mrb[0].mxu0
      %v1630 = vpop.f32.mrb[0].mxu0
      %1631 = vdwg.mxu0
      %1632 = vmatprep.subr.bf16.mxu0 0
      %1633 = vmatpush1.bf16.msra.mxu0 %v1589
      %1634 = vmatprep.subr.bf16.mxu0 0
      %1635 = vmatpush1.bf16.msra.mxu0 0
      %1636 = vmatprep.subr.bf16.mxu0 0
      %1637 = vmatpush1.bf16.msra.mxu0 0
      %1638 = vmatprep.subr.bf16.mxu0 0
      %1639 = vmatpush1.bf16.msra.mxu0 0
      %1640 = vmatprep.subr.bf16.mxu0 0
      %1641 = vmatpush1.bf16.msra.mxu0 0
      %1642 = vmatprep.subr.bf16.mxu0 0
      %1643 = vmatpush1.bf16.msra.mxu0 0
      %1644 = vmatprep.subr.bf16.mxu0 0
      %1645 = vmatpush1.bf16.msra.mxu0 0
      %1646 = vmatprep.subr.bf16.mxu0 0
      %1647 = vmatpush1.bf16.msra.mxu0 0
      %1648 = vmatprep.subr.bf16.mxu0 0
      %1649 = vmatpush1.bf16.msra.mxu0 0
      %1650 = vmatprep.subr.bf16.mxu0 0
      %1651 = vmatpush1.bf16.msra.mxu0 0
      %1652 = vmatprep.subr.bf16.mxu0 0
      %1653 = vmatpush1.bf16.msra.mxu0 0
      %1654 = vmatprep.subr.bf16.mxu0 0
      %1655 = vmatpush1.bf16.msra.mxu0 0
      %1656 = vmatprep.subr.bf16.mxu0 0
      %1657 = vmatpush1.bf16.msra.mxu0 0
      %1658 = vmatprep.subr.bf16.mxu0 0
      %1659 = vmatpush1.bf16.msra.mxu0 0
      %1660 = vmatprep.subr.bf16.mxu0 0
      %1661 = vmatpush1.bf16.msra.mxu0 0
      %1662 = vmatprep.subr.bf16.mxu0 0
      %1663 = vmatpush1.bf16.msra.mxu0 0
      %1664 = vmatprep.mubr.bf16.mxu0 0
      %1665 = vmatmul.mubr.bf16.gmra.mrb[0].mxu0 %v1580
      %v1666 = vpop.f32.mrb[0].mxu0
      %v1667 = vadd.f32 0.0, %v1666
      %v1668 = vpop.f32.mrb[0].mxu0
      %v1669 = vpop.f32.mrb[0].mxu0
      %v1670 = vpop.f32.mrb[0].mxu0
      %1671 = vdwg.mxu0
      %v1672 = vadd.f32 %v1546, %v1626
      %v1673 = vadd.f32 %v1547, %v1628
      %v1674 = vadd.f32 %v1548, %v1667
      %s1675 = scalar_lea.vmem %s3, 10
      %v1676 = vld [vmem:[%s1675] sm:$0x3]
      %v1678 = vcombine.high %v1550, %v1550
      %v1680 = vunpack.c.l.s4 1983009808
      %v1681 = vunpack.c.0.s8 %v1680
      %v1682 = vlaneseq
      %v1683 = vshrl.u32 %v1682, 7
      %v1684 = vsub.s32 %v1681, %v1683
      %v1685 = vrot.slane %v1550, %v1684
      %v1687 = vunpack.c.l.s4 1983009808
      %v1688 = vunpack.c.0.s8 %v1687
      %v1689 = vlaneseq
      %v1690 = vshrl.u32 %v1689, 7
      %v1691 = vsub.s32 %v1688, %v1690
      %v1692 = vrot.slane %v1678, %v1691
      %v1693 = vcombine.high %v1685, %v1685
      %1694 = vrot.lane.b32.xlu0 %v1685, 108
      %v1695 = vpop.permute.xlu0 %1694
      %1696 = vrot.lane.b32.xlu0 %v1693, 108
      %v1697 = vpop.permute.xlu0 %1696
      %1698 = vrot.lane.b32.xlu0 %v1692, 108
      %v1699 = vpop.permute.xlu0 %1698
      %v1700 = vsel %vm1576, %v1695, %v1697
      %v1701 = vsel %vm1576, %v1697, %v1699
      %v1703 = vsel %vm348, %v1676, 0
      %v1706 = vsel %vm352, %v1700, 0
      %v1709 = vsel %vm352, %v1701, 0
      %v1712 = vsel %vm352, %v1699, 0
      %1714 = vmatprep.subr.bf16.mxu0 %v1709
      %1715 = vmatpush1.bf16.msra.mxu0 %v1706
      %1716 = vmatprep.subr.bf16.mxu0 0
      %1717 = vmatpush1.bf16.msra.mxu0 0
      %1718 = vmatprep.subr.bf16.mxu0 0
      %1719 = vmatpush1.bf16.msra.mxu0 0
      %1720 = vmatprep.subr.bf16.mxu0 0
      %1721 = vmatpush1.bf16.msra.mxu0 0
      %1722 = vmatprep.subr.bf16.mxu0 0
      %1723 = vmatpush1.bf16.msra.mxu0 0
      %1724 = vmatprep.subr.bf16.mxu0 0
      %1725 = vmatpush1.bf16.msra.mxu0 0
      %1726 = vmatprep.subr.bf16.mxu0 0
      %1727 = vmatpush1.bf16.msra.mxu0 0
      %1728 = vmatprep.subr.bf16.mxu0 0
      %1729 = vmatpush1.bf16.msra.mxu0 0
      %1730 = vmatprep.subr.bf16.mxu0 0
      %1731 = vmatpush1.bf16.msra.mxu0 0
      %1732 = vmatprep.subr.bf16.mxu0 0
      %1733 = vmatpush1.bf16.msra.mxu0 0
      %1734 = vmatprep.subr.bf16.mxu0 0
      %1735 = vmatpush1.bf16.msra.mxu0 0
      %1736 = vmatprep.subr.bf16.mxu0 0
      %1737 = vmatpush1.bf16.msra.mxu0 0
      %1738 = vmatprep.subr.bf16.mxu0 0
      %1739 = vmatpush1.bf16.msra.mxu0 0
      %1740 = vmatprep.subr.bf16.mxu0 0
      %1741 = vmatpush1.bf16.msra.mxu0 0
      %1742 = vmatprep.subr.bf16.mxu0 0
      %1743 = vmatpush1.bf16.msra.mxu0 0
      %1744 = vmatprep.subr.bf16.mxu0 0
      %1745 = vmatpush1.bf16.msra.mxu0 0
      %1746 = vmatprep.mubr.bf16.mxu0 0
      %1747 = vmatmul.mubr.bf16.gmra.mrb[0].mxu0 %v1703
      %v1748 = vpop.f32.mrb[0].mxu0
      %v1749 = vadd.f32 0.0, %v1748
      %v1750 = vpop.f32.mrb[0].mxu0
      %v1751 = vadd.f32 0.0, %v1750
      %v1752 = vpop.f32.mrb[0].mxu0
      %v1753 = vpop.f32.mrb[0].mxu0
      %1754 = vdwg.mxu0
      %1755 = vmatprep.subr.bf16.mxu0 0
      %1756 = vmatpush1.bf16.msra.mxu0 %v1712
      %1757 = vmatprep.subr.bf16.mxu0 0
      %1758 = vmatpush1.bf16.msra.mxu0 0
      %1759 = vmatprep.subr.bf16.mxu0 0
      %1760 = vmatpush1.bf16.msra.mxu0 0
      %1761 = vmatprep.subr.bf16.mxu0 0
      %1762 = vmatpush1.bf16.msra.mxu0 0
      %1763 = vmatprep.subr.bf16.mxu0 0
      %1764 = vmatpush1.bf16.msra.mxu0 0
      %1765 = vmatprep.subr.bf16.mxu0 0
      %1766 = vmatpush1.bf16.msra.mxu0 0
      %1767 = vmatprep.subr.bf16.mxu0 0
      %1768 = vmatpush1.bf16.msra.mxu0 0
      %1769 = vmatprep.subr.bf16.mxu0 0
      %1770 = vmatpush1.bf16.msra.mxu0 0
      %1771 = vmatprep.subr.bf16.mxu0 0
      %1772 = vmatpush1.bf16.msra.mxu0 0
      %1773 = vmatprep.subr.bf16.mxu0 0
      %1774 = vmatpush1.bf16.msra.mxu0 0
      %1775 = vmatprep.subr.bf16.mxu0 0
      %1776 = vmatpush1.bf16.msra.mxu0 0
      %1777 = vmatprep.subr.bf16.mxu0 0
      %1778 = vmatpush1.bf16.msra.mxu0 0
      %1779 = vmatprep.subr.bf16.mxu0 0
      %1780 = vmatpush1.bf16.msra.mxu0 0
      %1781 = vmatprep.subr.bf16.mxu0 0
      %1782 = vmatpush1.bf16.msra.mxu0 0
      %1783 = vmatprep.subr.bf16.mxu0 0
      %1784 = vmatpush1.bf16.msra.mxu0 0
      %1785 = vmatprep.subr.bf16.mxu0 0
      %1786 = vmatpush1.bf16.msra.mxu0 0
      %1787 = vmatprep.mubr.bf16.mxu0 0
      %1788 = vmatmul.mubr.bf16.gmra.mrb[0].mxu0 %v1703
      %v1789 = vpop.f32.mrb[0].mxu0
      %v1790 = vadd.f32 0.0, %v1789
      %v1791 = vpop.f32.mrb[0].mxu0
      %v1792 = vpop.f32.mrb[0].mxu0
      %v1793 = vpop.f32.mrb[0].mxu0
      %1794 = vdwg.mxu0
      %v1795 = vadd.f32 %v1672, %v1749
      %v1796 = vadd.f32 %v1673, %v1751
      %v1797 = vadd.f32 %v1674, %v1790
      %v1798 = vld [vmem:[%s315] sm:$0x3f]
      %v1799 = vld [vmem:[%s320] sm:$0x3f]
      %s1800 = scalar_lea.vmem %s2, 12
      %v1801 = vld [vmem:[%s1800] sm:$0x3]
      %v1803 = vcombine.high %v1798, %v1798
      %v1805 = vunpack.c.l.s4 1983009808
      %v1806 = vunpack.c.0.s8 %v1805
      %v1807 = vlaneseq
      %v1808 = vshrl.u32 %v1807, 7
      %v1809 = vsub.s32 %v1806, %v1808
      %v1810 = vrot.slane %v1798, %v1809
      %v1812 = vunpack.c.l.s4 1983009808
      %v1813 = vunpack.c.0.s8 %v1812
      %v1814 = vlaneseq
      %v1815 = vshrl.u32 %v1814, 7
      %v1816 = vsub.s32 %v1813, %v1815
      %v1817 = vrot.slane %v1803, %v1816
      %v1818 = vcombine.high %v1810, %v1810
      %1819 = vrot.lane.b32.xlu0 %v1810, 92
      %v1820 = vpop.permute.xlu0 %1819
      %1821 = vrot.lane.b32.xlu0 %v1818, 92
      %v1822 = vpop.permute.xlu0 %1821
      %1823 = vrot.lane.b32.xlu0 %v1817, 92
      %v1824 = vpop.permute.xlu0 %1823
      %vm1825 = vcmask 752640
      %v1826 = vsel %vm1825, %v1820, %v1822
      %v1827 = vsel %vm1825, %v1822, %v1824
      %v1829 = vsel %vm348, %v1801, 0
      %v1832 = vsel %vm352, %v1826, 0
      %v1835 = vsel %vm352, %v1827, 0
      %v1838 = vsel %vm352, %v1824, 0
      %1840 = vmatprep.subr.bf16.mxu0 %v1835
      %1841 = vmatpush1.bf16.msra.mxu0 %v1832
      %1842 = vmatprep.subr.bf16.mxu0 0
      %1843 = vmatpush1.bf16.msra.mxu0 0
      %1844 = vmatprep.subr.bf16.mxu0 0
      %1845 = vmatpush1.bf16.msra.mxu0 0
      %1846 = vmatprep.subr.bf16.mxu0 0
      %1847 = vmatpush1.bf16.msra.mxu0 0
      %1848 = vmatprep.subr.bf16.mxu0 0
      %1849 = vmatpush1.bf16.msra.mxu0 0
      %1850 = vmatprep.subr.bf16.mxu0 0
      %1851 = vmatpush1.bf16.msra.mxu0 0
      %1852 = vmatprep.subr.bf16.mxu0 0
      %1853 = vmatpush1.bf16.msra.mxu0 0
      %1854 = vmatprep.subr.bf16.mxu0 0
      %1855 = vmatpush1.bf16.msra.mxu0 0
      %1856 = vmatprep.subr.bf16.mxu0 0
      %1857 = vmatpush1.bf16.msra.mxu0 0
      %1858 = vmatprep.subr.bf16.mxu0 0
      %1859 = vmatpush1.bf16.msra.mxu0 0
      %1860 = vmatprep.subr.bf16.mxu0 0
      %1861 = vmatpush1.bf16.msra.mxu0 0
      %1862 = vmatprep.subr.bf16.mxu0 0
      %1863 = vmatpush1.bf16.msra.mxu0 0
      %1864 = vmatprep.subr.bf16.mxu0 0
      %1865 = vmatpush1.bf16.msra.mxu0 0
      %1866 = vmatprep.subr.bf16.mxu0 0
      %1867 = vmatpush1.bf16.msra.mxu0 0
      %1868 = vmatprep.subr.bf16.mxu0 0
      %1869 = vmatpush1.bf16.msra.mxu0 0
      %1870 = vmatprep.subr.bf16.mxu0 0
      %1871 = vmatpush1.bf16.msra.mxu0 0
      %1872 = vmatprep.mubr.bf16.mxu0 0
      %1873 = vmatmul.mubr.bf16.gmra.mrb[0].mxu0 %v1829
      %v1874 = vpop.f32.mrb[0].mxu0
      %v1875 = vadd.f32 0.0, %v1874
      %v1876 = vpop.f32.mrb[0].mxu0
      %v1877 = vadd.f32 0.0, %v1876
      %v1878 = vpop.f32.mrb[0].mxu0
      %v1879 = vpop.f32.mrb[0].mxu0
      %1880 = vdwg.mxu0
      %1881 = vmatprep.subr.bf16.mxu0 0
      %1882 = vmatpush1.bf16.msra.mxu0 %v1838
      %1883 = vmatprep.subr.bf16.mxu0 0
      %1884 = vmatpush1.bf16.msra.mxu0 0
      %1885 = vmatprep.subr.bf16.mxu0 0
      %1886 = vmatpush1.bf16.msra.mxu0 0
      %1887 = vmatprep.subr.bf16.mxu0 0
      %1888 = vmatpush1.bf16.msra.mxu0 0
      %1889 = vmatprep.subr.bf16.mxu0 0
      %1890 = vmatpush1.bf16.msra.mxu0 0
      %1891 = vmatprep.subr.bf16.mxu0 0
      %1892 = vmatpush1.bf16.msra.mxu0 0
      %1893 = vmatprep.subr.bf16.mxu0 0
      %1894 = vmatpush1.bf16.msra.mxu0 0
      %1895 = vmatprep.subr.bf16.mxu0 0
      %1896 = vmatpush1.bf16.msra.mxu0 0
      %1897 = vmatprep.subr.bf16.mxu0 0
      %1898 = vmatpush1.bf16.msra.mxu0 0
      %1899 = vmatprep.subr.bf16.mxu0 0
      %1900 = vmatpush1.bf16.msra.mxu0 0
      %1901 = vmatprep.subr.bf16.mxu0 0
      %1902 = vmatpush1.bf16.msra.mxu0 0
      %1903 = vmatprep.subr.bf16.mxu0 0
      %1904 = vmatpush1.bf16.msra.mxu0 0
      %1905 = vmatprep.subr.bf16.mxu0 0
      %1906 = vmatpush1.bf16.msra.mxu0 0
      %1907 = vmatprep.subr.bf16.mxu0 0
      %1908 = vmatpush1.bf16.msra.mxu0 0
      %1909 = vmatprep.subr.bf16.mxu0 0
      %1910 = vmatpush1.bf16.msra.mxu0 0
      %1911 = vmatprep.subr.bf16.mxu0 0
      %1912 = vmatpush1.bf16.msra.mxu0 0
      %1913 = vmatprep.mubr.bf16.mxu0 0
      %1914 = vmatmul.mubr.bf16.gmra.mrb[0].mxu0 %v1829
      %v1915 = vpop.f32.mrb[0].mxu0
      %v1916 = vadd.f32 0.0, %v1915
      %v1917 = vpop.f32.mrb[0].mxu0
      %v1918 = vpop.f32.mrb[0].mxu0
      %v1919 = vpop.f32.mrb[0].mxu0
      %1920 = vdwg.mxu0
      %v1921 = vadd.f32 %v1795, %v1875
      %v1922 = vadd.f32 %v1796, %v1877
      %v1923 = vadd.f32 %v1797, %v1916
      %s1924 = scalar_lea.vmem %s3, 12
      %v1925 = vld [vmem:[%s1924] sm:$0x3]
      %v1927 = vcombine.high %v1799, %v1799
      %v1929 = vunpack.c.l.s4 1983009808
      %v1930 = vunpack.c.0.s8 %v1929
      %v1931 = vlaneseq
      %v1932 = vshrl.u32 %v1931, 7
      %v1933 = vsub.s32 %v1930, %v1932
      %v1934 = vrot.slane %v1799, %v1933
      %v1936 = vunpack.c.l.s4 1983009808
      %v1937 = vunpack.c.0.s8 %v1936
      %v1938 = vlaneseq
      %v1939 = vshrl.u32 %v1938, 7
      %v1940 = vsub.s32 %v1937, %v1939
      %v1941 = vrot.slane %v1927, %v1940
      %v1942 = vcombine.high %v1934, %v1934
      %1943 = vrot.lane.b32.xlu0 %v1934, 92
      %v1944 = vpop.permute.xlu0 %1943
      %1945 = vrot.lane.b32.xlu0 %v1942, 92
      %v1946 = vpop.permute.xlu0 %1945
      %1947 = vrot.lane.b32.xlu0 %v1941, 92
      %v1948 = vpop.permute.xlu0 %1947
      %v1949 = vsel %vm1825, %v1944, %v1946
      %v1950 = vsel %vm1825, %v1946, %v1948
      %v1952 = vsel %vm348, %v1925, 0
      %v1955 = vsel %vm352, %v1949, 0
      %v1958 = vsel %vm352, %v1950, 0
      %v1961 = vsel %vm352, %v1948, 0
      %1963 = vmatprep.subr.bf16.mxu0 %v1958
      %1964 = vmatpush1.bf16.msra.mxu0 %v1955
      %1965 = vmatprep.subr.bf16.mxu0 0
      %1966 = vmatpush1.bf16.msra.mxu0 0
      %1967 = vmatprep.subr.bf16.mxu0 0
      %1968 = vmatpush1.bf16.msra.mxu0 0
      %1969 = vmatprep.subr.bf16.mxu0 0
      %1970 = vmatpush1.bf16.msra.mxu0 0
      %1971 = vmatprep.subr.bf16.mxu0 0
      %1972 = vmatpush1.bf16.msra.mxu0 0
      %1973 = vmatprep.subr.bf16.mxu0 0
      %1974 = vmatpush1.bf16.msra.mxu0 0
      %1975 = vmatprep.subr.bf16.mxu0 0
      %1976 = vmatpush1.bf16.msra.mxu0 0
      %1977 = vmatprep.subr.bf16.mxu0 0
      %1978 = vmatpush1.bf16.msra.mxu0 0
      %1979 = vmatprep.subr.bf16.mxu0 0
      %1980 = vmatpush1.bf16.msra.mxu0 0
      %1981 = vmatprep.subr.bf16.mxu0 0
      %1982 = vmatpush1.bf16.msra.mxu0 0
      %1983 = vmatprep.subr.bf16.mxu0 0
      %1984 = vmatpush1.bf16.msra.mxu0 0
      %1985 = vmatprep.subr.bf16.mxu0 0
      %1986 = vmatpush1.bf16.msra.mxu0 0
      %1987 = vmatprep.subr.bf16.mxu0 0
      %1988 = vmatpush1.bf16.msra.mxu0 0
      %1989 = vmatprep.subr.bf16.mxu0 0
      %1990 = vmatpush1.bf16.msra.mxu0 0
      %1991 = vmatprep.subr.bf16.mxu0 0
      %1992 = vmatpush1.bf16.msra.mxu0 0
      %1993 = vmatprep.subr.bf16.mxu0 0
      %1994 = vmatpush1.bf16.msra.mxu0 0
      %1995 = vmatprep.mubr.bf16.mxu0 0
      %1996 = vmatmul.mubr.bf16.gmra.mrb[0].mxu0 %v1952
      %v1997 = vpop.f32.mrb[0].mxu0
      %v1998 = vadd.f32 0.0, %v1997
      %v1999 = vpop.f32.mrb[0].mxu0
      %v2000 = vadd.f32 0.0, %v1999
      %v2001 = vpop.f32.mrb[0].mxu0
      %v2002 = vpop.f32.mrb[0].mxu0
      %2003 = vdwg.mxu0
      %2004 = vmatprep.subr.bf16.mxu0 0
      %2005 = vmatpush1.bf16.msra.mxu0 %v1961
      %2006 = vmatprep.subr.bf16.mxu0 0
      %2007 = vmatpush1.bf16.msra.mxu0 0
      %2008 = vmatprep.subr.bf16.mxu0 0
      %2009 = vmatpush1.bf16.msra.mxu0 0
      %2010 = vmatprep.subr.bf16.mxu0 0
      %2011 = vmatpush1.bf16.msra.mxu0 0
      %2012 = vmatprep.subr.bf16.mxu0 0
      %2013 = vmatpush1.bf16.msra.mxu0 0
      %2014 = vmatprep.subr.bf16.mxu0 0
      %2015 = vmatpush1.bf16.msra.mxu0 0
      %2016 = vmatprep.subr.bf16.mxu0 0
      %2017 = vmatpush1.bf16.msra.mxu0 0
      %2018 = vmatprep.subr.bf16.mxu0 0
      %2019 = vmatpush1.bf16.msra.mxu0 0
      %2020 = vmatprep.subr.bf16.mxu0 0
      %2021 = vmatpush1.bf16.msra.mxu0 0
      %2022 = vmatprep.subr.bf16.mxu0 0
      %2023 = vmatpush1.bf16.msra.mxu0 0
      %2024 = vmatprep.subr.bf16.mxu0 0
      %2025 = vmatpush1.bf16.msra.mxu0 0
      %2026 = vmatprep.subr.bf16.mxu0 0
      %2027 = vmatpush1.bf16.msra.mxu0 0
      %2028 = vmatprep.subr.bf16.mxu0 0
      %2029 = vmatpush1.bf16.msra.mxu0 0
      %2030 = vmatprep.subr.bf16.mxu0 0
      %2031 = vmatpush1.bf16.msra.mxu0 0
      %2032 = vmatprep.subr.bf16.mxu0 0
      %2033 = vmatpush1.bf16.msra.mxu0 0
      %2034 = vmatprep.subr.bf16.mxu0 0
      %2035 = vmatpush1.bf16.msra.mxu0 0
      %2036 = vmatprep.mubr.bf16.mxu0 0
      %2037 = vmatmul.mubr.bf16.gmra.mrb[0].mxu0 %v1952
      %v2038 = vpop.f32.mrb[0].mxu0
      %v2039 = vadd.f32 0.0, %v2038
      %v2040 = vpop.f32.mrb[0].mxu0
      %v2041 = vpop.f32.mrb[0].mxu0
      %v2042 = vpop.f32.mrb[0].mxu0
      %2043 = vdwg.mxu0
      %v2044 = vadd.f32 %v1921, %v1998
      %v2045 = vadd.f32 %v1922, %v2000
      %v2046 = vadd.f32 %v1923, %v2039
      %v2047 = vld [vmem:[%s315] sm:$0x3f]
      %v2048 = vld [vmem:[%s320] sm:$0x3f]
      %s2049 = scalar_lea.vmem %s2, 14
      %v2050 = vld [vmem:[%s2049] sm:$0x3]
      %v2052 = vcombine.high %v2047, %v2047
      %v2054 = vunpack.c.l.s4 1983009808
      %v2055 = vunpack.c.0.s8 %v2054
      %v2056 = vlaneseq
      %v2057 = vshrl.u32 %v2056, 7
      %v2058 = vsub.s32 %v2055, %v2057
      %v2059 = vrot.slane %v2047, %v2058
      %v2061 = vunpack.c.l.s4 1983009808
      %v2062 = vunpack.c.0.s8 %v2061
      %v2063 = vlaneseq
      %v2064 = vshrl.u32 %v2063, 7
      %v2065 = vsub.s32 %v2062, %v2064
      %v2066 = vrot.slane %v2052, %v2065
      %v2067 = vcombine.high %v2059, %v2059
      %2068 = vrot.lane.b32.xlu0 %v2059, 91
      %v2069 = vpop.permute.xlu0 %2068
      %2070 = vrot.lane.b32.xlu0 %v2067, 91
      %v2071 = vpop.permute.xlu0 %2070
      %2072 = vrot.lane.b32.xlu0 %v2066, 91
      %v2073 = vpop.permute.xlu0 %2072
      %vm2074 = vcmask 744448
      %v2075 = vsel %vm2074, %v2069, %v2071
      %v2076 = vsel %vm2074, %v2071, %v2073
      %v2078 = vsel %vm348, %v2050, 0
      %v2081 = vsel %vm352, %v2075, 0
      %v2084 = vsel %vm352, %v2076, 0
      %v2087 = vsel %vm352, %v2073, 0
      %2089 = vmatprep.subr.bf16.mxu0 %v2084
      %2090 = vmatpush1.bf16.msra.mxu0 %v2081
      %2091 = vmatprep.subr.bf16.mxu0 0
      %2092 = vmatpush1.bf16.msra.mxu0 0
      %2093 = vmatprep.subr.bf16.mxu0 0
      %2094 = vmatpush1.bf16.msra.mxu0 0
      %2095 = vmatprep.subr.bf16.mxu0 0
      %2096 = vmatpush1.bf16.msra.mxu0 0
      %2097 = vmatprep.subr.bf16.mxu0 0
      %2098 = vmatpush1.bf16.msra.mxu0 0
      %2099 = vmatprep.subr.bf16.mxu0 0
      %2100 = vmatpush1.bf16.msra.mxu0 0
      %2101 = vmatprep.subr.bf16.mxu0 0
      %2102 = vmatpush1.bf16.msra.mxu0 0
      %2103 = vmatprep.subr.bf16.mxu0 0
      %2104 = vmatpush1.bf16.msra.mxu0 0
      %2105 = vmatprep.subr.bf16.mxu0 0
      %2106 = vmatpush1.bf16.msra.mxu0 0
      %2107 = vmatprep.subr.bf16.mxu0 0
      %2108 = vmatpush1.bf16.msra.mxu0 0
      %2109 = vmatprep.subr.bf16.mxu0 0
      %2110 = vmatpush1.bf16.msra.mxu0 0
      %2111 = vmatprep.subr.bf16.mxu0 0
      %2112 = vmatpush1.bf16.msra.mxu0 0
      %2113 = vmatprep.subr.bf16.mxu0 0
      %2114 = vmatpush1.bf16.msra.mxu0 0
      %2115 = vmatprep.subr.bf16.mxu0 0
      %2116 = vmatpush1.bf16.msra.mxu0 0
      %2117 = vmatprep.subr.bf16.mxu0 0
      %2118 = vmatpush1.bf16.msra.mxu0 0
      %2119 = vmatprep.subr.bf16.mxu0 0
      %2120 = vmatpush1.bf16.msra.mxu0 0
      %2121 = vmatprep.mubr.bf16.mxu0 0
      %2122 = vmatmul.mubr.bf16.gmra.mrb[0].mxu0 %v2078
      %v2123 = vpop.f32.mrb[0].mxu0
      %v2124 = vadd.f32 0.0, %v2123
      %v2125 = vpop.f32.mrb[0].mxu0
      %v2126 = vadd.f32 0.0, %v2125
      %v2127 = vpop.f32.mrb[0].mxu0
      %v2128 = vpop.f32.mrb[0].mxu0
      %2129 = vdwg.mxu0
      %2130 = vmatprep.subr.bf16.mxu0 0
      %2131 = vmatpush1.bf16.msra.mxu0 %v2087
      %2132 = vmatprep.subr.bf16.mxu0 0
      %2133 = vmatpush1.bf16.msra.mxu0 0
      %2134 = vmatprep.subr.bf16.mxu0 0
      %2135 = vmatpush1.bf16.msra.mxu0 0
      %2136 = vmatprep.subr.bf16.mxu0 0
      %2137 = vmatpush1.bf16.msra.mxu0 0
      %2138 = vmatprep.subr.bf16.mxu0 0
      %2139 = vmatpush1.bf16.msra.mxu0 0
      %2140 = vmatprep.subr.bf16.mxu0 0
      %2141 = vmatpush1.bf16.msra.mxu0 0
      %2142 = vmatprep.subr.bf16.mxu0 0
      %2143 = vmatpush1.bf16.msra.mxu0 0
      %2144 = vmatprep.subr.bf16.mxu0 0
      %2145 = vmatpush1.bf16.msra.mxu0 0
      %2146 = vmatprep.subr.bf16.mxu0 0
      %2147 = vmatpush1.bf16.msra.mxu0 0
      %2148 = vmatprep.subr.bf16.mxu0 0
      %2149 = vmatpush1.bf16.msra.mxu0 0
      %2150 = vmatprep.subr.bf16.mxu0 0
      %2151 = vmatpush1.bf16.msra.mxu0 0
      %2152 = vmatprep.subr.bf16.mxu0 0
      %2153 = vmatpush1.bf16.msra.mxu0 0
      %2154 = vmatprep.subr.bf16.mxu0 0
      %2155 = vmatpush1.bf16.msra.mxu0 0
      %2156 = vmatprep.subr.bf16.mxu0 0
      %2157 = vmatpush1.bf16.msra.mxu0 0
      %2158 = vmatprep.subr.bf16.mxu0 0
      %2159 = vmatpush1.bf16.msra.mxu0 0
      %2160 = vmatprep.subr.bf16.mxu0 0
      %2161 = vmatpush1.bf16.msra.mxu0 0
      %2162 = vmatprep.mubr.bf16.mxu0 0
      %2163 = vmatmul.mubr.bf16.gmra.mrb[0].mxu0 %v2078
      %v2164 = vpop.f32.mrb[0].mxu0
      %v2165 = vadd.f32 0.0, %v2164
      %v2166 = vpop.f32.mrb[0].mxu0
      %v2167 = vpop.f32.mrb[0].mxu0
      %v2168 = vpop.f32.mrb[0].mxu0
      %2169 = vdwg.mxu0
      %v2170 = vadd.f32 %v2044, %v2124
      %v2171 = vadd.f32 %v2045, %v2126
      %v2172 = vadd.f32 %v2046, %v2165
      %s2173 = scalar_lea.vmem %s3, 14
      %v2174 = vld [vmem:[%s2173] sm:$0x3]
      %v2176 = vcombine.high %v2048, %v2048
      %v2178 = vunpack.c.l.s4 1983009808
      %v2179 = vunpack.c.0.s8 %v2178
      %v2180 = vlaneseq
      %v2181 = vshrl.u32 %v2180, 7
      %v2182 = vsub.s32 %v2179, %v2181
      %v2183 = vrot.slane %v2048, %v2182
      %v2185 = vunpack.c.l.s4 1983009808
      %v2186 = vunpack.c.0.s8 %v2185
      %v2187 = vlaneseq
      %v2188 = vshrl.u32 %v2187, 7
      %v2189 = vsub.s32 %v2186, %v2188
      %v2190 = vrot.slane %v2176, %v2189
      %v2191 = vcombine.high %v2183, %v2183
      %2192 = vrot.lane.b32.xlu0 %v2183, 91
      %v2193 = vpop.permute.xlu0 %2192
      %2194 = vrot.lane.b32.xlu0 %v2191, 91
      %v2195 = vpop.permute.xlu0 %2194
      %2196 = vrot.lane.b32.xlu0 %v2190, 91
      %v2197 = vpop.permute.xlu0 %2196
      %v2198 = vsel %vm2074, %v2193, %v2195
      %v2199 = vsel %vm2074, %v2195, %v2197
      %v2201 = vsel %vm348, %v2174, 0
      %v2204 = vsel %vm352, %v2198, 0
      %v2207 = vsel %vm352, %v2199, 0
      %v2210 = vsel %vm352, %v2197, 0
      %2212 = vmatprep.subr.bf16.mxu0 %v2207
      %2213 = vmatpush1.bf16.msra.mxu0 %v2204
      %2214 = vmatprep.subr.bf16.mxu0 0
      %2215 = vmatpush1.bf16.msra.mxu0 0
      %2216 = vmatprep.subr.bf16.mxu0 0
      %2217 = vmatpush1.bf16.msra.mxu0 0
      %2218 = vmatprep.subr.bf16.mxu0 0
      %2219 = vmatpush1.bf16.msra.mxu0 0
      %2220 = vmatprep.subr.bf16.mxu0 0
      %2221 = vmatpush1.bf16.msra.mxu0 0
      %2222 = vmatprep.subr.bf16.mxu0 0
      %2223 = vmatpush1.bf16.msra.mxu0 0
      %2224 = vmatprep.subr.bf16.mxu0 0
      %2225 = vmatpush1.bf16.msra.mxu0 0
      %2226 = vmatprep.subr.bf16.mxu0 0
      %2227 = vmatpush1.bf16.msra.mxu0 0
      %2228 = vmatprep.subr.bf16.mxu0 0
      %2229 = vmatpush1.bf16.msra.mxu0 0
      %2230 = vmatprep.subr.bf16.mxu0 0
      %2231 = vmatpush1.bf16.msra.mxu0 0
      %2232 = vmatprep.subr.bf16.mxu0 0
      %2233 = vmatpush1.bf16.msra.mxu0 0
      %2234 = vmatprep.subr.bf16.mxu0 0
      %2235 = vmatpush1.bf16.msra.mxu0 0
      %2236 = vmatprep.subr.bf16.mxu0 0
      %2237 = vmatpush1.bf16.msra.mxu0 0
      %2238 = vmatprep.subr.bf16.mxu0 0
      %2239 = vmatpush1.bf16.msra.mxu0 0
      %2240 = vmatprep.subr.bf16.mxu0 0
      %2241 = vmatpush1.bf16.msra.mxu0 0
      %2242 = vmatprep.subr.bf16.mxu0 0
      %2243 = vmatpush1.bf16.msra.mxu0 0
      %2244 = vmatprep.mubr.bf16.mxu0 0
      %2245 = vmatmul.mubr.bf16.gmra.mrb[0].mxu0 %v2201
      %v2246 = vpop.f32.mrb[0].mxu0
      %v2247 = vadd.f32 0.0, %v2246
      %v2248 = vpop.f32.mrb[0].mxu0
      %v2249 = vadd.f32 0.0, %v2248
      %v2250 = vpop.f32.mrb[0].mxu0
      %v2251 = vpop.f32.mrb[0].mxu0
      %2252 = vdwg.mxu0
      %2253 = vmatprep.subr.bf16.mxu0 0
      %2254 = vmatpush1.bf16.msra.mxu0 %v2210
      %2255 = vmatprep.subr.bf16.mxu0 0
      %2256 = vmatpush1.bf16.msra.mxu0 0
      %2257 = vmatprep.subr.bf16.mxu0 0
      %2258 = vmatpush1.bf16.msra.mxu0 0
      %2259 = vmatprep.subr.bf16.mxu0 0
      %2260 = vmatpush1.bf16.msra.mxu0 0
      %2261 = vmatprep.subr.bf16.mxu0 0
      %2262 = vmatpush1.bf16.msra.mxu0 0
      %2263 = vmatprep.subr.bf16.mxu0 0
      %2264 = vmatpush1.bf16.msra.mxu0 0
      %2265 = vmatprep.subr.bf16.mxu0 0
      %2266 = vmatpush1.bf16.msra.mxu0 0
      %2267 = vmatprep.subr.bf16.mxu0 0
      %2268 = vmatpush1.bf16.msra.mxu0 0
      %2269 = vmatprep.subr.bf16.mxu0 0
      %2270 = vmatpush1.bf16.msra.mxu0 0
      %2271 = vmatprep.subr.bf16.mxu0 0
      %2272 = vmatpush1.bf16.msra.mxu0 0
      %2273 = vmatprep.subr.bf16.mxu0 0
      %2274 = vmatpush1.bf16.msra.mxu0 0
      %2275 = vmatprep.subr.bf16.mxu0 0
      %2276 = vmatpush1.bf16.msra.mxu0 0
      %2277 = vmatprep.subr.bf16.mxu0 0
      %2278 = vmatpush1.bf16.msra.mxu0 0
      %2279 = vmatprep.subr.bf16.mxu0 0
      %2280 = vmatpush1.bf16.msra.mxu0 0
      %2281 = vmatprep.subr.bf16.mxu0 0
      %2282 = vmatpush1.bf16.msra.mxu0 0
      %2283 = vmatprep.subr.bf16.mxu0 0
      %2284 = vmatpush1.bf16.msra.mxu0 0
      %2285 = vmatprep.mubr.bf16.mxu0 0
      %2286 = vmatmul.mubr.bf16.gmra.mrb[0].mxu0 %v2201
      %v2287 = vpop.f32.mrb[0].mxu0
      %v2288 = vadd.f32 0.0, %v2287
      %v2289 = vpop.f32.mrb[0].mxu0
      %v2290 = vpop.f32.mrb[0].mxu0
      %v2291 = vpop.f32.mrb[0].mxu0
      %2292 = vdwg.mxu0
      %v2293 = vadd.f32 %v2170, %v2247
      %v2294 = vadd.f32 %v2171, %v2249
      %v2295 = vadd.f32 %v2172, %v2288
      %v2296 = vld [vmem:[%s315] sm:$0x3f]
      %v2297 = vld [vmem:[%s320] sm:$0x3f]
      %s2298 = scalar_lea.vmem %s2, 16
      %v2299 = vld [vmem:[%s2298] sm:$0x3]
      %v2301 = vcombine.high %v2296, %v2296
      %v2303 = vunpack.c.l.s4 1983009808
      %v2304 = vunpack.c.0.s8 %v2303
      %v2305 = vlaneseq
      %v2306 = vshrl.u32 %v2305, 7
      %v2307 = vsub.s32 %v2304, %v2306
      %v2308 = vrot.slane %v2296, %v2307
      %v2310 = vunpack.c.l.s4 1983009808
      %v2311 = vunpack.c.0.s8 %v2310
      %v2312 = vlaneseq
      %v2313 = vshrl.u32 %v2312, 7
      %v2314 = vsub.s32 %v2311, %v2313
      %v2315 = vrot.slane %v2301, %v2314
      %v2316 = vcombine.high %v2308, %v2308
      %2317 = vrot.lane.b32.xlu0 %v2308, 90
      %v2318 = vpop.permute.xlu0 %2317
      %2319 = vrot.lane.b32.xlu0 %v2316, 90
      %v2320 = vpop.permute.xlu0 %2319
      %2321 = vrot.lane.b32.xlu0 %v2315, 90
      %v2322 = vpop.permute.xlu0 %2321
      %vm2323 = vcmask 736256
      %v2324 = vsel %vm2323, %v2318, %v2320
      %v2325 = vsel %vm2323, %v2320, %v2322
      %v2327 = vsel %vm348, %v2299, 0
      %v2330 = vsel %vm352, %v2324, 0
      %v2333 = vsel %vm352, %v2325, 0
      %v2336 = vsel %vm352, %v2322, 0
      %2338 = vmatprep.subr.bf16.mxu0 %v2333
      %2339 = vmatpush1.bf16.msra.mxu0 %v2330
      %2340 = vmatprep.subr.bf16.mxu0 0
      %2341 = vmatpush1.bf16.msra.mxu0 0
      %2342 = vmatprep.subr.bf16.mxu0 0
      %2343 = vmatpush1.bf16.msra.mxu0 0
      %2344 = vmatprep.subr.bf16.mxu0 0
      %2345 = vmatpush1.bf16.msra.mxu0 0
      %2346 = vmatprep.subr.bf16.mxu0 0
      %2347 = vmatpush1.bf16.msra.mxu0 0
      %2348 = vmatprep.subr.bf16.mxu0 0
      %2349 = vmatpush1.bf16.msra.mxu0 0
      %2350 = vmatprep.subr.bf16.mxu0 0
      %2351 = vmatpush1.bf16.msra.mxu0 0
      %2352 = vmatprep.subr.bf16.mxu0 0
      %2353 = vmatpush1.bf16.msra.mxu0 0
      %2354 = vmatprep.subr.bf16.mxu0 0
      %2355 = vmatpush1.bf16.msra.mxu0 0
      %2356 = vmatprep.subr.bf16.mxu0 0
      %2357 = vmatpush1.bf16.msra.mxu0 0
      %2358 = vmatprep.subr.bf16.mxu0 0
      %2359 = vmatpush1.bf16.msra.mxu0 0
      %2360 = vmatprep.subr.bf16.mxu0 0
      %2361 = vmatpush1.bf16.msra.mxu0 0
      %2362 = vmatprep.subr.bf16.mxu0 0
      %2363 = vmatpush1.bf16.msra.mxu0 0
      %2364 = vmatprep.subr.bf16.mxu0 0
      %2365 = vmatpush1.bf16.msra.mxu0 0
      %2366 = vmatprep.subr.bf16.mxu0 0
      %2367 = vmatpush1.bf16.msra.mxu0 0
      %2368 = vmatprep.subr.bf16.mxu0 0
      %2369 = vmatpush1.bf16.msra.mxu0 0
      %2370 = vmatprep.mubr.bf16.mxu0 0
      %2371 = vmatmul.mubr.bf16.gmra.mrb[0].mxu0 %v2327
      %v2372 = vpop.f32.mrb[0].mxu0
      %v2373 = vadd.f32 0.0, %v2372
      %v2374 = vpop.f32.mrb[0].mxu0
      %v2375 = vadd.f32 0.0, %v2374
      %v2376 = vpop.f32.mrb[0].mxu0
      %v2377 = vpop.f32.mrb[0].mxu0
      %2378 = vdwg.mxu0
      %2379 = vmatprep.subr.bf16.mxu0 0
      %2380 = vmatpush1.bf16.msra.mxu0 %v2336
      %2381 = vmatprep.subr.bf16.mxu0 0
      %2382 = vmatpush1.bf16.msra.mxu0 0
      %2383 = vmatprep.subr.bf16.mxu0 0
      %2384 = vmatpush1.bf16.msra.mxu0 0
      %2385 = vmatprep.subr.bf16.mxu0 0
      %2386 = vmatpush1.bf16.msra.mxu0 0
      %2387 = vmatprep.subr.bf16.mxu0 0
      %2388 = vmatpush1.bf16.msra.mxu0 0
      %2389 = vmatprep.subr.bf16.mxu0 0
      %2390 = vmatpush1.bf16.msra.mxu0 0
      %2391 = vmatprep.subr.bf16.mxu0 0
      %2392 = vmatpush1.bf16.msra.mxu0 0
      %2393 = vmatprep.subr.bf16.mxu0 0
      %2394 = vmatpush1.bf16.msra.mxu0 0
      %2395 = vmatprep.subr.bf16.mxu0 0
      %2396 = vmatpush1.bf16.msra.mxu0 0
      %2397 = vmatprep.subr.bf16.mxu0 0
      %2398 = vmatpush1.bf16.msra.mxu0 0
      %2399 = vmatprep.subr.bf16.mxu0 0
      %2400 = vmatpush1.bf16.msra.mxu0 0
      %2401 = vmatprep.subr.bf16.mxu0 0
      %2402 = vmatpush1.bf16.msra.mxu0 0
      %2403 = vmatprep.subr.bf16.mxu0 0
      %2404 = vmatpush1.bf16.msra.mxu0 0
      %2405 = vmatprep.subr.bf16.mxu0 0
      %2406 = vmatpush1.bf16.msra.mxu0 0
      %2407 = vmatprep.subr.bf16.mxu0 0
      %2408 = vmatpush1.bf16.msra.mxu0 0
      %2409 = vmatprep.subr.bf16.mxu0 0
      %2410 = vmatpush1.bf16.msra.mxu0 0
      %2411 = vmatprep.mubr.bf16.mxu0 0
      %2412 = vmatmul.mubr.bf16.gmra.mrb[0].mxu0 %v2327
      %v2413 = vpop.f32.mrb[0].mxu0
      %v2414 = vadd.f32 0.0, %v2413
      %v2415 = vpop.f32.mrb[0].mxu0
      %v2416 = vpop.f32.mrb[0].mxu0
      %v2417 = vpop.f32.mrb[0].mxu0
      %2418 = vdwg.mxu0
      %v2419 = vadd.f32 %v2293, %v2373
      %v2420 = vadd.f32 %v2294, %v2375
      %v2421 = vadd.f32 %v2295, %v2414
      %s2422 = scalar_lea.vmem %s3, 16
      %v2423 = vld [vmem:[%s2422] sm:$0x3]
      %v2425 = vcombine.high %v2297, %v2297
      %v2427 = vunpack.c.l.s4 1983009808
      %v2428 = vunpack.c.0.s8 %v2427
      %v2429 = vlaneseq
      %v2430 = vshrl.u32 %v2429, 7
      %v2431 = vsub.s32 %v2428, %v2430
      %v2432 = vrot.slane %v2297, %v2431
      %v2434 = vunpack.c.l.s4 1983009808
      %v2435 = vunpack.c.0.s8 %v2434
      %v2436 = vlaneseq
      %v2437 = vshrl.u32 %v2436, 7
      %v2438 = vsub.s32 %v2435, %v2437
      %v2439 = vrot.slane %v2425, %v2438
      %v2440 = vcombine.high %v2432, %v2432
      %2441 = vrot.lane.b32.xlu0 %v2432, 90
      %v2442 = vpop.permute.xlu0 %2441
      %2443 = vrot.lane.b32.xlu0 %v2440, 90
      %v2444 = vpop.permute.xlu0 %2443
      %2445 = vrot.lane.b32.xlu0 %v2439, 90
      %v2446 = vpop.permute.xlu0 %2445
      %v2447 = vsel %vm2323, %v2442, %v2444
      %v2448 = vsel %vm2323, %v2444, %v2446
      %v2450 = vsel %vm348, %v2423, 0
      %v2453 = vsel %vm352, %v2447, 0
      %v2456 = vsel %vm352, %v2448, 0
      %v2459 = vsel %vm352, %v2446, 0
      %2461 = vmatprep.subr.bf16.mxu0 %v2456
      %2462 = vmatpush1.bf16.msra.mxu0 %v2453
      %2463 = vmatprep.subr.bf16.mxu0 0
      %2464 = vmatpush1.bf16.msra.mxu0 0
      %2465 = vmatprep.subr.bf16.mxu0 0
      %2466 = vmatpush1.bf16.msra.mxu0 0
      %2467 = vmatprep.subr.bf16.mxu0 0
      %2468 = vmatpush1.bf16.msra.mxu0 0
      %2469 = vmatprep.subr.bf16.mxu0 0
      %2470 = vmatpush1.bf16.msra.mxu0 0
      %2471 = vmatprep.subr.bf16.mxu0 0
      %2472 = vmatpush1.bf16.msra.mxu0 0
      %2473 = vmatprep.subr.bf16.mxu0 0
      %2474 = vmatpush1.bf16.msra.mxu0 0
      %2475 = vmatprep.subr.bf16.mxu0 0
      %2476 = vmatpush1.bf16.msra.mxu0 0
      %2477 = vmatprep.subr.bf16.mxu0 0
      %2478 = vmatpush1.bf16.msra.mxu0 0
      %2479 = vmatprep.subr.bf16.mxu0 0
      %2480 = vmatpush1.bf16.msra.mxu0 0
      %2481 = vmatprep.subr.bf16.mxu0 0
      %2482 = vmatpush1.bf16.msra.mxu0 0
      %2483 = vmatprep.subr.bf16.mxu0 0
      %2484 = vmatpush1.bf16.msra.mxu0 0
      %2485 = vmatprep.subr.bf16.mxu0 0
      %2486 = vmatpush1.bf16.msra.mxu0 0
      %2487 = vmatprep.subr.bf16.mxu0 0
      %2488 = vmatpush1.bf16.msra.mxu0 0
      %2489 = vmatprep.subr.bf16.mxu0 0
      %2490 = vmatpush1.bf16.msra.mxu0 0
      %2491 = vmatprep.subr.bf16.mxu0 0
      %2492 = vmatpush1.bf16.msra.mxu0 0
      %2493 = vmatprep.mubr.bf16.mxu0 0
      %2494 = vmatmul.mubr.bf16.gmra.mrb[0].mxu0 %v2450
      %v2495 = vpop.f32.mrb[0].mxu0
      %v2496 = vadd.f32 0.0, %v2495
      %v2497 = vpop.f32.mrb[0].mxu0
      %v2498 = vadd.f32 0.0, %v2497
      %v2499 = vpop.f32.mrb[0].mxu0
      %v2500 = vpop.f32.mrb[0].mxu0
      %2501 = vdwg.mxu0
      %2502 = vmatprep.subr.bf16.mxu0 0
      %2503 = vmatpush1.bf16.msra.mxu0 %v2459
      %2504 = vmatprep.subr.bf16.mxu0 0
      %2505 = vmatpush1.bf16.msra.mxu0 0
      %2506 = vmatprep.subr.bf16.mxu0 0
      %2507 = vmatpush1.bf16.msra.mxu0 0
      %2508 = vmatprep.subr.bf16.mxu0 0
      %2509 = vmatpush1.bf16.msra.mxu0 0
      %2510 = vmatprep.subr.bf16.mxu0 0
      %2511 = vmatpush1.bf16.msra.mxu0 0
      %2512 = vmatprep.subr.bf16.mxu0 0
      %2513 = vmatpush1.bf16.msra.mxu0 0
      %2514 = vmatprep.subr.bf16.mxu0 0
      %2515 = vmatpush1.bf16.msra.mxu0 0
      %2516 = vmatprep.subr.bf16.mxu0 0
      %2517 = vmatpush1.bf16.msra.mxu0 0
      %2518 = vmatprep.subr.bf16.mxu0 0
      %2519 = vmatpush1.bf16.msra.mxu0 0
      %2520 = vmatprep.subr.bf16.mxu0 0
      %2521 = vmatpush1.bf16.msra.mxu0 0
      %2522 = vmatprep.subr.bf16.mxu0 0
      %2523 = vmatpush1.bf16.msra.mxu0 0
      %2524 = vmatprep.subr.bf16.mxu0 0
      %2525 = vmatpush1.bf16.msra.mxu0 0
      %2526 = vmatprep.subr.bf16.mxu0 0
      %2527 = vmatpush1.bf16.msra.mxu0 0
      %2528 = vmatprep.subr.bf16.mxu0 0
      %2529 = vmatpush1.bf16.msra.mxu0 0
      %2530 = vmatprep.subr.bf16.mxu0 0
      %2531 = vmatpush1.bf16.msra.mxu0 0
      %2532 = vmatprep.subr.bf16.mxu0 0
      %2533 = vmatpush1.bf16.msra.mxu0 0
      %2534 = vmatprep.mubr.bf16.mxu0 0
      %2535 = vmatmul.mubr.bf16.gmra.mrb[0].mxu0 %v2450
      %v2536 = vpop.f32.mrb[0].mxu0
      %v2537 = vadd.f32 0.0, %v2536
      %v2538 = vpop.f32.mrb[0].mxu0
      %v2539 = vpop.f32.mrb[0].mxu0
      %v2540 = vpop.f32.mrb[0].mxu0
      %2541 = vdwg.mxu0
      %v2542 = vadd.f32 %v2419, %v2496
      %v2543 = vadd.f32 %v2420, %v2498
      %v2544 = vadd.f32 %v2421, %v2537
      %v2545 = vld [vmem:[%s5] sm:$0xf]
      %2547 = vset.pattern.permute.xlu0 0
      %2548 = vperm.xlu0 %2547, %v2545
      %v2549 = vpop.permute.xlu0 %2548
      %v2551 = vmul.f32 %v2542, %v2549
      %v2552 = vmul.f32 %v2543, %v2549
      %v2553 = vmul.f32 %v2544, %v2549
      %s2554 = scalar_lea.vmem %s5, 4
      %v2555 = vld [vmem:[%s2554] sm:$0xf]
      %2557 = vset.pattern.permute.xlu0 0
      %2558 = vperm.xlu0 %2557, %v2555
      %v2559 = vpop.permute.xlu0 %2558
      %v2561 = vadd.f32 %v2551, %v2559
      %v2562 = vadd.f32 %v2552, %v2559
      %v2563 = vadd.f32 %v2553, %v2559
      %v2564 = vmax.f32 %v2561, 0.0
      %v2565 = vmax.f32 %v2562, 0.0
      %v2566 = vmax.f32 %v2563, 0.0
      %v2567 = vld [vmem:[%s7] sm:$0x7]
      %v2569 = vlaneseq
      %v2570 = vshrl.u32 %v2569, 7
      %v2571 = vsub.s32 0, %v2570
      %v2572 = vrot.slane %v2567, %v2571
      %v2573 = vlaneseq
      %v2574 = vshrl.u32 %v2573, 7
      %v2575 = vsub.s32 1, %v2574
      %v2576 = vrot.slane %v2567, %v2575
      %v2577 = vlaneseq
      %v2578 = vshrl.u32 %v2577, 7
      %v2579 = vsub.s32 2, %v2578
      %v2580 = vrot.slane %v2567, %v2579
      %v2584 = vmul.f32 %v2564, %v2572
      %v2585 = vmul.f32 %v2565, %v2576
      %v2586 = vmul.f32 %v2566, %v2580
      %vm2587 = vcmask 1043458
      %vm2588 = vmor %vm2587, %vm352
      %vm2589 = vcmask 865284
      %vm2590 = vmor %vm2589, %vm2588
      %2591 = vst.msk [vmem:[#allocation2] sm:$0x3f] %vm2590, 0
      %v2592 = vpack.c.bf16 %v2584, %v2584
      %v2593 = vpack.c.bf16 %v2585, %v2585
      %v2594 = vpack.c.bf16 %v2586, %v2586
      %v2598 = vcombine.low %v2592, %v2593
      %v2600 = vunpack.c.l.s4 1983009808
      %v2601 = vunpack.c.0.s8 %v2600
      %v2602 = vlaneseq
      %v2603 = vshrl.u32 %v2602, 7
      %v2604 = vsub.s32 %v2601, %v2603
      %v2605 = vrot.slane %v2598, %v2604
      %v2607 = vunpack.c.l.s4 1983009808
      %v2608 = vunpack.c.0.s8 %v2607
      %v2609 = vlaneseq
      %v2610 = vshrl.u32 %v2609, 7
      %v2611 = vsub.s32 %v2608, %v2610
      %v2612 = vrot.slane %v2594, %v2611
      %v2613 = vcombine.low %v2605, %v2612
      %2614 = vrot.lane.b32.xlu0 %v2613, 19
      %v2615 = vpop.permute.xlu0 %2614
      %v2616 = vrot.slane %v2615, 6
      %vm2617 = vcmask 154624
      %v2618 = vsel %vm2617, %v2616, %v2615
      %vm2620 = vcmask 1041560
      %vm2621 = vmor %vm2587, %vm2620
      %vm2622 = vcmask 709636
      %vm2623 = vmor %vm2622, %vm2621
      %2624 = vst.msk [vmem:[#allocation2] sm:$0x3f] %vm2623, %v2618
      %v2625 = vld [vmem:[#allocation2] sm:$0x3f]
      %v2626 = vld [vmem:[%s4] sm:$0x3]
      %s2627 = scalar_lea.vmem %s4, 2
      %v2628 = vld [vmem:[%s2627] sm:$0x3]
      %v2630 = vcombine.high %v2625, %v2625
      %v2632 = vunpack.c.l.s4 1983009808
      %v2633 = vunpack.c.0.s8 %v2632
      %v2634 = vlaneseq
      %v2635 = vshrl.u32 %v2634, 7
      %v2636 = vsub.s32 %v2633, %v2635
      %v2637 = vrot.slane %v2625, %v2636
      %v2639 = vunpack.c.l.s4 1983009808
      %v2640 = vunpack.c.0.s8 %v2639
      %v2641 = vlaneseq
      %v2642 = vshrl.u32 %v2641, 7
      %v2643 = vsub.s32 %v2640, %v2642
      %v2644 = vrot.slane %v2630, %v2643
      %v2645 = vcombine.high %v2637, %v2637
      %2646 = vrot.lane.b32.xlu0 %v2637, 127
      %v2647 = vpop.permute.xlu0 %2646
      %2648 = vrot.lane.b32.xlu0 %v2645, 127
      %v2649 = vpop.permute.xlu0 %2648
      %2650 = vrot.lane.b32.xlu0 %v2644, 127
      %v2651 = vpop.permute.xlu0 %2650
      %v2652 = vsel %vm580, %v2647, %v2649
      %v2653 = vsel %vm580, %v2649, %v2651
      %v2655 = vsel %vm348, %v2628, 0
      %v2658 = vsel %vm352, %v2652, 0
      %v2661 = vsel %vm352, %v2653, 0
      %v2664 = vsel %vm352, %v2651, 0
      %2666 = vmatprep.subr.bf16.mxu0 %v2661
      %2667 = vmatpush1.bf16.msra.mxu0 %v2658
      %2668 = vmatprep.subr.bf16.mxu0 0
      %2669 = vmatpush1.bf16.msra.mxu0 0
      %2670 = vmatprep.subr.bf16.mxu0 0
      %2671 = vmatpush1.bf16.msra.mxu0 0
      %2672 = vmatprep.subr.bf16.mxu0 0
      %2673 = vmatpush1.bf16.msra.mxu0 0
      %2674 = vmatprep.subr.bf16.mxu0 0
      %2675 = vmatpush1.bf16.msra.mxu0 0
      %2676 = vmatprep.subr.bf16.mxu0 0
      %2677 = vmatpush1.bf16.msra.mxu0 0
      %2678 = vmatprep.subr.bf16.mxu0 0
      %2679 = vmatpush1.bf16.msra.mxu0 0
      %2680 = vmatprep.subr.bf16.mxu0 0
      %2681 = vmatpush1.bf16.msra.mxu0 0
      %2682 = vmatprep.subr.bf16.mxu0 0
      %2683 = vmatpush1.bf16.msra.mxu0 0
      %2684 = vmatprep.subr.bf16.mxu0 0
      %2685 = vmatpush1.bf16.msra.mxu0 0
      %2686 = vmatprep.subr.bf16.mxu0 0
      %2687 = vmatpush1.bf16.msra.mxu0 0
      %2688 = vmatprep.subr.bf16.mxu0 0
      %2689 = vmatpush1.bf16.msra.mxu0 0
      %2690 = vmatprep.subr.bf16.mxu0 0
      %2691 = vmatpush1.bf16.msra.mxu0 0
      %2692 = vmatprep.subr.bf16.mxu0 0
      %2693 = vmatpush1.bf16.msra.mxu0 0
      %2694 = vmatprep.subr.bf16.mxu0 0
      %2695 = vmatpush1.bf16.msra.mxu0 0
      %2696 = vmatprep.subr.bf16.mxu0 0
      %2697 = vmatpush1.bf16.msra.mxu0 0
      %2698 = vmatprep.mubr.bf16.mxu0 0
      %2699 = vmatmul.mubr.bf16.gmra.mrb[0].mxu0 %v2655
      %v2700 = vpop.f32.mrb[0].mxu0
      %v2701 = vadd.f32 0.0, %v2700
      %v2702 = vpop.f32.mrb[0].mxu0
      %v2703 = vadd.f32 0.0, %v2702
      %v2704 = vpop.f32.mrb[0].mxu0
      %v2705 = vpop.f32.mrb[0].mxu0
      %2706 = vdwg.mxu0
      %2707 = vmatprep.subr.bf16.mxu0 0
      %2708 = vmatpush1.bf16.msra.mxu0 %v2664
      %2709 = vmatprep.subr.bf16.mxu0 0
      %2710 = vmatpush1.bf16.msra.mxu0 0
      %2711 = vmatprep.subr.bf16.mxu0 0
      %2712 = vmatpush1.bf16.msra.mxu0 0
      %2713 = vmatprep.subr.bf16.mxu0 0
      %2714 = vmatpush1.bf16.msra.mxu0 0
      %2715 = vmatprep.subr.bf16.mxu0 0
      %2716 = vmatpush1.bf16.msra.mxu0 0
      %2717 = vmatprep.subr.bf16.mxu0 0
      %2718 = vmatpush1.bf16.msra.mxu0 0
      %2719 = vmatprep.subr.bf16.mxu0 0
      %2720 = vmatpush1.bf16.msra.mxu0 0
      %2721 = vmatprep.subr.bf16.mxu0 0
      %2722 = vmatpush1.bf16.msra.mxu0 0
      %2723 = vmatprep.subr.bf16.mxu0 0
      %2724 = vmatpush1.bf16.msra.mxu0 0
      %2725 = vmatprep.subr.bf16.mxu0 0
      %2726 = vmatpush1.bf16.msra.mxu0 0
      %2727 = vmatprep.subr.bf16.mxu0 0
      %2728 = vmatpush1.bf16.msra.mxu0 0
      %2729 = vmatprep.subr.bf16.mxu0 0
      %2730 = vmatpush1.bf16.msra.mxu0 0
      %2731 = vmatprep.subr.bf16.mxu0 0
      %2732 = vmatpush1.bf16.msra.mxu0 0
      %2733 = vmatprep.subr.bf16.mxu0 0
      %2734 = vmatpush1.bf16.msra.mxu0 0
      %2735 = vmatprep.subr.bf16.mxu0 0
      %2736 = vmatpush1.bf16.msra.mxu0 0
      %2737 = vmatprep.subr.bf16.mxu0 0
      %2738 = vmatpush1.bf16.msra.mxu0 0
      %2739 = vmatprep.mubr.bf16.mxu0 0
      %2740 = vmatmul.mubr.bf16.gmra.mrb[0].mxu0 %v2655
      %v2741 = vpop.f32.mrb[0].mxu0
      %v2742 = vadd.f32 0.0, %v2741
      %v2743 = vpop.f32.mrb[0].mxu0
      %v2744 = vpop.f32.mrb[0].mxu0
      %v2745 = vpop.f32.mrb[0].mxu0
      %2746 = vdwg.mxu0
      %v2748 = vsel %vm348, %v2626, 0
      %v2751 = vsel %vm352, %v2637, 0
      %v2754 = vsel %vm352, %v2645, 0
      %v2757 = vsel %vm352, %v2644, 0
      %2759 = vmatprep.subr.bf16.mxu0 %v2754
      %2760 = vmatpush1.bf16.msra.mxu0 %v2751
      %2761 = vmatprep.subr.bf16.mxu0 0
      %2762 = vmatpush1.bf16.msra.mxu0 0
      %2763 = vmatprep.subr.bf16.mxu0 0
      %2764 = vmatpush1.bf16.msra.mxu0 0
      %2765 = vmatprep.subr.bf16.mxu0 0
      %2766 = vmatpush1.bf16.msra.mxu0 0
      %2767 = vmatprep.subr.bf16.mxu0 0
      %2768 = vmatpush1.bf16.msra.mxu0 0
      %2769 = vmatprep.subr.bf16.mxu0 0
      %2770 = vmatpush1.bf16.msra.mxu0 0
      %2771 = vmatprep.subr.bf16.mxu0 0
      %2772 = vmatpush1.bf16.msra.mxu0 0
      %2773 = vmatprep.subr.bf16.mxu0 0
      %2774 = vmatpush1.bf16.msra.mxu0 0
      %2775 = vmatprep.subr.bf16.mxu0 0
      %2776 = vmatpush1.bf16.msra.mxu0 0
      %2777 = vmatprep.subr.bf16.mxu0 0
      %2778 = vmatpush1.bf16.msra.mxu0 0
      %2779 = vmatprep.subr.bf16.mxu0 0
      %2780 = vmatpush1.bf16.msra.mxu0 0
      %2781 = vmatprep.subr.bf16.mxu0 0
      %2782 = vmatpush1.bf16.msra.mxu0 0
      %2783 = vmatprep.subr.bf16.mxu0 0
      %2784 = vmatpush1.bf16.msra.mxu0 0
      %2785 = vmatprep.subr.bf16.mxu0 0
      %2786 = vmatpush1.bf16.msra.mxu0 0
      %2787 = vmatprep.subr.bf16.mxu0 0
      %2788 = vmatpush1.bf16.msra.mxu0 0
      %2789 = vmatprep.subr.bf16.mxu0 0
      %2790 = vmatpush1.bf16.msra.mxu0 0
      %2791 = vmatprep.mubr.bf16.mxu0 0
      %2792 = vmatmul.mubr.bf16.gmra.mrb[0].mxu0 %v2748
      %v2793 = vpop.f32.mrb[0].mxu0
      %v2794 = vadd.f32 %v2701, %v2793
      %v2795 = vpop.f32.mrb[0].mxu0
      %v2796 = vadd.f32 %v2703, %v2795
      %v2797 = vpop.f32.mrb[0].mxu0
      %v2798 = vpop.f32.mrb[0].mxu0
      %2799 = vdwg.mxu0
      %2800 = vmatprep.subr.bf16.mxu0 0
      %2801 = vmatpush1.bf16.msra.mxu0 %v2757
      %2802 = vmatprep.subr.bf16.mxu0 0
      %2803 = vmatpush1.bf16.msra.mxu0 0
      %2804 = vmatprep.subr.bf16.mxu0 0
      %2805 = vmatpush1.bf16.msra.mxu0 0
      %2806 = vmatprep.subr.bf16.mxu0 0
      %2807 = vmatpush1.bf16.msra.mxu0 0
      %2808 = vmatprep.subr.bf16.mxu0 0
      %2809 = vmatpush1.bf16.msra.mxu0 0
      %2810 = vmatprep.subr.bf16.mxu0 0
      %2811 = vmatpush1.bf16.msra.mxu0 0
      %2812 = vmatprep.subr.bf16.mxu0 0
      %2813 = vmatpush1.bf16.msra.mxu0 0
      %2814 = vmatprep.subr.bf16.mxu0 0
      %2815 = vmatpush1.bf16.msra.mxu0 0
      %2816 = vmatprep.subr.bf16.mxu0 0
      %2817 = vmatpush1.bf16.msra.mxu0 0
      %2818 = vmatprep.subr.bf16.mxu0 0
      %2819 = vmatpush1.bf16.msra.mxu0 0
      %2820 = vmatprep.subr.bf16.mxu0 0
      %2821 = vmatpush1.bf16.msra.mxu0 0
      %2822 = vmatprep.subr.bf16.mxu0 0
      %2823 = vmatpush1.bf16.msra.mxu0 0
      %2824 = vmatprep.subr.bf16.mxu0 0
      %2825 = vmatpush1.bf16.msra.mxu0 0
      %2826 = vmatprep.subr.bf16.mxu0 0
      %2827 = vmatpush1.bf16.msra.mxu0 0
      %2828 = vmatprep.subr.bf16.mxu0 0
      %2829 = vmatpush1.bf16.msra.mxu0 0
      %2830 = vmatprep.subr.bf16.mxu0 0
      %2831 = vmatpush1.bf16.msra.mxu0 0
      %2832 = vmatprep.mubr.bf16.mxu0 0
      %2833 = vmatmul.mubr.bf16.gmra.mrb[0].mxu0 %v2748
      %v2834 = vpop.f32.mrb[0].mxu0
      %v2835 = vadd.f32 %v2742, %v2834
      %v2836 = vpop.f32.mrb[0].mxu0
      %v2837 = vpop.f32.mrb[0].mxu0
      %v2838 = vpop.f32.mrb[0].mxu0
      %2839 = vdwg.mxu0
      %v2840 = vld [vmem:[#allocation2] sm:$0x3f]
      %s2841 = scalar_lea.vmem %s4, 4
      %v2842 = vld [vmem:[%s2841] sm:$0x3]
      %v2844 = vcombine.high %v2840, %v2840
      %v2846 = vunpack.c.l.s4 1983009808
      %v2847 = vunpack.c.0.s8 %v2846
      %v2848 = vlaneseq
      %v2849 = vshrl.u32 %v2848, 7
      %v2850 = vsub.s32 %v2847, %v2849
      %v2851 = vrot.slane %v2840, %v2850
      %v2853 = vunpack.c.l.s4 1983009808
      %v2854 = vunpack.c.0.s8 %v2853
      %v2855 = vlaneseq
      %v2856 = vshrl.u32 %v2855, 7
      %v2857 = vsub.s32 %v2854, %v2856
      %v2858 = vrot.slane %v2844, %v2857
      %v2859 = vcombine.high %v2851, %v2851
      %2860 = vrot.lane.b32.xlu0 %v2851, 126
      %v2861 = vpop.permute.xlu0 %2860
      %2862 = vrot.lane.b32.xlu0 %v2859, 126
      %v2863 = vpop.permute.xlu0 %2862
      %2864 = vrot.lane.b32.xlu0 %v2858, 126
      %v2865 = vpop.permute.xlu0 %2864
      %v2866 = vsel %vm829, %v2861, %v2863
      %v2867 = vsel %vm829, %v2863, %v2865
      %v2869 = vsel %vm348, %v2842, 0
      %v2872 = vsel %vm352, %v2866, 0
      %v2875 = vsel %vm352, %v2867, 0
      %v2878 = vsel %vm352, %v2865, 0
      %2880 = vmatprep.subr.bf16.mxu0 %v2875
      %2881 = vmatpush1.bf16.msra.mxu0 %v2872
      %2882 = vmatprep.subr.bf16.mxu0 0
      %2883 = vmatpush1.bf16.msra.mxu0 0
      %2884 = vmatprep.subr.bf16.mxu0 0
      %2885 = vmatpush1.bf16.msra.mxu0 0
      %2886 = vmatprep.subr.bf16.mxu0 0
      %2887 = vmatpush1.bf16.msra.mxu0 0
      %2888 = vmatprep.subr.bf16.mxu0 0
      %2889 = vmatpush1.bf16.msra.mxu0 0
      %2890 = vmatprep.subr.bf16.mxu0 0
      %2891 = vmatpush1.bf16.msra.mxu0 0
      %2892 = vmatprep.subr.bf16.mxu0 0
      %2893 = vmatpush1.bf16.msra.mxu0 0
      %2894 = vmatprep.subr.bf16.mxu0 0
      %2895 = vmatpush1.bf16.msra.mxu0 0
      %2896 = vmatprep.subr.bf16.mxu0 0
      %2897 = vmatpush1.bf16.msra.mxu0 0
      %2898 = vmatprep.subr.bf16.mxu0 0
      %2899 = vmatpush1.bf16.msra.mxu0 0
      %2900 = vmatprep.subr.bf16.mxu0 0
      %2901 = vmatpush1.bf16.msra.mxu0 0
      %2902 = vmatprep.subr.bf16.mxu0 0
      %2903 = vmatpush1.bf16.msra.mxu0 0
      %2904 = vmatprep.subr.bf16.mxu0 0
      %2905 = vmatpush1.bf16.msra.mxu0 0
      %2906 = vmatprep.subr.bf16.mxu0 0
      %2907 = vmatpush1.bf16.msra.mxu0 0
      %2908 = vmatprep.subr.bf16.mxu0 0
      %2909 = vmatpush1.bf16.msra.mxu0 0
      %2910 = vmatprep.subr.bf16.mxu0 0
      %2911 = vmatpush1.bf16.msra.mxu0 0
      %2912 = vmatprep.mubr.bf16.mxu0 0
      %2913 = vmatmul.mubr.bf16.gmra.mrb[0].mxu0 %v2869
      %v2914 = vpop.f32.mrb[0].mxu0
      %v2915 = vadd.f32 0.0, %v2914
      %v2916 = vpop.f32.mrb[0].mxu0
      %v2917 = vadd.f32 0.0, %v2916
      %v2918 = vpop.f32.mrb[0].mxu0
      %v2919 = vpop.f32.mrb[0].mxu0
      %2920 = vdwg.mxu0
      %2921 = vmatprep.subr.bf16.mxu0 0
      %2922 = vmatpush1.bf16.msra.mxu0 %v2878
      %2923 = vmatprep.subr.bf16.mxu0 0
      %2924 = vmatpush1.bf16.msra.mxu0 0
      %2925 = vmatprep.subr.bf16.mxu0 0
      %2926 = vmatpush1.bf16.msra.mxu0 0
      %2927 = vmatprep.subr.bf16.mxu0 0
      %2928 = vmatpush1.bf16.msra.mxu0 0
      %2929 = vmatprep.subr.bf16.mxu0 0
      %2930 = vmatpush1.bf16.msra.mxu0 0
      %2931 = vmatprep.subr.bf16.mxu0 0
      %2932 = vmatpush1.bf16.msra.mxu0 0
      %2933 = vmatprep.subr.bf16.mxu0 0
      %2934 = vmatpush1.bf16.msra.mxu0 0
      %2935 = vmatprep.subr.bf16.mxu0 0
      %2936 = vmatpush1.bf16.msra.mxu0 0
      %2937 = vmatprep.subr.bf16.mxu0 0
      %2938 = vmatpush1.bf16.msra.mxu0 0
      %2939 = vmatprep.subr.bf16.mxu0 0
      %2940 = vmatpush1.bf16.msra.mxu0 0
      %2941 = vmatprep.subr.bf16.mxu0 0
      %2942 = vmatpush1.bf16.msra.mxu0 0
      %2943 = vmatprep.subr.bf16.mxu0 0
      %2944 = vmatpush1.bf16.msra.mxu0 0
      %2945 = vmatprep.subr.bf16.mxu0 0
      %2946 = vmatpush1.bf16.msra.mxu0 0
      %2947 = vmatprep.subr.bf16.mxu0 0
      %2948 = vmatpush1.bf16.msra.mxu0 0
      %2949 = vmatprep.subr.bf16.mxu0 0
      %2950 = vmatpush1.bf16.msra.mxu0 0
      %2951 = vmatprep.subr.bf16.mxu0 0
      %2952 = vmatpush1.bf16.msra.mxu0 0
      %2953 = vmatprep.mubr.bf16.mxu0 0
      %2954 = vmatmul.mubr.bf16.gmra.mrb[0].mxu0 %v2869
      %v2955 = vpop.f32.mrb[0].mxu0
      %v2956 = vadd.f32 0.0, %v2955
      %v2957 = vpop.f32.mrb[0].mxu0
      %v2958 = vpop.f32.mrb[0].mxu0
      %v2959 = vpop.f32.mrb[0].mxu0
      %2960 = vdwg.mxu0
      %v2961 = vadd.f32 %v2794, %v2915
      %v2962 = vadd.f32 %v2796, %v2917
      %v2963 = vadd.f32 %v2835, %v2956
      %v2964 = vld [vmem:[#allocation2] sm:$0x3f]
      %s2965 = scalar_lea.vmem %s4, 6
      %v2966 = vld [vmem:[%s2965] sm:$0x3]
      %v2968 = vcombine.high %v2964, %v2964
      %v2970 = vunpack.c.l.s4 1983009808
      %v2971 = vunpack.c.0.s8 %v2970
      %v2972 = vlaneseq
      %v2973 = vshrl.u32 %v2972, 7
      %v2974 = vsub.s32 %v2971, %v2973
      %v2975 = vrot.slane %v2964, %v2974
      %v2977 = vunpack.c.l.s4 1983009808
      %v2978 = vunpack.c.0.s8 %v2977
      %v2979 = vlaneseq
      %v2980 = vshrl.u32 %v2979, 7
      %v2981 = vsub.s32 %v2978, %v2980
      %v2982 = vrot.slane %v2968, %v2981
      %v2983 = vcombine.high %v2975, %v2975
      %2984 = vrot.lane.b32.xlu0 %v2975, 110
      %v2985 = vpop.permute.xlu0 %2984
      %2986 = vrot.lane.b32.xlu0 %v2983, 110
      %v2987 = vpop.permute.xlu0 %2986
      %2988 = vrot.lane.b32.xlu0 %v2982, 110
      %v2989 = vpop.permute.xlu0 %2988
      %v2990 = vsel %vm1078, %v2985, %v2987
      %v2991 = vsel %vm1078, %v2987, %v2989
      %v2993 = vsel %vm348, %v2966, 0
      %v2996 = vsel %vm352, %v2990, 0
      %v2999 = vsel %vm352, %v2991, 0
      %v3002 = vsel %vm352, %v2989, 0
      %3004 = vmatprep.subr.bf16.mxu0 %v2999
      %3005 = vmatpush1.bf16.msra.mxu0 %v2996
      %3006 = vmatprep.subr.bf16.mxu0 0
      %3007 = vmatpush1.bf16.msra.mxu0 0
      %3008 = vmatprep.subr.bf16.mxu0 0
      %3009 = vmatpush1.bf16.msra.mxu0 0
      %3010 = vmatprep.subr.bf16.mxu0 0
      %3011 = vmatpush1.bf16.msra.mxu0 0
      %3012 = vmatprep.subr.bf16.mxu0 0
      %3013 = vmatpush1.bf16.msra.mxu0 0
      %3014 = vmatprep.subr.bf16.mxu0 0
      %3015 = vmatpush1.bf16.msra.mxu0 0
      %3016 = vmatprep.subr.bf16.mxu0 0
      %3017 = vmatpush1.bf16.msra.mxu0 0
      %3018 = vmatprep.subr.bf16.mxu0 0
      %3019 = vmatpush1.bf16.msra.mxu0 0
      %3020 = vmatprep.subr.bf16.mxu0 0
      %3021 = vmatpush1.bf16.msra.mxu0 0
      %3022 = vmatprep.subr.bf16.mxu0 0
      %3023 = vmatpush1.bf16.msra.mxu0 0
      %3024 = vmatprep.subr.bf16.mxu0 0
      %3025 = vmatpush1.bf16.msra.mxu0 0
      %3026 = vmatprep.subr.bf16.mxu0 0
      %3027 = vmatpush1.bf16.msra.mxu0 0
      %3028 = vmatprep.subr.bf16.mxu0 0
      %3029 = vmatpush1.bf16.msra.mxu0 0
      %3030 = vmatprep.subr.bf16.mxu0 0
      %3031 = vmatpush1.bf16.msra.mxu0 0
      %3032 = vmatprep.subr.bf16.mxu0 0
      %3033 = vmatpush1.bf16.msra.mxu0 0
      %3034 = vmatprep.subr.bf16.mxu0 0
      %3035 = vmatpush1.bf16.msra.mxu0 0
      %3036 = vmatprep.mubr.bf16.mxu0 0
      %3037 = vmatmul.mubr.bf16.gmra.mrb[0].mxu0 %v2993
      %v3038 = vpop.f32.mrb[0].mxu0
      %v3039 = vadd.f32 0.0, %v3038
      %v3040 = vpop.f32.mrb[0].mxu0
      %v3041 = vadd.f32 0.0, %v3040
      %v3042 = vpop.f32.mrb[0].mxu0
      %v3043 = vpop.f32.mrb[0].mxu0
      %3044 = vdwg.mxu0
      %3045 = vmatprep.subr.bf16.mxu0 0
      %3046 = vmatpush1.bf16.msra.mxu0 %v3002
      %3047 = vmatprep.subr.bf16.mxu0 0
      %3048 = vmatpush1.bf16.msra.mxu0 0
      %3049 = vmatprep.subr.bf16.mxu0 0
      %3050 = vmatpush1.bf16.msra.mxu0 0
      %3051 = vmatprep.subr.bf16.mxu0 0
      %3052 = vmatpush1.bf16.msra.mxu0 0
      %3053 = vmatprep.subr.bf16.mxu0 0
      %3054 = vmatpush1.bf16.msra.mxu0 0
      %3055 = vmatprep.subr.bf16.mxu0 0
      %3056 = vmatpush1.bf16.msra.mxu0 0
      %3057 = vmatprep.subr.bf16.mxu0 0
      %3058 = vmatpush1.bf16.msra.mxu0 0
      %3059 = vmatprep.subr.bf16.mxu0 0
      %3060 = vmatpush1.bf16.msra.mxu0 0
      %3061 = vmatprep.subr.bf16.mxu0 0
      %3062 = vmatpush1.bf16.msra.mxu0 0
      %3063 = vmatprep.subr.bf16.mxu0 0
      %3064 = vmatpush1.bf16.msra.mxu0 0
      %3065 = vmatprep.subr.bf16.mxu0 0
      %3066 = vmatpush1.bf16.msra.mxu0 0
      %3067 = vmatprep.subr.bf16.mxu0 0
      %3068 = vmatpush1.bf16.msra.mxu0 0
      %3069 = vmatprep.subr.bf16.mxu0 0
      %3070 = vmatpush1.bf16.msra.mxu0 0
      %3071 = vmatprep.subr.bf16.mxu0 0
      %3072 = vmatpush1.bf16.msra.mxu0 0
      %3073 = vmatprep.subr.bf16.mxu0 0
      %3074 = vmatpush1.bf16.msra.mxu0 0
      %3075 = vmatprep.subr.bf16.mxu0 0
      %3076 = vmatpush1.bf16.msra.mxu0 0
      %3077 = vmatprep.mubr.bf16.mxu0 0
      %3078 = vmatmul.mubr.bf16.gmra.mrb[0].mxu0 %v2993
      %v3079 = vpop.f32.mrb[0].mxu0
      %v3080 = vadd.f32 0.0, %v3079
      %v3081 = vpop.f32.mrb[0].mxu0
      %v3082 = vpop.f32.mrb[0].mxu0
      %v3083 = vpop.f32.mrb[0].mxu0
      %3084 = vdwg.mxu0
      %v3085 = vadd.f32 %v2961, %v3039
      %v3086 = vadd.f32 %v2962, %v3041
      %v3087 = vadd.f32 %v2963, %v3080
      %v3088 = vld [vmem:[#allocation2] sm:$0x3f]
      %s3089 = scalar_lea.vmem %s4, 8
      %v3090 = vld [vmem:[%s3089] sm:$0x3]
      %v3092 = vcombine.high %v3088, %v3088
      %v3094 = vunpack.c.l.s4 1983009808
      %v3095 = vunpack.c.0.s8 %v3094
      %v3096 = vlaneseq
      %v3097 = vshrl.u32 %v3096, 7
      %v3098 = vsub.s32 %v3095, %v3097
      %v3099 = vrot.slane %v3088, %v3098
      %v3101 = vunpack.c.l.s4 1983009808
      %v3102 = vunpack.c.0.s8 %v3101
      %v3103 = vlaneseq
      %v3104 = vshrl.u32 %v3103, 7
      %v3105 = vsub.s32 %v3102, %v3104
      %v3106 = vrot.slane %v3092, %v3105
      %v3107 = vcombine.high %v3099, %v3099
      %3108 = vrot.lane.b32.xlu0 %v3099, 109
      %v3109 = vpop.permute.xlu0 %3108
      %3110 = vrot.lane.b32.xlu0 %v3107, 109
      %v3111 = vpop.permute.xlu0 %3110
      %3112 = vrot.lane.b32.xlu0 %v3106, 109
      %v3113 = vpop.permute.xlu0 %3112
      %v3114 = vsel %vm1327, %v3109, %v3111
      %v3115 = vsel %vm1327, %v3111, %v3113
      %v3117 = vsel %vm348, %v3090, 0
      %v3120 = vsel %vm352, %v3114, 0
      %v3123 = vsel %vm352, %v3115, 0
      %v3126 = vsel %vm352, %v3113, 0
      %3128 = vmatprep.subr.bf16.mxu0 %v3123
      %3129 = vmatpush1.bf16.msra.mxu0 %v3120
      %3130 = vmatprep.subr.bf16.mxu0 0
      %3131 = vmatpush1.bf16.msra.mxu0 0
      %3132 = vmatprep.subr.bf16.mxu0 0
      %3133 = vmatpush1.bf16.msra.mxu0 0
      %3134 = vmatprep.subr.bf16.mxu0 0
      %3135 = vmatpush1.bf16.msra.mxu0 0
      %3136 = vmatprep.subr.bf16.mxu0 0
      %3137 = vmatpush1.bf16.msra.mxu0 0
      %3138 = vmatprep.subr.bf16.mxu0 0
      %3139 = vmatpush1.bf16.msra.mxu0 0
      %3140 = vmatprep.subr.bf16.mxu0 0
      %3141 = vmatpush1.bf16.msra.mxu0 0
      %3142 = vmatprep.subr.bf16.mxu0 0
      %3143 = vmatpush1.bf16.msra.mxu0 0
      %3144 = vmatprep.subr.bf16.mxu0 0
      %3145 = vmatpush1.bf16.msra.mxu0 0
      %3146 = vmatprep.subr.bf16.mxu0 0
      %3147 = vmatpush1.bf16.msra.mxu0 0
      %3148 = vmatprep.subr.bf16.mxu0 0
      %3149 = vmatpush1.bf16.msra.mxu0 0
      %3150 = vmatprep.subr.bf16.mxu0 0
      %3151 = vmatpush1.bf16.msra.mxu0 0
      %3152 = vmatprep.subr.bf16.mxu0 0
      %3153 = vmatpush1.bf16.msra.mxu0 0
      %3154 = vmatprep.subr.bf16.mxu0 0
      %3155 = vmatpush1.bf16.msra.mxu0 0
      %3156 = vmatprep.subr.bf16.mxu0 0
      %3157 = vmatpush1.bf16.msra.mxu0 0
      %3158 = vmatprep.subr.bf16.mxu0 0
      %3159 = vmatpush1.bf16.msra.mxu0 0
      %3160 = vmatprep.mubr.bf16.mxu0 0
      %3161 = vmatmul.mubr.bf16.gmra.mrb[0].mxu0 %v3117
      %v3162 = vpop.f32.mrb[0].mxu0
      %v3163 = vadd.f32 0.0, %v3162
      %v3164 = vpop.f32.mrb[0].mxu0
      %v3165 = vadd.f32 0.0, %v3164
      %v3166 = vpop.f32.mrb[0].mxu0
      %v3167 = vpop.f32.mrb[0].mxu0
      %3168 = vdwg.mxu0
      %3169 = vmatprep.subr.bf16.mxu0 0
      %3170 = vmatpush1.bf16.msra.mxu0 %v3126
      %3171 = vmatprep.subr.bf16.mxu0 0
      %3172 = vmatpush1.bf16.msra.mxu0 0
      %3173 = vmatprep.subr.bf16.mxu0 0
      %3174 = vmatpush1.bf16.msra.mxu0 0
      %3175 = vmatprep.subr.bf16.mxu0 0
      %3176 = vmatpush1.bf16.msra.mxu0 0
      %3177 = vmatprep.subr.bf16.mxu0 0
      %3178 = vmatpush1.bf16.msra.mxu0 0
      %3179 = vmatprep.subr.bf16.mxu0 0
      %3180 = vmatpush1.bf16.msra.mxu0 0
      %3181 = vmatprep.subr.bf16.mxu0 0
      %3182 = vmatpush1.bf16.msra.mxu0 0
      %3183 = vmatprep.subr.bf16.mxu0 0
      %3184 = vmatpush1.bf16.msra.mxu0 0
      %3185 = vmatprep.subr.bf16.mxu0 0
      %3186 = vmatpush1.bf16.msra.mxu0 0
      %3187 = vmatprep.subr.bf16.mxu0 0
      %3188 = vmatpush1.bf16.msra.mxu0 0
      %3189 = vmatprep.subr.bf16.mxu0 0
      %3190 = vmatpush1.bf16.msra.mxu0 0
      %3191 = vmatprep.subr.bf16.mxu0 0
      %3192 = vmatpush1.bf16.msra.mxu0 0
      %3193 = vmatprep.subr.bf16.mxu0 0
      %3194 = vmatpush1.bf16.msra.mxu0 0
      %3195 = vmatprep.subr.bf16.mxu0 0
      %3196 = vmatpush1.bf16.msra.mxu0 0
      %3197 = vmatprep.subr.bf16.mxu0 0
      %3198 = vmatpush1.bf16.msra.mxu0 0
      %3199 = vmatprep.subr.bf16.mxu0 0
      %3200 = vmatpush1.bf16.msra.mxu0 0
      %3201 = vmatprep.mubr.bf16.mxu0 0
      %3202 = vmatmul.mubr.bf16.gmra.mrb[0].mxu0 %v3117
      %v3203 = vpop.f32.mrb[0].mxu0
      %v3204 = vadd.f32 0.0, %v3203
      %v3205 = vpop.f32.mrb[0].mxu0
      %v3206 = vpop.f32.mrb[0].mxu0
      %v3207 = vpop.f32.mrb[0].mxu0
      %3208 = vdwg.mxu0
      %v3209 = vadd.f32 %v3085, %v3163
      %v3210 = vadd.f32 %v3086, %v3165
      %v3211 = vadd.f32 %v3087, %v3204
      %v3212 = vld [vmem:[#allocation2] sm:$0x3f]
      %s3213 = scalar_lea.vmem %s4, 10
      %v3214 = vld [vmem:[%s3213] sm:$0x3]
      %v3216 = vcombine.high %v3212, %v3212
      %v3218 = vunpack.c.l.s4 1983009808
      %v3219 = vunpack.c.0.s8 %v3218
      %v3220 = vlaneseq
      %v3221 = vshrl.u32 %v3220, 7
      %v3222 = vsub.s32 %v3219, %v3221
      %v3223 = vrot.slane %v3212, %v3222
      %v3225 = vunpack.c.l.s4 1983009808
      %v3226 = vunpack.c.0.s8 %v3225
      %v3227 = vlaneseq
      %v3228 = vshrl.u32 %v3227, 7
      %v3229 = vsub.s32 %v3226, %v3228
      %v3230 = vrot.slane %v3216, %v3229
      %v3231 = vcombine.high %v3223, %v3223
      %3232 = vrot.lane.b32.xlu0 %v3223, 108
      %v3233 = vpop.permute.xlu0 %3232
      %3234 = vrot.lane.b32.xlu0 %v3231, 108
      %v3235 = vpop.permute.xlu0 %3234
      %3236 = vrot.lane.b32.xlu0 %v3230, 108
      %v3237 = vpop.permute.xlu0 %3236
      %v3238 = vsel %vm1576, %v3233, %v3235
      %v3239 = vsel %vm1576, %v3235, %v3237
      %v3241 = vsel %vm348, %v3214, 0
      %v3244 = vsel %vm352, %v3238, 0
      %v3247 = vsel %vm352, %v3239, 0
      %v3250 = vsel %vm352, %v3237, 0
      %3252 = vmatprep.subr.bf16.mxu0 %v3247
      %3253 = vmatpush1.bf16.msra.mxu0 %v3244
      %3254 = vmatprep.subr.bf16.mxu0 0
      %3255 = vmatpush1.bf16.msra.mxu0 0
      %3256 = vmatprep.subr.bf16.mxu0 0
      %3257 = vmatpush1.bf16.msra.mxu0 0
      %3258 = vmatprep.subr.bf16.mxu0 0
      %3259 = vmatpush1.bf16.msra.mxu0 0
      %3260 = vmatprep.subr.bf16.mxu0 0
      %3261 = vmatpush1.bf16.msra.mxu0 0
      %3262 = vmatprep.subr.bf16.mxu0 0
      %3263 = vmatpush1.bf16.msra.mxu0 0
      %3264 = vmatprep.subr.bf16.mxu0 0
      %3265 = vmatpush1.bf16.msra.mxu0 0
      %3266 = vmatprep.subr.bf16.mxu0 0
      %3267 = vmatpush1.bf16.msra.mxu0 0
      %3268 = vmatprep.subr.bf16.mxu0 0
      %3269 = vmatpush1.bf16.msra.mxu0 0
      %3270 = vmatprep.subr.bf16.mxu0 0
      %3271 = vmatpush1.bf16.msra.mxu0 0
      %3272 = vmatprep.subr.bf16.mxu0 0
      %3273 = vmatpush1.bf16.msra.mxu0 0
      %3274 = vmatprep.subr.bf16.mxu0 0
      %3275 = vmatpush1.bf16.msra.mxu0 0
      %3276 = vmatprep.subr.bf16.mxu0 0
      %3277 = vmatpush1.bf16.msra.mxu0 0
      %3278 = vmatprep.subr.bf16.mxu0 0
      %3279 = vmatpush1.bf16.msra.mxu0 0
      %3280 = vmatprep.subr.bf16.mxu0 0
      %3281 = vmatpush1.bf16.msra.mxu0 0
      %3282 = vmatprep.subr.bf16.mxu0 0
      %3283 = vmatpush1.bf16.msra.mxu0 0
      %3284 = vmatprep.mubr.bf16.mxu0 0
      %3285 = vmatmul.mubr.bf16.gmra.mrb[0].mxu0 %v3241
      %v3286 = vpop.f32.mrb[0].mxu0
      %v3287 = vadd.f32 0.0, %v3286
      %v3288 = vpop.f32.mrb[0].mxu0
      %v3289 = vadd.f32 0.0, %v3288
      %v3290 = vpop.f32.mrb[0].mxu0
      %v3291 = vpop.f32.mrb[0].mxu0
      %3292 = vdwg.mxu0
      %3293 = vmatprep.subr.bf16.mxu0 0
      %3294 = vmatpush1.bf16.msra.mxu0 %v3250
      %3295 = vmatprep.subr.bf16.mxu0 0
      %3296 = vmatpush1.bf16.msra.mxu0 0
      %3297 = vmatprep.subr.bf16.mxu0 0
      %3298 = vmatpush1.bf16.msra.mxu0 0
      %3299 = vmatprep.subr.bf16.mxu0 0
      %3300 = vmatpush1.bf16.msra.mxu0 0
      %3301 = vmatprep.subr.bf16.mxu0 0
      %3302 = vmatpush1.bf16.msra.mxu0 0
      %3303 = vmatprep.subr.bf16.mxu0 0
      %3304 = vmatpush1.bf16.msra.mxu0 0
      %3305 = vmatprep.subr.bf16.mxu0 0
      %3306 = vmatpush1.bf16.msra.mxu0 0
      %3307 = vmatprep.subr.bf16.mxu0 0
      %3308 = vmatpush1.bf16.msra.mxu0 0
      %3309 = vmatprep.subr.bf16.mxu0 0
      %3310 = vmatpush1.bf16.msra.mxu0 0
      %3311 = vmatprep.subr.bf16.mxu0 0
      %3312 = vmatpush1.bf16.msra.mxu0 0
      %3313 = vmatprep.subr.bf16.mxu0 0
      %3314 = vmatpush1.bf16.msra.mxu0 0
      %3315 = vmatprep.subr.bf16.mxu0 0
      %3316 = vmatpush1.bf16.msra.mxu0 0
      %3317 = vmatprep.subr.bf16.mxu0 0
      %3318 = vmatpush1.bf16.msra.mxu0 0
      %3319 = vmatprep.subr.bf16.mxu0 0
      %3320 = vmatpush1.bf16.msra.mxu0 0
      %3321 = vmatprep.subr.bf16.mxu0 0
      %3322 = vmatpush1.bf16.msra.mxu0 0
      %3323 = vmatprep.subr.bf16.mxu0 0
      %3324 = vmatpush1.bf16.msra.mxu0 0
      %3325 = vmatprep.mubr.bf16.mxu0 0
      %3326 = vmatmul.mubr.bf16.gmra.mrb[0].mxu0 %v3241
      %v3327 = vpop.f32.mrb[0].mxu0
      %v3328 = vadd.f32 0.0, %v3327
      %v3329 = vpop.f32.mrb[0].mxu0
      %v3330 = vpop.f32.mrb[0].mxu0
      %v3331 = vpop.f32.mrb[0].mxu0
      %3332 = vdwg.mxu0
      %v3333 = vadd.f32 %v3209, %v3287
      %v3334 = vadd.f32 %v3210, %v3289
      %v3335 = vadd.f32 %v3211, %v3328
      %v3336 = vld [vmem:[#allocation2] sm:$0x3f]
      %s3337 = scalar_lea.vmem %s4, 12
      %v3338 = vld [vmem:[%s3337] sm:$0x3]
      %v3340 = vcombine.high %v3336, %v3336
      %v3342 = vunpack.c.l.s4 1983009808
      %v3343 = vunpack.c.0.s8 %v3342
      %v3344 = vlaneseq
      %v3345 = vshrl.u32 %v3344, 7
      %v3346 = vsub.s32 %v3343, %v3345
      %v3347 = vrot.slane %v3336, %v3346
      %v3349 = vunpack.c.l.s4 1983009808
      %v3350 = vunpack.c.0.s8 %v3349
      %v3351 = vlaneseq
      %v3352 = vshrl.u32 %v3351, 7
      %v3353 = vsub.s32 %v3350, %v3352
      %v3354 = vrot.slane %v3340, %v3353
      %v3355 = vcombine.high %v3347, %v3347
      %3356 = vrot.lane.b32.xlu0 %v3347, 92
      %v3357 = vpop.permute.xlu0 %3356
      %3358 = vrot.lane.b32.xlu0 %v3355, 92
      %v3359 = vpop.permute.xlu0 %3358
      %3360 = vrot.lane.b32.xlu0 %v3354, 92
      %v3361 = vpop.permute.xlu0 %3360
      %v3362 = vsel %vm1825, %v3357, %v3359
      %v3363 = vsel %vm1825, %v3359, %v3361
      %v3365 = vsel %vm348, %v3338, 0
      %v3368 = vsel %vm352, %v3362, 0
      %v3371 = vsel %vm352, %v3363, 0
      %v3374 = vsel %vm352, %v3361, 0
      %3376 = vmatprep.subr.bf16.mxu0 %v3371
      %3377 = vmatpush1.bf16.msra.mxu0 %v3368
      %3378 = vmatprep.subr.bf16.mxu0 0
      %3379 = vmatpush1.bf16.msra.mxu0 0
      %3380 = vmatprep.subr.bf16.mxu0 0
      %3381 = vmatpush1.bf16.msra.mxu0 0
      %3382 = vmatprep.subr.bf16.mxu0 0
      %3383 = vmatpush1.bf16.msra.mxu0 0
      %3384 = vmatprep.subr.bf16.mxu0 0
      %3385 = vmatpush1.bf16.msra.mxu0 0
      %3386 = vmatprep.subr.bf16.mxu0 0
      %3387 = vmatpush1.bf16.msra.mxu0 0
      %3388 = vmatprep.subr.bf16.mxu0 0
      %3389 = vmatpush1.bf16.msra.mxu0 0
      %3390 = vmatprep.subr.bf16.mxu0 0
      %3391 = vmatpush1.bf16.msra.mxu0 0
      %3392 = vmatprep.subr.bf16.mxu0 0
      %3393 = vmatpush1.bf16.msra.mxu0 0
      %3394 = vmatprep.subr.bf16.mxu0 0
      %3395 = vmatpush1.bf16.msra.mxu0 0
      %3396 = vmatprep.subr.bf16.mxu0 0
      %3397 = vmatpush1.bf16.msra.mxu0 0
      %3398 = vmatprep.subr.bf16.mxu0 0
      %3399 = vmatpush1.bf16.msra.mxu0 0
      %3400 = vmatprep.subr.bf16.mxu0 0
      %3401 = vmatpush1.bf16.msra.mxu0 0
      %3402 = vmatprep.subr.bf16.mxu0 0
      %3403 = vmatpush1.bf16.msra.mxu0 0
      %3404 = vmatprep.subr.bf16.mxu0 0
      %3405 = vmatpush1.bf16.msra.mxu0 0
      %3406 = vmatprep.subr.bf16.mxu0 0
      %3407 = vmatpush1.bf16.msra.mxu0 0
      %3408 = vmatprep.mubr.bf16.mxu0 0
      %3409 = vmatmul.mubr.bf16.gmra.mrb[0].mxu0 %v3365
      %v3410 = vpop.f32.mrb[0].mxu0
      %v3411 = vadd.f32 0.0, %v3410
      %v3412 = vpop.f32.mrb[0].mxu0
      %v3413 = vadd.f32 0.0, %v3412
      %v3414 = vpop.f32.mrb[0].mxu0
      %v3415 = vpop.f32.mrb[0].mxu0
      %3416 = vdwg.mxu0
      %3417 = vmatprep.subr.bf16.mxu0 0
      %3418 = vmatpush1.bf16.msra.mxu0 %v3374
      %3419 = vmatprep.subr.bf16.mxu0 0
      %3420 = vmatpush1.bf16.msra.mxu0 0
      %3421 = vmatprep.subr.bf16.mxu0 0
      %3422 = vmatpush1.bf16.msra.mxu0 0
      %3423 = vmatprep.subr.bf16.mxu0 0
      %3424 = vmatpush1.bf16.msra.mxu0 0
      %3425 = vmatprep.subr.bf16.mxu0 0
      %3426 = vmatpush1.bf16.msra.mxu0 0
      %3427 = vmatprep.subr.bf16.mxu0 0
      %3428 = vmatpush1.bf16.msra.mxu0 0
      %3429 = vmatprep.subr.bf16.mxu0 0
      %3430 = vmatpush1.bf16.msra.mxu0 0
      %3431 = vmatprep.subr.bf16.mxu0 0
      %3432 = vmatpush1.bf16.msra.mxu0 0
      %3433 = vmatprep.subr.bf16.mxu0 0
      %3434 = vmatpush1.bf16.msra.mxu0 0
      %3435 = vmatprep.subr.bf16.mxu0 0
      %3436 = vmatpush1.bf16.msra.mxu0 0
      %3437 = vmatprep.subr.bf16.mxu0 0
      %3438 = vmatpush1.bf16.msra.mxu0 0
      %3439 = vmatprep.subr.bf16.mxu0 0
      %3440 = vmatpush1.bf16.msra.mxu0 0
      %3441 = vmatprep.subr.bf16.mxu0 0
      %3442 = vmatpush1.bf16.msra.mxu0 0
      %3443 = vmatprep.subr.bf16.mxu0 0
      %3444 = vmatpush1.bf16.msra.mxu0 0
      %3445 = vmatprep.subr.bf16.mxu0 0
      %3446 = vmatpush1.bf16.msra.mxu0 0
      %3447 = vmatprep.subr.bf16.mxu0 0
      %3448 = vmatpush1.bf16.msra.mxu0 0
      %3449 = vmatprep.mubr.bf16.mxu0 0
      %3450 = vmatmul.mubr.bf16.gmra.mrb[0].mxu0 %v3365
      %v3451 = vpop.f32.mrb[0].mxu0
      %v3452 = vadd.f32 0.0, %v3451
      %v3453 = vpop.f32.mrb[0].mxu0
      %v3454 = vpop.f32.mrb[0].mxu0
      %v3455 = vpop.f32.mrb[0].mxu0
      %3456 = vdwg.mxu0
      %v3457 = vadd.f32 %v3333, %v3411
      %v3458 = vadd.f32 %v3334, %v3413
      %v3459 = vadd.f32 %v3335, %v3452
      %v3460 = vld [vmem:[#allocation2] sm:$0x3f]
      %s3461 = scalar_lea.vmem %s4, 14
      %v3462 = vld [vmem:[%s3461] sm:$0x3]
      %v3464 = vcombine.high %v3460, %v3460
      %v3466 = vunpack.c.l.s4 1983009808
      %v3467 = vunpack.c.0.s8 %v3466
      %v3468 = vlaneseq
      %v3469 = vshrl.u32 %v3468, 7
      %v3470 = vsub.s32 %v3467, %v3469
      %v3471 = vrot.slane %v3460, %v3470
      %v3473 = vunpack.c.l.s4 1983009808
      %v3474 = vunpack.c.0.s8 %v3473
      %v3475 = vlaneseq
      %v3476 = vshrl.u32 %v3475, 7
      %v3477 = vsub.s32 %v3474, %v3476
      %v3478 = vrot.slane %v3464, %v3477
      %v3479 = vcombine.high %v3471, %v3471
      %3480 = vrot.lane.b32.xlu0 %v3471, 91
      %v3481 = vpop.permute.xlu0 %3480
      %3482 = vrot.lane.b32.xlu0 %v3479, 91
      %v3483 = vpop.permute.xlu0 %3482
      %3484 = vrot.lane.b32.xlu0 %v3478, 91
      %v3485 = vpop.permute.xlu0 %3484
      %v3486 = vsel %vm2074, %v3481, %v3483
      %v3487 = vsel %vm2074, %v3483, %v3485
      %v3489 = vsel %vm348, %v3462, 0
      %v3492 = vsel %vm352, %v3486, 0
      %v3495 = vsel %vm352, %v3487, 0
      %v3498 = vsel %vm352, %v3485, 0
      %3500 = vmatprep.subr.bf16.mxu0 %v3495
      %3501 = vmatpush1.bf16.msra.mxu0 %v3492
      %3502 = vmatprep.subr.bf16.mxu0 0
      %3503 = vmatpush1.bf16.msra.mxu0 0
      %3504 = vmatprep.subr.bf16.mxu0 0
      %3505 = vmatpush1.bf16.msra.mxu0 0
      %3506 = vmatprep.subr.bf16.mxu0 0
      %3507 = vmatpush1.bf16.msra.mxu0 0
      %3508 = vmatprep.subr.bf16.mxu0 0
      %3509 = vmatpush1.bf16.msra.mxu0 0
      %3510 = vmatprep.subr.bf16.mxu0 0
      %3511 = vmatpush1.bf16.msra.mxu0 0
      %3512 = vmatprep.subr.bf16.mxu0 0
      %3513 = vmatpush1.bf16.msra.mxu0 0
      %3514 = vmatprep.subr.bf16.mxu0 0
      %3515 = vmatpush1.bf16.msra.mxu0 0
      %3516 = vmatprep.subr.bf16.mxu0 0
      %3517 = vmatpush1.bf16.msra.mxu0 0
      %3518 = vmatprep.subr.bf16.mxu0 0
      %3519 = vmatpush1.bf16.msra.mxu0 0
      %3520 = vmatprep.subr.bf16.mxu0 0
      %3521 = vmatpush1.bf16.msra.mxu0 0
      %3522 = vmatprep.subr.bf16.mxu0 0
      %3523 = vmatpush1.bf16.msra.mxu0 0
      %3524 = vmatprep.subr.bf16.mxu0 0
      %3525 = vmatpush1.bf16.msra.mxu0 0
      %3526 = vmatprep.subr.bf16.mxu0 0
      %3527 = vmatpush1.bf16.msra.mxu0 0
      %3528 = vmatprep.subr.bf16.mxu0 0
      %3529 = vmatpush1.bf16.msra.mxu0 0
      %3530 = vmatprep.subr.bf16.mxu0 0
      %3531 = vmatpush1.bf16.msra.mxu0 0
      %3532 = vmatprep.mubr.bf16.mxu0 0
      %3533 = vmatmul.mubr.bf16.gmra.mrb[0].mxu0 %v3489
      %v3534 = vpop.f32.mrb[0].mxu0
      %v3535 = vadd.f32 0.0, %v3534
      %v3536 = vpop.f32.mrb[0].mxu0
      %v3537 = vadd.f32 0.0, %v3536
      %v3538 = vpop.f32.mrb[0].mxu0
      %v3539 = vpop.f32.mrb[0].mxu0
      %3540 = vdwg.mxu0
      %3541 = vmatprep.subr.bf16.mxu0 0
      %3542 = vmatpush1.bf16.msra.mxu0 %v3498
      %3543 = vmatprep.subr.bf16.mxu0 0
      %3544 = vmatpush1.bf16.msra.mxu0 0
      %3545 = vmatprep.subr.bf16.mxu0 0
      %3546 = vmatpush1.bf16.msra.mxu0 0
      %3547 = vmatprep.subr.bf16.mxu0 0
      %3548 = vmatpush1.bf16.msra.mxu0 0
      %3549 = vmatprep.subr.bf16.mxu0 0
      %3550 = vmatpush1.bf16.msra.mxu0 0
      %3551 = vmatprep.subr.bf16.mxu0 0
      %3552 = vmatpush1.bf16.msra.mxu0 0
      %3553 = vmatprep.subr.bf16.mxu0 0
      %3554 = vmatpush1.bf16.msra.mxu0 0
      %3555 = vmatprep.subr.bf16.mxu0 0
      %3556 = vmatpush1.bf16.msra.mxu0 0
      %3557 = vmatprep.subr.bf16.mxu0 0
      %3558 = vmatpush1.bf16.msra.mxu0 0
      %3559 = vmatprep.subr.bf16.mxu0 0
      %3560 = vmatpush1.bf16.msra.mxu0 0
      %3561 = vmatprep.subr.bf16.mxu0 0
      %3562 = vmatpush1.bf16.msra.mxu0 0
      %3563 = vmatprep.subr.bf16.mxu0 0
      %3564 = vmatpush1.bf16.msra.mxu0 0
      %3565 = vmatprep.subr.bf16.mxu0 0
      %3566 = vmatpush1.bf16.msra.mxu0 0
      %3567 = vmatprep.subr.bf16.mxu0 0
      %3568 = vmatpush1.bf16.msra.mxu0 0
      %3569 = vmatprep.subr.bf16.mxu0 0
      %3570 = vmatpush1.bf16.msra.mxu0 0
      %3571 = vmatprep.subr.bf16.mxu0 0
      %3572 = vmatpush1.bf16.msra.mxu0 0
      %3573 = vmatprep.mubr.bf16.mxu0 0
      %3574 = vmatmul.mubr.bf16.gmra.mrb[0].mxu0 %v3489
      %v3575 = vpop.f32.mrb[0].mxu0
      %v3576 = vadd.f32 0.0, %v3575
      %v3577 = vpop.f32.mrb[0].mxu0
      %v3578 = vpop.f32.mrb[0].mxu0
      %v3579 = vpop.f32.mrb[0].mxu0
      %3580 = vdwg.mxu0
      %v3581 = vadd.f32 %v3457, %v3535
      %v3582 = vadd.f32 %v3458, %v3537
      %v3583 = vadd.f32 %v3459, %v3576
      %v3584 = vld [vmem:[#allocation2] sm:$0x3f]
      %s3585 = scalar_lea.vmem %s4, 16
      %v3586 = vld [vmem:[%s3585] sm:$0x3]
      %v3588 = vcombine.high %v3584, %v3584
      %v3590 = vunpack.c.l.s4 1983009808
      %v3591 = vunpack.c.0.s8 %v3590
      %v3592 = vlaneseq
      %v3593 = vshrl.u32 %v3592, 7
      %v3594 = vsub.s32 %v3591, %v3593
      %v3595 = vrot.slane %v3584, %v3594
      %v3597 = vunpack.c.l.s4 1983009808
      %v3598 = vunpack.c.0.s8 %v3597
      %v3599 = vlaneseq
      %v3600 = vshrl.u32 %v3599, 7
      %v3601 = vsub.s32 %v3598, %v3600
      %v3602 = vrot.slane %v3588, %v3601
      %v3603 = vcombine.high %v3595, %v3595
      %3604 = vrot.lane.b32.xlu0 %v3595, 90
      %v3605 = vpop.permute.xlu0 %3604
      %3606 = vrot.lane.b32.xlu0 %v3603, 90
      %v3607 = vpop.permute.xlu0 %3606
      %3608 = vrot.lane.b32.xlu0 %v3602, 90
      %v3609 = vpop.permute.xlu0 %3608
      %v3610 = vsel %vm2323, %v3605, %v3607
      %v3611 = vsel %vm2323, %v3607, %v3609
      %v3613 = vsel %vm348, %v3586, 0
      %v3616 = vsel %vm352, %v3610, 0
      %v3619 = vsel %vm352, %v3611, 0
      %v3622 = vsel %vm352, %v3609, 0
      %3624 = vmatprep.subr.bf16.mxu0 %v3619
      %3625 = vmatpush1.bf16.msra.mxu0 %v3616
      %3626 = vmatprep.subr.bf16.mxu0 0
      %3627 = vmatpush1.bf16.msra.mxu0 0
      %3628 = vmatprep.subr.bf16.mxu0 0
      %3629 = vmatpush1.bf16.msra.mxu0 0
      %3630 = vmatprep.subr.bf16.mxu0 0
      %3631 = vmatpush1.bf16.msra.mxu0 0
      %3632 = vmatprep.subr.bf16.mxu0 0
      %3633 = vmatpush1.bf16.msra.mxu0 0
      %3634 = vmatprep.subr.bf16.mxu0 0
      %3635 = vmatpush1.bf16.msra.mxu0 0
      %3636 = vmatprep.subr.bf16.mxu0 0
      %3637 = vmatpush1.bf16.msra.mxu0 0
      %3638 = vmatprep.subr.bf16.mxu0 0
      %3639 = vmatpush1.bf16.msra.mxu0 0
      %3640 = vmatprep.subr.bf16.mxu0 0
      %3641 = vmatpush1.bf16.msra.mxu0 0
      %3642 = vmatprep.subr.bf16.mxu0 0
      %3643 = vmatpush1.bf16.msra.mxu0 0
      %3644 = vmatprep.subr.bf16.mxu0 0
      %3645 = vmatpush1.bf16.msra.mxu0 0
      %3646 = vmatprep.subr.bf16.mxu0 0
      %3647 = vmatpush1.bf16.msra.mxu0 0
      %3648 = vmatprep.subr.bf16.mxu0 0
      %3649 = vmatpush1.bf16.msra.mxu0 0
      %3650 = vmatprep.subr.bf16.mxu0 0
      %3651 = vmatpush1.bf16.msra.mxu0 0
      %3652 = vmatprep.subr.bf16.mxu0 0
      %3653 = vmatpush1.bf16.msra.mxu0 0
      %3654 = vmatprep.subr.bf16.mxu0 0
      %3655 = vmatpush1.bf16.msra.mxu0 0
      %3656 = vmatprep.mubr.bf16.mxu0 0
      %3657 = vmatmul.mubr.bf16.gmra.mrb[0].mxu0 %v3613
      %v3658 = vpop.f32.mrb[0].mxu0
      %v3659 = vadd.f32 0.0, %v3658
      %v3660 = vpop.f32.mrb[0].mxu0
      %v3661 = vadd.f32 0.0, %v3660
      %v3662 = vpop.f32.mrb[0].mxu0
      %v3663 = vpop.f32.mrb[0].mxu0
      %3664 = vdwg.mxu0
      %3665 = vmatprep.subr.bf16.mxu0 0
      %3666 = vmatpush1.bf16.msra.mxu0 %v3622
      %3667 = vmatprep.subr.bf16.mxu0 0
      %3668 = vmatpush1.bf16.msra.mxu0 0
      %3669 = vmatprep.subr.bf16.mxu0 0
      %3670 = vmatpush1.bf16.msra.mxu0 0
      %3671 = vmatprep.subr.bf16.mxu0 0
      %3672 = vmatpush1.bf16.msra.mxu0 0
      %3673 = vmatprep.subr.bf16.mxu0 0
      %3674 = vmatpush1.bf16.msra.mxu0 0
      %3675 = vmatprep.subr.bf16.mxu0 0
      %3676 = vmatpush1.bf16.msra.mxu0 0
      %3677 = vmatprep.subr.bf16.mxu0 0
      %3678 = vmatpush1.bf16.msra.mxu0 0
      %3679 = vmatprep.subr.bf16.mxu0 0
      %3680 = vmatpush1.bf16.msra.mxu0 0
      %3681 = vmatprep.subr.bf16.mxu0 0
      %3682 = vmatpush1.bf16.msra.mxu0 0
      %3683 = vmatprep.subr.bf16.mxu0 0
      %3684 = vmatpush1.bf16.msra.mxu0 0
      %3685 = vmatprep.subr.bf16.mxu0 0
      %3686 = vmatpush1.bf16.msra.mxu0 0
      %3687 = vmatprep.subr.bf16.mxu0 0
      %3688 = vmatpush1.bf16.msra.mxu0 0
      %3689 = vmatprep.subr.bf16.mxu0 0
      %3690 = vmatpush1.bf16.msra.mxu0 0
      %3691 = vmatprep.subr.bf16.mxu0 0
      %3692 = vmatpush1.bf16.msra.mxu0 0
      %3693 = vmatprep.subr.bf16.mxu0 0
      %3694 = vmatpush1.bf16.msra.mxu0 0
      %3695 = vmatprep.subr.bf16.mxu0 0
      %3696 = vmatpush1.bf16.msra.mxu0 0
      %3697 = vmatprep.mubr.bf16.mxu0 0
      %3698 = vmatmul.mubr.bf16.gmra.mrb[0].mxu0 %v3613
      %v3699 = vpop.f32.mrb[0].mxu0
      %v3700 = vadd.f32 0.0, %v3699
      %v3701 = vpop.f32.mrb[0].mxu0
      %v3702 = vpop.f32.mrb[0].mxu0
      %v3703 = vpop.f32.mrb[0].mxu0
      %3704 = vdwg.mxu0
      %v3705 = vadd.f32 %v3581, %v3659
      %v3706 = vadd.f32 %v3582, %v3661
      %v3707 = vadd.f32 %v3583, %v3700
      %v3708 = vld [vmem:[%s6] sm:$0xf]
      %3710 = vset.pattern.permute.xlu0 0
      %3711 = vperm.xlu0 %3710, %v3708
      %v3712 = vpop.permute.xlu0 %3711
      %v3714 = vmul.f32 %v3705, %v3712
      %v3715 = vmul.f32 %v3706, %v3712
      %v3716 = vmul.f32 %v3707, %v3712
      %s3717 = scalar_lea.vmem %s6, 4
      %v3718 = vld [vmem:[%s3717] sm:$0xf]
      %3720 = vset.pattern.permute.xlu0 0
      %3721 = vperm.xlu0 %3720, %v3718
      %v3722 = vpop.permute.xlu0 %3721
      %v3724 = vadd.f32 %v3714, %v3722
      %v3725 = vadd.f32 %v3715, %v3722
      %v3726 = vadd.f32 %v3716, %v3722
      %v3727 = vmax.f32 %v3724, 0.0
      %v3728 = vmax.f32 %v3725, 0.0
      %v3729 = vmax.f32 %v3726, 0.0
      %v3732 = vcombine.low %v3727, %v3728
      %3734 = vst [vmem:[%s325] sm:$0xff] %v3732
      %vm3735 = vcmask 551936
      %3736 = vst.msk [vmem:[%s325 + $0x8] sm:$0xf] %vm3735, %v3729
      %p3737 = scmp.lt.s32.totalorder %s19, 1
      %s3738 = scalar_select %p3737, %s19, 1
      %s3739 = smul.addr %s3738, 3
      %s3740 = smul.addr %s3739, 4
      %s3741 = scalar_lea.vmem %s8, %s3740
      // Predicated region
      $region53: #{decoder_forward.5} parent=51 // pred_check
        %p3742 = pneg %p215
      $region54: #{decoder_forward.5} parent=51 // pred_check_branch
        %3744 = sbr.rel (%p3742) target = $region56
      $region55: #{decoder_forward.5} parent=51 // pred_region
        _
      $region56: #{decoder_forward.5} parent=51 // pred_fallthru
        _
    $region52: #{decoder_forward.5} parent=5 // pred_fallthru
      _
    %p3745 = scmp.le.s32.totalorder 2, %s14
    // Predicated region
    $region57: #{decoder_forward.5} parent=5 // pred_check
      %p3746 = pneg %p3745
    $region58: #{decoder_forward.5} parent=5 // pred_check_branch
      %3748 = sbr.rel (%p3746) target = $region60
    $region59: #{decoder_forward.5} parent=5 // pred_region
      %s3749 = ssub.s32 %s14, 2
      // Predicated region
      $region61: #{decoder_forward.5} parent=59 // pred_check
        %p3750 = pneg %p221
      $region62: #{decoder_forward.5} parent=59 // pred_check_branch
        %3752 = sbr.rel (%p3750) target = $region64
      $region63: #{decoder_forward.5} parent=59 // pred_region
        %p3753 = scmp.lt.s32.totalorder %s20, 1
        %s3754 = scalar_select %p3753, %s20, 1
        %s3755 = smul.addr %s3754, 3
        %s3756 = smul.addr %s3755, 4
        %s3757 = scalar_lea.vmem %s8, %s3756
      $region64: #{decoder_forward.5} parent=59 // pred_fallthru
        _
    $region60: #{decoder_forward.5} parent=5 // pred_fallthru
      _
  $region6: #{decoder_forward.5} parent=0 // loop_footer
    %s18 = sadd.s32 1, %s14
  $region7: #{decoder_forward.5} parent=0 // loop_footer_branch
    %13 = sbr.rel target = $region3
  $region8: #{decoder_forward.5} parent=0 // loop_exit
    _

</llo_original>
